<compile_context>
chip_gen: v7x
topology: tpu7x:2x2x1
jax: 0.10.0
libtpu: 0.0.40
codegen_flags: <defaults>
</compile_context>

<pallas_src>
import functools

import jax
import jax.numpy as jnp
from jax.experimental import pallas as pl
from jax.experimental.pallas import tpu as pltpu

DIM = 64
NEGATIVE_SLOPE = 1.0  # nn.LeakyReLU(True): negative_slope == True == 1.0 (identity)


def _round_up(x, m):
    return ((x + m - 1) // m) * m


def _padded_bytes(shape, dtype):
    """VMEM footprint of one block, accounting for (sublane, lane) padding."""
    s = list(shape)
    if len(s) >= 1:
        s[-1] = _round_up(s[-1], 128)
    if len(s) >= 2:
        s[-2] = _round_up(s[-2], 16)
    n = 1
    for d in s:
        n *= d
    return n * jnp.dtype(dtype).itemsize


def _vmem_limit(block_bytes):
    """2x (double buffering) over the actual blocks + headroom for temporaries."""
    return int(min(48 * 1024 * 1024, 2 * sum(block_bytes) + 24 * 1024 * 1024))


def _maybe_leaky(x, negative_slope):
    if negative_slope is not None and negative_slope != 1.0:
        return jnp.where(x >= 0.0, x, negative_slope * x)
    return x


# --------------------------- conv1: tiny patches GEMM -------------------------
def _gemm_bias_kernel(x_ref, w_ref, b_ref, o_ref, *, negative_slope):
    acc = jnp.dot(x_ref[...], w_ref[...], preferred_element_type=jnp.float32)
    acc = acc + b_ref[...]
    o_ref[...] = _maybe_leaky(acc, negative_slope)


def conv1_gemm(patches, w_mat, bias, *, tile_m=512, negative_slope=NEGATIVE_SLOPE):
    """patches (M, 25) bf16 @ w (25, 128) bf16 + b -> (M_pad, 128) f32."""
    M, K = patches.shape
    _, N = w_mat.shape
    # >= 2 grid steps when possible (v7x megacore); 16-row alignment (bf16 packing).
    tm = min(tile_m, _round_up(max(M // 2, 16), 16))
    m_pad = _round_up(M, tm)
    if m_pad != M:  # only a handful of 25-wide rows -- negligible
        patches = jnp.pad(patches, ((0, m_pad - M), (0, 0)))
    grid = (m_pad // tm,)

    vmem = _vmem_limit([
        _padded_bytes((tm, K), jnp.bfloat16),
        _padded_bytes((K, N), jnp.bfloat16),
        _padded_bytes((1, N), jnp.float32),
        _padded_bytes((tm, N), jnp.float32),
    ])
    return pl.pallas_call(
        functools.partial(_gemm_bias_kernel, negative_slope=negative_slope),
        out_shape=jax.ShapeDtypeStruct((m_pad, N), jnp.float32),
        grid=grid,
        in_specs=[
            pl.BlockSpec((tm, K), lambda i: (i, 0)),   # M-tiled patches
            pl.BlockSpec((K, N), lambda i: (0, 0)),    # resident weights
            pl.BlockSpec((1, N), lambda i: (0, 0)),    # resident bias
        ],
        out_specs=pl.BlockSpec((tm, N), lambda i: (i, 0)),
        compiler_params=pltpu.CompilerParams(
            dimension_semantics=("parallel",), vmem_limit_bytes=vmem),
        cost_estimate=pl.CostEstimate(
            flops=2 * m_pad * K * N, transcendentals=0,
            bytes_accessed=m_pad * K * 2 + K * N * 2 + m_pad * N * 4),
    )(patches, w_mat, bias)


# ------------------- conv2: fused-im2col (25 taps in-kernel) ------------------
def _conv2_kernel(x_ref, w_ref, b_ref, o_ref, *, tb, negative_slope):
    # x_ref: (tb, 2, 2, 9, 10, 64) f32   (H/W parity split, spatially padded)
    # w_ref: (25, 64, 128) bf16 ; b_ref: (1, 128) f32
    # o_ref: (tb*56, 128) f32 ; row = b*56 + ho*8 + wo  (ho in [0,7), wo in [0,8))
    acc = None
    for t in range(25):
        i, j = t // 5, t % 5
        sl = x_ref[:, i % 2, j % 2, i // 2:i // 2 + 7, j // 2:j // 2 + 8, :]
        lhs = sl.reshape(tb * 56, 64).astype(jnp.bfloat16)   # layout-preserving
        d = jnp.dot(lhs, w_ref[t], preferred_element_type=jnp.float32)
        acc = d if acc is None else acc + d
    acc = acc + b_ref[...]
    o_ref[...] = _maybe_leaky(acc, negative_slope)


def conv2_pallas(x2, w2t, b2, *, tb, negative_slope=NEGATIVE_SLOPE):
    B = x2.shape[0]
    grid = (B // tb,)
    vmem = _vmem_limit([
        _padded_bytes(x2.shape[1:], jnp.float32) * tb,
        _padded_bytes((25, 64, 128), jnp.bfloat16),
        _padded_bytes((1, 128), jnp.float32),
        _padded_bytes((tb * 56, 128), jnp.float32),
    ])
    return pl.pallas_call(
        functools.partial(_conv2_kernel, tb=tb, negative_slope=negative_slope),
        out_shape=jax.ShapeDtypeStruct((B * 56, 128), jnp.float32),
        grid=grid,
        in_specs=[
            pl.BlockSpec((tb, 2, 2, 9, 10, 64), lambda b: (b, 0, 0, 0, 0, 0)),
            pl.BlockSpec((25, 64, 128), lambda b: (0, 0, 0)),
            pl.BlockSpec((1, 128), lambda b: (0, 0)),
        ],
        out_specs=pl.BlockSpec((tb * 56, 128), lambda b: (b, 0)),
        compiler_params=pltpu.CompilerParams(
            dimension_semantics=("parallel",), vmem_limit_bytes=vmem),
        cost_estimate=pl.CostEstimate(
            flops=2 * B * 56 * 64 * 128 * 25, transcendentals=0,
            bytes_accessed=B * (92160 * 4 + 56 * 128 * 4) + 25 * 64 * 128 * 2),
    )(x2, w2t, b2)


# --------------- conv3 + Linear(4096,1) fused in a single kernel --------------
def _conv3_linear_kernel(x_ref, w_ref, b_ref, wl_ref, bl_ref, o_ref, *, tb,
                         negative_slope):
    # x_ref : (tb, 2, 2, 6, 10, 128) f32
    # w_ref : (25, 128, 256) bf16 ; b_ref: (1, 256) f32
    # wl_ref: (32, 256) f32  (linear weight reordered to (ho, wo_pad, c), 0 at wo>=4)
    # bl_ref: (1, 1) f32
    # o_ref : (1, 8, 1) f32  (rows [0, tb) hold the per-image scalars)
    acc = None
    for t in range(25):
        i, j = t // 5, t % 5
        sl = x_ref[:, i % 2, j % 2, i // 2:i // 2 + 4, j // 2:j // 2 + 8, :]
        lhs = sl.reshape(tb * 32, 128).astype(jnp.bfloat16)  # layout-preserving
        d = jnp.dot(lhs, w_ref[t], preferred_element_type=jnp.float32)
        acc = d if acc is None else acc + d
    acc = _maybe_leaky(acc + b_ref[...], negative_slope)      # (tb*32, 256)
    # Fused Linear(4*4*4*DIM, 1): weighted sum, two-stage reduction.
    prod = acc.reshape(tb, 32, 256) * wl_ref[...]
    s = jnp.sum(prod, axis=1, keepdims=True)                  # (tb, 1, 256)
    s = jnp.sum(s, axis=2, keepdims=True)                     # (tb, 1, 1)
    y = s[:, 0, :] + bl_ref[...]                              # (tb, 1)
    o_ref[0, 0:tb, :] = y


def conv3_linear_pallas(x3, w3t, b3, wl, bl, *, tb, negative_slope=NEGATIVE_SLOPE):
    B = x3.shape[0]
    grid = (B // tb,)
    vmem = _vmem_limit([
        _padded_bytes(x3.shape[1:], jnp.float32) * tb,
        _padded_bytes((25, 128, 256), jnp.bfloat16),
        _padded_bytes((1, 256), jnp.float32),
        _padded_bytes((32, 256), jnp.float32),
        _padded_bytes((tb * 32, 256), jnp.float32),
    ])
    return pl.pallas_call(
        functools.partial(_conv3_linear_kernel, tb=tb,
                          negative_slope=negative_slope),
        out_shape=jax.ShapeDtypeStruct((B // tb, 8, 1), jnp.float32),
        grid=grid,
        in_specs=[
            pl.BlockSpec((tb, 2, 2, 6, 10, 128), lambda b: (b, 0, 0, 0, 0, 0)),
            pl.BlockSpec((25, 128, 256), lambda b: (0, 0, 0)),
            pl.BlockSpec((1, 256), lambda b: (0, 0)),
            pl.BlockSpec((32, 256), lambda b: (0, 0)),
            pl.BlockSpec((1, 1), lambda b: (0, 0)),
        ],
        out_specs=pl.BlockSpec((1, 8, 1), lambda b: (b, 0, 0)),
        compiler_params=pltpu.CompilerParams(
            dimension_semantics=("parallel",), vmem_limit_bytes=vmem),
        cost_estimate=pl.CostEstimate(
            flops=2 * B * 32 * 128 * 256 * 25 + 2 * B * 32 * 256,
            transcendentals=0,
            bytes_accessed=B * (122880 * 4 + 8 * 4) + 25 * 128 * 256 * 2),
    )(x3, w3t, b3, wl, bl)


# ------------------------------ XLA glue (tiny) --------------------------------
def _im2col_conv1(x):
    """x: (B, 28, 28, 1) f32 -> (B*196, 25) bf16 patches (tap-major features)."""
    B = x.shape[0]
    xp = jnp.pad(x, ((0, 0), (2, 2), (2, 2), (0, 0)))
    cols = []
    for i in range(5):
        for j in range(5):
            cols.append(xp[:, i:i + 28:2, j:j + 28:2, :])
    p = jnp.stack(cols, axis=3)                     # (B, 14, 14, 25, 1)
    return p.reshape(B * 196, 25).astype(jnp.bfloat16)


def _parity_split(a, pad_hw):
    """Pad NHWC activation and split H/W into (parity, half-resolution)."""
    B, _, _, C = a.shape
    ap = jnp.pad(a, ((0, 0), pad_hw[0], pad_hw[1], (0, 0)))
    Hp, Wp = ap.shape[1], ap.shape[2]
    a6 = ap.reshape(B, Hp // 2, 2, Wp // 2, 2, C)
    return a6.transpose(0, 2, 4, 1, 3, 5)           # (B, hr, wr, Hq, Wq, C)


# ------------------------------ model ------------------------------------------
def init_params(key):
    """Deterministic PyTorch-style uniform init; shapes from Discriminator.__init__."""
    ks = jax.random.split(key, 8)

    def u(k, shape, fan_in):
        bound = 1.0 / jnp.sqrt(jnp.float32(fan_in))
        return jax.random.uniform(k, shape, jnp.float32, -bound, bound)

    return {
        "w1": u(ks[0], (DIM, 1, 5, 5), 1 * 25),
        "b1": u(ks[1], (DIM,), 1 * 25),
        "w2": u(ks[2], (2 * DIM, DIM, 5, 5), DIM * 25),
        "b2": u(ks[3], (2 * DIM,), DIM * 25),
        "w3": u(ks[4], (4 * DIM, 2 * DIM, 5, 5), 2 * DIM * 25),
        "b3": u(ks[5], (4 * DIM,), 2 * DIM * 25),
        "wl": u(ks[6], (1, 4 * 4 * 4 * DIM), 4 * 4 * 4 * DIM),
        "bl": u(ks[7], (1,), 4 * 4 * 4 * DIM),
    }


def discriminator_forward(params, x):
    # input.view(-1, 1, 28, 28); with C == 1 the NHWC view is the same data.
    x = x.reshape(-1, 28, 28, 1).astype(jnp.float32)
    B = x.shape[0]
    tb = 8 if B >= 16 else max(1, B // 2)           # >= 2 parallel grid steps for B >= 2
    B_pad = _round_up(B, tb)
    if B_pad != B:
        x = jnp.pad(x, ((0, B_pad - B), (0, 0), (0, 0), (0, 0)))

    # ---- Conv2d(1, 64, 5, s2, p2): tiny im2col (25 features) + GEMM kernel.
    patches = _im2col_conv1(x)                                      # (B_pad*196, 25)
    w1m = params["w1"].transpose(2, 3, 1, 0).reshape(25, DIM)
    w1m = jnp.pad(w1m, ((0, 0), (0, 128 - DIM))).astype(jnp.bfloat16)   # lane-dense out
    b1 = jnp.pad(params["b1"], (0, 128 - DIM)).reshape(1, 128).astype(jnp.float32)
    out1 = conv1_gemm(patches, w1m, b1)                             # (M1_pad, 128) f32
    a1 = out1[:B_pad * 196, :DIM].reshape(B_pad, 14, 14, DIM)       # drop pad channels

    # ---- Conv2d(64, 128, 5, s2, p2): fused-im2col kernel (output W padded 7->8).
    x2 = _parity_split(a1, ((2, 2), (2, 4)))                        # (B_pad,2,2,9,10,64)
    w2t = params["w2"].transpose(2, 3, 1, 0).reshape(25, DIM, 2 * DIM).astype(jnp.bfloat16)
    b2 = params["b2"].reshape(1, 2 * DIM).astype(jnp.float32)
    out2 = conv2_pallas(x2, w2t, b2, tb=tb)                         # (B_pad*56, 128) f32
    a2 = out2.reshape(B_pad, 7, 8, 2 * DIM)[:, :, :7, :]            # drop padded column

    # ---- Conv2d(128, 256, 5, s2, p2) + Linear(4096, 1) fused in one kernel.
    x3 = _parity_split(a2, ((2, 3), (2, 11)))                       # (B_pad,2,2,6,10,128)
    w3t = params["w3"].transpose(2, 3, 1, 0).reshape(25, 2 * DIM, 4 * DIM).astype(jnp.bfloat16)
    b3 = params["b3"].reshape(1, 4 * DIM).astype(jnp.float32)
    # torch flattens conv3 output as (c, h, w); reorder the Linear weight once to
    # our (h, w_padded, c) row order, zeros on the padded w >= 4 columns.
    wl = params["wl"].reshape(4 * DIM, 4, 4).transpose(1, 2, 0)     # (4, 4, 256)
    wl = jnp.pad(wl, ((0, 0), (0, 4), (0, 0))).reshape(32, 4 * DIM).astype(jnp.float32)
    bl = params["bl"].reshape(1, 1).astype(jnp.float32)
    yo = conv3_linear_pallas(x3, w3t, b3, wl, bl, tb=tb)            # (B_pad//tb, 8, 1)

    y = yo[:, :tb, 0].reshape(-1)[:B]                               # (B,)
    return y


if __name__ == "__main__":
    key = jax.random.PRNGKey(0)
    kp, kx = jax.random.split(key)
    params = init_params(kp)
    x = jax.random.normal(kx, (2, 784), dtype=jnp.float32)          # 2 MNIST-shaped images

    y = jax.jit(discriminator_forward)(params, x)
    jax.block_until_ready(y)
    assert y.shape == (2,) and y.dtype == jnp.float32
    print("KERNEL_OK")
</pallas_src>

<mosaic_0001>
module attributes {stable_mosaic.version = 11 : i64} {
  func.func @_gemm_bias_kernel(%arg0: i32, %arg1: memref<208x25xbf16, #tpu.memory_space<vmem>>, %arg2: memref<25x128xbf16, #tpu.memory_space<vmem>>, %arg3: memref<1x128xf32, #tpu.memory_space<vmem>>, %arg4: memref<208x128xf32, #tpu.memory_space<vmem>>) attributes {dimension_semantics = [#tpu.dimension_semantics<parallel>], iteration_bounds = array<i64: 2>, scalar_prefetch = 0 : i64, scratch_operands = 0 : i64, tpu.core_type = #tpu.core_type<tc>, window_params = [{transform_indices = @transform_0, window_bounds = array<i64: 208, 25>}, {pipeline_mode = #tpu.pipeline_mode<synchronous>, transform_indices = @transform_1, window_bounds = array<i64: 25, 128>}, {pipeline_mode = #tpu.pipeline_mode<synchronous>, transform_indices = @transform_2, window_bounds = array<i64: 1, 128>}, {transform_indices = @transform_3, window_bounds = array<i64: 208, 128>}]} {
    %c0 = arith.constant 0 : index
    %c0_0 = arith.constant 0 : index
    %0 = vector.load %arg1[%c0, %c0_0] : memref<208x25xbf16, #tpu.memory_space<vmem>>, vector<208x25xbf16>
    %c0_1 = arith.constant 0 : index
    %c0_2 = arith.constant 0 : index
    %1 = vector.load %arg2[%c0_1, %c0_2] : memref<25x128xbf16, #tpu.memory_space<vmem>>, vector<25x128xbf16>
    %cst = arith.constant dense<0.000000e+00> : vector<208x128xf32>
    %2 = tpu.matmul %0, %1, %cst {dimension_numbers = #tpu.dot_dimension_numbers<[1], [0], [0], [1], [0, 0, 1, 1], [], []>} : vector<208x25xbf16>, vector<25x128xbf16>, vector<208x128xf32> -> vector<208x128xf32>
    %c0_3 = arith.constant 0 : index
    %c0_4 = arith.constant 0 : index
    %3 = vector.load %arg3[%c0_3, %c0_4] : memref<1x128xf32, #tpu.memory_space<vmem>>, vector<1x128xf32>
    %4 = vector.broadcast %3 : vector<1x128xf32> to vector<208x128xf32>
    %5 = arith.addf %2, %4 : vector<208x128xf32>
    %c0_5 = arith.constant 0 : index
    %c0_6 = arith.constant 0 : index
    %6 = vector.load %arg4[%c0_5, %c0_6] : memref<208x128xf32, #tpu.memory_space<vmem>>, vector<208x128xf32>
    tpu.vector_store %arg4[%c0_5, %c0_6], %5 {strides = array<i32>} : memref<208x128xf32, #tpu.memory_space<vmem>>, vector<208x128xf32>,
    return
  }
  func.func @transform_0(%arg0: i32) -> (i32, i32) {
    %c0_i32 = arith.constant 0 : i32
    %c0_i32_0 = arith.constant 0 : i32
    return %arg0, %c0_i32 : i32, i32
  }
  func.func @transform_1(%arg0: i32) -> (i32, i32) {
    %c0_i32 = arith.constant 0 : i32
    %c0_i32_0 = arith.constant 0 : i32
    %c0_i32_1 = arith.constant 0 : i32
    return %c0_i32, %c0_i32_0 : i32, i32
  }
  func.func @transform_2(%arg0: i32) -> (i32, i32) {
    %c0_i32 = arith.constant 0 : i32
    %c0_i32_0 = arith.constant 0 : i32
    %c0_i32_1 = arith.constant 0 : i32
    return %c0_i32, %c0_i32_0 : i32, i32
  }
  func.func @transform_3(%arg0: i32) -> (i32, i32) {
    %c0_i32 = arith.constant 0 : i32
    %c0_i32_0 = arith.constant 0 : i32
    return %arg0, %c0_i32 : i32, i32
  }
}

module attributes {stable_mosaic.version = 11 : i64} {
  func.func @_conv2_kernel(%arg0: i32, %arg1: memref<1x2x2x9x10x64xf32, #tpu.memory_space<vmem>>, %arg2: memref<25x64x128xbf16, #tpu.memory_space<vmem>>, %arg3: memref<1x128xf32, #tpu.memory_space<vmem>>, %arg4: memref<56x128xf32, #tpu.memory_space<vmem>>) attributes {dimension_semantics = [#tpu.dimension_semantics<parallel>], iteration_bounds = array<i64: 2>, scalar_prefetch = 0 : i64, scratch_operands = 0 : i64, tpu.core_type = #tpu.core_type<tc>, window_params = [{transform_indices = @transform_0, window_bounds = array<i64: 1, 2, 2, 9, 10, 64>}, {pipeline_mode = #tpu.pipeline_mode<synchronous>, transform_indices = @transform_1, window_bounds = array<i64: 25, 64, 128>}, {pipeline_mode = #tpu.pipeline_mode<synchronous>, transform_indices = @transform_2, window_bounds = array<i64: 1, 128>}, {transform_indices = @transform_3, window_bounds = array<i64: 56, 128>}]} {
    %c0 = arith.constant 0 : index
    %c0_0 = arith.constant 0 : index
    %c0_1 = arith.constant 0 : index
    %c0_2 = arith.constant 0 : index
    %c0_3 = arith.constant 0 : index
    %c0_4 = arith.constant 0 : index
    %0 = vector.load %arg1[%c0, %c0_0, %c0_1, %c0_2, %c0_3, %c0_4] : memref<1x2x2x9x10x64xf32, #tpu.memory_space<vmem>>, vector<1x1x1x7x8x64xf32>
    %1 = vector.shape_cast %0 : vector<1x1x1x7x8x64xf32> to vector<1x7x8x64xf32>
    %2 = vector.shape_cast %1 : vector<1x7x8x64xf32> to vector<56x64xf32>
    %3 = arith.truncf %2 : vector<56x64xf32> to vector<56x64xbf16>
    %c0_5 = arith.constant 0 : index
    %c0_6 = arith.constant 0 : index
    %c0_7 = arith.constant 0 : index
    %4 = vector.load %arg2[%c0_5, %c0_6, %c0_7] : memref<25x64x128xbf16, #tpu.memory_space<vmem>>, vector<1x64x128xbf16>
    %5 = vector.shape_cast %4 : vector<1x64x128xbf16> to vector<64x128xbf16>
    %cst = arith.constant dense<0.000000e+00> : vector<56x128xf32>
    %6 = tpu.matmul %3, %5, %cst {dimension_numbers = #tpu.dot_dimension_numbers<[1], [0], [0], [1], [0, 0, 1, 1], [], []>} : vector<56x64xbf16>, vector<64x128xbf16>, vector<56x128xf32> -> vector<56x128xf32>
    %c0_8 = arith.constant 0 : index
    %c0_9 = arith.constant 0 : index
    %c1 = arith.constant 1 : index
    %c0_10 = arith.constant 0 : index
    %c0_11 = arith.constant 0 : index
    %c0_12 = arith.constant 0 : index
    %7 = vector.load %arg1[%c0_8, %c0_9, %c1, %c0_10, %c0_11, %c0_12] : memref<1x2x2x9x10x64xf32, #tpu.memory_space<vmem>>, vector<1x1x1x7x8x64xf32>
    %8 = vector.shape_cast %7 : vector<1x1x1x7x8x64xf32> to vector<1x7x8x64xf32>
    %9 = vector.shape_cast %8 : vector<1x7x8x64xf32> to vector<56x64xf32>
    %10 = arith.truncf %9 : vector<56x64xf32> to vector<56x64xbf16>
    %c1_13 = arith.constant 1 : index
    %c0_14 = arith.constant 0 : index
    %c0_15 = arith.constant 0 : index
    %11 = vector.load %arg2[%c1_13, %c0_14, %c0_15] : memref<25x64x128xbf16, #tpu.memory_space<vmem>>, vector<1x64x128xbf16>
    %12 = vector.shape_cast %11 : vector<1x64x128xbf16> to vector<64x128xbf16>
    %cst_16 = arith.constant dense<0.000000e+00> : vector<56x128xf32>
    %13 = tpu.matmul %10, %12, %cst_16 {dimension_numbers = #tpu.dot_dimension_numbers<[1], [0], [0], [1], [0, 0, 1, 1], [], []>} : vector<56x64xbf16>, vector<64x128xbf16>, vector<56x128xf32> -> vector<56x128xf32>
    %14 = arith.addf %6, %13 : vector<56x128xf32>
    %c0_17 = arith.constant 0 : index
    %c0_18 = arith.constant 0 : index
    %c0_19 = arith.constant 0 : index
    %c0_20 = arith.constant 0 : index
    %c1_21 = arith.constant 1 : index
    %c0_22 = arith.constant 0 : index
    %15 = vector.load %arg1[%c0_17, %c0_18, %c0_19, %c0_20, %c1_21, %c0_22] : memref<1x2x2x9x10x64xf32, #tpu.memory_space<vmem>>, vector<1x1x1x7x8x64xf32>
    %16 = vector.shape_cast %15 : vector<1x1x1x7x8x64xf32> to vector<1x7x8x64xf32>
    %17 = vector.shape_cast %16 : vector<1x7x8x64xf32> to vector<56x64xf32>
    %18 = arith.truncf %17 : vector<56x64xf32> to vector<56x64xbf16>
    %c2 = arith.constant 2 : index
    %c0_23 = arith.constant 0 : index
    %c0_24 = arith.constant 0 : index
    %19 = vector.load %arg2[%c2, %c0_23, %c0_24] : memref<25x64x128xbf16, #tpu.memory_space<vmem>>, vector<1x64x128xbf16>
    %20 = vector.shape_cast %19 : vector<1x64x128xbf16> to vector<64x128xbf16>
    %cst_25 = arith.constant dense<0.000000e+00> : vector<56x128xf32>
    %21 = tpu.matmul %18, %20, %cst_25 {dimension_numbers = #tpu.dot_dimension_numbers<[1], [0], [0], [1], [0, 0, 1, 1], [], []>} : vector<56x64xbf16>, vector<64x128xbf16>, vector<56x128xf32> -> vector<56x128xf32>
    %22 = arith.addf %14, %21 : vector<56x128xf32>
    %c0_26 = arith.constant 0 : index
    %c0_27 = arith.constant 0 : index
    %c1_28 = arith.constant 1 : index
    %c0_29 = arith.constant 0 : index
    %c1_30 = arith.constant 1 : index
    %c0_31 = arith.constant 0 : index
    %23 = vector.load %arg1[%c0_26, %c0_27, %c1_28, %c0_29, %c1_30, %c0_31] : memref<1x2x2x9x10x64xf32, #tpu.memory_space<vmem>>, vector<1x1x1x7x8x64xf32>
    %24 = vector.shape_cast %23 : vector<1x1x1x7x8x64xf32> to vector<1x7x8x64xf32>
    %25 = vector.shape_cast %24 : vector<1x7x8x64xf32> to vector<56x64xf32>
    %26 = arith.truncf %25 : vector<56x64xf32> to vector<56x64xbf16>
    %c3 = arith.constant 3 : index
    %c0_32 = arith.constant 0 : index
    %c0_33 = arith.constant 0 : index
    %27 = vector.load %arg2[%c3, %c0_32, %c0_33] : memref<25x64x128xbf16, #tpu.memory_space<vmem>>, vector<1x64x128xbf16>
    %28 = vector.shape_cast %27 : vector<1x64x128xbf16> to vector<64x128xbf16>
    %cst_34 = arith.constant dense<0.000000e+00> : vector<56x128xf32>
    %29 = tpu.matmul %26, %28, %cst_34 {dimension_numbers = #tpu.dot_dimension_numbers<[1], [0], [0], [1], [0, 0, 1, 1], [], []>} : vector<56x64xbf16>, vector<64x128xbf16>, vector<56x128xf32> -> vector<56x128xf32>
    %30 = arith.addf %22, %29 : vector<56x128xf32>
    %c0_35 = arith.constant 0 : index
    %c0_36 = arith.constant 0 : index
    %c0_37 = arith.constant 0 : index
    %c0_38 = arith.constant 0 : index
    %c2_39 = arith.constant 2 : index
    %c0_40 = arith.constant 0 : index
    %31 = vector.load %arg1[%c0_35, %c0_36, %c0_37, %c0_38, %c2_39, %c0_40] : memref<1x2x2x9x10x64xf32, #tpu.memory_space<vmem>>, vector<1x1x1x7x8x64xf32>
    %32 = vector.shape_cast %31 : vector<1x1x1x7x8x64xf32> to vector<1x7x8x64xf32>
    %33 = vector.shape_cast %32 : vector<1x7x8x64xf32> to vector<56x64xf32>
    %34 = arith.truncf %33 : vector<56x64xf32> to vector<56x64xbf16>
    %c4 = arith.constant 4 : index
    %c0_41 = arith.constant 0 : index
    %c0_42 = arith.constant 0 : index
    %35 = vector.load %arg2[%c4, %c0_41, %c0_42] : memref<25x64x128xbf16, #tpu.memory_space<vmem>>, vector<1x64x128xbf16>
    %36 = vector.shape_cast %35 : vector<1x64x128xbf16> to vector<64x128xbf16>
    %cst_43 = arith.constant dense<0.000000e+00> : vector<56x128xf32>
    %37 = tpu.matmul %34, %36, %cst_43 {dimension_numbers = #tpu.dot_dimension_numbers<[1], [0], [0], [1], [0, 0, 1, 1], [], []>} : vector<56x64xbf16>, vector<64x128xbf16>, vector<56x128xf32> -> vector<56x128xf32>
    %38 = arith.addf %30, %37 : vector<56x128xf32>
    %c0_44 = arith.constant 0 : index
    %c1_45 = arith.constant 1 : index
    %c0_46 = arith.constant 0 : index
    %c0_47 = arith.constant 0 : index
    %c0_48 = arith.constant 0 : index
    %c0_49 = arith.constant 0 : index
    %39 = vector.load %arg1[%c0_44, %c1_45, %c0_46, %c0_47, %c0_48, %c0_49] : memref<1x2x2x9x10x64xf32, #tpu.memory_space<vmem>>, vector<1x1x1x7x8x64xf32>
    %40 = vector.shape_cast %39 : vector<1x1x1x7x8x64xf32> to vector<1x7x8x64xf32>
    %41 = vector.shape_cast %40 : vector<1x7x8x64xf32> to vector<56x64xf32>
    %42 = arith.truncf %41 : vector<56x64xf32> to vector<56x64xbf16>
    %c5 = arith.constant 5 : index
    %c0_50 = arith.constant 0 : index
    %c0_51 = arith.constant 0 : index
    %43 = vector.load %arg2[%c5, %c0_50, %c0_51] : memref<25x64x128xbf16, #tpu.memory_space<vmem>>, vector<1x64x128xbf16>
    %44 = vector.shape_cast %43 : vector<1x64x128xbf16> to vector<64x128xbf16>
    %cst_52 = arith.constant dense<0.000000e+00> : vector<56x128xf32>
    %45 = tpu.matmul %42, %44, %cst_52 {dimension_numbers = #tpu.dot_dimension_numbers<[1], [0], [0], [1], [0, 0, 1, 1], [], []>} : vector<56x64xbf16>, vector<64x128xbf16>, vector<56x128xf32> -> vector<56x128xf32>
    %46 = arith.addf %38, %45 : vector<56x128xf32>
    %c0_53 = arith.constant 0 : index
    %c1_54 = arith.constant 1 : index
    %c1_55 = arith.constant 1 : index
    %c0_56 = arith.constant 0 : index
    %c0_57 = arith.constant 0 : index
    %c0_58 = arith.constant 0 : index
    %47 = vector.load %arg1[%c0_53, %c1_54, %c1_55, %c0_56, %c0_57, %c0_58] : memref<1x2x2x9x10x64xf32, #tpu.memory_space<vmem>>, vector<1x1x1x7x8x64xf32>
    %48 = vector.shape_cast %47 : vector<1x1x1x7x8x64xf32> to vector<1x7x8x64xf32>
    %49 = vector.shape_cast %48 : vector<1x7x8x64xf32> to vector<56x64xf32>
    %50 = arith.truncf %49 : vector<56x64xf32> to vector<56x64xbf16>
    %c6 = arith.constant 6 : index
    %c0_59 = arith.constant 0 : index
    %c0_60 = arith.constant 0 : index
    %51 = vector.load %arg2[%c6, %c0_59, %c0_60] : memref<25x64x128xbf16, #tpu.memory_space<vmem>>, vector<1x64x128xbf16>
    %52 = vector.shape_cast %51 : vector<1x64x128xbf16> to vector<64x128xbf16>
    %cst_61 = arith.constant dense<0.000000e+00> : vector<56x128xf32>
    %53 = tpu.matmul %50, %52, %cst_61 {dimension_numbers = #tpu.dot_dimension_numbers<[1], [0], [0], [1], [0, 0, 1, 1], [], []>} : vector<56x64xbf16>, vector<64x128xbf16>, vector<56x128xf32> -> vector<56x128xf32>
    %54 = arith.addf %46, %53 : vector<56x128xf32>
    %c0_62 = arith.constant 0 : index
    %c1_63 = arith.constant 1 : index
    %c0_64 = arith.constant 0 : index
    %c0_65 = arith.constant 0 : index
    %c1_66 = arith.constant 1 : index
    %c0_67 = arith.constant 0 : index
    %55 = vector.load %arg1[%c0_62, %c1_63, %c0_64, %c0_65, %c1_66, %c0_67] : memref<1x2x2x9x10x64xf32, #tpu.memory_space<vmem>>, vector<1x1x1x7x8x64xf32>
    %56 = vector.shape_cast %55 : vector<1x1x1x7x8x64xf32> to vector<1x7x8x64xf32>
    %57 = vector.shape_cast %56 : vector<1x7x8x64xf32> to vector<56x64xf32>
    %58 = arith.truncf %57 : vector<56x64xf32> to vector<56x64xbf16>
    %c7 = arith.constant 7 : index
    %c0_68 = arith.constant 0 : index
    %c0_69 = arith.constant 0 : index
    %59 = vector.load %arg2[%c7, %c0_68, %c0_69] : memref<25x64x128xbf16, #tpu.memory_space<vmem>>, vector<1x64x128xbf16>
    %60 = vector.shape_cast %59 : vector<1x64x128xbf16> to vector<64x128xbf16>
    %cst_70 = arith.constant dense<0.000000e+00> : vector<56x128xf32>
    %61 = tpu.matmul %58, %60, %cst_70 {dimension_numbers = #tpu.dot_dimension_numbers<[1], [0], [0], [1], [0, 0, 1, 1], [], []>} : vector<56x64xbf16>, vector<64x128xbf16>, vector<56x128xf32> -> vector<56x128xf32>
    %62 = arith.addf %54, %61 : vector<56x128xf32>
    %c0_71 = arith.constant 0 : index
    %c1_72 = arith.constant 1 : index
    %c1_73 = arith.constant 1 : index
    %c0_74 = arith.constant 0 : index
    %c1_75 = arith.constant 1 : index
    %c0_76 = arith.constant 0 : index
    %63 = vector.load %arg1[%c0_71, %c1_72, %c1_73, %c0_74, %c1_75, %c0_76] : memref<1x2x2x9x10x64xf32, #tpu.memory_space<vmem>>, vector<1x1x1x7x8x64xf32>
    %64 = vector.shape_cast %63 : vector<1x1x1x7x8x64xf32> to vector<1x7x8x64xf32>
    %65 = vector.shape_cast %64 : vector<1x7x8x64xf32> to vector<56x64xf32>
    %66 = arith.truncf %65 : vector<56x64xf32> to vector<56x64xbf16>
    %c8 = arith.constant 8 : index
    %c0_77 = arith.constant 0 : index
    %c0_78 = arith.constant 0 : index
    %67 = vector.load %arg2[%c8, %c0_77, %c0_78] : memref<25x64x128xbf16, #tpu.memory_space<vmem>>, vector<1x64x128xbf16>
    %68 = vector.shape_cast %67 : vector<1x64x128xbf16> to vector<64x128xbf16>
    %cst_79 = arith.constant dense<0.000000e+00> : vector<56x128xf32>
    %69 = tpu.matmul %66, %68, %cst_79 {dimension_numbers = #tpu.dot_dimension_numbers<[1], [0], [0], [1], [0, 0, 1, 1], [], []>} : vector<56x64xbf16>, vector<64x128xbf16>, vector<56x128xf32> -> vector<56x128xf32>
    %70 = arith.addf %62, %69 : vector<56x128xf32>
    %c0_80 = arith.constant 0 : index
    %c1_81 = arith.constant 1 : index
    %c0_82 = arith.constant 0 : index
    %c0_83 = arith.constant 0 : index
    %c2_84 = arith.constant 2 : index
    %c0_85 = arith.constant 0 : index
    %71 = vector.load %arg1[%c0_80, %c1_81, %c0_82, %c0_83, %c2_84, %c0_85] : memref<1x2x2x9x10x64xf32, #tpu.memory_space<vmem>>, vector<1x1x1x7x8x64xf32>
    %72 = vector.shape_cast %71 : vector<1x1x1x7x8x64xf32> to vector<1x7x8x64xf32>
    %73 = vector.shape_cast %72 : vector<1x7x8x64xf32> to vector<56x64xf32>
    %74 = arith.truncf %73 : vector<56x64xf32> to vector<56x64xbf16>
    %c9 = arith.constant 9 : index
    %c0_86 = arith.constant 0 : index
    %c0_87 = arith.constant 0 : index
    %75 = vector.load %arg2[%c9, %c0_86, %c0_87] : memref<25x64x128xbf16, #tpu.memory_space<vmem>>, vector<1x64x128xbf16>
    %76 = vector.shape_cast %75 : vector<1x64x128xbf16> to vector<64x128xbf16>
    %cst_88 = arith.constant dense<0.000000e+00> : vector<56x128xf32>
    %77 = tpu.matmul %74, %76, %cst_88 {dimension_numbers = #tpu.dot_dimension_numbers<[1], [0], [0], [1], [0, 0, 1, 1], [], []>} : vector<56x64xbf16>, vector<64x128xbf16>, vector<56x128xf32> -> vector<56x128xf32>
    %78 = arith.addf %70, %77 : vector<56x128xf32>
    %c0_89 = arith.constant 0 : index
    %c0_90 = arith.constant 0 : index
    %c0_91 = arith.constant 0 : index
    %c1_92 = arith.constant 1 : index
    %c0_93 = arith.constant 0 : index
    %c0_94 = arith.constant 0 : index
    %79 = vector.load %arg1[%c0_89, %c0_90, %c0_91, %c1_92, %c0_93, %c0_94] : memref<1x2x2x9x10x64xf32, #tpu.memory_space<vmem>>, vector<1x1x1x7x8x64xf32>
    %80 = vector.shape_cast %79 : vector<1x1x1x7x8x64xf32> to vector<1x7x8x64xf32>
    %81 = vector.shape_cast %80 : vector<1x7x8x64xf32> to vector<56x64xf32>
    %82 = arith.truncf %81 : vector<56x64xf32> to vector<56x64xbf16>
    %c10 = arith.constant 10 : index
    %c0_95 = arith.constant 0 : index
    %c0_96 = arith.constant 0 : index
    %83 = vector.load %arg2[%c10, %c0_95, %c0_96] : memref<25x64x128xbf16, #tpu.memory_space<vmem>>, vector<1x64x128xbf16>
    %84 = vector.shape_cast %83 : vector<1x64x128xbf16> to vector<64x128xbf16>
    %cst_97 = arith.constant dense<0.000000e+00> : vector<56x128xf32>
    %85 = tpu.matmul %82, %84, %cst_97 {dimension_numbers = #tpu.dot_dimension_numbers<[1], [0], [0], [1], [0, 0, 1, 1], [], []>} : vector<56x64xbf16>, vector<64x128xbf16>, vector<56x128xf32> -> vector<56x128xf32>
    %86 = arith.addf %78, %85 : vector<56x128xf32>
    %c0_98 = arith.constant 0 : index
    %c0_99 = arith.constant 0 : index
    %c1_100 = arith.constant 1 : index
    %c1_101 = arith.constant 1 : index
    %c0_102 = arith.constant 0 : index
    %c0_103 = arith.constant 0 : index
    %87 = vector.load %arg1[%c0_98, %c0_99, %c1_100, %c1_101, %c0_102, %c0_103] : memref<1x2x2x9x10x64xf32, #tpu.memory_space<vmem>>, vector<1x1x1x7x8x64xf32>
    %88 = vector.shape_cast %87 : vector<1x1x1x7x8x64xf32> to vector<1x7x8x64xf32>
    %89 = vector.shape_cast %88 : vector<1x7x8x64xf32> to vector<56x64xf32>
    %90 = arith.truncf %89 : vector<56x64xf32> to vector<56x64xbf16>
    %c11 = arith.constant 11 : index
    %c0_104 = arith.constant 0 : index
    %c0_105 = arith.constant 0 : index
    %91 = vector.load %arg2[%c11, %c0_104, %c0_105] : memref<25x64x128xbf16, #tpu.memory_space<vmem>>, vector<1x64x128xbf16>
    %92 = vector.shape_cast %91 : vector<1x64x128xbf16> to vector<64x128xbf16>
    %cst_106 = arith.constant dense<0.000000e+00> : vector<56x128xf32>
    %93 = tpu.matmul %90, %92, %cst_106 {dimension_numbers = #tpu.dot_dimension_numbers<[1], [0], [0], [1], [0, 0, 1, 1], [], []>} : vector<56x64xbf16>, vector<64x128xbf16>, vector<56x128xf32> -> vector<56x128xf32>
    %94 = arith.addf %86, %93 : vector<56x128xf32>
    %c0_107 = arith.constant 0 : index
    %c0_108 = arith.constant 0 : index
    %c0_109 = arith.constant 0 : index
    %c1_110 = arith.constant 1 : index
    %c1_111 = arith.constant 1 : index
    %c0_112 = arith.constant 0 : index
    %95 = vector.load %arg1[%c0_107, %c0_108, %c0_109, %c1_110, %c1_111, %c0_112] : memref<1x2x2x9x10x64xf32, #tpu.memory_space<vmem>>, vector<1x1x1x7x8x64xf32>
    %96 = vector.shape_cast %95 : vector<1x1x1x7x8x64xf32> to vector<1x7x8x64xf32>
    %97 = vector.shape_cast %96 : vector<1x7x8x64xf32> to vector<56x64xf32>
    %98 = arith.truncf %97 : vector<56x64xf32> to vector<56x64xbf16>
    %c12 = arith.constant 12 : index
    %c0_113 = arith.constant 0 : index
    %c0_114 = arith.constant 0 : index
    %99 = vector.load %arg2[%c12, %c0_113, %c0_114] : memref<25x64x128xbf16, #tpu.memory_space<vmem>>, vector<1x64x128xbf16>
    %100 = vector.shape_cast %99 : vector<1x64x128xbf16> to vector<64x128xbf16>
    %cst_115 = arith.constant dense<0.000000e+00> : vector<56x128xf32>
    %101 = tpu.matmul %98, %100, %cst_115 {dimension_numbers = #tpu.dot_dimension_numbers<[1], [0], [0], [1], [0, 0, 1, 1], [], []>} : vector<56x64xbf16>, vector<64x128xbf16>, vector<56x128xf32> -> vector<56x128xf32>
    %102 = arith.addf %94, %101 : vector<56x128xf32>
    %c0_116 = arith.constant 0 : index
    %c0_117 = arith.constant 0 : index
    %c1_118 = arith.constant 1 : index
    %c1_119 = arith.constant 1 : index
    %c1_120 = arith.constant 1 : index
    %c0_121 = arith.constant 0 : index
    %103 = vector.load %arg1[%c0_116, %c0_117, %c1_118, %c1_119, %c1_120, %c0_121] : memref<1x2x2x9x10x64xf32, #tpu.memory_space<vmem>>, vector<1x1x1x7x8x64xf32>
    %104 = vector.shape_cast %103 : vector<1x1x1x7x8x64xf32> to vector<1x7x8x64xf32>
    %105 = vector.shape_cast %104 : vector<1x7x8x64xf32> to vector<56x64xf32>
    %106 = arith.truncf %105 : vector<56x64xf32> to vector<56x64xbf16>
    %c13 = arith.constant 13 : index
    %c0_122 = arith.constant 0 : index
    %c0_123 = arith.constant 0 : index
    %107 = vector.load %arg2[%c13, %c0_122, %c0_123] : memref<25x64x128xbf16, #tpu.memory_space<vmem>>, vector<1x64x128xbf16>
    %108 = vector.shape_cast %107 : vector<1x64x128xbf16> to vector<64x128xbf16>
    %cst_124 = arith.constant dense<0.000000e+00> : vector<56x128xf32>
    %109 = tpu.matmul %106, %108, %cst_124 {dimension_numbers = #tpu.dot_dimension_numbers<[1], [0], [0], [1], [0, 0, 1, 1], [], []>} : vector<56x64xbf16>, vector<64x128xbf16>, vector<56x128xf32> -> vector<56x128xf32>
    %110 = arith.addf %102, %109 : vector<56x128xf32>
    %c0_125 = arith.constant 0 : index
    %c0_126 = arith.constant 0 : index
    %c0_127 = arith.constant 0 : index
    %c1_128 = arith.constant 1 : index
    %c2_129 = arith.constant 2 : index
    %c0_130 = arith.constant 0 : index
    %111 = vector.load %arg1[%c0_125, %c0_126, %c0_127, %c1_128, %c2_129, %c0_130] : memref<1x2x2x9x10x64xf32, #tpu.memory_space<vmem>>, vector<1x1x1x7x8x64xf32>
    %112 = vector.shape_cast %111 : vector<1x1x1x7x8x64xf32> to vector<1x7x8x64xf32>
    %113 = vector.shape_cast %112 : vector<1x7x8x64xf32> to vector<56x64xf32>
    %114 = arith.truncf %113 : vector<56x64xf32> to vector<56x64xbf16>
    %c14 = arith.constant 14 : index
    %c0_131 = arith.constant 0 : index
    %c0_132 = arith.constant 0 : index
    %115 = vector.load %arg2[%c14, %c0_131, %c0_132] : memref<25x64x128xbf16, #tpu.memory_space<vmem>>, vector<1x64x128xbf16>
    %116 = vector.shape_cast %115 : vector<1x64x128xbf16> to vector<64x128xbf16>
    %cst_133 = arith.constant dense<0.000000e+00> : vector<56x128xf32>
    %117 = tpu.matmul %114, %116, %cst_133 {dimension_numbers = #tpu.dot_dimension_numbers<[1], [0], [0], [1], [0, 0, 1, 1], [], []>} : vector<56x64xbf16>, vector<64x128xbf16>, vector<56x128xf32> -> vector<56x128xf32>
    %118 = arith.addf %110, %117 : vector<56x128xf32>
    %c0_134 = arith.constant 0 : index
    %c1_135 = arith.constant 1 : index
    %c0_136 = arith.constant 0 : index
    %c1_137 = arith.constant 1 : index
    %c0_138 = arith.constant 0 : index
    %c0_139 = arith.constant 0 : index
    %119 = vector.load %arg1[%c0_134, %c1_135, %c0_136, %c1_137, %c0_138, %c0_139] : memref<1x2x2x9x10x64xf32, #tpu.memory_space<vmem>>, vector<1x1x1x7x8x64xf32>
    %120 = vector.shape_cast %119 : vector<1x1x1x7x8x64xf32> to vector<1x7x8x64xf32>
    %121 = vector.shape_cast %120 : vector<1x7x8x64xf32> to vector<56x64xf32>
    %122 = arith.truncf %121 : vector<56x64xf32> to vector<56x64xbf16>
    %c15 = arith.constant 15 : index
    %c0_140 = arith.constant 0 : index
    %c0_141 = arith.constant 0 : index
    %123 = vector.load %arg2[%c15, %c0_140, %c0_141] : memref<25x64x128xbf16, #tpu.memory_space<vmem>>, vector<1x64x128xbf16>
    %124 = vector.shape_cast %123 : vector<1x64x128xbf16> to vector<64x128xbf16>
    %cst_142 = arith.constant dense<0.000000e+00> : vector<56x128xf32>
    %125 = tpu.matmul %122, %124, %cst_142 {dimension_numbers = #tpu.dot_dimension_numbers<[1], [0], [0], [1], [0, 0, 1, 1], [], []>} : vector<56x64xbf16>, vector<64x128xbf16>, vector<56x128xf32> -> vector<56x128xf32>
    %126 = arith.addf %118, %125 : vector<56x128xf32>
    %c0_143 = arith.constant 0 : index
    %c1_144 = arith.constant 1 : index
    %c1_145 = arith.constant 1 : index
    %c1_146 = arith.constant 1 : index
    %c0_147 = arith.constant 0 : index
    %c0_148 = arith.constant 0 : index
    %127 = vector.load %arg1[%c0_143, %c1_144, %c1_145, %c1_146, %c0_147, %c0_148] : memref<1x2x2x9x10x64xf32, #tpu.memory_space<vmem>>, vector<1x1x1x7x8x64xf32>
    %128 = vector.shape_cast %127 : vector<1x1x1x7x8x64xf32> to vector<1x7x8x64xf32>
    %129 = vector.shape_cast %128 : vector<1x7x8x64xf32> to vector<56x64xf32>
    %130 = arith.truncf %129 : vector<56x64xf32> to vector<56x64xbf16>
    %c16 = arith.constant 16 : index
    %c0_149 = arith.constant 0 : index
    %c0_150 = arith.constant 0 : index
    %131 = vector.load %arg2[%c16, %c0_149, %c0_150] : memref<25x64x128xbf16, #tpu.memory_space<vmem>>, vector<1x64x128xbf16>
    %132 = vector.shape_cast %131 : vector<1x64x128xbf16> to vector<64x128xbf16>
    %cst_151 = arith.constant dense<0.000000e+00> : vector<56x128xf32>
    %133 = tpu.matmul %130, %132, %cst_151 {dimension_numbers = #tpu.dot_dimension_numbers<[1], [0], [0], [1], [0, 0, 1, 1], [], []>} : vector<56x64xbf16>, vector<64x128xbf16>, vector<56x128xf32> -> vector<56x128xf32>
    %134 = arith.addf %126, %133 : vector<56x128xf32>
    %c0_152 = arith.constant 0 : index
    %c1_153 = arith.constant 1 : index
    %c0_154 = arith.constant 0 : index
    %c1_155 = arith.constant 1 : index
    %c1_156 = arith.constant 1 : index
    %c0_157 = arith.constant 0 : index
    %135 = vector.load %arg1[%c0_152, %c1_153, %c0_154, %c1_155, %c1_156, %c0_157] : memref<1x2x2x9x10x64xf32, #tpu.memory_space<vmem>>, vector<1x1x1x7x8x64xf32>
    %136 = vector.shape_cast %135 : vector<1x1x1x7x8x64xf32> to vector<1x7x8x64xf32>
    %137 = vector.shape_cast %136 : vector<1x7x8x64xf32> to vector<56x64xf32>
    %138 = arith.truncf %137 : vector<56x64xf32> to vector<56x64xbf16>
    %c17 = arith.constant 17 : index
    %c0_158 = arith.constant 0 : index
    %c0_159 = arith.constant 0 : index
    %139 = vector.load %arg2[%c17, %c0_158, %c0_159] : memref<25x64x128xbf16, #tpu.memory_space<vmem>>, vector<1x64x128xbf16>
    %140 = vector.shape_cast %139 : vector<1x64x128xbf16> to vector<64x128xbf16>
    %cst_160 = arith.constant dense<0.000000e+00> : vector<56x128xf32>
    %141 = tpu.matmul %138, %140, %cst_160 {dimension_numbers = #tpu.dot_dimension_numbers<[1], [0], [0], [1], [0, 0, 1, 1], [], []>} : vector<56x64xbf16>, vector<64x128xbf16>, vector<56x128xf32> -> vector<56x128xf32>
    %142 = arith.addf %134, %141 : vector<56x128xf32>
    %c0_161 = arith.constant 0 : index
    %c1_162 = arith.constant 1 : index
    %c1_163 = arith.constant 1 : index
    %c1_164 = arith.constant 1 : index
    %c1_165 = arith.constant 1 : index
    %c0_166 = arith.constant 0 : index
    %143 = vector.load %arg1[%c0_161, %c1_162, %c1_163, %c1_164, %c1_165, %c0_166] : memref<1x2x2x9x10x64xf32, #tpu.memory_space<vmem>>, vector<1x1x1x7x8x64xf32>
    %144 = vector.shape_cast %143 : vector<1x1x1x7x8x64xf32> to vector<1x7x8x64xf32>
    %145 = vector.shape_cast %144 : vector<1x7x8x64xf32> to vector<56x64xf32>
    %146 = arith.truncf %145 : vector<56x64xf32> to vector<56x64xbf16>
    %c18 = arith.constant 18 : index
    %c0_167 = arith.constant 0 : index
    %c0_168 = arith.constant 0 : index
    %147 = vector.load %arg2[%c18, %c0_167, %c0_168] : memref<25x64x128xbf16, #tpu.memory_space<vmem>>, vector<1x64x128xbf16>
    %148 = vector.shape_cast %147 : vector<1x64x128xbf16> to vector<64x128xbf16>
    %cst_169 = arith.constant dense<0.000000e+00> : vector<56x128xf32>
    %149 = tpu.matmul %146, %148, %cst_169 {dimension_numbers = #tpu.dot_dimension_numbers<[1], [0], [0], [1], [0, 0, 1, 1], [], []>} : vector<56x64xbf16>, vector<64x128xbf16>, vector<56x128xf32> -> vector<56x128xf32>
    %150 = arith.addf %142, %149 : vector<56x128xf32>
    %c0_170 = arith.constant 0 : index
    %c1_171 = arith.constant 1 : index
    %c0_172 = arith.constant 0 : index
    %c1_173 = arith.constant 1 : index
    %c2_174 = arith.constant 2 : index
    %c0_175 = arith.constant 0 : index
    %151 = vector.load %arg1[%c0_170, %c1_171, %c0_172, %c1_173, %c2_174, %c0_175] : memref<1x2x2x9x10x64xf32, #tpu.memory_space<vmem>>, vector<1x1x1x7x8x64xf32>
    %152 = vector.shape_cast %151 : vector<1x1x1x7x8x64xf32> to vector<1x7x8x64xf32>
    %153 = vector.shape_cast %152 : vector<1x7x8x64xf32> to vector<56x64xf32>
    %154 = arith.truncf %153 : vector<56x64xf32> to vector<56x64xbf16>
    %c19 = arith.constant 19 : index
    %c0_176 = arith.constant 0 : index
    %c0_177 = arith.constant 0 : index
    %155 = vector.load %arg2[%c19, %c0_176, %c0_177] : memref<25x64x128xbf16, #tpu.memory_space<vmem>>, vector<1x64x128xbf16>
    %156 = vector.shape_cast %155 : vector<1x64x128xbf16> to vector<64x128xbf16>
    %cst_178 = arith.constant dense<0.000000e+00> : vector<56x128xf32>
    %157 = tpu.matmul %154, %156, %cst_178 {dimension_numbers = #tpu.dot_dimension_numbers<[1], [0], [0], [1], [0, 0, 1, 1], [], []>} : vector<56x64xbf16>, vector<64x128xbf16>, vector<56x128xf32> -> vector<56x128xf32>
    %158 = arith.addf %150, %157 : vector<56x128xf32>
    %c0_179 = arith.constant 0 : index
    %c0_180 = arith.constant 0 : index
    %c0_181 = arith.constant 0 : index
    %c2_182 = arith.constant 2 : index
    %c0_183 = arith.constant 0 : index
    %c0_184 = arith.constant 0 : index
    %159 = vector.load %arg1[%c0_179, %c0_180, %c0_181, %c2_182, %c0_183, %c0_184] : memref<1x2x2x9x10x64xf32, #tpu.memory_space<vmem>>, vector<1x1x1x7x8x64xf32>
    %160 = vector.shape_cast %159 : vector<1x1x1x7x8x64xf32> to vector<1x7x8x64xf32>
    %161 = vector.shape_cast %160 : vector<1x7x8x64xf32> to vector<56x64xf32>
    %162 = arith.truncf %161 : vector<56x64xf32> to vector<56x64xbf16>
    %c20 = arith.constant 20 : index
    %c0_185 = arith.constant 0 : index
    %c0_186 = arith.constant 0 : index
    %163 = vector.load %arg2[%c20, %c0_185, %c0_186] : memref<25x64x128xbf16, #tpu.memory_space<vmem>>, vector<1x64x128xbf16>
    %164 = vector.shape_cast %163 : vector<1x64x128xbf16> to vector<64x128xbf16>
    %cst_187 = arith.constant dense<0.000000e+00> : vector<56x128xf32>
    %165 = tpu.matmul %162, %164, %cst_187 {dimension_numbers = #tpu.dot_dimension_numbers<[1], [0], [0], [1], [0, 0, 1, 1], [], []>} : vector<56x64xbf16>, vector<64x128xbf16>, vector<56x128xf32> -> vector<56x128xf32>
    %166 = arith.addf %158, %165 : vector<56x128xf32>
    %c0_188 = arith.constant 0 : index
    %c0_189 = arith.constant 0 : index
    %c1_190 = arith.constant 1 : index
    %c2_191 = arith.constant 2 : index
    %c0_192 = arith.constant 0 : index
    %c0_193 = arith.constant 0 : index
    %167 = vector.load %arg1[%c0_188, %c0_189, %c1_190, %c2_191, %c0_192, %c0_193] : memref<1x2x2x9x10x64xf32, #tpu.memory_space<vmem>>, vector<1x1x1x7x8x64xf32>
    %168 = vector.shape_cast %167 : vector<1x1x1x7x8x64xf32> to vector<1x7x8x64xf32>
    %169 = vector.shape_cast %168 : vector<1x7x8x64xf32> to vector<56x64xf32>
    %170 = arith.truncf %169 : vector<56x64xf32> to vector<56x64xbf16>
    %c21 = arith.constant 21 : index
    %c0_194 = arith.constant 0 : index
    %c0_195 = arith.constant 0 : index
    %171 = vector.load %arg2[%c21, %c0_194, %c0_195] : memref<25x64x128xbf16, #tpu.memory_space<vmem>>, vector<1x64x128xbf16>
    %172 = vector.shape_cast %171 : vector<1x64x128xbf16> to vector<64x128xbf16>
    %cst_196 = arith.constant dense<0.000000e+00> : vector<56x128xf32>
    %173 = tpu.matmul %170, %172, %cst_196 {dimension_numbers = #tpu.dot_dimension_numbers<[1], [0], [0], [1], [0, 0, 1, 1], [], []>} : vector<56x64xbf16>, vector<64x128xbf16>, vector<56x128xf32> -> vector<56x128xf32>
    %174 = arith.addf %166, %173 : vector<56x128xf32>
    %c0_197 = arith.constant 0 : index
    %c0_198 = arith.constant 0 : index
    %c0_199 = arith.constant 0 : index
    %c2_200 = arith.constant 2 : index
    %c1_201 = arith.constant 1 : index
    %c0_202 = arith.constant 0 : index
    %175 = vector.load %arg1[%c0_197, %c0_198, %c0_199, %c2_200, %c1_201, %c0_202] : memref<1x2x2x9x10x64xf32, #tpu.memory_space<vmem>>, vector<1x1x1x7x8x64xf32>
    %176 = vector.shape_cast %175 : vector<1x1x1x7x8x64xf32> to vector<1x7x8x64xf32>
    %177 = vector.shape_cast %176 : vector<1x7x8x64xf32> to vector<56x64xf32>
    %178 = arith.truncf %177 : vector<56x64xf32> to vector<56x64xbf16>
    %c22 = arith.constant 22 : index
    %c0_203 = arith.constant 0 : index
    %c0_204 = arith.constant 0 : index
    %179 = vector.load %arg2[%c22, %c0_203, %c0_204] : memref<25x64x128xbf16, #tpu.memory_space<vmem>>, vector<1x64x128xbf16>
    %180 = vector.shape_cast %179 : vector<1x64x128xbf16> to vector<64x128xbf16>
    %cst_205 = arith.constant dense<0.000000e+00> : vector<56x128xf32>
    %181 = tpu.matmul %178, %180, %cst_205 {dimension_numbers = #tpu.dot_dimension_numbers<[1], [0], [0], [1], [0, 0, 1, 1], [], []>} : vector<56x64xbf16>, vector<64x128xbf16>, vector<56x128xf32> -> vector<56x128xf32>
    %182 = arith.addf %174, %181 : vector<56x128xf32>
    %c0_206 = arith.constant 0 : index
    %c0_207 = arith.constant 0 : index
    %c1_208 = arith.constant 1 : index
    %c2_209 = arith.constant 2 : index
    %c1_210 = arith.constant 1 : index
    %c0_211 = arith.constant 0 : index
    %183 = vector.load %arg1[%c0_206, %c0_207, %c1_208, %c2_209, %c1_210, %c0_211] : memref<1x2x2x9x10x64xf32, #tpu.memory_space<vmem>>, vector<1x1x1x7x8x64xf32>
    %184 = vector.shape_cast %183 : vector<1x1x1x7x8x64xf32> to vector<1x7x8x64xf32>
    %185 = vector.shape_cast %184 : vector<1x7x8x64xf32> to vector<56x64xf32>
    %186 = arith.truncf %185 : vector<56x64xf32> to vector<56x64xbf16>
    %c23 = arith.constant 23 : index
    %c0_212 = arith.constant 0 : index
    %c0_213 = arith.constant 0 : index
    %187 = vector.load %arg2[%c23, %c0_212, %c0_213] : memref<25x64x128xbf16, #tpu.memory_space<vmem>>, vector<1x64x128xbf16>
    %188 = vector.shape_cast %187 : vector<1x64x128xbf16> to vector<64x128xbf16>
    %cst_214 = arith.constant dense<0.000000e+00> : vector<56x128xf32>
    %189 = tpu.matmul %186, %188, %cst_214 {dimension_numbers = #tpu.dot_dimension_numbers<[1], [0], [0], [1], [0, 0, 1, 1], [], []>} : vector<56x64xbf16>, vector<64x128xbf16>, vector<56x128xf32> -> vector<56x128xf32>
    %190 = arith.addf %182, %189 : vector<56x128xf32>
    %c0_215 = arith.constant 0 : index
    %c0_216 = arith.constant 0 : index
    %c0_217 = arith.constant 0 : index
    %c2_218 = arith.constant 2 : index
    %c2_219 = arith.constant 2 : index
    %c0_220 = arith.constant 0 : index
    %191 = vector.load %arg1[%c0_215, %c0_216, %c0_217, %c2_218, %c2_219, %c0_220] : memref<1x2x2x9x10x64xf32, #tpu.memory_space<vmem>>, vector<1x1x1x7x8x64xf32>
    %192 = vector.shape_cast %191 : vector<1x1x1x7x8x64xf32> to vector<1x7x8x64xf32>
    %193 = vector.shape_cast %192 : vector<1x7x8x64xf32> to vector<56x64xf32>
    %194 = arith.truncf %193 : vector<56x64xf32> to vector<56x64xbf16>
    %c24 = arith.constant 24 : index
    %c0_221 = arith.constant 0 : index
    %c0_222 = arith.constant 0 : index
    %195 = vector.load %arg2[%c24, %c0_221, %c0_222] : memref<25x64x128xbf16, #tpu.memory_space<vmem>>, vector<1x64x128xbf16>
    %196 = vector.shape_cast %195 : vector<1x64x128xbf16> to vector<64x128xbf16>
    %cst_223 = arith.constant dense<0.000000e+00> : vector<56x128xf32>
    %197 = tpu.matmul %194, %196, %cst_223 {dimension_numbers = #tpu.dot_dimension_numbers<[1], [0], [0], [1], [0, 0, 1, 1], [], []>} : vector<56x64xbf16>, vector<64x128xbf16>, vector<56x128xf32> -> vector<56x128xf32>
    %198 = arith.addf %190, %197 : vector<56x128xf32>
    %c0_224 = arith.constant 0 : index
    %c0_225 = arith.constant 0 : index
    %199 = vector.load %arg3[%c0_224, %c0_225] : memref<1x128xf32, #tpu.memory_space<vmem>>, vector<1x128xf32>
    %200 = vector.broadcast %199 : vector<1x128xf32> to vector<56x128xf32>
    %201 = arith.addf %198, %200 : vector<56x128xf32>
    %c0_226 = arith.constant 0 : index
    %c0_227 = arith.constant 0 : index
    %202 = vector.load %arg4[%c0_226, %c0_227] : memref<56x128xf32, #tpu.memory_space<vmem>>, vector<56x128xf32>
    tpu.vector_store %arg4[%c0_226, %c0_227], %201 {strides = array<i32>} : memref<56x128xf32, #tpu.memory_space<vmem>>, vector<56x128xf32>,
    return
  }
  func.func @transform_0(%arg0: i32) -> (i32, i32, i32, i32, i32, i32) {
    %c0_i32 = arith.constant 0 : i32
    %c0_i32_0 = arith.constant 0 : i32
    %c0_i32_1 = arith.constant 0 : i32
    %c0_i32_2 = arith.constant 0 : i32
    %c0_i32_3 = arith.constant 0 : i32
    %c0_i32_4 = arith.constant 0 : i32
    return %arg0, %c0_i32, %c0_i32_0, %c0_i32_1, %c0_i32_2, %c0_i32_3 : i32, i32, i32, i32, i32, i32
  }
  func.func @transform_1(%arg0: i32) -> (i32, i32, i32) {
    %c0_i32 = arith.constant 0 : i32
    %c0_i32_0 = arith.constant 0 : i32
    %c0_i32_1 = arith.constant 0 : i32
    %c0_i32_2 = arith.constant 0 : i32
    return %c0_i32, %c0_i32_0, %c0_i32_1 : i32, i32, i32
  }
  func.func @transform_2(%arg0: i32) -> (i32, i32) {
    %c0_i32 = arith.constant 0 : i32
    %c0_i32_0 = arith.constant 0 : i32
    %c0_i32_1 = arith.constant 0 : i32
    return %c0_i32, %c0_i32_0 : i32, i32
  }
  func.func @transform_3(%arg0: i32) -> (i32, i32) {
    %c0_i32 = arith.constant 0 : i32
    %c0_i32_0 = arith.constant 0 : i32
    return %arg0, %c0_i32 : i32, i32
  }
}

module attributes {stable_mosaic.version = 11 : i64} {
  func.func @_conv3_linear_kernel(%arg0: i32, %arg1: memref<1x2x2x6x10x128xf32, #tpu.memory_space<vmem>>, %arg2: memref<25x128x256xbf16, #tpu.memory_space<vmem>>, %arg3: memref<1x256xf32, #tpu.memory_space<vmem>>, %arg4: memref<32x256xf32, #tpu.memory_space<vmem>>, %arg5: memref<1x1xf32, #tpu.memory_space<vmem>>, %arg6: memref<1x8x1xf32, #tpu.memory_space<vmem>>) attributes {dimension_semantics = [#tpu.dimension_semantics<parallel>], iteration_bounds = array<i64: 2>, scalar_prefetch = 0 : i64, scratch_operands = 0 : i64, tpu.core_type = #tpu.core_type<tc>, window_params = [{transform_indices = @transform_0, window_bounds = array<i64: 1, 2, 2, 6, 10, 128>}, {pipeline_mode = #tpu.pipeline_mode<synchronous>, transform_indices = @transform_1, window_bounds = array<i64: 25, 128, 256>}, {pipeline_mode = #tpu.pipeline_mode<synchronous>, transform_indices = @transform_2, window_bounds = array<i64: 1, 256>}, {pipeline_mode = #tpu.pipeline_mode<synchronous>, transform_indices = @transform_3, window_bounds = array<i64: 32, 256>}, {pipeline_mode = #tpu.pipeline_mode<synchronous>, transform_indices = @transform_4, window_bounds = array<i64: 1, 1>}, {transform_indices = @transform_5, window_bounds = array<i64: 1, 8, 1>}]} {
    %c0 = arith.constant 0 : index
    %c0_0 = arith.constant 0 : index
    %c0_1 = arith.constant 0 : index
    %c0_2 = arith.constant 0 : index
    %c0_3 = arith.constant 0 : index
    %c0_4 = arith.constant 0 : index
    %0 = vector.load %arg1[%c0, %c0_0, %c0_1, %c0_2, %c0_3, %c0_4] : memref<1x2x2x6x10x128xf32, #tpu.memory_space<vmem>>, vector<1x1x1x4x8x128xf32>
    %1 = vector.shape_cast %0 : vector<1x1x1x4x8x128xf32> to vector<1x4x8x128xf32>
    %2 = vector.shape_cast %1 : vector<1x4x8x128xf32> to vector<32x128xf32>
    %3 = arith.truncf %2 : vector<32x128xf32> to vector<32x128xbf16>
    %c0_5 = arith.constant 0 : index
    %c0_6 = arith.constant 0 : index
    %c0_7 = arith.constant 0 : index
    %4 = vector.load %arg2[%c0_5, %c0_6, %c0_7] : memref<25x128x256xbf16, #tpu.memory_space<vmem>>, vector<1x128x256xbf16>
    %5 = vector.shape_cast %4 : vector<1x128x256xbf16> to vector<128x256xbf16>
    %cst = arith.constant dense<0.000000e+00> : vector<32x256xf32>
    %6 = tpu.matmul %3, %5, %cst {dimension_numbers = #tpu.dot_dimension_numbers<[1], [0], [0], [1], [0, 0, 1, 1], [], []>} : vector<32x128xbf16>, vector<128x256xbf16>, vector<32x256xf32> -> vector<32x256xf32>
    %c0_8 = arith.constant 0 : index
    %c0_9 = arith.constant 0 : index
    %c1 = arith.constant 1 : index
    %c0_10 = arith.constant 0 : index
    %c0_11 = arith.constant 0 : index
    %c0_12 = arith.constant 0 : index
    %7 = vector.load %arg1[%c0_8, %c0_9, %c1, %c0_10, %c0_11, %c0_12] : memref<1x2x2x6x10x128xf32, #tpu.memory_space<vmem>>, vector<1x1x1x4x8x128xf32>
    %8 = vector.shape_cast %7 : vector<1x1x1x4x8x128xf32> to vector<1x4x8x128xf32>
    %9 = vector.shape_cast %8 : vector<1x4x8x128xf32> to vector<32x128xf32>
    %10 = arith.truncf %9 : vector<32x128xf32> to vector<32x128xbf16>
    %c1_13 = arith.constant 1 : index
    %c0_14 = arith.constant 0 : index
    %c0_15 = arith.constant 0 : index
    %11 = vector.load %arg2[%c1_13, %c0_14, %c0_15] : memref<25x128x256xbf16, #tpu.memory_space<vmem>>, vector<1x128x256xbf16>
    %12 = vector.shape_cast %11 : vector<1x128x256xbf16> to vector<128x256xbf16>
    %cst_16 = arith.constant dense<0.000000e+00> : vector<32x256xf32>
    %13 = tpu.matmul %10, %12, %cst_16 {dimension_numbers = #tpu.dot_dimension_numbers<[1], [0], [0], [1], [0, 0, 1, 1], [], []>} : vector<32x128xbf16>, vector<128x256xbf16>, vector<32x256xf32> -> vector<32x256xf32>
    %14 = arith.addf %6, %13 : vector<32x256xf32>
    %c0_17 = arith.constant 0 : index
    %c0_18 = arith.constant 0 : index
    %c0_19 = arith.constant 0 : index
    %c0_20 = arith.constant 0 : index
    %c1_21 = arith.constant 1 : index
    %c0_22 = arith.constant 0 : index
    %15 = vector.load %arg1[%c0_17, %c0_18, %c0_19, %c0_20, %c1_21, %c0_22] : memref<1x2x2x6x10x128xf32, #tpu.memory_space<vmem>>, vector<1x1x1x4x8x128xf32>
    %16 = vector.shape_cast %15 : vector<1x1x1x4x8x128xf32> to vector<1x4x8x128xf32>
    %17 = vector.shape_cast %16 : vector<1x4x8x128xf32> to vector<32x128xf32>
    %18 = arith.truncf %17 : vector<32x128xf32> to vector<32x128xbf16>
    %c2 = arith.constant 2 : index
    %c0_23 = arith.constant 0 : index
    %c0_24 = arith.constant 0 : index
    %19 = vector.load %arg2[%c2, %c0_23, %c0_24] : memref<25x128x256xbf16, #tpu.memory_space<vmem>>, vector<1x128x256xbf16>
    %20 = vector.shape_cast %19 : vector<1x128x256xbf16> to vector<128x256xbf16>
    %cst_25 = arith.constant dense<0.000000e+00> : vector<32x256xf32>
    %21 = tpu.matmul %18, %20, %cst_25 {dimension_numbers = #tpu.dot_dimension_numbers<[1], [0], [0], [1], [0, 0, 1, 1], [], []>} : vector<32x128xbf16>, vector<128x256xbf16>, vector<32x256xf32> -> vector<32x256xf32>
    %22 = arith.addf %14, %21 : vector<32x256xf32>
    %c0_26 = arith.constant 0 : index
    %c0_27 = arith.constant 0 : index
    %c1_28 = arith.constant 1 : index
    %c0_29 = arith.constant 0 : index
    %c1_30 = arith.constant 1 : index
    %c0_31 = arith.constant 0 : index
    %23 = vector.load %arg1[%c0_26, %c0_27, %c1_28, %c0_29, %c1_30, %c0_31] : memref<1x2x2x6x10x128xf32, #tpu.memory_space<vmem>>, vector<1x1x1x4x8x128xf32>
    %24 = vector.shape_cast %23 : vector<1x1x1x4x8x128xf32> to vector<1x4x8x128xf32>
    %25 = vector.shape_cast %24 : vector<1x4x8x128xf32> to vector<32x128xf32>
    %26 = arith.truncf %25 : vector<32x128xf32> to vector<32x128xbf16>
    %c3 = arith.constant 3 : index
    %c0_32 = arith.constant 0 : index
    %c0_33 = arith.constant 0 : index
    %27 = vector.load %arg2[%c3, %c0_32, %c0_33] : memref<25x128x256xbf16, #tpu.memory_space<vmem>>, vector<1x128x256xbf16>
    %28 = vector.shape_cast %27 : vector<1x128x256xbf16> to vector<128x256xbf16>
    %cst_34 = arith.constant dense<0.000000e+00> : vector<32x256xf32>
    %29 = tpu.matmul %26, %28, %cst_34 {dimension_numbers = #tpu.dot_dimension_numbers<[1], [0], [0], [1], [0, 0, 1, 1], [], []>} : vector<32x128xbf16>, vector<128x256xbf16>, vector<32x256xf32> -> vector<32x256xf32>
    %30 = arith.addf %22, %29 : vector<32x256xf32>
    %c0_35 = arith.constant 0 : index
    %c0_36 = arith.constant 0 : index
    %c0_37 = arith.constant 0 : index
    %c0_38 = arith.constant 0 : index
    %c2_39 = arith.constant 2 : index
    %c0_40 = arith.constant 0 : index
    %31 = vector.load %arg1[%c0_35, %c0_36, %c0_37, %c0_38, %c2_39, %c0_40] : memref<1x2x2x6x10x128xf32, #tpu.memory_space<vmem>>, vector<1x1x1x4x8x128xf32>
    %32 = vector.shape_cast %31 : vector<1x1x1x4x8x128xf32> to vector<1x4x8x128xf32>
    %33 = vector.shape_cast %32 : vector<1x4x8x128xf32> to vector<32x128xf32>
    %34 = arith.truncf %33 : vector<32x128xf32> to vector<32x128xbf16>
    %c4 = arith.constant 4 : index
    %c0_41 = arith.constant 0 : index
    %c0_42 = arith.constant 0 : index
    %35 = vector.load %arg2[%c4, %c0_41, %c0_42] : memref<25x128x256xbf16, #tpu.memory_space<vmem>>, vector<1x128x256xbf16>
    %36 = vector.shape_cast %35 : vector<1x128x256xbf16> to vector<128x256xbf16>
    %cst_43 = arith.constant dense<0.000000e+00> : vector<32x256xf32>
    %37 = tpu.matmul %34, %36, %cst_43 {dimension_numbers = #tpu.dot_dimension_numbers<[1], [0], [0], [1], [0, 0, 1, 1], [], []>} : vector<32x128xbf16>, vector<128x256xbf16>, vector<32x256xf32> -> vector<32x256xf32>
    %38 = arith.addf %30, %37 : vector<32x256xf32>
    %c0_44 = arith.constant 0 : index
    %c1_45 = arith.constant 1 : index
    %c0_46 = arith.constant 0 : index
    %c0_47 = arith.constant 0 : index
    %c0_48 = arith.constant 0 : index
    %c0_49 = arith.constant 0 : index
    %39 = vector.load %arg1[%c0_44, %c1_45, %c0_46, %c0_47, %c0_48, %c0_49] : memref<1x2x2x6x10x128xf32, #tpu.memory_space<vmem>>, vector<1x1x1x4x8x128xf32>
    %40 = vector.shape_cast %39 : vector<1x1x1x4x8x128xf32> to vector<1x4x8x128xf32>
    %41 = vector.shape_cast %40 : vector<1x4x8x128xf32> to vector<32x128xf32>
    %42 = arith.truncf %41 : vector<32x128xf32> to vector<32x128xbf16>
    %c5 = arith.constant 5 : index
    %c0_50 = arith.constant 0 : index
    %c0_51 = arith.constant 0 : index
    %43 = vector.load %arg2[%c5, %c0_50, %c0_51] : memref<25x128x256xbf16, #tpu.memory_space<vmem>>, vector<1x128x256xbf16>
    %44 = vector.shape_cast %43 : vector<1x128x256xbf16> to vector<128x256xbf16>
    %cst_52 = arith.constant dense<0.000000e+00> : vector<32x256xf32>
    %45 = tpu.matmul %42, %44, %cst_52 {dimension_numbers = #tpu.dot_dimension_numbers<[1], [0], [0], [1], [0, 0, 1, 1], [], []>} : vector<32x128xbf16>, vector<128x256xbf16>, vector<32x256xf32> -> vector<32x256xf32>
    %46 = arith.addf %38, %45 : vector<32x256xf32>
    %c0_53 = arith.constant 0 : index
    %c1_54 = arith.constant 1 : index
    %c1_55 = arith.constant 1 : index
    %c0_56 = arith.constant 0 : index
    %c0_57 = arith.constant 0 : index
    %c0_58 = arith.constant 0 : index
    %47 = vector.load %arg1[%c0_53, %c1_54, %c1_55, %c0_56, %c0_57, %c0_58] : memref<1x2x2x6x10x128xf32, #tpu.memory_space<vmem>>, vector<1x1x1x4x8x128xf32>
    %48 = vector.shape_cast %47 : vector<1x1x1x4x8x128xf32> to vector<1x4x8x128xf32>
    %49 = vector.shape_cast %48 : vector<1x4x8x128xf32> to vector<32x128xf32>
    %50 = arith.truncf %49 : vector<32x128xf32> to vector<32x128xbf16>
    %c6 = arith.constant 6 : index
    %c0_59 = arith.constant 0 : index
    %c0_60 = arith.constant 0 : index
    %51 = vector.load %arg2[%c6, %c0_59, %c0_60] : memref<25x128x256xbf16, #tpu.memory_space<vmem>>, vector<1x128x256xbf16>
    %52 = vector.shape_cast %51 : vector<1x128x256xbf16> to vector<128x256xbf16>
    %cst_61 = arith.constant dense<0.000000e+00> : vector<32x256xf32>
    %53 = tpu.matmul %50, %52, %cst_61 {dimension_numbers = #tpu.dot_dimension_numbers<[1], [0], [0], [1], [0, 0, 1, 1], [], []>} : vector<32x128xbf16>, vector<128x256xbf16>, vector<32x256xf32> -> vector<32x256xf32>
    %54 = arith.addf %46, %53 : vector<32x256xf32>
    %c0_62 = arith.constant 0 : index
    %c1_63 = arith.constant 1 : index
    %c0_64 = arith.constant 0 : index
    %c0_65 = arith.constant 0 : index
    %c1_66 = arith.constant 1 : index
    %c0_67 = arith.constant 0 : index
    %55 = vector.load %arg1[%c0_62, %c1_63, %c0_64, %c0_65, %c1_66, %c0_67] : memref<1x2x2x6x10x128xf32, #tpu.memory_space<vmem>>, vector<1x1x1x4x8x128xf32>
    %56 = vector.shape_cast %55 : vector<1x1x1x4x8x128xf32> to vector<1x4x8x128xf32>
    %57 = vector.shape_cast %56 : vector<1x4x8x128xf32> to vector<32x128xf32>
    %58 = arith.truncf %57 : vector<32x128xf32> to vector<32x128xbf16>
    %c7 = arith.constant 7 : index
    %c0_68 = arith.constant 0 : index
    %c0_69 = arith.constant 0 : index
    %59 = vector.load %arg2[%c7, %c0_68, %c0_69] : memref<25x128x256xbf16, #tpu.memory_space<vmem>>, vector<1x128x256xbf16>
    %60 = vector.shape_cast %59 : vector<1x128x256xbf16> to vector<128x256xbf16>
    %cst_70 = arith.constant dense<0.000000e+00> : vector<32x256xf32>
    %61 = tpu.matmul %58, %60, %cst_70 {dimension_numbers = #tpu.dot_dimension_numbers<[1], [0], [0], [1], [0, 0, 1, 1], [], []>} : vector<32x128xbf16>, vector<128x256xbf16>, vector<32x256xf32> -> vector<32x256xf32>
    %62 = arith.addf %54, %61 : vector<32x256xf32>
    %c0_71 = arith.constant 0 : index
    %c1_72 = arith.constant 1 : index
    %c1_73 = arith.constant 1 : index
    %c0_74 = arith.constant 0 : index
    %c1_75 = arith.constant 1 : index
    %c0_76 = arith.constant 0 : index
    %63 = vector.load %arg1[%c0_71, %c1_72, %c1_73, %c0_74, %c1_75, %c0_76] : memref<1x2x2x6x10x128xf32, #tpu.memory_space<vmem>>, vector<1x1x1x4x8x128xf32>
    %64 = vector.shape_cast %63 : vector<1x1x1x4x8x128xf32> to vector<1x4x8x128xf32>
    %65 = vector.shape_cast %64 : vector<1x4x8x128xf32> to vector<32x128xf32>
    %66 = arith.truncf %65 : vector<32x128xf32> to vector<32x128xbf16>
    %c8 = arith.constant 8 : index
    %c0_77 = arith.constant 0 : index
    %c0_78 = arith.constant 0 : index
    %67 = vector.load %arg2[%c8, %c0_77, %c0_78] : memref<25x128x256xbf16, #tpu.memory_space<vmem>>, vector<1x128x256xbf16>
    %68 = vector.shape_cast %67 : vector<1x128x256xbf16> to vector<128x256xbf16>
    %cst_79 = arith.constant dense<0.000000e+00> : vector<32x256xf32>
    %69 = tpu.matmul %66, %68, %cst_79 {dimension_numbers = #tpu.dot_dimension_numbers<[1], [0], [0], [1], [0, 0, 1, 1], [], []>} : vector<32x128xbf16>, vector<128x256xbf16>, vector<32x256xf32> -> vector<32x256xf32>
    %70 = arith.addf %62, %69 : vector<32x256xf32>
    %c0_80 = arith.constant 0 : index
    %c1_81 = arith.constant 1 : index
    %c0_82 = arith.constant 0 : index
    %c0_83 = arith.constant 0 : index
    %c2_84 = arith.constant 2 : index
    %c0_85 = arith.constant 0 : index
    %71 = vector.load %arg1[%c0_80, %c1_81, %c0_82, %c0_83, %c2_84, %c0_85] : memref<1x2x2x6x10x128xf32, #tpu.memory_space<vmem>>, vector<1x1x1x4x8x128xf32>
    %72 = vector.shape_cast %71 : vector<1x1x1x4x8x128xf32> to vector<1x4x8x128xf32>
    %73 = vector.shape_cast %72 : vector<1x4x8x128xf32> to vector<32x128xf32>
    %74 = arith.truncf %73 : vector<32x128xf32> to vector<32x128xbf16>
    %c9 = arith.constant 9 : index
    %c0_86 = arith.constant 0 : index
    %c0_87 = arith.constant 0 : index
    %75 = vector.load %arg2[%c9, %c0_86, %c0_87] : memref<25x128x256xbf16, #tpu.memory_space<vmem>>, vector<1x128x256xbf16>
    %76 = vector.shape_cast %75 : vector<1x128x256xbf16> to vector<128x256xbf16>
    %cst_88 = arith.constant dense<0.000000e+00> : vector<32x256xf32>
    %77 = tpu.matmul %74, %76, %cst_88 {dimension_numbers = #tpu.dot_dimension_numbers<[1], [0], [0], [1], [0, 0, 1, 1], [], []>} : vector<32x128xbf16>, vector<128x256xbf16>, vector<32x256xf32> -> vector<32x256xf32>
    %78 = arith.addf %70, %77 : vector<32x256xf32>
    %c0_89 = arith.constant 0 : index
    %c0_90 = arith.constant 0 : index
    %c0_91 = arith.constant 0 : index
    %c1_92 = arith.constant 1 : index
    %c0_93 = arith.constant 0 : index
    %c0_94 = arith.constant 0 : index
    %79 = vector.load %arg1[%c0_89, %c0_90, %c0_91, %c1_92, %c0_93, %c0_94] : memref<1x2x2x6x10x128xf32, #tpu.memory_space<vmem>>, vector<1x1x1x4x8x128xf32>
    %80 = vector.shape_cast %79 : vector<1x1x1x4x8x128xf32> to vector<1x4x8x128xf32>
    %81 = vector.shape_cast %80 : vector<1x4x8x128xf32> to vector<32x128xf32>
    %82 = arith.truncf %81 : vector<32x128xf32> to vector<32x128xbf16>
    %c10 = arith.constant 10 : index
    %c0_95 = arith.constant 0 : index
    %c0_96 = arith.constant 0 : index
    %83 = vector.load %arg2[%c10, %c0_95, %c0_96] : memref<25x128x256xbf16, #tpu.memory_space<vmem>>, vector<1x128x256xbf16>
    %84 = vector.shape_cast %83 : vector<1x128x256xbf16> to vector<128x256xbf16>
    %cst_97 = arith.constant dense<0.000000e+00> : vector<32x256xf32>
    %85 = tpu.matmul %82, %84, %cst_97 {dimension_numbers = #tpu.dot_dimension_numbers<[1], [0], [0], [1], [0, 0, 1, 1], [], []>} : vector<32x128xbf16>, vector<128x256xbf16>, vector<32x256xf32> -> vector<32x256xf32>
    %86 = arith.addf %78, %85 : vector<32x256xf32>
    %c0_98 = arith.constant 0 : index
    %c0_99 = arith.constant 0 : index
    %c1_100 = arith.constant 1 : index
    %c1_101 = arith.constant 1 : index
    %c0_102 = arith.constant 0 : index
    %c0_103 = arith.constant 0 : index
    %87 = vector.load %arg1[%c0_98, %c0_99, %c1_100, %c1_101, %c0_102, %c0_103] : memref<1x2x2x6x10x128xf32, #tpu.memory_space<vmem>>, vector<1x1x1x4x8x128xf32>
    %88 = vector.shape_cast %87 : vector<1x1x1x4x8x128xf32> to vector<1x4x8x128xf32>
    %89 = vector.shape_cast %88 : vector<1x4x8x128xf32> to vector<32x128xf32>
    %90 = arith.truncf %89 : vector<32x128xf32> to vector<32x128xbf16>
    %c11 = arith.constant 11 : index
    %c0_104 = arith.constant 0 : index
    %c0_105 = arith.constant 0 : index
    %91 = vector.load %arg2[%c11, %c0_104, %c0_105] : memref<25x128x256xbf16, #tpu.memory_space<vmem>>, vector<1x128x256xbf16>
    %92 = vector.shape_cast %91 : vector<1x128x256xbf16> to vector<128x256xbf16>
    %cst_106 = arith.constant dense<0.000000e+00> : vector<32x256xf32>
    %93 = tpu.matmul %90, %92, %cst_106 {dimension_numbers = #tpu.dot_dimension_numbers<[1], [0], [0], [1], [0, 0, 1, 1], [], []>} : vector<32x128xbf16>, vector<128x256xbf16>, vector<32x256xf32> -> vector<32x256xf32>
    %94 = arith.addf %86, %93 : vector<32x256xf32>
    %c0_107 = arith.constant 0 : index
    %c0_108 = arith.constant 0 : index
    %c0_109 = arith.constant 0 : index
    %c1_110 = arith.constant 1 : index
    %c1_111 = arith.constant 1 : index
    %c0_112 = arith.constant 0 : index
    %95 = vector.load %arg1[%c0_107, %c0_108, %c0_109, %c1_110, %c1_111, %c0_112] : memref<1x2x2x6x10x128xf32, #tpu.memory_space<vmem>>, vector<1x1x1x4x8x128xf32>
    %96 = vector.shape_cast %95 : vector<1x1x1x4x8x128xf32> to vector<1x4x8x128xf32>
    %97 = vector.shape_cast %96 : vector<1x4x8x128xf32> to vector<32x128xf32>
    %98 = arith.truncf %97 : vector<32x128xf32> to vector<32x128xbf16>
    %c12 = arith.constant 12 : index
    %c0_113 = arith.constant 0 : index
    %c0_114 = arith.constant 0 : index
    %99 = vector.load %arg2[%c12, %c0_113, %c0_114] : memref<25x128x256xbf16, #tpu.memory_space<vmem>>, vector<1x128x256xbf16>
    %100 = vector.shape_cast %99 : vector<1x128x256xbf16> to vector<128x256xbf16>
    %cst_115 = arith.constant dense<0.000000e+00> : vector<32x256xf32>
    %101 = tpu.matmul %98, %100, %cst_115 {dimension_numbers = #tpu.dot_dimension_numbers<[1], [0], [0], [1], [0, 0, 1, 1], [], []>} : vector<32x128xbf16>, vector<128x256xbf16>, vector<32x256xf32> -> vector<32x256xf32>
    %102 = arith.addf %94, %101 : vector<32x256xf32>
    %c0_116 = arith.constant 0 : index
    %c0_117 = arith.constant 0 : index
    %c1_118 = arith.constant 1 : index
    %c1_119 = arith.constant 1 : index
    %c1_120 = arith.constant 1 : index
    %c0_121 = arith.constant 0 : index
    %103 = vector.load %arg1[%c0_116, %c0_117, %c1_118, %c1_119, %c1_120, %c0_121] : memref<1x2x2x6x10x128xf32, #tpu.memory_space<vmem>>, vector<1x1x1x4x8x128xf32>
    %104 = vector.shape_cast %103 : vector<1x1x1x4x8x128xf32> to vector<1x4x8x128xf32>
    %105 = vector.shape_cast %104 : vector<1x4x8x128xf32> to vector<32x128xf32>
    %106 = arith.truncf %105 : vector<32x128xf32> to vector<32x128xbf16>
    %c13 = arith.constant 13 : index
    %c0_122 = arith.constant 0 : index
    %c0_123 = arith.constant 0 : index
    %107 = vector.load %arg2[%c13, %c0_122, %c0_123] : memref<25x128x256xbf16, #tpu.memory_space<vmem>>, vector<1x128x256xbf16>
    %108 = vector.shape_cast %107 : vector<1x128x256xbf16> to vector<128x256xbf16>
    %cst_124 = arith.constant dense<0.000000e+00> : vector<32x256xf32>
    %109 = tpu.matmul %106, %108, %cst_124 {dimension_numbers = #tpu.dot_dimension_numbers<[1], [0], [0], [1], [0, 0, 1, 1], [], []>} : vector<32x128xbf16>, vector<128x256xbf16>, vector<32x256xf32> -> vector<32x256xf32>
    %110 = arith.addf %102, %109 : vector<32x256xf32>
    %c0_125 = arith.constant 0 : index
    %c0_126 = arith.constant 0 : index
    %c0_127 = arith.constant 0 : index
    %c1_128 = arith.constant 1 : index
    %c2_129 = arith.constant 2 : index
    %c0_130 = arith.constant 0 : index
    %111 = vector.load %arg1[%c0_125, %c0_126, %c0_127, %c1_128, %c2_129, %c0_130] : memref<1x2x2x6x10x128xf32, #tpu.memory_space<vmem>>, vector<1x1x1x4x8x128xf32>
    %112 = vector.shape_cast %111 : vector<1x1x1x4x8x128xf32> to vector<1x4x8x128xf32>
    %113 = vector.shape_cast %112 : vector<1x4x8x128xf32> to vector<32x128xf32>
    %114 = arith.truncf %113 : vector<32x128xf32> to vector<32x128xbf16>
    %c14 = arith.constant 14 : index
    %c0_131 = arith.constant 0 : index
    %c0_132 = arith.constant 0 : index
    %115 = vector.load %arg2[%c14, %c0_131, %c0_132] : memref<25x128x256xbf16, #tpu.memory_space<vmem>>, vector<1x128x256xbf16>
    %116 = vector.shape_cast %115 : vector<1x128x256xbf16> to vector<128x256xbf16>
    %cst_133 = arith.constant dense<0.000000e+00> : vector<32x256xf32>
    %117 = tpu.matmul %114, %116, %cst_133 {dimension_numbers = #tpu.dot_dimension_numbers<[1], [0], [0], [1], [0, 0, 1, 1], [], []>} : vector<32x128xbf16>, vector<128x256xbf16>, vector<32x256xf32> -> vector<32x256xf32>
    %118 = arith.addf %110, %117 : vector<32x256xf32>
    %c0_134 = arith.constant 0 : index
    %c1_135 = arith.constant 1 : index
    %c0_136 = arith.constant 0 : index
    %c1_137 = arith.constant 1 : index
    %c0_138 = arith.constant 0 : index
    %c0_139 = arith.constant 0 : index
    %119 = vector.load %arg1[%c0_134, %c1_135, %c0_136, %c1_137, %c0_138, %c0_139] : memref<1x2x2x6x10x128xf32, #tpu.memory_space<vmem>>, vector<1x1x1x4x8x128xf32>
    %120 = vector.shape_cast %119 : vector<1x1x1x4x8x128xf32> to vector<1x4x8x128xf32>
    %121 = vector.shape_cast %120 : vector<1x4x8x128xf32> to vector<32x128xf32>
    %122 = arith.truncf %121 : vector<32x128xf32> to vector<32x128xbf16>
    %c15 = arith.constant 15 : index
    %c0_140 = arith.constant 0 : index
    %c0_141 = arith.constant 0 : index
    %123 = vector.load %arg2[%c15, %c0_140, %c0_141] : memref<25x128x256xbf16, #tpu.memory_space<vmem>>, vector<1x128x256xbf16>
    %124 = vector.shape_cast %123 : vector<1x128x256xbf16> to vector<128x256xbf16>
    %cst_142 = arith.constant dense<0.000000e+00> : vector<32x256xf32>
    %125 = tpu.matmul %122, %124, %cst_142 {dimension_numbers = #tpu.dot_dimension_numbers<[1], [0], [0], [1], [0, 0, 1, 1], [], []>} : vector<32x128xbf16>, vector<128x256xbf16>, vector<32x256xf32> -> vector<32x256xf32>
    %126 = arith.addf %118, %125 : vector<32x256xf32>
    %c0_143 = arith.constant 0 : index
    %c1_144 = arith.constant 1 : index
    %c1_145 = arith.constant 1 : index
    %c1_146 = arith.constant 1 : index
    %c0_147 = arith.constant 0 : index
    %c0_148 = arith.constant 0 : index
    %127 = vector.load %arg1[%c0_143, %c1_144, %c1_145, %c1_146, %c0_147, %c0_148] : memref<1x2x2x6x10x128xf32, #tpu.memory_space<vmem>>, vector<1x1x1x4x8x128xf32>
    %128 = vector.shape_cast %127 : vector<1x1x1x4x8x128xf32> to vector<1x4x8x128xf32>
    %129 = vector.shape_cast %128 : vector<1x4x8x128xf32> to vector<32x128xf32>
    %130 = arith.truncf %129 : vector<32x128xf32> to vector<32x128xbf16>
    %c16 = arith.constant 16 : index
    %c0_149 = arith.constant 0 : index
    %c0_150 = arith.constant 0 : index
    %131 = vector.load %arg2[%c16, %c0_149, %c0_150] : memref<25x128x256xbf16, #tpu.memory_space<vmem>>, vector<1x128x256xbf16>
    %132 = vector.shape_cast %131 : vector<1x128x256xbf16> to vector<128x256xbf16>
    %cst_151 = arith.constant dense<0.000000e+00> : vector<32x256xf32>
    %133 = tpu.matmul %130, %132, %cst_151 {dimension_numbers = #tpu.dot_dimension_numbers<[1], [0], [0], [1], [0, 0, 1, 1], [], []>} : vector<32x128xbf16>, vector<128x256xbf16>, vector<32x256xf32> -> vector<32x256xf32>
    %134 = arith.addf %126, %133 : vector<32x256xf32>
    %c0_152 = arith.constant 0 : index
    %c1_153 = arith.constant 1 : index
    %c0_154 = arith.constant 0 : index
    %c1_155 = arith.constant 1 : index
    %c1_156 = arith.constant 1 : index
    %c0_157 = arith.constant 0 : index
    %135 = vector.load %arg1[%c0_152, %c1_153, %c0_154, %c1_155, %c1_156, %c0_157] : memref<1x2x2x6x10x128xf32, #tpu.memory_space<vmem>>, vector<1x1x1x4x8x128xf32>
    %136 = vector.shape_cast %135 : vector<1x1x1x4x8x128xf32> to vector<1x4x8x128xf32>
    %137 = vector.shape_cast %136 : vector<1x4x8x128xf32> to vector<32x128xf32>
    %138 = arith.truncf %137 : vector<32x128xf32> to vector<32x128xbf16>
    %c17 = arith.constant 17 : index
    %c0_158 = arith.constant 0 : index
    %c0_159 = arith.constant 0 : index
    %139 = vector.load %arg2[%c17, %c0_158, %c0_159] : memref<25x128x256xbf16, #tpu.memory_space<vmem>>, vector<1x128x256xbf16>
    %140 = vector.shape_cast %139 : vector<1x128x256xbf16> to vector<128x256xbf16>
    %cst_160 = arith.constant dense<0.000000e+00> : vector<32x256xf32>
    %141 = tpu.matmul %138, %140, %cst_160 {dimension_numbers = #tpu.dot_dimension_numbers<[1], [0], [0], [1], [0, 0, 1, 1], [], []>} : vector<32x128xbf16>, vector<128x256xbf16>, vector<32x256xf32> -> vector<32x256xf32>
    %142 = arith.addf %134, %141 : vector<32x256xf32>
    %c0_161 = arith.constant 0 : index
    %c1_162 = arith.constant 1 : index
    %c1_163 = arith.constant 1 : index
    %c1_164 = arith.constant 1 : index
    %c1_165 = arith.constant 1 : index
    %c0_166 = arith.constant 0 : index
    %143 = vector.load %arg1[%c0_161, %c1_162, %c1_163, %c1_164, %c1_165, %c0_166] : memref<1x2x2x6x10x128xf32, #tpu.memory_space<vmem>>, vector<1x1x1x4x8x128xf32>
    %144 = vector.shape_cast %143 : vector<1x1x1x4x8x128xf32> to vector<1x4x8x128xf32>
    %145 = vector.shape_cast %144 : vector<1x4x8x128xf32> to vector<32x128xf32>
    %146 = arith.truncf %145 : vector<32x128xf32> to vector<32x128xbf16>
    %c18 = arith.constant 18 : index
    %c0_167 = arith.constant 0 : index
    %c0_168 = arith.constant 0 : index
    %147 = vector.load %arg2[%c18, %c0_167, %c0_168] : memref<25x128x256xbf16, #tpu.memory_space<vmem>>, vector<1x128x256xbf16>
    %148 = vector.shape_cast %147 : vector<1x128x256xbf16> to vector<128x256xbf16>
    %cst_169 = arith.constant dense<0.000000e+00> : vector<32x256xf32>
    %149 = tpu.matmul %146, %148, %cst_169 {dimension_numbers = #tpu.dot_dimension_numbers<[1], [0], [0], [1], [0, 0, 1, 1], [], []>} : vector<32x128xbf16>, vector<128x256xbf16>, vector<32x256xf32> -> vector<32x256xf32>
    %150 = arith.addf %142, %149 : vector<32x256xf32>
    %c0_170 = arith.constant 0 : index
    %c1_171 = arith.constant 1 : index
    %c0_172 = arith.constant 0 : index
    %c1_173 = arith.constant 1 : index
    %c2_174 = arith.constant 2 : index
    %c0_175 = arith.constant 0 : index
    %151 = vector.load %arg1[%c0_170, %c1_171, %c0_172, %c1_173, %c2_174, %c0_175] : memref<1x2x2x6x10x128xf32, #tpu.memory_space<vmem>>, vector<1x1x1x4x8x128xf32>
    %152 = vector.shape_cast %151 : vector<1x1x1x4x8x128xf32> to vector<1x4x8x128xf32>
    %153 = vector.shape_cast %152 : vector<1x4x8x128xf32> to vector<32x128xf32>
    %154 = arith.truncf %153 : vector<32x128xf32> to vector<32x128xbf16>
    %c19 = arith.constant 19 : index
    %c0_176 = arith.constant 0 : index
    %c0_177 = arith.constant 0 : index
    %155 = vector.load %arg2[%c19, %c0_176, %c0_177] : memref<25x128x256xbf16, #tpu.memory_space<vmem>>, vector<1x128x256xbf16>
    %156 = vector.shape_cast %155 : vector<1x128x256xbf16> to vector<128x256xbf16>
    %cst_178 = arith.constant dense<0.000000e+00> : vector<32x256xf32>
    %157 = tpu.matmul %154, %156, %cst_178 {dimension_numbers = #tpu.dot_dimension_numbers<[1], [0], [0], [1], [0, 0, 1, 1], [], []>} : vector<32x128xbf16>, vector<128x256xbf16>, vector<32x256xf32> -> vector<32x256xf32>
    %158 = arith.addf %150, %157 : vector<32x256xf32>
    %c0_179 = arith.constant 0 : index
    %c0_180 = arith.constant 0 : index
    %c0_181 = arith.constant 0 : index
    %c2_182 = arith.constant 2 : index
    %c0_183 = arith.constant 0 : index
    %c0_184 = arith.constant 0 : index
    %159 = vector.load %arg1[%c0_179, %c0_180, %c0_181, %c2_182, %c0_183, %c0_184] : memref<1x2x2x6x10x128xf32, #tpu.memory_space<vmem>>, vector<1x1x1x4x8x128xf32>
    %160 = vector.shape_cast %159 : vector<1x1x1x4x8x128xf32> to vector<1x4x8x128xf32>
    %161 = vector.shape_cast %160 : vector<1x4x8x128xf32> to vector<32x128xf32>
    %162 = arith.truncf %161 : vector<32x128xf32> to vector<32x128xbf16>
    %c20 = arith.constant 20 : index
    %c0_185 = arith.constant 0 : index
    %c0_186 = arith.constant 0 : index
    %163 = vector.load %arg2[%c20, %c0_185, %c0_186] : memref<25x128x256xbf16, #tpu.memory_space<vmem>>, vector<1x128x256xbf16>
    %164 = vector.shape_cast %163 : vector<1x128x256xbf16> to vector<128x256xbf16>
    %cst_187 = arith.constant dense<0.000000e+00> : vector<32x256xf32>
    %165 = tpu.matmul %162, %164, %cst_187 {dimension_numbers = #tpu.dot_dimension_numbers<[1], [0], [0], [1], [0, 0, 1, 1], [], []>} : vector<32x128xbf16>, vector<128x256xbf16>, vector<32x256xf32> -> vector<32x256xf32>
    %166 = arith.addf %158, %165 : vector<32x256xf32>
    %c0_188 = arith.constant 0 : index
    %c0_189 = arith.constant 0 : index
    %c1_190 = arith.constant 1 : index
    %c2_191 = arith.constant 2 : index
    %c0_192 = arith.constant 0 : index
    %c0_193 = arith.constant 0 : index
    %167 = vector.load %arg1[%c0_188, %c0_189, %c1_190, %c2_191, %c0_192, %c0_193] : memref<1x2x2x6x10x128xf32, #tpu.memory_space<vmem>>, vector<1x1x1x4x8x128xf32>
    %168 = vector.shape_cast %167 : vector<1x1x1x4x8x128xf32> to vector<1x4x8x128xf32>
    %169 = vector.shape_cast %168 : vector<1x4x8x128xf32> to vector<32x128xf32>
    %170 = arith.truncf %169 : vector<32x128xf32> to vector<32x128xbf16>
    %c21 = arith.constant 21 : index
    %c0_194 = arith.constant 0 : index
    %c0_195 = arith.constant 0 : index
    %171 = vector.load %arg2[%c21, %c0_194, %c0_195] : memref<25x128x256xbf16, #tpu.memory_space<vmem>>, vector<1x128x256xbf16>
    %172 = vector.shape_cast %171 : vector<1x128x256xbf16> to vector<128x256xbf16>
    %cst_196 = arith.constant dense<0.000000e+00> : vector<32x256xf32>
    %173 = tpu.matmul %170, %172, %cst_196 {dimension_numbers = #tpu.dot_dimension_numbers<[1], [0], [0], [1], [0, 0, 1, 1], [], []>} : vector<32x128xbf16>, vector<128x256xbf16>, vector<32x256xf32> -> vector<32x256xf32>
    %174 = arith.addf %166, %173 : vector<32x256xf32>
    %c0_197 = arith.constant 0 : index
    %c0_198 = arith.constant 0 : index
    %c0_199 = arith.constant 0 : index
    %c2_200 = arith.constant 2 : index
    %c1_201 = arith.constant 1 : index
    %c0_202 = arith.constant 0 : index
    %175 = vector.load %arg1[%c0_197, %c0_198, %c0_199, %c2_200, %c1_201, %c0_202] : memref<1x2x2x6x10x128xf32, #tpu.memory_space<vmem>>, vector<1x1x1x4x8x128xf32>
    %176 = vector.shape_cast %175 : vector<1x1x1x4x8x128xf32> to vector<1x4x8x128xf32>
    %177 = vector.shape_cast %176 : vector<1x4x8x128xf32> to vector<32x128xf32>
    %178 = arith.truncf %177 : vector<32x128xf32> to vector<32x128xbf16>
    %c22 = arith.constant 22 : index
    %c0_203 = arith.constant 0 : index
    %c0_204 = arith.constant 0 : index
    %179 = vector.load %arg2[%c22, %c0_203, %c0_204] : memref<25x128x256xbf16, #tpu.memory_space<vmem>>, vector<1x128x256xbf16>
    %180 = vector.shape_cast %179 : vector<1x128x256xbf16> to vector<128x256xbf16>
    %cst_205 = arith.constant dense<0.000000e+00> : vector<32x256xf32>
    %181 = tpu.matmul %178, %180, %cst_205 {dimension_numbers = #tpu.dot_dimension_numbers<[1], [0], [0], [1], [0, 0, 1, 1], [], []>} : vector<32x128xbf16>, vector<128x256xbf16>, vector<32x256xf32> -> vector<32x256xf32>
    %182 = arith.addf %174, %181 : vector<32x256xf32>
    %c0_206 = arith.constant 0 : index
    %c0_207 = arith.constant 0 : index
    %c1_208 = arith.constant 1 : index
    %c2_209 = arith.constant 2 : index
    %c1_210 = arith.constant 1 : index
    %c0_211 = arith.constant 0 : index
    %183 = vector.load %arg1[%c0_206, %c0_207, %c1_208, %c2_209, %c1_210, %c0_211] : memref<1x2x2x6x10x128xf32, #tpu.memory_space<vmem>>, vector<1x1x1x4x8x128xf32>
    %184 = vector.shape_cast %183 : vector<1x1x1x4x8x128xf32> to vector<1x4x8x128xf32>
    %185 = vector.shape_cast %184 : vector<1x4x8x128xf32> to vector<32x128xf32>
    %186 = arith.truncf %185 : vector<32x128xf32> to vector<32x128xbf16>
    %c23 = arith.constant 23 : index
    %c0_212 = arith.constant 0 : index
    %c0_213 = arith.constant 0 : index
    %187 = vector.load %arg2[%c23, %c0_212, %c0_213] : memref<25x128x256xbf16, #tpu.memory_space<vmem>>, vector<1x128x256xbf16>
    %188 = vector.shape_cast %187 : vector<1x128x256xbf16> to vector<128x256xbf16>
    %cst_214 = arith.constant dense<0.000000e+00> : vector<32x256xf32>
    %189 = tpu.matmul %186, %188, %cst_214 {dimension_numbers = #tpu.dot_dimension_numbers<[1], [0], [0], [1], [0, 0, 1, 1], [], []>} : vector<32x128xbf16>, vector<128x256xbf16>, vector<32x256xf32> -> vector<32x256xf32>
    %190 = arith.addf %182, %189 : vector<32x256xf32>
    %c0_215 = arith.constant 0 : index
    %c0_216 = arith.constant 0 : index
    %c0_217 = arith.constant 0 : index
    %c2_218 = arith.constant 2 : index
    %c2_219 = arith.constant 2 : index
    %c0_220 = arith.constant 0 : index
    %191 = vector.load %arg1[%c0_215, %c0_216, %c0_217, %c2_218, %c2_219, %c0_220] : memref<1x2x2x6x10x128xf32, #tpu.memory_space<vmem>>, vector<1x1x1x4x8x128xf32>
    %192 = vector.shape_cast %191 : vector<1x1x1x4x8x128xf32> to vector<1x4x8x128xf32>
    %193 = vector.shape_cast %192 : vector<1x4x8x128xf32> to vector<32x128xf32>
    %194 = arith.truncf %193 : vector<32x128xf32> to vector<32x128xbf16>
    %c24 = arith.constant 24 : index
    %c0_221 = arith.constant 0 : index
    %c0_222 = arith.constant 0 : index
    %195 = vector.load %arg2[%c24, %c0_221, %c0_222] : memref<25x128x256xbf16, #tpu.memory_space<vmem>>, vector<1x128x256xbf16>
    %196 = vector.shape_cast %195 : vector<1x128x256xbf16> to vector<128x256xbf16>
    %cst_223 = arith.constant dense<0.000000e+00> : vector<32x256xf32>
    %197 = tpu.matmul %194, %196, %cst_223 {dimension_numbers = #tpu.dot_dimension_numbers<[1], [0], [0], [1], [0, 0, 1, 1], [], []>} : vector<32x128xbf16>, vector<128x256xbf16>, vector<32x256xf32> -> vector<32x256xf32>
    %198 = arith.addf %190, %197 : vector<32x256xf32>
    %c0_224 = arith.constant 0 : index
    %c0_225 = arith.constant 0 : index
    %199 = vector.load %arg3[%c0_224, %c0_225] : memref<1x256xf32, #tpu.memory_space<vmem>>, vector<1x256xf32>
    %200 = vector.broadcast %199 : vector<1x256xf32> to vector<32x256xf32>
    %201 = arith.addf %198, %200 : vector<32x256xf32>
    %202 = vector.shape_cast %201 : vector<32x256xf32> to vector<1x32x256xf32>
    %c0_226 = arith.constant 0 : index
    %c0_227 = arith.constant 0 : index
    %203 = vector.load %arg4[%c0_226, %c0_227] : memref<32x256xf32, #tpu.memory_space<vmem>>, vector<32x256xf32>
    %204 = vector.shape_cast %203 : vector<32x256xf32> to vector<1x32x256xf32>
    %205 = arith.mulf %202, %204 : vector<1x32x256xf32>
    %cst_228 = arith.constant dense<0.000000e+00> : vector<1x256xf32>
    %206 = vector.multi_reduction <add>, %205, %cst_228 [1] : vector<1x32x256xf32> to vector<1x256xf32>
    %207 = vector.shape_cast %206 : vector<1x256xf32> to vector<1x1x256xf32>
    %cst_229 = arith.constant dense<0.000000e+00> : vector<1x1xf32>
    %208 = vector.multi_reduction <add>, %207, %cst_229 [2] : vector<1x1x256xf32> to vector<1x1xf32>
    %209 = vector.shape_cast %208 : vector<1x1xf32> to vector<1x1x1xf32>
    %210 = vector.shape_cast %209 : vector<1x1x1xf32> to vector<1x1xf32>
    %c0_230 = arith.constant 0 : index
    %c0_231 = arith.constant 0 : index
    %211 = vector.load %arg5[%c0_230, %c0_231] : memref<1x1xf32, #tpu.memory_space<vmem>>, vector<1x1xf32>
    %212 = arith.addf %210, %211 : vector<1x1xf32>
    %c0_232 = arith.constant 0 : index
    %c0_233 = arith.constant 0 : index
    %c0_234 = arith.constant 0 : index
    %213 = vector.load %arg6[%c0_232, %c0_233, %c0_234] : memref<1x8x1xf32, #tpu.memory_space<vmem>>, vector<1x1x1xf32>
    %214 = vector.shape_cast %213 : vector<1x1x1xf32> to vector<1x1xf32>
    %215 = vector.shape_cast %212 : vector<1x1xf32> to vector<1x1x1xf32>
    tpu.vector_store %arg6[%c0_232, %c0_233, %c0_234], %215 {strides = array<i32>} : memref<1x8x1xf32, #tpu.memory_space<vmem>>, vector<1x1x1xf32>,
    return
  }
  func.func @transform_0(%arg0: i32) -> (i32, i32, i32, i32, i32, i32) {
    %c0_i32 = arith.constant 0 : i32
    %c0_i32_0 = arith.constant 0 : i32
    %c0_i32_1 = arith.constant 0 : i32
    %c0_i32_2 = arith.constant 0 : i32
    %c0_i32_3 = arith.constant 0 : i32
    %c0_i32_4 = arith.constant 0 : i32
    return %arg0, %c0_i32, %c0_i32_0, %c0_i32_1, %c0_i32_2, %c0_i32_3 : i32, i32, i32, i32, i32, i32
  }
  func.func @transform_1(%arg0: i32) -> (i32, i32, i32) {
    %c0_i32 = arith.constant 0 : i32
    %c0_i32_0 = arith.constant 0 : i32
    %c0_i32_1 = arith.constant 0 : i32
    %c0_i32_2 = arith.constant 0 : i32
    return %c0_i32, %c0_i32_0, %c0_i32_1 : i32, i32, i32
  }
  func.func @transform_2(%arg0: i32) -> (i32, i32) {
    %c0_i32 = arith.constant 0 : i32
    %c0_i32_0 = arith.constant 0 : i32
    %c0_i32_1 = arith.constant 0 : i32
    return %c0_i32, %c0_i32_0 : i32, i32
  }
  func.func @transform_3(%arg0: i32) -> (i32, i32) {
    %c0_i32 = arith.constant 0 : i32
    %c0_i32_0 = arith.constant 0 : i32
    %c0_i32_1 = arith.constant 0 : i32
    return %c0_i32, %c0_i32_0 : i32, i32
  }
  func.func @transform_4(%arg0: i32) -> (i32, i32) {
    %c0_i32 = arith.constant 0 : i32
    %c0_i32_0 = arith.constant 0 : i32
    %c0_i32_1 = arith.constant 0 : i32
    return %c0_i32, %c0_i32_0 : i32, i32
  }
  func.func @transform_5(%arg0: i32) -> (i32, i32, i32) {
    %c0_i32 = arith.constant 0 : i32
    %c0_i32_0 = arith.constant 0 : i32
    %c0_i32_1 = arith.constant 0 : i32
    return %arg0, %c0_i32, %c0_i32_0 : i32, i32, i32
  }
}

</mosaic_0001>

<llo_original>
// kernel: discriminator_forward.3
$region0: #{discriminator_forward.3}
  #allocation0 [shape = 'u32[]', space=smem, size = 0x4, offset = 0x4, fixed_abs, tag = 'smem constant byte address 0x4 - core index']
  #allocation1 [shape = 'u32[144,128]{1,0:T(1,128)}', space=vmem, size = 0x12000, scoped, tag = 'internal scratch']
  %s0 = inlined_call_operand.vmem [shape: bf16[416,25], index: 0, kind: input, shape index: {}]
  %s1 = inlined_call_operand.vmem [shape: bf16[25,128], index: 1, kind: input, shape index: {}]
  %s2 = inlined_call_operand.vmem [shape: f32[1,128], index: 2, kind: input, shape index: {}]
  %s3 = inlined_call_operand.vmem [shape: f32[416,128], index: 3, kind: output, shape index: {}]
  %s4 = sld [smem:[#allocation0]]
  $region45: #{discriminator_forward.3} parent=0
    _
  %s6 = ssub.s32 1, %s4
  %s7 = scalar_select 0, %s6, %s4
  loop: start=0, step=1, limit=4
  $region2: #{discriminator_forward.3} parent=0 // loop_pre_header
    _
  $region3: #{discriminator_forward.3} parent=0 // loop_header
    %s9 = sphi 0, %s13
    %p10 = scmp.ge.s32.totalorder %s9, 4
    %s19 = sphi 0, %s21
    %s22 = sphi 0, %s19
    %s23 = sphi 0, %s22
    %s39 = sphi 0, %s23
    %s43 = sphi 0, %s43
    %s45 = sphi 0, %s43
    %s46 = sphi 0, %s45
    %s60 = sphi 0, %s46
    %s64 = sphi 0, %s64
    %s66 = sphi 0, %s64
    %s67 = sphi 0, %s66
    %s81 = sphi 0, %s67
    %s87 = sphi 0, %s89
    %s90 = sphi 0, %s87
    %s91 = sphi 0, %s90
    %s107 = sphi 0, %s91
  $region4: #{discriminator_forward.3} parent=0 // loop_header_branch
    %12 = sbr.rel (%p10) target = $region8
  $region5: #{discriminator_forward.3} parent=0 // loop_body
    %s14 = ssub.s32 %s9, 1
    %s15 = ssub.s32 %s9, 2
    %s16 = sadd.s32 %s9, 1
    %s17 = ssub.s32 %s9, %s16
    %p18 = scmp.eq.s32.totalorder %s17, 0
    %s20 = sadd.s32 %s19, 1
    %s21 = scalar_select %p18, %s19, %s20
    %p24 = pneg %p18
    %p25 = scmp.eq.s32.totalorder %s9, 1
    %p26 = por %p24, %p25
    %p27 = scmp.ne.s32.totalorder %s19, %s22
    %p28 = scmp.eq.s32.totalorder %s9, 0
    %p29 = por %p27, %p28
    %p30 = scmp.ne.s32.totalorder %s19, %s22
    %p31 = scmp.eq.s32.totalorder %s14, 1
    %p32 = por %p30, %p31
    %p33 = scmp.ne.s32.totalorder %s22, %s23
    %p34 = scmp.eq.s32.totalorder %s14, 0
    %p35 = por %p33, %p34
    %p36 = scmp.ne.s32.totalorder %s22, %s23
    %p37 = scmp.eq.s32.totalorder %s15, 1
    %p38 = por %p36, %p37
    %p40 = scmp.ne.s32.totalorder %s23, %s39
    %p41 = scmp.eq.s32.totalorder %s15, 0
    %p42 = por %p40, %p41
    %s44 = sadd.s32 %s43, 1
    %p47 = scmp.eq.s32.totalorder %s9, 1
    %p48 = scmp.ne.s32.totalorder %s43, %s45
    %p49 = scmp.eq.s32.totalorder %s9, 0
    %p50 = por %p48, %p49
    %p51 = scmp.ne.s32.totalorder %s43, %s45
    %p52 = scmp.eq.s32.totalorder %s14, 1
    %p53 = por %p51, %p52
    %p54 = scmp.ne.s32.totalorder %s45, %s46
    %p55 = scmp.eq.s32.totalorder %s14, 0
    %p56 = por %p54, %p55
    %p57 = scmp.ne.s32.totalorder %s45, %s46
    %p58 = scmp.eq.s32.totalorder %s15, 1
    %p59 = por %p57, %p58
    %p61 = scmp.ne.s32.totalorder %s46, %s60
    %p62 = scmp.eq.s32.totalorder %s15, 0
    %p63 = por %p61, %p62
    %s65 = sadd.s32 %s64, 1
    %p68 = scmp.eq.s32.totalorder %s9, 1
    %p69 = scmp.ne.s32.totalorder %s64, %s66
    %p70 = scmp.eq.s32.totalorder %s9, 0
    %p71 = por %p69, %p70
    %p72 = scmp.ne.s32.totalorder %s64, %s66
    %p73 = scmp.eq.s32.totalorder %s14, 1
    %p74 = por %p72, %p73
    %p75 = scmp.ne.s32.totalorder %s66, %s67
    %p76 = scmp.eq.s32.totalorder %s14, 0
    %p77 = por %p75, %p76
    %p78 = scmp.ne.s32.totalorder %s66, %s67
    %p79 = scmp.eq.s32.totalorder %s15, 1
    %p80 = por %p78, %p79
    %p82 = scmp.ne.s32.totalorder %s67, %s81
    %p83 = scmp.eq.s32.totalorder %s15, 0
    %p84 = por %p82, %p83
    %s85 = ssub.s32 %s9, %s16
    %p86 = scmp.eq.s32.totalorder %s85, 0
    %s88 = sadd.s32 %s87, 1
    %s89 = scalar_select %p86, %s87, %s88
    %p92 = pneg %p86
    %p93 = scmp.eq.s32.totalorder %s9, 1
    %p94 = por %p92, %p93
    %p95 = scmp.ne.s32.totalorder %s87, %s90
    %p96 = scmp.eq.s32.totalorder %s9, 0
    %p97 = por %p95, %p96
    %p98 = scmp.ne.s32.totalorder %s87, %s90
    %p99 = scmp.eq.s32.totalorder %s14, 1
    %p100 = por %p98, %p99
    %p101 = scmp.ne.s32.totalorder %s90, %s91
    %p102 = scmp.eq.s32.totalorder %s14, 0
    %p103 = por %p101, %p102
    %p104 = scmp.ne.s32.totalorder %s90, %s91
    %p105 = scmp.eq.s32.totalorder %s15, 1
    %p106 = por %p104, %p105
    %p108 = scmp.ne.s32.totalorder %s91, %s107
    %p109 = scmp.eq.s32.totalorder %s15, 0
    %p110 = por %p108, %p109
    %p111 = scmp.le.s32.totalorder 1, %s9
    %p112 = scmp.lt.s32.totalorder %s9, 3
    %p113 = pnand %p111, %p112
    %p114 = pneg %p113
    // Predicated region
    $region9: #{discriminator_forward.3} parent=5 // pred_check
      _
    $region10: #{discriminator_forward.3} parent=5 // pred_check_branch
      %116 = sbr.rel (%p113) target = $region12
    $region11: #{discriminator_forward.3} parent=5 // pred_region
      %s117 = ssub.s32 %s9, 1
      // Predicated region
      $region13: #{discriminator_forward.3} parent=11 // pred_check
        %p118 = pneg %p56
      $region14: #{discriminator_forward.3} parent=11 // pred_check_branch
        %120 = sbr.rel (%p118) target = $region16
      $region15: #{discriminator_forward.3} parent=11 // pred_region
        _
      $region16: #{discriminator_forward.3} parent=11 // pred_fallthru
        _
      // Predicated region
      $region17: #{discriminator_forward.3} parent=11 // pred_check
        %p121 = pneg %p77
      $region18: #{discriminator_forward.3} parent=11 // pred_check_branch
        %123 = sbr.rel (%p121) target = $region20
      $region19: #{discriminator_forward.3} parent=11 // pred_region
        _
      $region20: #{discriminator_forward.3} parent=11 // pred_fallthru
        _
    $region12: #{discriminator_forward.3} parent=5 // pred_fallthru
      _
    %p124 = scmp.lt.s32.totalorder %s9, 2
    // Predicated region
    $region21: #{discriminator_forward.3} parent=5 // pred_check
      %p125 = pneg %p124
    $region22: #{discriminator_forward.3} parent=5 // pred_check_branch
      %127 = sbr.rel (%p125) target = $region24
    $region23: #{discriminator_forward.3} parent=5 // pred_region
      // Predicated region
      $region25: #{discriminator_forward.3} parent=23 // pred_check
        %p128 = pneg %p29
      $region26: #{discriminator_forward.3} parent=23 // pred_check_branch
        %130 = sbr.rel (%p128) target = $region28
      $region27: #{discriminator_forward.3} parent=23 // pred_region
        %s131 = smul.u32 26, %s9
        %p132 = scmp.lt.s32.totalorder %s131, 51
        %s133 = scalar_select %p132, %s131, 51
        %s134 = smul.addr %s133, 4
        %s135 = scalar_lea.vmem %s0, %s134
        %s136 = smul.u32 26, %s9
      $region28: #{discriminator_forward.3} parent=23 // pred_fallthru
        _
    $region24: #{discriminator_forward.3} parent=5 // pred_fallthru
      _
    %p137 = scmp.le.s32.totalorder 1, %s9
    %p138 = scmp.lt.s32.totalorder %s9, 3
    %p139 = pnand %p137, %p138
    %p140 = pneg %p139
    // Predicated region
    $region29: #{discriminator_forward.3} parent=5 // pred_check
      _
    $region30: #{discriminator_forward.3} parent=5 // pred_check_branch
      %142 = sbr.rel (%p139) target = $region32
    $region31: #{discriminator_forward.3} parent=5 // pred_region
      %s143 = ssub.s32 %s9, 1
      %s144 = smul.u32 26, %s14
      %p145 = scmp.lt.s32.totalorder %s144, 51
      %s146 = scalar_select %p145, %s144, 51
      %s147 = smul.addr %s146, 4
      %s148 = scalar_lea.vmem %s0, %s147
      %p149 = pneg %p35
      %p150 = pneg %p32
      %p151 = pneg %p56
      %p152 = pneg %p53
      %p153 = pneg %p77
      %p154 = pneg %p74
      %p155 = pneg %p103
      %p156 = pneg %p100
      %s157 = smul.u32 26, %s14
      %p158 = scmp.lt.s32.totalorder %s157, 51
      %s159 = scalar_select %p158, %s157, 51
      %s160 = smul.addr %s159, 8
      %s161 = scalar_lea.vmem %s3, %s160
      %s162 = smul.u32 26, %s14
      %p163 = scmp.lt.s32.totalorder %s162, 51
      %s164 = scalar_select %p163, %s162, 51
      %s165 = smul.addr %s164, 4
      %s166 = scalar_lea.vmem %s0, %s165
      %s167 = smul.u32 26, %s14
      %s168 = smul.u32 26, %s14
      %p169 = scmp.lt.s32.totalorder %s168, 51
      %s170 = scalar_select %p169, %s168, 51
      %s171 = smul.addr %s170, 8
      %s172 = scalar_lea.vmem %s3, %s171
      %s173 = smul.u32 26, %s14
      %v175 = vld [vmem:[%s166] sm:$0xf]
      %v176 = vld [vmem:[%s166 + $0x4] sm:$0xf]
      %v177 = vld [vmem:[%s166 + $0x8] sm:$0xf]
      %v178 = vld [vmem:[%s166 + $0xc] sm:$0xf]
      %v179 = vld [vmem:[%s166 + $0x10] sm:$0xf]
      %v180 = vld [vmem:[%s166 + $0x14] sm:$0xf]
      %v181 = vld [vmem:[%s166 + $0x18] sm:$0xf]
      %v182 = vld [vmem:[%s166 + $0x1c] sm:$0xf]
      %v183 = vld [vmem:[%s166 + $0x20] sm:$0xf]
      %v184 = vld [vmem:[%s166 + $0x24] sm:$0xf]
      %v185 = vld [vmem:[%s166 + $0x28] sm:$0xf]
      %v186 = vld [vmem:[%s166 + $0x2c] sm:$0xf]
      %v187 = vld [vmem:[%s166 + $0x30] sm:$0xf]
      %v188 = vld [vmem:[%s166 + $0x34] sm:$0xf]
      %v189 = vld [vmem:[%s166 + $0x38] sm:$0xf]
      %v190 = vld [vmem:[%s166 + $0x3c] sm:$0xf]
      %v191 = vld [vmem:[%s166 + $0x40] sm:$0xf]
      %v192 = vld [vmem:[%s166 + $0x44] sm:$0xf]
      %v193 = vld [vmem:[%s166 + $0x48] sm:$0xf]
      %v194 = vld [vmem:[%s166 + $0x4c] sm:$0xf]
      %v195 = vld [vmem:[%s166 + $0x50] sm:$0xf]
      %v196 = vld [vmem:[%s166 + $0x54] sm:$0xf]
      %v197 = vld [vmem:[%s166 + $0x58] sm:$0xf]
      %v198 = vld [vmem:[%s166 + $0x5c] sm:$0xf]
      %v199 = vld [vmem:[%s166 + $0x60] sm:$0xf]
      %v200 = vld [vmem:[%s166 + $0x64] sm:$0xf]
      %v201 = vld [vmem:[%s1] sm:$0xf]
      %v202 = vld [vmem:[%s1 + $0x4] sm:$0xf]
      %v203 = vld [vmem:[%s1 + $0x8] sm:$0xf]
      %v204 = vld [vmem:[%s1 + $0xc] sm:$0x1]
      %v205 = vld [vmem:[%s2] sm:$0x1]
      %v207 = vlaneseq
      %v208 = vshrl.u32 %v207, 7
      %v209 = vsub.s32 0, %v208
      %v210 = vrot.slane %v205, %v209
      %v238 = vunpack.c.l.b16 %v175
      %v239 = vunpack.c.l.b16 %v176
      %v240 = vunpack.c.l.b16 %v177
      %v241 = vunpack.c.l.b16 %v178
      %v242 = vunpack.c.l.b16 %v179
      %v243 = vunpack.c.l.b16 %v180
      %v244 = vunpack.c.l.b16 %v181
      %v245 = vunpack.c.l.b16 %v182
      %v246 = vunpack.c.l.b16 %v183
      %v247 = vunpack.c.l.b16 %v184
      %v248 = vunpack.c.l.b16 %v185
      %v249 = vunpack.c.l.b16 %v186
      %v250 = vunpack.c.l.b16 %v187
      %v251 = vunpack.c.l.b16 %v188
      %v252 = vunpack.c.l.b16 %v189
      %v253 = vunpack.c.l.b16 %v190
      %v254 = vunpack.c.l.b16 %v191
      %v255 = vunpack.c.l.b16 %v192
      %v256 = vunpack.c.l.b16 %v193
      %v257 = vunpack.c.l.b16 %v194
      %v258 = vunpack.c.l.b16 %v195
      %v259 = vunpack.c.l.b16 %v196
      %v260 = vunpack.c.l.b16 %v197
      %v261 = vunpack.c.l.b16 %v198
      %v262 = vunpack.c.l.b16 %v199
      %v263 = vunpack.c.l.b16 %v200
      %v264 = vpack.c.b16 %v239, %v238
      %v265 = vpack.c.b16 %v241, %v240
      %v266 = vpack.c.b16 %v243, %v242
      %v267 = vpack.c.b16 %v245, %v244
      %v268 = vpack.c.b16 %v247, %v246
      %v269 = vpack.c.b16 %v249, %v248
      %v270 = vpack.c.b16 %v251, %v250
      %v271 = vpack.c.b16 %v253, %v252
      %v272 = vpack.c.b16 %v255, %v254
      %v273 = vpack.c.b16 %v257, %v256
      %v274 = vpack.c.b16 %v259, %v258
      %v275 = vpack.c.b16 %v261, %v260
      %v276 = vpack.c.b16 %v263, %v262
      %v281 = vunpack.c.l.b16 %v201
      %v282 = vunpack.c.l.b16 %v202
      %v283 = vunpack.c.l.b16 %v203
      %v284 = vunpack.c.l.b16 %v204
      %v285 = vpack.c.b16 %v282, %v281
      %v286 = vpack.c.b16 %v284, %v283
      %vm288 = vcmask 203776
      %v290 = vsel %vm288, %v264, 0
      %v293 = vsel %vm288, %v265, 0
      %v296 = vsel %vm288, %v266, 0
      %v299 = vsel %vm288, %v267, 0
      %v302 = vsel %vm288, %v268, 0
      %v305 = vsel %vm288, %v269, 0
      %v308 = vsel %vm288, %v270, 0
      %v311 = vsel %vm288, %v271, 0
      %v314 = vsel %vm288, %v272, 0
      %v317 = vsel %vm288, %v273, 0
      %v320 = vsel %vm288, %v274, 0
      %v323 = vsel %vm288, %v275, 0
      %v326 = vsel %vm288, %v276, 0
      %vm328 = vcmask 1043456
      %vm329 = vcmask 1044480
      %v330 = vsel %vm328, 4294967295, 65535
      %v331 = vsel %vm329, %v330, 0
      %v333 = vand.u32 %v286, %v331
      %335 = vmatprep.subr.bf16.mxu0 0
      %336 = vmatpush1.bf16.msra.mxu0 %v285
      %337 = vmatprep.subr.bf16.mxu0 0
      %338 = vmatpush1.bf16.msra.mxu0 %v333
      %339 = vmatprep.subr.bf16.mxu0 0
      %340 = vmatpush1.bf16.msra.mxu0 0
      %341 = vmatprep.subr.bf16.mxu0 0
      %342 = vmatpush1.bf16.msra.mxu0 0
      %343 = vmatprep.subr.bf16.mxu0 0
      %344 = vmatpush1.bf16.msra.mxu0 0
      %345 = vmatprep.subr.bf16.mxu0 0
      %346 = vmatpush1.bf16.msra.mxu0 0
      %347 = vmatprep.subr.bf16.mxu0 0
      %348 = vmatpush1.bf16.msra.mxu0 0
      %349 = vmatprep.subr.bf16.mxu0 0
      %350 = vmatpush1.bf16.msra.mxu0 0
      %351 = vmatprep.subr.bf16.mxu0 0
      %352 = vmatpush1.bf16.msra.mxu0 0
      %353 = vmatprep.subr.bf16.mxu0 0
      %354 = vmatpush1.bf16.msra.mxu0 0
      %355 = vmatprep.subr.bf16.mxu0 0
      %356 = vmatpush1.bf16.msra.mxu0 0
      %357 = vmatprep.subr.bf16.mxu0 0
      %358 = vmatpush1.bf16.msra.mxu0 0
      %359 = vmatprep.subr.bf16.mxu0 0
      %360 = vmatpush1.bf16.msra.mxu0 0
      %361 = vmatprep.subr.bf16.mxu0 0
      %362 = vmatpush1.bf16.msra.mxu0 0
      %363 = vmatprep.subr.bf16.mxu0 0
      %364 = vmatpush1.bf16.msra.mxu0 0
      %365 = vmatprep.subr.bf16.mxu0 0
      %366 = vmatpush1.bf16.msra.mxu0 0
      %367 = vmatprep.mubr.bf16.mxu0 0
      %368 = vmatmul.mubr.bf16.gmra.mrb[0].mxu0 %v290
      %v369 = vpop.f32.mrb[0].mxu0
      %v370 = vadd.f32 %v210, %v369
      %v371 = vpop.f32.mrb[0].mxu0
      %v372 = vpop.f32.mrb[0].mxu0
      %v373 = vadd.f32 %v210, %v372
      %v374 = vpop.f32.mrb[0].mxu0
      %375 = vmatprep.mubr.bf16.mxu0 0
      %376 = vmatmul.mubr.bf16.gmra.mrb[0].mxu0 %v293
      %v377 = vpop.f32.mrb[0].mxu0
      %v378 = vadd.f32 %v210, %v377
      %v379 = vpop.f32.mrb[0].mxu0
      %v380 = vpop.f32.mrb[0].mxu0
      %v381 = vadd.f32 %v210, %v380
      %v382 = vpop.f32.mrb[0].mxu0
      %383 = vmatprep.mubr.bf16.mxu0 0
      %384 = vmatmul.mubr.bf16.gmra.mrb[0].mxu0 %v296
      %v385 = vpop.f32.mrb[0].mxu0
      %v386 = vadd.f32 %v210, %v385
      %v387 = vpop.f32.mrb[0].mxu0
      %v388 = vpop.f32.mrb[0].mxu0
      %v389 = vadd.f32 %v210, %v388
      %v390 = vpop.f32.mrb[0].mxu0
      %391 = vmatprep.mubr.bf16.mxu0 0
      %392 = vmatmul.mubr.bf16.gmra.mrb[0].mxu0 %v299
      %v393 = vpop.f32.mrb[0].mxu0
      %v394 = vadd.f32 %v210, %v393
      %v395 = vpop.f32.mrb[0].mxu0
      %v396 = vpop.f32.mrb[0].mxu0
      %v397 = vadd.f32 %v210, %v396
      %v398 = vpop.f32.mrb[0].mxu0
      %399 = vmatprep.mubr.bf16.mxu0 0
      %400 = vmatmul.mubr.bf16.gmra.mrb[0].mxu0 %v302
      %v401 = vpop.f32.mrb[0].mxu0
      %v402 = vadd.f32 %v210, %v401
      %v403 = vpop.f32.mrb[0].mxu0
      %v404 = vpop.f32.mrb[0].mxu0
      %v405 = vadd.f32 %v210, %v404
      %v406 = vpop.f32.mrb[0].mxu0
      %407 = vmatprep.mubr.bf16.mxu0 0
      %408 = vmatmul.mubr.bf16.gmra.mrb[0].mxu0 %v305
      %v409 = vpop.f32.mrb[0].mxu0
      %v410 = vadd.f32 %v210, %v409
      %v411 = vpop.f32.mrb[0].mxu0
      %v412 = vpop.f32.mrb[0].mxu0
      %v413 = vadd.f32 %v210, %v412
      %v414 = vpop.f32.mrb[0].mxu0
      %415 = vmatprep.mubr.bf16.mxu0 0
      %416 = vmatmul.mubr.bf16.gmra.mrb[0].mxu0 %v308
      %v417 = vpop.f32.mrb[0].mxu0
      %v418 = vadd.f32 %v210, %v417
      %v419 = vpop.f32.mrb[0].mxu0
      %v420 = vpop.f32.mrb[0].mxu0
      %v421 = vadd.f32 %v210, %v420
      %v422 = vpop.f32.mrb[0].mxu0
      %423 = vmatprep.mubr.bf16.mxu0 0
      %424 = vmatmul.mubr.bf16.gmra.mrb[0].mxu0 %v311
      %v425 = vpop.f32.mrb[0].mxu0
      %v426 = vadd.f32 %v210, %v425
      %v427 = vpop.f32.mrb[0].mxu0
      %v428 = vpop.f32.mrb[0].mxu0
      %v429 = vadd.f32 %v210, %v428
      %v430 = vpop.f32.mrb[0].mxu0
      %431 = vmatprep.mubr.bf16.mxu0 0
      %432 = vmatmul.mubr.bf16.gmra.mrb[0].mxu0 %v314
      %v433 = vpop.f32.mrb[0].mxu0
      %v434 = vadd.f32 %v210, %v433
      %v435 = vpop.f32.mrb[0].mxu0
      %v436 = vpop.f32.mrb[0].mxu0
      %v437 = vadd.f32 %v210, %v436
      %v438 = vpop.f32.mrb[0].mxu0
      %439 = vmatprep.mubr.bf16.mxu0 0
      %440 = vmatmul.mubr.bf16.gmra.mrb[0].mxu0 %v317
      %v441 = vpop.f32.mrb[0].mxu0
      %v442 = vadd.f32 %v210, %v441
      %v443 = vpop.f32.mrb[0].mxu0
      %v444 = vpop.f32.mrb[0].mxu0
      %v445 = vadd.f32 %v210, %v444
      %v446 = vpop.f32.mrb[0].mxu0
      %447 = vmatprep.mubr.bf16.mxu0 0
      %448 = vmatmul.mubr.bf16.gmra.mrb[0].mxu0 %v320
      %v449 = vpop.f32.mrb[0].mxu0
      %v450 = vadd.f32 %v210, %v449
      %v451 = vpop.f32.mrb[0].mxu0
      %v452 = vpop.f32.mrb[0].mxu0
      %v453 = vadd.f32 %v210, %v452
      %v454 = vpop.f32.mrb[0].mxu0
      %455 = vmatprep.mubr.bf16.mxu0 0
      %456 = vmatmul.mubr.bf16.gmra.mrb[0].mxu0 %v323
      %v457 = vpop.f32.mrb[0].mxu0
      %v458 = vadd.f32 %v210, %v457
      %v459 = vpop.f32.mrb[0].mxu0
      %v460 = vpop.f32.mrb[0].mxu0
      %v461 = vadd.f32 %v210, %v460
      %v462 = vpop.f32.mrb[0].mxu0
      %463 = vmatprep.mubr.bf16.mxu0 0
      %464 = vmatmul.mubr.bf16.gmra.mrb[0].mxu0 %v326
      %v465 = vpop.f32.mrb[0].mxu0
      %v466 = vadd.f32 %v210, %v465
      %v467 = vpop.f32.mrb[0].mxu0
      %v468 = vpop.f32.mrb[0].mxu0
      %v469 = vadd.f32 %v210, %v468
      %v470 = vpop.f32.mrb[0].mxu0
      %471 = vdwg.mxu0
      %472 = vst [vmem:[%s172] sm:$0xff] %v370
      %473 = vst [vmem:[%s172 + $0x8] sm:$0xff] %v373
      %474 = vst [vmem:[%s172 + $0x10] sm:$0xff] %v378
      %475 = vst [vmem:[%s172 + $0x18] sm:$0xff] %v381
      %476 = vst [vmem:[%s172 + $0x20] sm:$0xff] %v386
      %477 = vst [vmem:[%s172 + $0x28] sm:$0xff] %v389
      %478 = vst [vmem:[%s172 + $0x30] sm:$0xff] %v394
      %479 = vst [vmem:[%s172 + $0x38] sm:$0xff] %v397
      %480 = vst [vmem:[%s172 + $0x40] sm:$0xff] %v402
      %481 = vst [vmem:[%s172 + $0x48] sm:$0xff] %v405
      %482 = vst [vmem:[%s172 + $0x50] sm:$0xff] %v410
      %483 = vst [vmem:[%s172 + $0x58] sm:$0xff] %v413
      %484 = vst [vmem:[%s172 + $0x60] sm:$0xff] %v418
      %485 = vst [vmem:[%s172 + $0x68] sm:$0xff] %v421
      %486 = vst [vmem:[%s172 + $0x70] sm:$0xff] %v426
      %487 = vst [vmem:[%s172 + $0x78] sm:$0xff] %v429
      %488 = vst [vmem:[%s172 + $0x80] sm:$0xff] %v434
      %489 = vst [vmem:[%s172 + $0x88] sm:$0xff] %v437
      %490 = vst [vmem:[%s172 + $0x90] sm:$0xff] %v442
      %491 = vst [vmem:[%s172 + $0x98] sm:$0xff] %v445
      %492 = vst [vmem:[%s172 + $0xa0] sm:$0xff] %v450
      %493 = vst [vmem:[%s172 + $0xa8] sm:$0xff] %v453
      %494 = vst [vmem:[%s172 + $0xb0] sm:$0xff] %v458
      %495 = vst [vmem:[%s172 + $0xb8] sm:$0xff] %v461
      %496 = vst [vmem:[%s172 + $0xc0] sm:$0xff] %v466
      %497 = vst [vmem:[%s172 + $0xc8] sm:$0xff] %v469
      %s498 = smul.u32 26, %s14
      %p499 = scmp.lt.s32.totalorder %s498, 51
      %s500 = scalar_select %p499, %s498, 51
      %s501 = smul.addr %s500, 8
      %s502 = scalar_lea.vmem %s3, %s501
      // Predicated region
      $region33: #{discriminator_forward.3} parent=31 // pred_check
        %p503 = pneg %p100
      $region34: #{discriminator_forward.3} parent=31 // pred_check_branch
        %505 = sbr.rel (%p503) target = $region36
      $region35: #{discriminator_forward.3} parent=31 // pred_region
        %s506 = smul.u32 26, %s14
      $region36: #{discriminator_forward.3} parent=31 // pred_fallthru
        _
    $region32: #{discriminator_forward.3} parent=5 // pred_fallthru
      _
    %p507 = scmp.le.s32.totalorder 2, %s9
    // Predicated region
    $region37: #{discriminator_forward.3} parent=5 // pred_check
      %p508 = pneg %p507
    $region38: #{discriminator_forward.3} parent=5 // pred_check_branch
      %510 = sbr.rel (%p508) target = $region40
    $region39: #{discriminator_forward.3} parent=5 // pred_region
      %s511 = ssub.s32 %s9, 2
      // Predicated region
      $region41: #{discriminator_forward.3} parent=39 // pred_check
        %p512 = pneg %p106
      $region42: #{discriminator_forward.3} parent=39 // pred_check_branch
        %514 = sbr.rel (%p512) target = $region44
      $region43: #{discriminator_forward.3} parent=39 // pred_region
        %s515 = smul.u32 26, %s15
        %p516 = scmp.lt.s32.totalorder %s515, 51
        %s517 = scalar_select %p516, %s515, 51
        %s518 = smul.addr %s517, 8
        %s519 = scalar_lea.vmem %s3, %s518
      $region44: #{discriminator_forward.3} parent=39 // pred_fallthru
        _
    $region40: #{discriminator_forward.3} parent=5 // pred_fallthru
      _
  $region6: #{discriminator_forward.3} parent=0 // loop_footer
    %s13 = sadd.s32 1, %s9
  $region7: #{discriminator_forward.3} parent=0 // loop_footer_branch
    %8 = sbr.rel target = $region3
  $region8: #{discriminator_forward.3} parent=0 // loop_exit
    _

// kernel: discriminator_forward.4
$region0: #{discriminator_forward.4}
  #allocation0 [shape = 'u32[]', space=smem, size = 0x4, offset = 0x4, fixed_abs, tag = 'smem constant byte address 0x4 - core index']
  #allocation1 [shape = 'u32[144,128]{1,0:T(1,128)}', space=vmem, size = 0x12000, scoped, tag = 'internal scratch']
  %s0 = inlined_call_operand.vmem [shape: f32[2,2,2,9,10,64], index: 0, kind: input, shape index: {}]
  %s1 = inlined_call_operand.vmem [shape: bf16[25,64,128], index: 1, kind: input, shape index: {}]
  %s2 = inlined_call_operand.vmem [shape: f32[1,128], index: 2, kind: input, shape index: {}]
  %s3 = inlined_call_operand.vmem [shape: f32[112,128], index: 3, kind: output, shape index: {}]
  %s4 = sld [smem:[#allocation0]]
  $region45: #{discriminator_forward.4} parent=0
    _
  %s6 = ssub.s32 1, %s4
  %s7 = scalar_select 0, %s6, %s4
  loop: start=0, step=1, limit=4
  $region2: #{discriminator_forward.4} parent=0 // loop_pre_header
    _
  $region3: #{discriminator_forward.4} parent=0 // loop_header
    %s9 = sphi 0, %s13
    %p10 = scmp.ge.s32.totalorder %s9, 4
    %s19 = sphi 0, %s21
    %s22 = sphi 0, %s19
    %s23 = sphi 0, %s22
    %s39 = sphi 0, %s23
    %s43 = sphi 0, %s43
    %s45 = sphi 0, %s43
    %s46 = sphi 0, %s45
    %s60 = sphi 0, %s46
    %s64 = sphi 0, %s64
    %s66 = sphi 0, %s64
    %s67 = sphi 0, %s66
    %s81 = sphi 0, %s67
    %s87 = sphi 0, %s89
    %s90 = sphi 0, %s87
    %s91 = sphi 0, %s90
    %s107 = sphi 0, %s91
  $region4: #{discriminator_forward.4} parent=0 // loop_header_branch
    %12 = sbr.rel (%p10) target = $region8
  $region5: #{discriminator_forward.4} parent=0 // loop_body
    %s14 = ssub.s32 %s9, 1
    %s15 = ssub.s32 %s9, 2
    %s16 = sadd.s32 %s9, 1
    %s17 = ssub.s32 %s9, %s16
    %p18 = scmp.eq.s32.totalorder %s17, 0
    %s20 = sadd.s32 %s19, 1
    %s21 = scalar_select %p18, %s19, %s20
    %p24 = pneg %p18
    %p25 = scmp.eq.s32.totalorder %s9, 1
    %p26 = por %p24, %p25
    %p27 = scmp.ne.s32.totalorder %s19, %s22
    %p28 = scmp.eq.s32.totalorder %s9, 0
    %p29 = por %p27, %p28
    %p30 = scmp.ne.s32.totalorder %s19, %s22
    %p31 = scmp.eq.s32.totalorder %s14, 1
    %p32 = por %p30, %p31
    %p33 = scmp.ne.s32.totalorder %s22, %s23
    %p34 = scmp.eq.s32.totalorder %s14, 0
    %p35 = por %p33, %p34
    %p36 = scmp.ne.s32.totalorder %s22, %s23
    %p37 = scmp.eq.s32.totalorder %s15, 1
    %p38 = por %p36, %p37
    %p40 = scmp.ne.s32.totalorder %s23, %s39
    %p41 = scmp.eq.s32.totalorder %s15, 0
    %p42 = por %p40, %p41
    %s44 = sadd.s32 %s43, 1
    %p47 = scmp.eq.s32.totalorder %s9, 1
    %p48 = scmp.ne.s32.totalorder %s43, %s45
    %p49 = scmp.eq.s32.totalorder %s9, 0
    %p50 = por %p48, %p49
    %p51 = scmp.ne.s32.totalorder %s43, %s45
    %p52 = scmp.eq.s32.totalorder %s14, 1
    %p53 = por %p51, %p52
    %p54 = scmp.ne.s32.totalorder %s45, %s46
    %p55 = scmp.eq.s32.totalorder %s14, 0
    %p56 = por %p54, %p55
    %p57 = scmp.ne.s32.totalorder %s45, %s46
    %p58 = scmp.eq.s32.totalorder %s15, 1
    %p59 = por %p57, %p58
    %p61 = scmp.ne.s32.totalorder %s46, %s60
    %p62 = scmp.eq.s32.totalorder %s15, 0
    %p63 = por %p61, %p62
    %s65 = sadd.s32 %s64, 1
    %p68 = scmp.eq.s32.totalorder %s9, 1
    %p69 = scmp.ne.s32.totalorder %s64, %s66
    %p70 = scmp.eq.s32.totalorder %s9, 0
    %p71 = por %p69, %p70
    %p72 = scmp.ne.s32.totalorder %s64, %s66
    %p73 = scmp.eq.s32.totalorder %s14, 1
    %p74 = por %p72, %p73
    %p75 = scmp.ne.s32.totalorder %s66, %s67
    %p76 = scmp.eq.s32.totalorder %s14, 0
    %p77 = por %p75, %p76
    %p78 = scmp.ne.s32.totalorder %s66, %s67
    %p79 = scmp.eq.s32.totalorder %s15, 1
    %p80 = por %p78, %p79
    %p82 = scmp.ne.s32.totalorder %s67, %s81
    %p83 = scmp.eq.s32.totalorder %s15, 0
    %p84 = por %p82, %p83
    %s85 = ssub.s32 %s9, %s16
    %p86 = scmp.eq.s32.totalorder %s85, 0
    %s88 = sadd.s32 %s87, 1
    %s89 = scalar_select %p86, %s87, %s88
    %p92 = pneg %p86
    %p93 = scmp.eq.s32.totalorder %s9, 1
    %p94 = por %p92, %p93
    %p95 = scmp.ne.s32.totalorder %s87, %s90
    %p96 = scmp.eq.s32.totalorder %s9, 0
    %p97 = por %p95, %p96
    %p98 = scmp.ne.s32.totalorder %s87, %s90
    %p99 = scmp.eq.s32.totalorder %s14, 1
    %p100 = por %p98, %p99
    %p101 = scmp.ne.s32.totalorder %s90, %s91
    %p102 = scmp.eq.s32.totalorder %s14, 0
    %p103 = por %p101, %p102
    %p104 = scmp.ne.s32.totalorder %s90, %s91
    %p105 = scmp.eq.s32.totalorder %s15, 1
    %p106 = por %p104, %p105
    %p108 = scmp.ne.s32.totalorder %s91, %s107
    %p109 = scmp.eq.s32.totalorder %s15, 0
    %p110 = por %p108, %p109
    %p111 = scmp.le.s32.totalorder 1, %s9
    %p112 = scmp.lt.s32.totalorder %s9, 3
    %p113 = pnand %p111, %p112
    %p114 = pneg %p113
    // Predicated region
    $region9: #{discriminator_forward.4} parent=5 // pred_check
      _
    $region10: #{discriminator_forward.4} parent=5 // pred_check_branch
      %116 = sbr.rel (%p113) target = $region12
    $region11: #{discriminator_forward.4} parent=5 // pred_region
      %s117 = ssub.s32 %s9, 1
      // Predicated region
      $region13: #{discriminator_forward.4} parent=11 // pred_check
        %p118 = pneg %p56
      $region14: #{discriminator_forward.4} parent=11 // pred_check_branch
        %120 = sbr.rel (%p118) target = $region16
      $region15: #{discriminator_forward.4} parent=11 // pred_region
        _
      $region16: #{discriminator_forward.4} parent=11 // pred_fallthru
        _
      // Predicated region
      $region17: #{discriminator_forward.4} parent=11 // pred_check
        %p121 = pneg %p77
      $region18: #{discriminator_forward.4} parent=11 // pred_check_branch
        %123 = sbr.rel (%p121) target = $region20
      $region19: #{discriminator_forward.4} parent=11 // pred_region
        _
      $region20: #{discriminator_forward.4} parent=11 // pred_fallthru
        _
    $region12: #{discriminator_forward.4} parent=5 // pred_fallthru
      _
    %p124 = scmp.lt.s32.totalorder %s9, 2
    // Predicated region
    $region21: #{discriminator_forward.4} parent=5 // pred_check
      %p125 = pneg %p124
    $region22: #{discriminator_forward.4} parent=5 // pred_check_branch
      %127 = sbr.rel (%p125) target = $region24
    $region23: #{discriminator_forward.4} parent=5 // pred_region
      // Predicated region
      $region25: #{discriminator_forward.4} parent=23 // pred_check
        %p128 = pneg %p29
      $region26: #{discriminator_forward.4} parent=23 // pred_check_branch
        %130 = sbr.rel (%p128) target = $region28
      $region27: #{discriminator_forward.4} parent=23 // pred_region
        %p131 = scmp.lt.s32.totalorder %s9, 1
        %s132 = scalar_select %p131, %s9, 1
        %s133 = smul.addr %s132, 72
        %s134 = smul.addr %s133, 8
        %s135 = scalar_lea.vmem %s0, %s134
      $region28: #{discriminator_forward.4} parent=23 // pred_fallthru
        _
    $region24: #{discriminator_forward.4} parent=5 // pred_fallthru
      _
    %p136 = scmp.le.s32.totalorder 1, %s9
    %p137 = scmp.lt.s32.totalorder %s9, 3
    %p138 = pnand %p136, %p137
    %p139 = pneg %p138
    // Predicated region
    $region29: #{discriminator_forward.4} parent=5 // pred_check
      _
    $region30: #{discriminator_forward.4} parent=5 // pred_check_branch
      %141 = sbr.rel (%p138) target = $region32
    $region31: #{discriminator_forward.4} parent=5 // pred_region
      %s142 = ssub.s32 %s9, 1
      %p143 = scmp.lt.s32.totalorder %s14, 1
      %s144 = scalar_select %p143, %s14, 1
      %s145 = smul.addr %s144, 72
      %s146 = smul.addr %s145, 8
      %s147 = scalar_lea.vmem %s0, %s146
      %p148 = pneg %p35
      %p149 = pneg %p32
      %p150 = pneg %p56
      %p151 = pneg %p53
      %p152 = pneg %p77
      %p153 = pneg %p74
      %p154 = pneg %p103
      %p155 = pneg %p100
      %s156 = smul.u32 7, %s14
      %p157 = scmp.lt.s32.totalorder %s156, 13
      %s158 = scalar_select %p157, %s156, 13
      %s159 = smul.addr %s158, 8
      %s160 = scalar_lea.vmem %s3, %s159
      %p161 = scmp.lt.s32.totalorder %s14, 1
      %s162 = scalar_select %p161, %s14, 1
      %s163 = smul.addr %s162, 72
      %s164 = smul.addr %s163, 8
      %s165 = scalar_lea.vmem %s0, %s164
      %s166 = smul.u32 7, %s14
      %p167 = scmp.lt.s32.totalorder %s166, 13
      %s168 = scalar_select %p167, %s166, 13
      %s169 = smul.addr %s168, 8
      %s170 = scalar_lea.vmem %s3, %s169
      %s171 = smul.u32 7, %s14
      %v173 = vld [vmem:[%s165] sm:$0xff]
      %v174 = vld [vmem:[%s165 + $0x10] sm:$0xff]
      %v175 = vld [vmem:[%s165 + $0x20] sm:$0xff]
      %v176 = vld [vmem:[%s165 + $0x30] sm:$0xff]
      %v177 = vld [vmem:[%s165 + $0x40] sm:$0xff]
      %v178 = vld [vmem:[%s165 + $0x50] sm:$0xff]
      %v179 = vld [vmem:[%s165 + $0x60] sm:$0xff]
      %v180 = vpack.c.bf16 %v174, %v173
      %v181 = vpack.c.bf16 %v176, %v175
      %v182 = vpack.c.bf16 %v178, %v177
      %v183 = vpack.c.bf16 %v179, %v179
      %v184 = vld [vmem:[%s1] sm:$0xf]
      %v185 = vld [vmem:[%s1 + $0x4] sm:$0xf]
      %v186 = vld [vmem:[%s1 + $0x8] sm:$0xf]
      %v187 = vld [vmem:[%s1 + $0xc] sm:$0xf]
      %v188 = vld [vmem:[%s1 + $0x10] sm:$0xf]
      %v189 = vld [vmem:[%s1 + $0x14] sm:$0xf]
      %v190 = vld [vmem:[%s1 + $0x18] sm:$0xf]
      %v191 = vld [vmem:[%s1 + $0x1c] sm:$0xf]
      %s192 = scalar_lea.vmem %s165, 144
      %v193 = vld [vmem:[%s192] sm:$0xff]
      %v194 = vld [vmem:[%s192 + $0x10] sm:$0xff]
      %v195 = vld [vmem:[%s192 + $0x20] sm:$0xff]
      %v196 = vld [vmem:[%s192 + $0x30] sm:$0xff]
      %v197 = vld [vmem:[%s192 + $0x40] sm:$0xff]
      %v198 = vld [vmem:[%s192 + $0x50] sm:$0xff]
      %v199 = vld [vmem:[%s192 + $0x60] sm:$0xff]
      %v200 = vpack.c.bf16 %v194, %v193
      %v201 = vpack.c.bf16 %v196, %v195
      %v202 = vpack.c.bf16 %v198, %v197
      %v203 = vpack.c.bf16 %v199, %v199
      %s204 = scalar_lea.vmem %s1, 32
      %v205 = vld [vmem:[%s204] sm:$0xf]
      %v206 = vld [vmem:[%s204 + $0x4] sm:$0xf]
      %v207 = vld [vmem:[%s204 + $0x8] sm:$0xf]
      %v208 = vld [vmem:[%s204 + $0xc] sm:$0xf]
      %v209 = vld [vmem:[%s204 + $0x10] sm:$0xf]
      %v210 = vld [vmem:[%s204 + $0x14] sm:$0xf]
      %v211 = vld [vmem:[%s204 + $0x18] sm:$0xf]
      %v212 = vld [vmem:[%s204 + $0x1c] sm:$0xf]
      %v221 = vunpack.c.l.b16 %v205
      %v222 = vunpack.c.l.b16 %v206
      %v223 = vunpack.c.l.b16 %v207
      %v224 = vunpack.c.l.b16 %v208
      %v225 = vunpack.c.l.b16 %v209
      %v226 = vunpack.c.l.b16 %v210
      %v227 = vunpack.c.l.b16 %v211
      %v228 = vunpack.c.l.b16 %v212
      %v229 = vpack.c.b16 %v222, %v221
      %v230 = vpack.c.b16 %v224, %v223
      %v231 = vpack.c.b16 %v226, %v225
      %v232 = vpack.c.b16 %v228, %v227
      %vm237 = vcmask 523264
      %v239 = vsel %vm237, %v200, 0
      %v242 = vsel %vm237, %v201, 0
      %v245 = vsel %vm237, %v202, 0
      %v248 = vsel %vm237, %v203, 0
      %250 = vmatprep.subr.bf16.mxu0 0
      %251 = vmatpush1.bf16.msra.mxu0 %v229
      %252 = vmatprep.subr.bf16.mxu0 0
      %253 = vmatpush1.bf16.msra.mxu0 %v230
      %254 = vmatprep.subr.bf16.mxu0 0
      %255 = vmatpush1.bf16.msra.mxu0 %v231
      %256 = vmatprep.subr.bf16.mxu0 0
      %257 = vmatpush1.bf16.msra.mxu0 %v232
      %258 = vmatprep.subr.bf16.mxu0 0
      %259 = vmatpush1.bf16.msra.mxu0 0
      %260 = vmatprep.subr.bf16.mxu0 0
      %261 = vmatpush1.bf16.msra.mxu0 0
      %262 = vmatprep.subr.bf16.mxu0 0
      %263 = vmatpush1.bf16.msra.mxu0 0
      %264 = vmatprep.subr.bf16.mxu0 0
      %265 = vmatpush1.bf16.msra.mxu0 0
      %266 = vmatprep.subr.bf16.mxu0 0
      %267 = vmatpush1.bf16.msra.mxu0 0
      %268 = vmatprep.subr.bf16.mxu0 0
      %269 = vmatpush1.bf16.msra.mxu0 0
      %270 = vmatprep.subr.bf16.mxu0 0
      %271 = vmatpush1.bf16.msra.mxu0 0
      %272 = vmatprep.subr.bf16.mxu0 0
      %273 = vmatpush1.bf16.msra.mxu0 0
      %274 = vmatprep.subr.bf16.mxu0 0
      %275 = vmatpush1.bf16.msra.mxu0 0
      %276 = vmatprep.subr.bf16.mxu0 0
      %277 = vmatpush1.bf16.msra.mxu0 0
      %278 = vmatprep.subr.bf16.mxu0 0
      %279 = vmatpush1.bf16.msra.mxu0 0
      %280 = vmatprep.subr.bf16.mxu0 0
      %281 = vmatpush1.bf16.msra.mxu0 0
      %282 = vmatprep.mubr.bf16.mxu0 0
      %283 = vmatmul.mubr.bf16.gmra.mrb[0].mxu0 %v239
      %v284 = vpop.f32.mrb[0].mxu0
      %v285 = vadd.f32 0.0, %v284
      %v286 = vpop.f32.mrb[0].mxu0
      %v287 = vpop.f32.mrb[0].mxu0
      %v288 = vadd.f32 0.0, %v287
      %v289 = vpop.f32.mrb[0].mxu0
      %290 = vmatprep.mubr.bf16.mxu0 0
      %291 = vmatmul.mubr.bf16.gmra.mrb[0].mxu0 %v242
      %v292 = vpop.f32.mrb[0].mxu0
      %v293 = vadd.f32 0.0, %v292
      %v294 = vpop.f32.mrb[0].mxu0
      %v295 = vpop.f32.mrb[0].mxu0
      %v296 = vadd.f32 0.0, %v295
      %v297 = vpop.f32.mrb[0].mxu0
      %298 = vmatprep.mubr.bf16.mxu0 0
      %299 = vmatmul.mubr.bf16.gmra.mrb[0].mxu0 %v245
      %v300 = vpop.f32.mrb[0].mxu0
      %v301 = vadd.f32 0.0, %v300
      %v302 = vpop.f32.mrb[0].mxu0
      %v303 = vpop.f32.mrb[0].mxu0
      %v304 = vadd.f32 0.0, %v303
      %v305 = vpop.f32.mrb[0].mxu0
      %306 = vmatprep.mubr.bf16.mxu0 0
      %307 = vmatmul.mubr.bf16.gmra.mrb[0].mxu0 %v248
      %v308 = vpop.f32.mrb[0].mxu0
      %v309 = vadd.f32 0.0, %v308
      %v310 = vpop.f32.mrb[0].mxu0
      %v311 = vpop.f32.mrb[0].mxu0
      %v312 = vpop.f32.mrb[0].mxu0
      %313 = vdwg.mxu0
      %v322 = vunpack.c.l.b16 %v184
      %v323 = vunpack.c.l.b16 %v185
      %v324 = vunpack.c.l.b16 %v186
      %v325 = vunpack.c.l.b16 %v187
      %v326 = vunpack.c.l.b16 %v188
      %v327 = vunpack.c.l.b16 %v189
      %v328 = vunpack.c.l.b16 %v190
      %v329 = vunpack.c.l.b16 %v191
      %v330 = vpack.c.b16 %v323, %v322
      %v331 = vpack.c.b16 %v325, %v324
      %v332 = vpack.c.b16 %v327, %v326
      %v333 = vpack.c.b16 %v329, %v328
      %v339 = vsel %vm237, %v180, 0
      %v342 = vsel %vm237, %v181, 0
      %v345 = vsel %vm237, %v182, 0
      %v348 = vsel %vm237, %v183, 0
      %350 = vmatprep.subr.bf16.mxu0 0
      %351 = vmatpush1.bf16.msra.mxu0 %v330
      %352 = vmatprep.subr.bf16.mxu0 0
      %353 = vmatpush1.bf16.msra.mxu0 %v331
      %354 = vmatprep.subr.bf16.mxu0 0
      %355 = vmatpush1.bf16.msra.mxu0 %v332
      %356 = vmatprep.subr.bf16.mxu0 0
      %357 = vmatpush1.bf16.msra.mxu0 %v333
      %358 = vmatprep.subr.bf16.mxu0 0
      %359 = vmatpush1.bf16.msra.mxu0 0
      %360 = vmatprep.subr.bf16.mxu0 0
      %361 = vmatpush1.bf16.msra.mxu0 0
      %362 = vmatprep.subr.bf16.mxu0 0
      %363 = vmatpush1.bf16.msra.mxu0 0
      %364 = vmatprep.subr.bf16.mxu0 0
      %365 = vmatpush1.bf16.msra.mxu0 0
      %366 = vmatprep.subr.bf16.mxu0 0
      %367 = vmatpush1.bf16.msra.mxu0 0
      %368 = vmatprep.subr.bf16.mxu0 0
      %369 = vmatpush1.bf16.msra.mxu0 0
      %370 = vmatprep.subr.bf16.mxu0 0
      %371 = vmatpush1.bf16.msra.mxu0 0
      %372 = vmatprep.subr.bf16.mxu0 0
      %373 = vmatpush1.bf16.msra.mxu0 0
      %374 = vmatprep.subr.bf16.mxu0 0
      %375 = vmatpush1.bf16.msra.mxu0 0
      %376 = vmatprep.subr.bf16.mxu0 0
      %377 = vmatpush1.bf16.msra.mxu0 0
      %378 = vmatprep.subr.bf16.mxu0 0
      %379 = vmatpush1.bf16.msra.mxu0 0
      %380 = vmatprep.subr.bf16.mxu0 0
      %381 = vmatpush1.bf16.msra.mxu0 0
      %382 = vmatprep.mubr.bf16.mxu0 0
      %383 = vmatmul.mubr.bf16.gmra.mrb[0].mxu0 %v339
      %v384 = vpop.f32.mrb[0].mxu0
      %v385 = vadd.f32 %v285, %v384
      %v386 = vpop.f32.mrb[0].mxu0
      %v387 = vpop.f32.mrb[0].mxu0
      %v388 = vadd.f32 %v288, %v387
      %v389 = vpop.f32.mrb[0].mxu0
      %390 = vmatprep.mubr.bf16.mxu0 0
      %391 = vmatmul.mubr.bf16.gmra.mrb[0].mxu0 %v342
      %v392 = vpop.f32.mrb[0].mxu0
      %v393 = vadd.f32 %v293, %v392
      %v394 = vpop.f32.mrb[0].mxu0
      %v395 = vpop.f32.mrb[0].mxu0
      %v396 = vadd.f32 %v296, %v395
      %v397 = vpop.f32.mrb[0].mxu0
      %398 = vmatprep.mubr.bf16.mxu0 0
      %399 = vmatmul.mubr.bf16.gmra.mrb[0].mxu0 %v345
      %v400 = vpop.f32.mrb[0].mxu0
      %v401 = vadd.f32 %v301, %v400
      %v402 = vpop.f32.mrb[0].mxu0
      %v403 = vpop.f32.mrb[0].mxu0
      %v404 = vadd.f32 %v304, %v403
      %v405 = vpop.f32.mrb[0].mxu0
      %406 = vmatprep.mubr.bf16.mxu0 0
      %407 = vmatmul.mubr.bf16.gmra.mrb[0].mxu0 %v348
      %v408 = vpop.f32.mrb[0].mxu0
      %v409 = vadd.f32 %v309, %v408
      %v410 = vpop.f32.mrb[0].mxu0
      %v411 = vpop.f32.mrb[0].mxu0
      %v412 = vpop.f32.mrb[0].mxu0
      %413 = vdwg.mxu0
      %v414 = vld [vmem:[%s165 + $0x1] sm:$0xff]
      %v415 = vld [vmem:[%s165 + $0x11] sm:$0xff]
      %v416 = vld [vmem:[%s165 + $0x21] sm:$0xff]
      %v417 = vld [vmem:[%s165 + $0x31] sm:$0xff]
      %v418 = vld [vmem:[%s165 + $0x41] sm:$0xff]
      %v419 = vld [vmem:[%s165 + $0x51] sm:$0xff]
      %v420 = vld [vmem:[%s165 + $0x61] sm:$0xff]
      %v421 = vpack.c.bf16 %v415, %v414
      %v422 = vpack.c.bf16 %v417, %v416
      %v423 = vpack.c.bf16 %v419, %v418
      %v424 = vpack.c.bf16 %v420, %v420
      %s425 = scalar_lea.vmem %s1, 64
      %v426 = vld [vmem:[%s425] sm:$0xf]
      %v427 = vld [vmem:[%s425 + $0x4] sm:$0xf]
      %v428 = vld [vmem:[%s425 + $0x8] sm:$0xf]
      %v429 = vld [vmem:[%s425 + $0xc] sm:$0xf]
      %v430 = vld [vmem:[%s425 + $0x10] sm:$0xf]
      %v431 = vld [vmem:[%s425 + $0x14] sm:$0xf]
      %v432 = vld [vmem:[%s425 + $0x18] sm:$0xf]
      %v433 = vld [vmem:[%s425 + $0x1c] sm:$0xf]
      %v442 = vunpack.c.l.b16 %v426
      %v443 = vunpack.c.l.b16 %v427
      %v444 = vunpack.c.l.b16 %v428
      %v445 = vunpack.c.l.b16 %v429
      %v446 = vunpack.c.l.b16 %v430
      %v447 = vunpack.c.l.b16 %v431
      %v448 = vunpack.c.l.b16 %v432
      %v449 = vunpack.c.l.b16 %v433
      %v450 = vpack.c.b16 %v443, %v442
      %v451 = vpack.c.b16 %v445, %v444
      %v452 = vpack.c.b16 %v447, %v446
      %v453 = vpack.c.b16 %v449, %v448
      %v459 = vsel %vm237, %v421, 0
      %v462 = vsel %vm237, %v422, 0
      %v465 = vsel %vm237, %v423, 0
      %v468 = vsel %vm237, %v424, 0
      %470 = vmatprep.subr.bf16.mxu0 0
      %471 = vmatpush1.bf16.msra.mxu0 %v450
      %472 = vmatprep.subr.bf16.mxu0 0
      %473 = vmatpush1.bf16.msra.mxu0 %v451
      %474 = vmatprep.subr.bf16.mxu0 0
      %475 = vmatpush1.bf16.msra.mxu0 %v452
      %476 = vmatprep.subr.bf16.mxu0 0
      %477 = vmatpush1.bf16.msra.mxu0 %v453
      %478 = vmatprep.subr.bf16.mxu0 0
      %479 = vmatpush1.bf16.msra.mxu0 0
      %480 = vmatprep.subr.bf16.mxu0 0
      %481 = vmatpush1.bf16.msra.mxu0 0
      %482 = vmatprep.subr.bf16.mxu0 0
      %483 = vmatpush1.bf16.msra.mxu0 0
      %484 = vmatprep.subr.bf16.mxu0 0
      %485 = vmatpush1.bf16.msra.mxu0 0
      %486 = vmatprep.subr.bf16.mxu0 0
      %487 = vmatpush1.bf16.msra.mxu0 0
      %488 = vmatprep.subr.bf16.mxu0 0
      %489 = vmatpush1.bf16.msra.mxu0 0
      %490 = vmatprep.subr.bf16.mxu0 0
      %491 = vmatpush1.bf16.msra.mxu0 0
      %492 = vmatprep.subr.bf16.mxu0 0
      %493 = vmatpush1.bf16.msra.mxu0 0
      %494 = vmatprep.subr.bf16.mxu0 0
      %495 = vmatpush1.bf16.msra.mxu0 0
      %496 = vmatprep.subr.bf16.mxu0 0
      %497 = vmatpush1.bf16.msra.mxu0 0
      %498 = vmatprep.subr.bf16.mxu0 0
      %499 = vmatpush1.bf16.msra.mxu0 0
      %500 = vmatprep.subr.bf16.mxu0 0
      %501 = vmatpush1.bf16.msra.mxu0 0
      %502 = vmatprep.mubr.bf16.mxu0 0
      %503 = vmatmul.mubr.bf16.gmra.mrb[0].mxu0 %v459
      %v504 = vpop.f32.mrb[0].mxu0
      %v505 = vadd.f32 0.0, %v504
      %v506 = vpop.f32.mrb[0].mxu0
      %v507 = vpop.f32.mrb[0].mxu0
      %v508 = vadd.f32 0.0, %v507
      %v509 = vpop.f32.mrb[0].mxu0
      %510 = vmatprep.mubr.bf16.mxu0 0
      %511 = vmatmul.mubr.bf16.gmra.mrb[0].mxu0 %v462
      %v512 = vpop.f32.mrb[0].mxu0
      %v513 = vadd.f32 0.0, %v512
      %v514 = vpop.f32.mrb[0].mxu0
      %v515 = vpop.f32.mrb[0].mxu0
      %v516 = vadd.f32 0.0, %v515
      %v517 = vpop.f32.mrb[0].mxu0
      %518 = vmatprep.mubr.bf16.mxu0 0
      %519 = vmatmul.mubr.bf16.gmra.mrb[0].mxu0 %v465
      %v520 = vpop.f32.mrb[0].mxu0
      %v521 = vadd.f32 0.0, %v520
      %v522 = vpop.f32.mrb[0].mxu0
      %v523 = vpop.f32.mrb[0].mxu0
      %v524 = vadd.f32 0.0, %v523
      %v525 = vpop.f32.mrb[0].mxu0
      %526 = vmatprep.mubr.bf16.mxu0 0
      %527 = vmatmul.mubr.bf16.gmra.mrb[0].mxu0 %v468
      %v528 = vpop.f32.mrb[0].mxu0
      %v529 = vadd.f32 0.0, %v528
      %v530 = vpop.f32.mrb[0].mxu0
      %v531 = vpop.f32.mrb[0].mxu0
      %v532 = vpop.f32.mrb[0].mxu0
      %533 = vdwg.mxu0
      %v534 = vadd.f32 %v385, %v505
      %v535 = vadd.f32 %v388, %v508
      %v536 = vadd.f32 %v393, %v513
      %v537 = vadd.f32 %v396, %v516
      %v538 = vadd.f32 %v401, %v521
      %v539 = vadd.f32 %v404, %v524
      %v540 = vadd.f32 %v409, %v529
      %v541 = vld [vmem:[%s192 + $0x1] sm:$0xff]
      %v542 = vld [vmem:[%s192 + $0x11] sm:$0xff]
      %v543 = vld [vmem:[%s192 + $0x21] sm:$0xff]
      %v544 = vld [vmem:[%s192 + $0x31] sm:$0xff]
      %v545 = vld [vmem:[%s192 + $0x41] sm:$0xff]
      %v546 = vld [vmem:[%s192 + $0x51] sm:$0xff]
      %v547 = vld [vmem:[%s192 + $0x61] sm:$0xff]
      %v548 = vpack.c.bf16 %v542, %v541
      %v549 = vpack.c.bf16 %v544, %v543
      %v550 = vpack.c.bf16 %v546, %v545
      %v551 = vpack.c.bf16 %v547, %v547
      %s552 = scalar_lea.vmem %s1, 96
      %v553 = vld [vmem:[%s552] sm:$0xf]
      %v554 = vld [vmem:[%s552 + $0x4] sm:$0xf]
      %v555 = vld [vmem:[%s552 + $0x8] sm:$0xf]
      %v556 = vld [vmem:[%s552 + $0xc] sm:$0xf]
      %v557 = vld [vmem:[%s552 + $0x10] sm:$0xf]
      %v558 = vld [vmem:[%s552 + $0x14] sm:$0xf]
      %v559 = vld [vmem:[%s552 + $0x18] sm:$0xf]
      %v560 = vld [vmem:[%s552 + $0x1c] sm:$0xf]
      %v569 = vunpack.c.l.b16 %v553
      %v570 = vunpack.c.l.b16 %v554
      %v571 = vunpack.c.l.b16 %v555
      %v572 = vunpack.c.l.b16 %v556
      %v573 = vunpack.c.l.b16 %v557
      %v574 = vunpack.c.l.b16 %v558
      %v575 = vunpack.c.l.b16 %v559
      %v576 = vunpack.c.l.b16 %v560
      %v577 = vpack.c.b16 %v570, %v569
      %v578 = vpack.c.b16 %v572, %v571
      %v579 = vpack.c.b16 %v574, %v573
      %v580 = vpack.c.b16 %v576, %v575
      %v586 = vsel %vm237, %v548, 0
      %v589 = vsel %vm237, %v549, 0
      %v592 = vsel %vm237, %v550, 0
      %v595 = vsel %vm237, %v551, 0
      %597 = vmatprep.subr.bf16.mxu0 0
      %598 = vmatpush1.bf16.msra.mxu0 %v577
      %599 = vmatprep.subr.bf16.mxu0 0
      %600 = vmatpush1.bf16.msra.mxu0 %v578
      %601 = vmatprep.subr.bf16.mxu0 0
      %602 = vmatpush1.bf16.msra.mxu0 %v579
      %603 = vmatprep.subr.bf16.mxu0 0
      %604 = vmatpush1.bf16.msra.mxu0 %v580
      %605 = vmatprep.subr.bf16.mxu0 0
      %606 = vmatpush1.bf16.msra.mxu0 0
      %607 = vmatprep.subr.bf16.mxu0 0
      %608 = vmatpush1.bf16.msra.mxu0 0
      %609 = vmatprep.subr.bf16.mxu0 0
      %610 = vmatpush1.bf16.msra.mxu0 0
      %611 = vmatprep.subr.bf16.mxu0 0
      %612 = vmatpush1.bf16.msra.mxu0 0
      %613 = vmatprep.subr.bf16.mxu0 0
      %614 = vmatpush1.bf16.msra.mxu0 0
      %615 = vmatprep.subr.bf16.mxu0 0
      %616 = vmatpush1.bf16.msra.mxu0 0
      %617 = vmatprep.subr.bf16.mxu0 0
      %618 = vmatpush1.bf16.msra.mxu0 0
      %619 = vmatprep.subr.bf16.mxu0 0
      %620 = vmatpush1.bf16.msra.mxu0 0
      %621 = vmatprep.subr.bf16.mxu0 0
      %622 = vmatpush1.bf16.msra.mxu0 0
      %623 = vmatprep.subr.bf16.mxu0 0
      %624 = vmatpush1.bf16.msra.mxu0 0
      %625 = vmatprep.subr.bf16.mxu0 0
      %626 = vmatpush1.bf16.msra.mxu0 0
      %627 = vmatprep.subr.bf16.mxu0 0
      %628 = vmatpush1.bf16.msra.mxu0 0
      %629 = vmatprep.mubr.bf16.mxu0 0
      %630 = vmatmul.mubr.bf16.gmra.mrb[0].mxu0 %v586
      %v631 = vpop.f32.mrb[0].mxu0
      %v632 = vadd.f32 0.0, %v631
      %v633 = vpop.f32.mrb[0].mxu0
      %v634 = vpop.f32.mrb[0].mxu0
      %v635 = vadd.f32 0.0, %v634
      %v636 = vpop.f32.mrb[0].mxu0
      %637 = vmatprep.mubr.bf16.mxu0 0
      %638 = vmatmul.mubr.bf16.gmra.mrb[0].mxu0 %v589
      %v639 = vpop.f32.mrb[0].mxu0
      %v640 = vadd.f32 0.0, %v639
      %v641 = vpop.f32.mrb[0].mxu0
      %v642 = vpop.f32.mrb[0].mxu0
      %v643 = vadd.f32 0.0, %v642
      %v644 = vpop.f32.mrb[0].mxu0
      %645 = vmatprep.mubr.bf16.mxu0 0
      %646 = vmatmul.mubr.bf16.gmra.mrb[0].mxu0 %v592
      %v647 = vpop.f32.mrb[0].mxu0
      %v648 = vadd.f32 0.0, %v647
      %v649 = vpop.f32.mrb[0].mxu0
      %v650 = vpop.f32.mrb[0].mxu0
      %v651 = vadd.f32 0.0, %v650
      %v652 = vpop.f32.mrb[0].mxu0
      %653 = vmatprep.mubr.bf16.mxu0 0
      %654 = vmatmul.mubr.bf16.gmra.mrb[0].mxu0 %v595
      %v655 = vpop.f32.mrb[0].mxu0
      %v656 = vadd.f32 0.0, %v655
      %v657 = vpop.f32.mrb[0].mxu0
      %v658 = vpop.f32.mrb[0].mxu0
      %v659 = vpop.f32.mrb[0].mxu0
      %660 = vdwg.mxu0
      %v661 = vadd.f32 %v534, %v632
      %v662 = vadd.f32 %v535, %v635
      %v663 = vadd.f32 %v536, %v640
      %v664 = vadd.f32 %v537, %v643
      %v665 = vadd.f32 %v538, %v648
      %v666 = vadd.f32 %v539, %v651
      %v667 = vadd.f32 %v540, %v656
      %v668 = vld [vmem:[%s165 + $0x2] sm:$0xff]
      %v669 = vld [vmem:[%s165 + $0x12] sm:$0xff]
      %v670 = vld [vmem:[%s165 + $0x22] sm:$0xff]
      %v671 = vld [vmem:[%s165 + $0x32] sm:$0xff]
      %v672 = vld [vmem:[%s165 + $0x42] sm:$0xff]
      %v673 = vld [vmem:[%s165 + $0x52] sm:$0xff]
      %v674 = vld [vmem:[%s165 + $0x62] sm:$0xff]
      %v675 = vpack.c.bf16 %v669, %v668
      %v676 = vpack.c.bf16 %v671, %v670
      %v677 = vpack.c.bf16 %v673, %v672
      %v678 = vpack.c.bf16 %v674, %v674
      %s679 = scalar_lea.vmem %s1, 128
      %v680 = vld [vmem:[%s679] sm:$0xf]
      %v681 = vld [vmem:[%s679 + $0x4] sm:$0xf]
      %v682 = vld [vmem:[%s679 + $0x8] sm:$0xf]
      %v683 = vld [vmem:[%s679 + $0xc] sm:$0xf]
      %v684 = vld [vmem:[%s679 + $0x10] sm:$0xf]
      %v685 = vld [vmem:[%s679 + $0x14] sm:$0xf]
      %v686 = vld [vmem:[%s679 + $0x18] sm:$0xf]
      %v687 = vld [vmem:[%s679 + $0x1c] sm:$0xf]
      %v696 = vunpack.c.l.b16 %v680
      %v697 = vunpack.c.l.b16 %v681
      %v698 = vunpack.c.l.b16 %v682
      %v699 = vunpack.c.l.b16 %v683
      %v700 = vunpack.c.l.b16 %v684
      %v701 = vunpack.c.l.b16 %v685
      %v702 = vunpack.c.l.b16 %v686
      %v703 = vunpack.c.l.b16 %v687
      %v704 = vpack.c.b16 %v697, %v696
      %v705 = vpack.c.b16 %v699, %v698
      %v706 = vpack.c.b16 %v701, %v700
      %v707 = vpack.c.b16 %v703, %v702
      %v713 = vsel %vm237, %v675, 0
      %v716 = vsel %vm237, %v676, 0
      %v719 = vsel %vm237, %v677, 0
      %v722 = vsel %vm237, %v678, 0
      %724 = vmatprep.subr.bf16.mxu0 0
      %725 = vmatpush1.bf16.msra.mxu0 %v704
      %726 = vmatprep.subr.bf16.mxu0 0
      %727 = vmatpush1.bf16.msra.mxu0 %v705
      %728 = vmatprep.subr.bf16.mxu0 0
      %729 = vmatpush1.bf16.msra.mxu0 %v706
      %730 = vmatprep.subr.bf16.mxu0 0
      %731 = vmatpush1.bf16.msra.mxu0 %v707
      %732 = vmatprep.subr.bf16.mxu0 0
      %733 = vmatpush1.bf16.msra.mxu0 0
      %734 = vmatprep.subr.bf16.mxu0 0
      %735 = vmatpush1.bf16.msra.mxu0 0
      %736 = vmatprep.subr.bf16.mxu0 0
      %737 = vmatpush1.bf16.msra.mxu0 0
      %738 = vmatprep.subr.bf16.mxu0 0
      %739 = vmatpush1.bf16.msra.mxu0 0
      %740 = vmatprep.subr.bf16.mxu0 0
      %741 = vmatpush1.bf16.msra.mxu0 0
      %742 = vmatprep.subr.bf16.mxu0 0
      %743 = vmatpush1.bf16.msra.mxu0 0
      %744 = vmatprep.subr.bf16.mxu0 0
      %745 = vmatpush1.bf16.msra.mxu0 0
      %746 = vmatprep.subr.bf16.mxu0 0
      %747 = vmatpush1.bf16.msra.mxu0 0
      %748 = vmatprep.subr.bf16.mxu0 0
      %749 = vmatpush1.bf16.msra.mxu0 0
      %750 = vmatprep.subr.bf16.mxu0 0
      %751 = vmatpush1.bf16.msra.mxu0 0
      %752 = vmatprep.subr.bf16.mxu0 0
      %753 = vmatpush1.bf16.msra.mxu0 0
      %754 = vmatprep.subr.bf16.mxu0 0
      %755 = vmatpush1.bf16.msra.mxu0 0
      %756 = vmatprep.mubr.bf16.mxu0 0
      %757 = vmatmul.mubr.bf16.gmra.mrb[0].mxu0 %v713
      %v758 = vpop.f32.mrb[0].mxu0
      %v759 = vadd.f32 0.0, %v758
      %v760 = vpop.f32.mrb[0].mxu0
      %v761 = vpop.f32.mrb[0].mxu0
      %v762 = vadd.f32 0.0, %v761
      %v763 = vpop.f32.mrb[0].mxu0
      %764 = vmatprep.mubr.bf16.mxu0 0
      %765 = vmatmul.mubr.bf16.gmra.mrb[0].mxu0 %v716
      %v766 = vpop.f32.mrb[0].mxu0
      %v767 = vadd.f32 0.0, %v766
      %v768 = vpop.f32.mrb[0].mxu0
      %v769 = vpop.f32.mrb[0].mxu0
      %v770 = vadd.f32 0.0, %v769
      %v771 = vpop.f32.mrb[0].mxu0
      %772 = vmatprep.mubr.bf16.mxu0 0
      %773 = vmatmul.mubr.bf16.gmra.mrb[0].mxu0 %v719
      %v774 = vpop.f32.mrb[0].mxu0
      %v775 = vadd.f32 0.0, %v774
      %v776 = vpop.f32.mrb[0].mxu0
      %v777 = vpop.f32.mrb[0].mxu0
      %v778 = vadd.f32 0.0, %v777
      %v779 = vpop.f32.mrb[0].mxu0
      %780 = vmatprep.mubr.bf16.mxu0 0
      %781 = vmatmul.mubr.bf16.gmra.mrb[0].mxu0 %v722
      %v782 = vpop.f32.mrb[0].mxu0
      %v783 = vadd.f32 0.0, %v782
      %v784 = vpop.f32.mrb[0].mxu0
      %v785 = vpop.f32.mrb[0].mxu0
      %v786 = vpop.f32.mrb[0].mxu0
      %787 = vdwg.mxu0
      %v788 = vadd.f32 %v661, %v759
      %v789 = vadd.f32 %v662, %v762
      %v790 = vadd.f32 %v663, %v767
      %v791 = vadd.f32 %v664, %v770
      %v792 = vadd.f32 %v665, %v775
      %v793 = vadd.f32 %v666, %v778
      %v794 = vadd.f32 %v667, %v783
      %s795 = scalar_lea.vmem %s165, 288
      %v796 = vld [vmem:[%s795] sm:$0xff]
      %v797 = vld [vmem:[%s795 + $0x10] sm:$0xff]
      %v798 = vld [vmem:[%s795 + $0x20] sm:$0xff]
      %v799 = vld [vmem:[%s795 + $0x30] sm:$0xff]
      %v800 = vld [vmem:[%s795 + $0x40] sm:$0xff]
      %v801 = vld [vmem:[%s795 + $0x50] sm:$0xff]
      %v802 = vld [vmem:[%s795 + $0x60] sm:$0xff]
      %v803 = vpack.c.bf16 %v797, %v796
      %v804 = vpack.c.bf16 %v799, %v798
      %v805 = vpack.c.bf16 %v801, %v800
      %v806 = vpack.c.bf16 %v802, %v802
      %s807 = scalar_lea.vmem %s1, 160
      %v808 = vld [vmem:[%s807] sm:$0xf]
      %v809 = vld [vmem:[%s807 + $0x4] sm:$0xf]
      %v810 = vld [vmem:[%s807 + $0x8] sm:$0xf]
      %v811 = vld [vmem:[%s807 + $0xc] sm:$0xf]
      %v812 = vld [vmem:[%s807 + $0x10] sm:$0xf]
      %v813 = vld [vmem:[%s807 + $0x14] sm:$0xf]
      %v814 = vld [vmem:[%s807 + $0x18] sm:$0xf]
      %v815 = vld [vmem:[%s807 + $0x1c] sm:$0xf]
      %v824 = vunpack.c.l.b16 %v808
      %v825 = vunpack.c.l.b16 %v809
      %v826 = vunpack.c.l.b16 %v810
      %v827 = vunpack.c.l.b16 %v811
      %v828 = vunpack.c.l.b16 %v812
      %v829 = vunpack.c.l.b16 %v813
      %v830 = vunpack.c.l.b16 %v814
      %v831 = vunpack.c.l.b16 %v815
      %v832 = vpack.c.b16 %v825, %v824
      %v833 = vpack.c.b16 %v827, %v826
      %v834 = vpack.c.b16 %v829, %v828
      %v835 = vpack.c.b16 %v831, %v830
      %v841 = vsel %vm237, %v803, 0
      %v844 = vsel %vm237, %v804, 0
      %v847 = vsel %vm237, %v805, 0
      %v850 = vsel %vm237, %v806, 0
      %852 = vmatprep.subr.bf16.mxu0 0
      %853 = vmatpush1.bf16.msra.mxu0 %v832
      %854 = vmatprep.subr.bf16.mxu0 0
      %855 = vmatpush1.bf16.msra.mxu0 %v833
      %856 = vmatprep.subr.bf16.mxu0 0
      %857 = vmatpush1.bf16.msra.mxu0 %v834
      %858 = vmatprep.subr.bf16.mxu0 0
      %859 = vmatpush1.bf16.msra.mxu0 %v835
      %860 = vmatprep.subr.bf16.mxu0 0
      %861 = vmatpush1.bf16.msra.mxu0 0
      %862 = vmatprep.subr.bf16.mxu0 0
      %863 = vmatpush1.bf16.msra.mxu0 0
      %864 = vmatprep.subr.bf16.mxu0 0
      %865 = vmatpush1.bf16.msra.mxu0 0
      %866 = vmatprep.subr.bf16.mxu0 0
      %867 = vmatpush1.bf16.msra.mxu0 0
      %868 = vmatprep.subr.bf16.mxu0 0
      %869 = vmatpush1.bf16.msra.mxu0 0
      %870 = vmatprep.subr.bf16.mxu0 0
      %871 = vmatpush1.bf16.msra.mxu0 0
      %872 = vmatprep.subr.bf16.mxu0 0
      %873 = vmatpush1.bf16.msra.mxu0 0
      %874 = vmatprep.subr.bf16.mxu0 0
      %875 = vmatpush1.bf16.msra.mxu0 0
      %876 = vmatprep.subr.bf16.mxu0 0
      %877 = vmatpush1.bf16.msra.mxu0 0
      %878 = vmatprep.subr.bf16.mxu0 0
      %879 = vmatpush1.bf16.msra.mxu0 0
      %880 = vmatprep.subr.bf16.mxu0 0
      %881 = vmatpush1.bf16.msra.mxu0 0
      %882 = vmatprep.subr.bf16.mxu0 0
      %883 = vmatpush1.bf16.msra.mxu0 0
      %884 = vmatprep.mubr.bf16.mxu0 0
      %885 = vmatmul.mubr.bf16.gmra.mrb[0].mxu0 %v841
      %v886 = vpop.f32.mrb[0].mxu0
      %v887 = vadd.f32 0.0, %v886
      %v888 = vpop.f32.mrb[0].mxu0
      %v889 = vpop.f32.mrb[0].mxu0
      %v890 = vadd.f32 0.0, %v889
      %v891 = vpop.f32.mrb[0].mxu0
      %892 = vmatprep.mubr.bf16.mxu0 0
      %893 = vmatmul.mubr.bf16.gmra.mrb[0].mxu0 %v844
      %v894 = vpop.f32.mrb[0].mxu0
      %v895 = vadd.f32 0.0, %v894
      %v896 = vpop.f32.mrb[0].mxu0
      %v897 = vpop.f32.mrb[0].mxu0
      %v898 = vadd.f32 0.0, %v897
      %v899 = vpop.f32.mrb[0].mxu0
      %900 = vmatprep.mubr.bf16.mxu0 0
      %901 = vmatmul.mubr.bf16.gmra.mrb[0].mxu0 %v847
      %v902 = vpop.f32.mrb[0].mxu0
      %v903 = vadd.f32 0.0, %v902
      %v904 = vpop.f32.mrb[0].mxu0
      %v905 = vpop.f32.mrb[0].mxu0
      %v906 = vadd.f32 0.0, %v905
      %v907 = vpop.f32.mrb[0].mxu0
      %908 = vmatprep.mubr.bf16.mxu0 0
      %909 = vmatmul.mubr.bf16.gmra.mrb[0].mxu0 %v850
      %v910 = vpop.f32.mrb[0].mxu0
      %v911 = vadd.f32 0.0, %v910
      %v912 = vpop.f32.mrb[0].mxu0
      %v913 = vpop.f32.mrb[0].mxu0
      %v914 = vpop.f32.mrb[0].mxu0
      %915 = vdwg.mxu0
      %v916 = vadd.f32 %v788, %v887
      %v917 = vadd.f32 %v789, %v890
      %v918 = vadd.f32 %v790, %v895
      %v919 = vadd.f32 %v791, %v898
      %v920 = vadd.f32 %v792, %v903
      %v921 = vadd.f32 %v793, %v906
      %v922 = vadd.f32 %v794, %v911
      %s923 = scalar_lea.vmem %s165, 432
      %v924 = vld [vmem:[%s923] sm:$0xff]
      %v925 = vld [vmem:[%s923 + $0x10] sm:$0xff]
      %v926 = vld [vmem:[%s923 + $0x20] sm:$0xff]
      %v927 = vld [vmem:[%s923 + $0x30] sm:$0xff]
      %v928 = vld [vmem:[%s923 + $0x40] sm:$0xff]
      %v929 = vld [vmem:[%s923 + $0x50] sm:$0xff]
      %v930 = vld [vmem:[%s923 + $0x60] sm:$0xff]
      %v931 = vpack.c.bf16 %v925, %v924
      %v932 = vpack.c.bf16 %v927, %v926
      %v933 = vpack.c.bf16 %v929, %v928
      %v934 = vpack.c.bf16 %v930, %v930
      %s935 = scalar_lea.vmem %s1, 192
      %v936 = vld [vmem:[%s935] sm:$0xf]
      %v937 = vld [vmem:[%s935 + $0x4] sm:$0xf]
      %v938 = vld [vmem:[%s935 + $0x8] sm:$0xf]
      %v939 = vld [vmem:[%s935 + $0xc] sm:$0xf]
      %v940 = vld [vmem:[%s935 + $0x10] sm:$0xf]
      %v941 = vld [vmem:[%s935 + $0x14] sm:$0xf]
      %v942 = vld [vmem:[%s935 + $0x18] sm:$0xf]
      %v943 = vld [vmem:[%s935 + $0x1c] sm:$0xf]
      %v952 = vunpack.c.l.b16 %v936
      %v953 = vunpack.c.l.b16 %v937
      %v954 = vunpack.c.l.b16 %v938
      %v955 = vunpack.c.l.b16 %v939
      %v956 = vunpack.c.l.b16 %v940
      %v957 = vunpack.c.l.b16 %v941
      %v958 = vunpack.c.l.b16 %v942
      %v959 = vunpack.c.l.b16 %v943
      %v960 = vpack.c.b16 %v953, %v952
      %v961 = vpack.c.b16 %v955, %v954
      %v962 = vpack.c.b16 %v957, %v956
      %v963 = vpack.c.b16 %v959, %v958
      %v969 = vsel %vm237, %v931, 0
      %v972 = vsel %vm237, %v932, 0
      %v975 = vsel %vm237, %v933, 0
      %v978 = vsel %vm237, %v934, 0
      %980 = vmatprep.subr.bf16.mxu0 0
      %981 = vmatpush1.bf16.msra.mxu0 %v960
      %982 = vmatprep.subr.bf16.mxu0 0
      %983 = vmatpush1.bf16.msra.mxu0 %v961
      %984 = vmatprep.subr.bf16.mxu0 0
      %985 = vmatpush1.bf16.msra.mxu0 %v962
      %986 = vmatprep.subr.bf16.mxu0 0
      %987 = vmatpush1.bf16.msra.mxu0 %v963
      %988 = vmatprep.subr.bf16.mxu0 0
      %989 = vmatpush1.bf16.msra.mxu0 0
      %990 = vmatprep.subr.bf16.mxu0 0
      %991 = vmatpush1.bf16.msra.mxu0 0
      %992 = vmatprep.subr.bf16.mxu0 0
      %993 = vmatpush1.bf16.msra.mxu0 0
      %994 = vmatprep.subr.bf16.mxu0 0
      %995 = vmatpush1.bf16.msra.mxu0 0
      %996 = vmatprep.subr.bf16.mxu0 0
      %997 = vmatpush1.bf16.msra.mxu0 0
      %998 = vmatprep.subr.bf16.mxu0 0
      %999 = vmatpush1.bf16.msra.mxu0 0
      %1000 = vmatprep.subr.bf16.mxu0 0
      %1001 = vmatpush1.bf16.msra.mxu0 0
      %1002 = vmatprep.subr.bf16.mxu0 0
      %1003 = vmatpush1.bf16.msra.mxu0 0
      %1004 = vmatprep.subr.bf16.mxu0 0
      %1005 = vmatpush1.bf16.msra.mxu0 0
      %1006 = vmatprep.subr.bf16.mxu0 0
      %1007 = vmatpush1.bf16.msra.mxu0 0
      %1008 = vmatprep.subr.bf16.mxu0 0
      %1009 = vmatpush1.bf16.msra.mxu0 0
      %1010 = vmatprep.subr.bf16.mxu0 0
      %1011 = vmatpush1.bf16.msra.mxu0 0
      %1012 = vmatprep.mubr.bf16.mxu0 0
      %1013 = vmatmul.mubr.bf16.gmra.mrb[0].mxu0 %v969
      %v1014 = vpop.f32.mrb[0].mxu0
      %v1015 = vadd.f32 0.0, %v1014
      %v1016 = vpop.f32.mrb[0].mxu0
      %v1017 = vpop.f32.mrb[0].mxu0
      %v1018 = vadd.f32 0.0, %v1017
      %v1019 = vpop.f32.mrb[0].mxu0
      %1020 = vmatprep.mubr.bf16.mxu0 0
      %1021 = vmatmul.mubr.bf16.gmra.mrb[0].mxu0 %v972
      %v1022 = vpop.f32.mrb[0].mxu0
      %v1023 = vadd.f32 0.0, %v1022
      %v1024 = vpop.f32.mrb[0].mxu0
      %v1025 = vpop.f32.mrb[0].mxu0
      %v1026 = vadd.f32 0.0, %v1025
      %v1027 = vpop.f32.mrb[0].mxu0
      %1028 = vmatprep.mubr.bf16.mxu0 0
      %1029 = vmatmul.mubr.bf16.gmra.mrb[0].mxu0 %v975
      %v1030 = vpop.f32.mrb[0].mxu0
      %v1031 = vadd.f32 0.0, %v1030
      %v1032 = vpop.f32.mrb[0].mxu0
      %v1033 = vpop.f32.mrb[0].mxu0
      %v1034 = vadd.f32 0.0, %v1033
      %v1035 = vpop.f32.mrb[0].mxu0
      %1036 = vmatprep.mubr.bf16.mxu0 0
      %1037 = vmatmul.mubr.bf16.gmra.mrb[0].mxu0 %v978
      %v1038 = vpop.f32.mrb[0].mxu0
      %v1039 = vadd.f32 0.0, %v1038
      %v1040 = vpop.f32.mrb[0].mxu0
      %v1041 = vpop.f32.mrb[0].mxu0
      %v1042 = vpop.f32.mrb[0].mxu0
      %1043 = vdwg.mxu0
      %v1044 = vadd.f32 %v916, %v1015
      %v1045 = vadd.f32 %v917, %v1018
      %v1046 = vadd.f32 %v918, %v1023
      %v1047 = vadd.f32 %v919, %v1026
      %v1048 = vadd.f32 %v920, %v1031
      %v1049 = vadd.f32 %v921, %v1034
      %v1050 = vadd.f32 %v922, %v1039
      %v1051 = vld [vmem:[%s795 + $0x1] sm:$0xff]
      %v1052 = vld [vmem:[%s795 + $0x11] sm:$0xff]
      %v1053 = vld [vmem:[%s795 + $0x21] sm:$0xff]
      %v1054 = vld [vmem:[%s795 + $0x31] sm:$0xff]
      %v1055 = vld [vmem:[%s795 + $0x41] sm:$0xff]
      %v1056 = vld [vmem:[%s795 + $0x51] sm:$0xff]
      %v1057 = vld [vmem:[%s795 + $0x61] sm:$0xff]
      %v1058 = vpack.c.bf16 %v1052, %v1051
      %v1059 = vpack.c.bf16 %v1054, %v1053
      %v1060 = vpack.c.bf16 %v1056, %v1055
      %v1061 = vpack.c.bf16 %v1057, %v1057
      %s1062 = scalar_lea.vmem %s1, 224
      %v1063 = vld [vmem:[%s1062] sm:$0xf]
      %v1064 = vld [vmem:[%s1062 + $0x4] sm:$0xf]
      %v1065 = vld [vmem:[%s1062 + $0x8] sm:$0xf]
      %v1066 = vld [vmem:[%s1062 + $0xc] sm:$0xf]
      %v1067 = vld [vmem:[%s1062 + $0x10] sm:$0xf]
      %v1068 = vld [vmem:[%s1062 + $0x14] sm:$0xf]
      %v1069 = vld [vmem:[%s1062 + $0x18] sm:$0xf]
      %v1070 = vld [vmem:[%s1062 + $0x1c] sm:$0xf]
      %v1079 = vunpack.c.l.b16 %v1063
      %v1080 = vunpack.c.l.b16 %v1064
      %v1081 = vunpack.c.l.b16 %v1065
      %v1082 = vunpack.c.l.b16 %v1066
      %v1083 = vunpack.c.l.b16 %v1067
      %v1084 = vunpack.c.l.b16 %v1068
      %v1085 = vunpack.c.l.b16 %v1069
      %v1086 = vunpack.c.l.b16 %v1070
      %v1087 = vpack.c.b16 %v1080, %v1079
      %v1088 = vpack.c.b16 %v1082, %v1081
      %v1089 = vpack.c.b16 %v1084, %v1083
      %v1090 = vpack.c.b16 %v1086, %v1085
      %v1096 = vsel %vm237, %v1058, 0
      %v1099 = vsel %vm237, %v1059, 0
      %v1102 = vsel %vm237, %v1060, 0
      %v1105 = vsel %vm237, %v1061, 0
      %1107 = vmatprep.subr.bf16.mxu0 0
      %1108 = vmatpush1.bf16.msra.mxu0 %v1087
      %1109 = vmatprep.subr.bf16.mxu0 0
      %1110 = vmatpush1.bf16.msra.mxu0 %v1088
      %1111 = vmatprep.subr.bf16.mxu0 0
      %1112 = vmatpush1.bf16.msra.mxu0 %v1089
      %1113 = vmatprep.subr.bf16.mxu0 0
      %1114 = vmatpush1.bf16.msra.mxu0 %v1090
      %1115 = vmatprep.subr.bf16.mxu0 0
      %1116 = vmatpush1.bf16.msra.mxu0 0
      %1117 = vmatprep.subr.bf16.mxu0 0
      %1118 = vmatpush1.bf16.msra.mxu0 0
      %1119 = vmatprep.subr.bf16.mxu0 0
      %1120 = vmatpush1.bf16.msra.mxu0 0
      %1121 = vmatprep.subr.bf16.mxu0 0
      %1122 = vmatpush1.bf16.msra.mxu0 0
      %1123 = vmatprep.subr.bf16.mxu0 0
      %1124 = vmatpush1.bf16.msra.mxu0 0
      %1125 = vmatprep.subr.bf16.mxu0 0
      %1126 = vmatpush1.bf16.msra.mxu0 0
      %1127 = vmatprep.subr.bf16.mxu0 0
      %1128 = vmatpush1.bf16.msra.mxu0 0
      %1129 = vmatprep.subr.bf16.mxu0 0
      %1130 = vmatpush1.bf16.msra.mxu0 0
      %1131 = vmatprep.subr.bf16.mxu0 0
      %1132 = vmatpush1.bf16.msra.mxu0 0
      %1133 = vmatprep.subr.bf16.mxu0 0
      %1134 = vmatpush1.bf16.msra.mxu0 0
      %1135 = vmatprep.subr.bf16.mxu0 0
      %1136 = vmatpush1.bf16.msra.mxu0 0
      %1137 = vmatprep.subr.bf16.mxu0 0
      %1138 = vmatpush1.bf16.msra.mxu0 0
      %1139 = vmatprep.mubr.bf16.mxu0 0
      %1140 = vmatmul.mubr.bf16.gmra.mrb[0].mxu0 %v1096
      %v1141 = vpop.f32.mrb[0].mxu0
      %v1142 = vadd.f32 0.0, %v1141
      %v1143 = vpop.f32.mrb[0].mxu0
      %v1144 = vpop.f32.mrb[0].mxu0
      %v1145 = vadd.f32 0.0, %v1144
      %v1146 = vpop.f32.mrb[0].mxu0
      %1147 = vmatprep.mubr.bf16.mxu0 0
      %1148 = vmatmul.mubr.bf16.gmra.mrb[0].mxu0 %v1099
      %v1149 = vpop.f32.mrb[0].mxu0
      %v1150 = vadd.f32 0.0, %v1149
      %v1151 = vpop.f32.mrb[0].mxu0
      %v1152 = vpop.f32.mrb[0].mxu0
      %v1153 = vadd.f32 0.0, %v1152
      %v1154 = vpop.f32.mrb[0].mxu0
      %1155 = vmatprep.mubr.bf16.mxu0 0
      %1156 = vmatmul.mubr.bf16.gmra.mrb[0].mxu0 %v1102
      %v1157 = vpop.f32.mrb[0].mxu0
      %v1158 = vadd.f32 0.0, %v1157
      %v1159 = vpop.f32.mrb[0].mxu0
      %v1160 = vpop.f32.mrb[0].mxu0
      %v1161 = vadd.f32 0.0, %v1160
      %v1162 = vpop.f32.mrb[0].mxu0
      %1163 = vmatprep.mubr.bf16.mxu0 0
      %1164 = vmatmul.mubr.bf16.gmra.mrb[0].mxu0 %v1105
      %v1165 = vpop.f32.mrb[0].mxu0
      %v1166 = vadd.f32 0.0, %v1165
      %v1167 = vpop.f32.mrb[0].mxu0
      %v1168 = vpop.f32.mrb[0].mxu0
      %v1169 = vpop.f32.mrb[0].mxu0
      %1170 = vdwg.mxu0
      %v1171 = vadd.f32 %v1044, %v1142
      %v1172 = vadd.f32 %v1045, %v1145
      %v1173 = vadd.f32 %v1046, %v1150
      %v1174 = vadd.f32 %v1047, %v1153
      %v1175 = vadd.f32 %v1048, %v1158
      %v1176 = vadd.f32 %v1049, %v1161
      %v1177 = vadd.f32 %v1050, %v1166
      %v1178 = vld [vmem:[%s923 + $0x1] sm:$0xff]
      %v1179 = vld [vmem:[%s923 + $0x11] sm:$0xff]
      %v1180 = vld [vmem:[%s923 + $0x21] sm:$0xff]
      %v1181 = vld [vmem:[%s923 + $0x31] sm:$0xff]
      %v1182 = vld [vmem:[%s923 + $0x41] sm:$0xff]
      %v1183 = vld [vmem:[%s923 + $0x51] sm:$0xff]
      %v1184 = vld [vmem:[%s923 + $0x61] sm:$0xff]
      %v1185 = vpack.c.bf16 %v1179, %v1178
      %v1186 = vpack.c.bf16 %v1181, %v1180
      %v1187 = vpack.c.bf16 %v1183, %v1182
      %v1188 = vpack.c.bf16 %v1184, %v1184
      %s1189 = scalar_lea.vmem %s1, 256
      %v1190 = vld [vmem:[%s1189] sm:$0xf]
      %v1191 = vld [vmem:[%s1189 + $0x4] sm:$0xf]
      %v1192 = vld [vmem:[%s1189 + $0x8] sm:$0xf]
      %v1193 = vld [vmem:[%s1189 + $0xc] sm:$0xf]
      %v1194 = vld [vmem:[%s1189 + $0x10] sm:$0xf]
      %v1195 = vld [vmem:[%s1189 + $0x14] sm:$0xf]
      %v1196 = vld [vmem:[%s1189 + $0x18] sm:$0xf]
      %v1197 = vld [vmem:[%s1189 + $0x1c] sm:$0xf]
      %v1206 = vunpack.c.l.b16 %v1190
      %v1207 = vunpack.c.l.b16 %v1191
      %v1208 = vunpack.c.l.b16 %v1192
      %v1209 = vunpack.c.l.b16 %v1193
      %v1210 = vunpack.c.l.b16 %v1194
      %v1211 = vunpack.c.l.b16 %v1195
      %v1212 = vunpack.c.l.b16 %v1196
      %v1213 = vunpack.c.l.b16 %v1197
      %v1214 = vpack.c.b16 %v1207, %v1206
      %v1215 = vpack.c.b16 %v1209, %v1208
      %v1216 = vpack.c.b16 %v1211, %v1210
      %v1217 = vpack.c.b16 %v1213, %v1212
      %v1223 = vsel %vm237, %v1185, 0
      %v1226 = vsel %vm237, %v1186, 0
      %v1229 = vsel %vm237, %v1187, 0
      %v1232 = vsel %vm237, %v1188, 0
      %1234 = vmatprep.subr.bf16.mxu0 0
      %1235 = vmatpush1.bf16.msra.mxu0 %v1214
      %1236 = vmatprep.subr.bf16.mxu0 0
      %1237 = vmatpush1.bf16.msra.mxu0 %v1215
      %1238 = vmatprep.subr.bf16.mxu0 0
      %1239 = vmatpush1.bf16.msra.mxu0 %v1216
      %1240 = vmatprep.subr.bf16.mxu0 0
      %1241 = vmatpush1.bf16.msra.mxu0 %v1217
      %1242 = vmatprep.subr.bf16.mxu0 0
      %1243 = vmatpush1.bf16.msra.mxu0 0
      %1244 = vmatprep.subr.bf16.mxu0 0
      %1245 = vmatpush1.bf16.msra.mxu0 0
      %1246 = vmatprep.subr.bf16.mxu0 0
      %1247 = vmatpush1.bf16.msra.mxu0 0
      %1248 = vmatprep.subr.bf16.mxu0 0
      %1249 = vmatpush1.bf16.msra.mxu0 0
      %1250 = vmatprep.subr.bf16.mxu0 0
      %1251 = vmatpush1.bf16.msra.mxu0 0
      %1252 = vmatprep.subr.bf16.mxu0 0
      %1253 = vmatpush1.bf16.msra.mxu0 0
      %1254 = vmatprep.subr.bf16.mxu0 0
      %1255 = vmatpush1.bf16.msra.mxu0 0
      %1256 = vmatprep.subr.bf16.mxu0 0
      %1257 = vmatpush1.bf16.msra.mxu0 0
      %1258 = vmatprep.subr.bf16.mxu0 0
      %1259 = vmatpush1.bf16.msra.mxu0 0
      %1260 = vmatprep.subr.bf16.mxu0 0
      %1261 = vmatpush1.bf16.msra.mxu0 0
      %1262 = vmatprep.subr.bf16.mxu0 0
      %1263 = vmatpush1.bf16.msra.mxu0 0
      %1264 = vmatprep.subr.bf16.mxu0 0
      %1265 = vmatpush1.bf16.msra.mxu0 0
      %1266 = vmatprep.mubr.bf16.mxu0 0
      %1267 = vmatmul.mubr.bf16.gmra.mrb[0].mxu0 %v1223
      %v1268 = vpop.f32.mrb[0].mxu0
      %v1269 = vadd.f32 0.0, %v1268
      %v1270 = vpop.f32.mrb[0].mxu0
      %v1271 = vpop.f32.mrb[0].mxu0
      %v1272 = vadd.f32 0.0, %v1271
      %v1273 = vpop.f32.mrb[0].mxu0
      %1274 = vmatprep.mubr.bf16.mxu0 0
      %1275 = vmatmul.mubr.bf16.gmra.mrb[0].mxu0 %v1226
      %v1276 = vpop.f32.mrb[0].mxu0
      %v1277 = vadd.f32 0.0, %v1276
      %v1278 = vpop.f32.mrb[0].mxu0
      %v1279 = vpop.f32.mrb[0].mxu0
      %v1280 = vadd.f32 0.0, %v1279
      %v1281 = vpop.f32.mrb[0].mxu0
      %1282 = vmatprep.mubr.bf16.mxu0 0
      %1283 = vmatmul.mubr.bf16.gmra.mrb[0].mxu0 %v1229
      %v1284 = vpop.f32.mrb[0].mxu0
      %v1285 = vadd.f32 0.0, %v1284
      %v1286 = vpop.f32.mrb[0].mxu0
      %v1287 = vpop.f32.mrb[0].mxu0
      %v1288 = vadd.f32 0.0, %v1287
      %v1289 = vpop.f32.mrb[0].mxu0
      %1290 = vmatprep.mubr.bf16.mxu0 0
      %1291 = vmatmul.mubr.bf16.gmra.mrb[0].mxu0 %v1232
      %v1292 = vpop.f32.mrb[0].mxu0
      %v1293 = vadd.f32 0.0, %v1292
      %v1294 = vpop.f32.mrb[0].mxu0
      %v1295 = vpop.f32.mrb[0].mxu0
      %v1296 = vpop.f32.mrb[0].mxu0
      %1297 = vdwg.mxu0
      %v1298 = vadd.f32 %v1171, %v1269
      %v1299 = vadd.f32 %v1172, %v1272
      %v1300 = vadd.f32 %v1173, %v1277
      %v1301 = vadd.f32 %v1174, %v1280
      %v1302 = vadd.f32 %v1175, %v1285
      %v1303 = vadd.f32 %v1176, %v1288
      %v1304 = vadd.f32 %v1177, %v1293
      %v1305 = vld [vmem:[%s795 + $0x2] sm:$0xff]
      %v1306 = vld [vmem:[%s795 + $0x12] sm:$0xff]
      %v1307 = vld [vmem:[%s795 + $0x22] sm:$0xff]
      %v1308 = vld [vmem:[%s795 + $0x32] sm:$0xff]
      %v1309 = vld [vmem:[%s795 + $0x42] sm:$0xff]
      %v1310 = vld [vmem:[%s795 + $0x52] sm:$0xff]
      %v1311 = vld [vmem:[%s795 + $0x62] sm:$0xff]
      %v1312 = vpack.c.bf16 %v1306, %v1305
      %v1313 = vpack.c.bf16 %v1308, %v1307
      %v1314 = vpack.c.bf16 %v1310, %v1309
      %v1315 = vpack.c.bf16 %v1311, %v1311
      %s1316 = scalar_lea.vmem %s1, 288
      %v1317 = vld [vmem:[%s1316] sm:$0xf]
      %v1318 = vld [vmem:[%s1316 + $0x4] sm:$0xf]
      %v1319 = vld [vmem:[%s1316 + $0x8] sm:$0xf]
      %v1320 = vld [vmem:[%s1316 + $0xc] sm:$0xf]
      %v1321 = vld [vmem:[%s1316 + $0x10] sm:$0xf]
      %v1322 = vld [vmem:[%s1316 + $0x14] sm:$0xf]
      %v1323 = vld [vmem:[%s1316 + $0x18] sm:$0xf]
      %v1324 = vld [vmem:[%s1316 + $0x1c] sm:$0xf]
      %v1333 = vunpack.c.l.b16 %v1317
      %v1334 = vunpack.c.l.b16 %v1318
      %v1335 = vunpack.c.l.b16 %v1319
      %v1336 = vunpack.c.l.b16 %v1320
      %v1337 = vunpack.c.l.b16 %v1321
      %v1338 = vunpack.c.l.b16 %v1322
      %v1339 = vunpack.c.l.b16 %v1323
      %v1340 = vunpack.c.l.b16 %v1324
      %v1341 = vpack.c.b16 %v1334, %v1333
      %v1342 = vpack.c.b16 %v1336, %v1335
      %v1343 = vpack.c.b16 %v1338, %v1337
      %v1344 = vpack.c.b16 %v1340, %v1339
      %v1350 = vsel %vm237, %v1312, 0
      %v1353 = vsel %vm237, %v1313, 0
      %v1356 = vsel %vm237, %v1314, 0
      %v1359 = vsel %vm237, %v1315, 0
      %1361 = vmatprep.subr.bf16.mxu0 0
      %1362 = vmatpush1.bf16.msra.mxu0 %v1341
      %1363 = vmatprep.subr.bf16.mxu0 0
      %1364 = vmatpush1.bf16.msra.mxu0 %v1342
      %1365 = vmatprep.subr.bf16.mxu0 0
      %1366 = vmatpush1.bf16.msra.mxu0 %v1343
      %1367 = vmatprep.subr.bf16.mxu0 0
      %1368 = vmatpush1.bf16.msra.mxu0 %v1344
      %1369 = vmatprep.subr.bf16.mxu0 0
      %1370 = vmatpush1.bf16.msra.mxu0 0
      %1371 = vmatprep.subr.bf16.mxu0 0
      %1372 = vmatpush1.bf16.msra.mxu0 0
      %1373 = vmatprep.subr.bf16.mxu0 0
      %1374 = vmatpush1.bf16.msra.mxu0 0
      %1375 = vmatprep.subr.bf16.mxu0 0
      %1376 = vmatpush1.bf16.msra.mxu0 0
      %1377 = vmatprep.subr.bf16.mxu0 0
      %1378 = vmatpush1.bf16.msra.mxu0 0
      %1379 = vmatprep.subr.bf16.mxu0 0
      %1380 = vmatpush1.bf16.msra.mxu0 0
      %1381 = vmatprep.subr.bf16.mxu0 0
      %1382 = vmatpush1.bf16.msra.mxu0 0
      %1383 = vmatprep.subr.bf16.mxu0 0
      %1384 = vmatpush1.bf16.msra.mxu0 0
      %1385 = vmatprep.subr.bf16.mxu0 0
      %1386 = vmatpush1.bf16.msra.mxu0 0
      %1387 = vmatprep.subr.bf16.mxu0 0
      %1388 = vmatpush1.bf16.msra.mxu0 0
      %1389 = vmatprep.subr.bf16.mxu0 0
      %1390 = vmatpush1.bf16.msra.mxu0 0
      %1391 = vmatprep.subr.bf16.mxu0 0
      %1392 = vmatpush1.bf16.msra.mxu0 0
      %1393 = vmatprep.mubr.bf16.mxu0 0
      %1394 = vmatmul.mubr.bf16.gmra.mrb[0].mxu0 %v1350
      %v1395 = vpop.f32.mrb[0].mxu0
      %v1396 = vadd.f32 0.0, %v1395
      %v1397 = vpop.f32.mrb[0].mxu0
      %v1398 = vpop.f32.mrb[0].mxu0
      %v1399 = vadd.f32 0.0, %v1398
      %v1400 = vpop.f32.mrb[0].mxu0
      %1401 = vmatprep.mubr.bf16.mxu0 0
      %1402 = vmatmul.mubr.bf16.gmra.mrb[0].mxu0 %v1353
      %v1403 = vpop.f32.mrb[0].mxu0
      %v1404 = vadd.f32 0.0, %v1403
      %v1405 = vpop.f32.mrb[0].mxu0
      %v1406 = vpop.f32.mrb[0].mxu0
      %v1407 = vadd.f32 0.0, %v1406
      %v1408 = vpop.f32.mrb[0].mxu0
      %1409 = vmatprep.mubr.bf16.mxu0 0
      %1410 = vmatmul.mubr.bf16.gmra.mrb[0].mxu0 %v1356
      %v1411 = vpop.f32.mrb[0].mxu0
      %v1412 = vadd.f32 0.0, %v1411
      %v1413 = vpop.f32.mrb[0].mxu0
      %v1414 = vpop.f32.mrb[0].mxu0
      %v1415 = vadd.f32 0.0, %v1414
      %v1416 = vpop.f32.mrb[0].mxu0
      %1417 = vmatprep.mubr.bf16.mxu0 0
      %1418 = vmatmul.mubr.bf16.gmra.mrb[0].mxu0 %v1359
      %v1419 = vpop.f32.mrb[0].mxu0
      %v1420 = vadd.f32 0.0, %v1419
      %v1421 = vpop.f32.mrb[0].mxu0
      %v1422 = vpop.f32.mrb[0].mxu0
      %v1423 = vpop.f32.mrb[0].mxu0
      %1424 = vdwg.mxu0
      %v1425 = vadd.f32 %v1298, %v1396
      %v1426 = vadd.f32 %v1299, %v1399
      %v1427 = vadd.f32 %v1300, %v1404
      %v1428 = vadd.f32 %v1301, %v1407
      %v1429 = vadd.f32 %v1302, %v1412
      %v1430 = vadd.f32 %v1303, %v1415
      %v1431 = vadd.f32 %v1304, %v1420
      %s1432 = scalar_lea.vmem %s165, 16
      %v1433 = vld [vmem:[%s1432] sm:$0xff]
      %v1434 = vld [vmem:[%s1432 + $0x10] sm:$0xff]
      %v1435 = vld [vmem:[%s1432 + $0x20] sm:$0xff]
      %v1436 = vld [vmem:[%s1432 + $0x30] sm:$0xff]
      %v1437 = vld [vmem:[%s1432 + $0x40] sm:$0xff]
      %v1438 = vld [vmem:[%s1432 + $0x50] sm:$0xff]
      %v1439 = vld [vmem:[%s1432 + $0x60] sm:$0xff]
      %v1440 = vpack.c.bf16 %v1434, %v1433
      %v1441 = vpack.c.bf16 %v1436, %v1435
      %v1442 = vpack.c.bf16 %v1438, %v1437
      %v1443 = vpack.c.bf16 %v1439, %v1439
      %s1444 = scalar_lea.vmem %s1, 320
      %v1445 = vld [vmem:[%s1444] sm:$0xf]
      %v1446 = vld [vmem:[%s1444 + $0x4] sm:$0xf]
      %v1447 = vld [vmem:[%s1444 + $0x8] sm:$0xf]
      %v1448 = vld [vmem:[%s1444 + $0xc] sm:$0xf]
      %v1449 = vld [vmem:[%s1444 + $0x10] sm:$0xf]
      %v1450 = vld [vmem:[%s1444 + $0x14] sm:$0xf]
      %v1451 = vld [vmem:[%s1444 + $0x18] sm:$0xf]
      %v1452 = vld [vmem:[%s1444 + $0x1c] sm:$0xf]
      %v1461 = vunpack.c.l.b16 %v1445
      %v1462 = vunpack.c.l.b16 %v1446
      %v1463 = vunpack.c.l.b16 %v1447
      %v1464 = vunpack.c.l.b16 %v1448
      %v1465 = vunpack.c.l.b16 %v1449
      %v1466 = vunpack.c.l.b16 %v1450
      %v1467 = vunpack.c.l.b16 %v1451
      %v1468 = vunpack.c.l.b16 %v1452
      %v1469 = vpack.c.b16 %v1462, %v1461
      %v1470 = vpack.c.b16 %v1464, %v1463
      %v1471 = vpack.c.b16 %v1466, %v1465
      %v1472 = vpack.c.b16 %v1468, %v1467
      %v1478 = vsel %vm237, %v1440, 0
      %v1481 = vsel %vm237, %v1441, 0
      %v1484 = vsel %vm237, %v1442, 0
      %v1487 = vsel %vm237, %v1443, 0
      %1489 = vmatprep.subr.bf16.mxu0 0
      %1490 = vmatpush1.bf16.msra.mxu0 %v1469
      %1491 = vmatprep.subr.bf16.mxu0 0
      %1492 = vmatpush1.bf16.msra.mxu0 %v1470
      %1493 = vmatprep.subr.bf16.mxu0 0
      %1494 = vmatpush1.bf16.msra.mxu0 %v1471
      %1495 = vmatprep.subr.bf16.mxu0 0
      %1496 = vmatpush1.bf16.msra.mxu0 %v1472
      %1497 = vmatprep.subr.bf16.mxu0 0
      %1498 = vmatpush1.bf16.msra.mxu0 0
      %1499 = vmatprep.subr.bf16.mxu0 0
      %1500 = vmatpush1.bf16.msra.mxu0 0
      %1501 = vmatprep.subr.bf16.mxu0 0
      %1502 = vmatpush1.bf16.msra.mxu0 0
      %1503 = vmatprep.subr.bf16.mxu0 0
      %1504 = vmatpush1.bf16.msra.mxu0 0
      %1505 = vmatprep.subr.bf16.mxu0 0
      %1506 = vmatpush1.bf16.msra.mxu0 0
      %1507 = vmatprep.subr.bf16.mxu0 0
      %1508 = vmatpush1.bf16.msra.mxu0 0
      %1509 = vmatprep.subr.bf16.mxu0 0
      %1510 = vmatpush1.bf16.msra.mxu0 0
      %1511 = vmatprep.subr.bf16.mxu0 0
      %1512 = vmatpush1.bf16.msra.mxu0 0
      %1513 = vmatprep.subr.bf16.mxu0 0
      %1514 = vmatpush1.bf16.msra.mxu0 0
      %1515 = vmatprep.subr.bf16.mxu0 0
      %1516 = vmatpush1.bf16.msra.mxu0 0
      %1517 = vmatprep.subr.bf16.mxu0 0
      %1518 = vmatpush1.bf16.msra.mxu0 0
      %1519 = vmatprep.subr.bf16.mxu0 0
      %1520 = vmatpush1.bf16.msra.mxu0 0
      %1521 = vmatprep.mubr.bf16.mxu0 0
      %1522 = vmatmul.mubr.bf16.gmra.mrb[0].mxu0 %v1478
      %v1523 = vpop.f32.mrb[0].mxu0
      %v1524 = vadd.f32 0.0, %v1523
      %v1525 = vpop.f32.mrb[0].mxu0
      %v1526 = vpop.f32.mrb[0].mxu0
      %v1527 = vadd.f32 0.0, %v1526
      %v1528 = vpop.f32.mrb[0].mxu0
      %1529 = vmatprep.mubr.bf16.mxu0 0
      %1530 = vmatmul.mubr.bf16.gmra.mrb[0].mxu0 %v1481
      %v1531 = vpop.f32.mrb[0].mxu0
      %v1532 = vadd.f32 0.0, %v1531
      %v1533 = vpop.f32.mrb[0].mxu0
      %v1534 = vpop.f32.mrb[0].mxu0
      %v1535 = vadd.f32 0.0, %v1534
      %v1536 = vpop.f32.mrb[0].mxu0
      %1537 = vmatprep.mubr.bf16.mxu0 0
      %1538 = vmatmul.mubr.bf16.gmra.mrb[0].mxu0 %v1484
      %v1539 = vpop.f32.mrb[0].mxu0
      %v1540 = vadd.f32 0.0, %v1539
      %v1541 = vpop.f32.mrb[0].mxu0
      %v1542 = vpop.f32.mrb[0].mxu0
      %v1543 = vadd.f32 0.0, %v1542
      %v1544 = vpop.f32.mrb[0].mxu0
      %1545 = vmatprep.mubr.bf16.mxu0 0
      %1546 = vmatmul.mubr.bf16.gmra.mrb[0].mxu0 %v1487
      %v1547 = vpop.f32.mrb[0].mxu0
      %v1548 = vadd.f32 0.0, %v1547
      %v1549 = vpop.f32.mrb[0].mxu0
      %v1550 = vpop.f32.mrb[0].mxu0
      %v1551 = vpop.f32.mrb[0].mxu0
      %1552 = vdwg.mxu0
      %v1553 = vadd.f32 %v1425, %v1524
      %v1554 = vadd.f32 %v1426, %v1527
      %v1555 = vadd.f32 %v1427, %v1532
      %v1556 = vadd.f32 %v1428, %v1535
      %v1557 = vadd.f32 %v1429, %v1540
      %v1558 = vadd.f32 %v1430, %v1543
      %v1559 = vadd.f32 %v1431, %v1548
      %s1560 = scalar_lea.vmem %s165, 160
      %v1561 = vld [vmem:[%s1560] sm:$0xff]
      %v1562 = vld [vmem:[%s1560 + $0x10] sm:$0xff]
      %v1563 = vld [vmem:[%s1560 + $0x20] sm:$0xff]
      %v1564 = vld [vmem:[%s1560 + $0x30] sm:$0xff]
      %v1565 = vld [vmem:[%s1560 + $0x40] sm:$0xff]
      %v1566 = vld [vmem:[%s1560 + $0x50] sm:$0xff]
      %v1567 = vld [vmem:[%s1560 + $0x60] sm:$0xff]
      %v1568 = vpack.c.bf16 %v1562, %v1561
      %v1569 = vpack.c.bf16 %v1564, %v1563
      %v1570 = vpack.c.bf16 %v1566, %v1565
      %v1571 = vpack.c.bf16 %v1567, %v1567
      %s1572 = scalar_lea.vmem %s1, 352
      %v1573 = vld [vmem:[%s1572] sm:$0xf]
      %v1574 = vld [vmem:[%s1572 + $0x4] sm:$0xf]
      %v1575 = vld [vmem:[%s1572 + $0x8] sm:$0xf]
      %v1576 = vld [vmem:[%s1572 + $0xc] sm:$0xf]
      %v1577 = vld [vmem:[%s1572 + $0x10] sm:$0xf]
      %v1578 = vld [vmem:[%s1572 + $0x14] sm:$0xf]
      %v1579 = vld [vmem:[%s1572 + $0x18] sm:$0xf]
      %v1580 = vld [vmem:[%s1572 + $0x1c] sm:$0xf]
      %v1589 = vunpack.c.l.b16 %v1573
      %v1590 = vunpack.c.l.b16 %v1574
      %v1591 = vunpack.c.l.b16 %v1575
      %v1592 = vunpack.c.l.b16 %v1576
      %v1593 = vunpack.c.l.b16 %v1577
      %v1594 = vunpack.c.l.b16 %v1578
      %v1595 = vunpack.c.l.b16 %v1579
      %v1596 = vunpack.c.l.b16 %v1580
      %v1597 = vpack.c.b16 %v1590, %v1589
      %v1598 = vpack.c.b16 %v1592, %v1591
      %v1599 = vpack.c.b16 %v1594, %v1593
      %v1600 = vpack.c.b16 %v1596, %v1595
      %v1606 = vsel %vm237, %v1568, 0
      %v1609 = vsel %vm237, %v1569, 0
      %v1612 = vsel %vm237, %v1570, 0
      %v1615 = vsel %vm237, %v1571, 0
      %1617 = vmatprep.subr.bf16.mxu0 0
      %1618 = vmatpush1.bf16.msra.mxu0 %v1597
      %1619 = vmatprep.subr.bf16.mxu0 0
      %1620 = vmatpush1.bf16.msra.mxu0 %v1598
      %1621 = vmatprep.subr.bf16.mxu0 0
      %1622 = vmatpush1.bf16.msra.mxu0 %v1599
      %1623 = vmatprep.subr.bf16.mxu0 0
      %1624 = vmatpush1.bf16.msra.mxu0 %v1600
      %1625 = vmatprep.subr.bf16.mxu0 0
      %1626 = vmatpush1.bf16.msra.mxu0 0
      %1627 = vmatprep.subr.bf16.mxu0 0
      %1628 = vmatpush1.bf16.msra.mxu0 0
      %1629 = vmatprep.subr.bf16.mxu0 0
      %1630 = vmatpush1.bf16.msra.mxu0 0
      %1631 = vmatprep.subr.bf16.mxu0 0
      %1632 = vmatpush1.bf16.msra.mxu0 0
      %1633 = vmatprep.subr.bf16.mxu0 0
      %1634 = vmatpush1.bf16.msra.mxu0 0
      %1635 = vmatprep.subr.bf16.mxu0 0
      %1636 = vmatpush1.bf16.msra.mxu0 0
      %1637 = vmatprep.subr.bf16.mxu0 0
      %1638 = vmatpush1.bf16.msra.mxu0 0
      %1639 = vmatprep.subr.bf16.mxu0 0
      %1640 = vmatpush1.bf16.msra.mxu0 0
      %1641 = vmatprep.subr.bf16.mxu0 0
      %1642 = vmatpush1.bf16.msra.mxu0 0
      %1643 = vmatprep.subr.bf16.mxu0 0
      %1644 = vmatpush1.bf16.msra.mxu0 0
      %1645 = vmatprep.subr.bf16.mxu0 0
      %1646 = vmatpush1.bf16.msra.mxu0 0
      %1647 = vmatprep.subr.bf16.mxu0 0
      %1648 = vmatpush1.bf16.msra.mxu0 0
      %1649 = vmatprep.mubr.bf16.mxu0 0
      %1650 = vmatmul.mubr.bf16.gmra.mrb[0].mxu0 %v1606
      %v1651 = vpop.f32.mrb[0].mxu0
      %v1652 = vadd.f32 0.0, %v1651
      %v1653 = vpop.f32.mrb[0].mxu0
      %v1654 = vpop.f32.mrb[0].mxu0
      %v1655 = vadd.f32 0.0, %v1654
      %v1656 = vpop.f32.mrb[0].mxu0
      %1657 = vmatprep.mubr.bf16.mxu0 0
      %1658 = vmatmul.mubr.bf16.gmra.mrb[0].mxu0 %v1609
      %v1659 = vpop.f32.mrb[0].mxu0
      %v1660 = vadd.f32 0.0, %v1659
      %v1661 = vpop.f32.mrb[0].mxu0
      %v1662 = vpop.f32.mrb[0].mxu0
      %v1663 = vadd.f32 0.0, %v1662
      %v1664 = vpop.f32.mrb[0].mxu0
      %1665 = vmatprep.mubr.bf16.mxu0 0
      %1666 = vmatmul.mubr.bf16.gmra.mrb[0].mxu0 %v1612
      %v1667 = vpop.f32.mrb[0].mxu0
      %v1668 = vadd.f32 0.0, %v1667
      %v1669 = vpop.f32.mrb[0].mxu0
      %v1670 = vpop.f32.mrb[0].mxu0
      %v1671 = vadd.f32 0.0, %v1670
      %v1672 = vpop.f32.mrb[0].mxu0
      %1673 = vmatprep.mubr.bf16.mxu0 0
      %1674 = vmatmul.mubr.bf16.gmra.mrb[0].mxu0 %v1615
      %v1675 = vpop.f32.mrb[0].mxu0
      %v1676 = vadd.f32 0.0, %v1675
      %v1677 = vpop.f32.mrb[0].mxu0
      %v1678 = vpop.f32.mrb[0].mxu0
      %v1679 = vpop.f32.mrb[0].mxu0
      %1680 = vdwg.mxu0
      %v1681 = vadd.f32 %v1553, %v1652
      %v1682 = vadd.f32 %v1554, %v1655
      %v1683 = vadd.f32 %v1555, %v1660
      %v1684 = vadd.f32 %v1556, %v1663
      %v1685 = vadd.f32 %v1557, %v1668
      %v1686 = vadd.f32 %v1558, %v1671
      %v1687 = vadd.f32 %v1559, %v1676
      %v1688 = vld [vmem:[%s1432 + $0x1] sm:$0xff]
      %v1689 = vld [vmem:[%s1432 + $0x11] sm:$0xff]
      %v1690 = vld [vmem:[%s1432 + $0x21] sm:$0xff]
      %v1691 = vld [vmem:[%s1432 + $0x31] sm:$0xff]
      %v1692 = vld [vmem:[%s1432 + $0x41] sm:$0xff]
      %v1693 = vld [vmem:[%s1432 + $0x51] sm:$0xff]
      %v1694 = vld [vmem:[%s1432 + $0x61] sm:$0xff]
      %v1695 = vpack.c.bf16 %v1689, %v1688
      %v1696 = vpack.c.bf16 %v1691, %v1690
      %v1697 = vpack.c.bf16 %v1693, %v1692
      %v1698 = vpack.c.bf16 %v1694, %v1694
      %s1699 = scalar_lea.vmem %s1, 384
      %v1700 = vld [vmem:[%s1699] sm:$0xf]
      %v1701 = vld [vmem:[%s1699 + $0x4] sm:$0xf]
      %v1702 = vld [vmem:[%s1699 + $0x8] sm:$0xf]
      %v1703 = vld [vmem:[%s1699 + $0xc] sm:$0xf]
      %v1704 = vld [vmem:[%s1699 + $0x10] sm:$0xf]
      %v1705 = vld [vmem:[%s1699 + $0x14] sm:$0xf]
      %v1706 = vld [vmem:[%s1699 + $0x18] sm:$0xf]
      %v1707 = vld [vmem:[%s1699 + $0x1c] sm:$0xf]
      %v1716 = vunpack.c.l.b16 %v1700
      %v1717 = vunpack.c.l.b16 %v1701
      %v1718 = vunpack.c.l.b16 %v1702
      %v1719 = vunpack.c.l.b16 %v1703
      %v1720 = vunpack.c.l.b16 %v1704
      %v1721 = vunpack.c.l.b16 %v1705
      %v1722 = vunpack.c.l.b16 %v1706
      %v1723 = vunpack.c.l.b16 %v1707
      %v1724 = vpack.c.b16 %v1717, %v1716
      %v1725 = vpack.c.b16 %v1719, %v1718
      %v1726 = vpack.c.b16 %v1721, %v1720
      %v1727 = vpack.c.b16 %v1723, %v1722
      %v1733 = vsel %vm237, %v1695, 0
      %v1736 = vsel %vm237, %v1696, 0
      %v1739 = vsel %vm237, %v1697, 0
      %v1742 = vsel %vm237, %v1698, 0
      %1744 = vmatprep.subr.bf16.mxu0 0
      %1745 = vmatpush1.bf16.msra.mxu0 %v1724
      %1746 = vmatprep.subr.bf16.mxu0 0
      %1747 = vmatpush1.bf16.msra.mxu0 %v1725
      %1748 = vmatprep.subr.bf16.mxu0 0
      %1749 = vmatpush1.bf16.msra.mxu0 %v1726
      %1750 = vmatprep.subr.bf16.mxu0 0
      %1751 = vmatpush1.bf16.msra.mxu0 %v1727
      %1752 = vmatprep.subr.bf16.mxu0 0
      %1753 = vmatpush1.bf16.msra.mxu0 0
      %1754 = vmatprep.subr.bf16.mxu0 0
      %1755 = vmatpush1.bf16.msra.mxu0 0
      %1756 = vmatprep.subr.bf16.mxu0 0
      %1757 = vmatpush1.bf16.msra.mxu0 0
      %1758 = vmatprep.subr.bf16.mxu0 0
      %1759 = vmatpush1.bf16.msra.mxu0 0
      %1760 = vmatprep.subr.bf16.mxu0 0
      %1761 = vmatpush1.bf16.msra.mxu0 0
      %1762 = vmatprep.subr.bf16.mxu0 0
      %1763 = vmatpush1.bf16.msra.mxu0 0
      %1764 = vmatprep.subr.bf16.mxu0 0
      %1765 = vmatpush1.bf16.msra.mxu0 0
      %1766 = vmatprep.subr.bf16.mxu0 0
      %1767 = vmatpush1.bf16.msra.mxu0 0
      %1768 = vmatprep.subr.bf16.mxu0 0
      %1769 = vmatpush1.bf16.msra.mxu0 0
      %1770 = vmatprep.subr.bf16.mxu0 0
      %1771 = vmatpush1.bf16.msra.mxu0 0
      %1772 = vmatprep.subr.bf16.mxu0 0
      %1773 = vmatpush1.bf16.msra.mxu0 0
      %1774 = vmatprep.subr.bf16.mxu0 0
      %1775 = vmatpush1.bf16.msra.mxu0 0
      %1776 = vmatprep.mubr.bf16.mxu0 0
      %1777 = vmatmul.mubr.bf16.gmra.mrb[0].mxu0 %v1733
      %v1778 = vpop.f32.mrb[0].mxu0
      %v1779 = vadd.f32 0.0, %v1778
      %v1780 = vpop.f32.mrb[0].mxu0
      %v1781 = vpop.f32.mrb[0].mxu0
      %v1782 = vadd.f32 0.0, %v1781
      %v1783 = vpop.f32.mrb[0].mxu0
      %1784 = vmatprep.mubr.bf16.mxu0 0
      %1785 = vmatmul.mubr.bf16.gmra.mrb[0].mxu0 %v1736
      %v1786 = vpop.f32.mrb[0].mxu0
      %v1787 = vadd.f32 0.0, %v1786
      %v1788 = vpop.f32.mrb[0].mxu0
      %v1789 = vpop.f32.mrb[0].mxu0
      %v1790 = vadd.f32 0.0, %v1789
      %v1791 = vpop.f32.mrb[0].mxu0
      %1792 = vmatprep.mubr.bf16.mxu0 0
      %1793 = vmatmul.mubr.bf16.gmra.mrb[0].mxu0 %v1739
      %v1794 = vpop.f32.mrb[0].mxu0
      %v1795 = vadd.f32 0.0, %v1794
      %v1796 = vpop.f32.mrb[0].mxu0
      %v1797 = vpop.f32.mrb[0].mxu0
      %v1798 = vadd.f32 0.0, %v1797
      %v1799 = vpop.f32.mrb[0].mxu0
      %1800 = vmatprep.mubr.bf16.mxu0 0
      %1801 = vmatmul.mubr.bf16.gmra.mrb[0].mxu0 %v1742
      %v1802 = vpop.f32.mrb[0].mxu0
      %v1803 = vadd.f32 0.0, %v1802
      %v1804 = vpop.f32.mrb[0].mxu0
      %v1805 = vpop.f32.mrb[0].mxu0
      %v1806 = vpop.f32.mrb[0].mxu0
      %1807 = vdwg.mxu0
      %v1808 = vadd.f32 %v1681, %v1779
      %v1809 = vadd.f32 %v1682, %v1782
      %v1810 = vadd.f32 %v1683, %v1787
      %v1811 = vadd.f32 %v1684, %v1790
      %v1812 = vadd.f32 %v1685, %v1795
      %v1813 = vadd.f32 %v1686, %v1798
      %v1814 = vadd.f32 %v1687, %v1803
      %v1815 = vld [vmem:[%s1560 + $0x1] sm:$0xff]
      %v1816 = vld [vmem:[%s1560 + $0x11] sm:$0xff]
      %v1817 = vld [vmem:[%s1560 + $0x21] sm:$0xff]
      %v1818 = vld [vmem:[%s1560 + $0x31] sm:$0xff]
      %v1819 = vld [vmem:[%s1560 + $0x41] sm:$0xff]
      %v1820 = vld [vmem:[%s1560 + $0x51] sm:$0xff]
      %v1821 = vld [vmem:[%s1560 + $0x61] sm:$0xff]
      %v1822 = vpack.c.bf16 %v1816, %v1815
      %v1823 = vpack.c.bf16 %v1818, %v1817
      %v1824 = vpack.c.bf16 %v1820, %v1819
      %v1825 = vpack.c.bf16 %v1821, %v1821
      %s1826 = scalar_lea.vmem %s1, 416
      %v1827 = vld [vmem:[%s1826] sm:$0xf]
      %v1828 = vld [vmem:[%s1826 + $0x4] sm:$0xf]
      %v1829 = vld [vmem:[%s1826 + $0x8] sm:$0xf]
      %v1830 = vld [vmem:[%s1826 + $0xc] sm:$0xf]
      %v1831 = vld [vmem:[%s1826 + $0x10] sm:$0xf]
      %v1832 = vld [vmem:[%s1826 + $0x14] sm:$0xf]
      %v1833 = vld [vmem:[%s1826 + $0x18] sm:$0xf]
      %v1834 = vld [vmem:[%s1826 + $0x1c] sm:$0xf]
      %v1843 = vunpack.c.l.b16 %v1827
      %v1844 = vunpack.c.l.b16 %v1828
      %v1845 = vunpack.c.l.b16 %v1829
      %v1846 = vunpack.c.l.b16 %v1830
      %v1847 = vunpack.c.l.b16 %v1831
      %v1848 = vunpack.c.l.b16 %v1832
      %v1849 = vunpack.c.l.b16 %v1833
      %v1850 = vunpack.c.l.b16 %v1834
      %v1851 = vpack.c.b16 %v1844, %v1843
      %v1852 = vpack.c.b16 %v1846, %v1845
      %v1853 = vpack.c.b16 %v1848, %v1847
      %v1854 = vpack.c.b16 %v1850, %v1849
      %v1860 = vsel %vm237, %v1822, 0
      %v1863 = vsel %vm237, %v1823, 0
      %v1866 = vsel %vm237, %v1824, 0
      %v1869 = vsel %vm237, %v1825, 0
      %1871 = vmatprep.subr.bf16.mxu0 0
      %1872 = vmatpush1.bf16.msra.mxu0 %v1851
      %1873 = vmatprep.subr.bf16.mxu0 0
      %1874 = vmatpush1.bf16.msra.mxu0 %v1852
      %1875 = vmatprep.subr.bf16.mxu0 0
      %1876 = vmatpush1.bf16.msra.mxu0 %v1853
      %1877 = vmatprep.subr.bf16.mxu0 0
      %1878 = vmatpush1.bf16.msra.mxu0 %v1854
      %1879 = vmatprep.subr.bf16.mxu0 0
      %1880 = vmatpush1.bf16.msra.mxu0 0
      %1881 = vmatprep.subr.bf16.mxu0 0
      %1882 = vmatpush1.bf16.msra.mxu0 0
      %1883 = vmatprep.subr.bf16.mxu0 0
      %1884 = vmatpush1.bf16.msra.mxu0 0
      %1885 = vmatprep.subr.bf16.mxu0 0
      %1886 = vmatpush1.bf16.msra.mxu0 0
      %1887 = vmatprep.subr.bf16.mxu0 0
      %1888 = vmatpush1.bf16.msra.mxu0 0
      %1889 = vmatprep.subr.bf16.mxu0 0
      %1890 = vmatpush1.bf16.msra.mxu0 0
      %1891 = vmatprep.subr.bf16.mxu0 0
      %1892 = vmatpush1.bf16.msra.mxu0 0
      %1893 = vmatprep.subr.bf16.mxu0 0
      %1894 = vmatpush1.bf16.msra.mxu0 0
      %1895 = vmatprep.subr.bf16.mxu0 0
      %1896 = vmatpush1.bf16.msra.mxu0 0
      %1897 = vmatprep.subr.bf16.mxu0 0
      %1898 = vmatpush1.bf16.msra.mxu0 0
      %1899 = vmatprep.subr.bf16.mxu0 0
      %1900 = vmatpush1.bf16.msra.mxu0 0
      %1901 = vmatprep.subr.bf16.mxu0 0
      %1902 = vmatpush1.bf16.msra.mxu0 0
      %1903 = vmatprep.mubr.bf16.mxu0 0
      %1904 = vmatmul.mubr.bf16.gmra.mrb[0].mxu0 %v1860
      %v1905 = vpop.f32.mrb[0].mxu0
      %v1906 = vadd.f32 0.0, %v1905
      %v1907 = vpop.f32.mrb[0].mxu0
      %v1908 = vpop.f32.mrb[0].mxu0
      %v1909 = vadd.f32 0.0, %v1908
      %v1910 = vpop.f32.mrb[0].mxu0
      %1911 = vmatprep.mubr.bf16.mxu0 0
      %1912 = vmatmul.mubr.bf16.gmra.mrb[0].mxu0 %v1863
      %v1913 = vpop.f32.mrb[0].mxu0
      %v1914 = vadd.f32 0.0, %v1913
      %v1915 = vpop.f32.mrb[0].mxu0
      %v1916 = vpop.f32.mrb[0].mxu0
      %v1917 = vadd.f32 0.0, %v1916
      %v1918 = vpop.f32.mrb[0].mxu0
      %1919 = vmatprep.mubr.bf16.mxu0 0
      %1920 = vmatmul.mubr.bf16.gmra.mrb[0].mxu0 %v1866
      %v1921 = vpop.f32.mrb[0].mxu0
      %v1922 = vadd.f32 0.0, %v1921
      %v1923 = vpop.f32.mrb[0].mxu0
      %v1924 = vpop.f32.mrb[0].mxu0
      %v1925 = vadd.f32 0.0, %v1924
      %v1926 = vpop.f32.mrb[0].mxu0
      %1927 = vmatprep.mubr.bf16.mxu0 0
      %1928 = vmatmul.mubr.bf16.gmra.mrb[0].mxu0 %v1869
      %v1929 = vpop.f32.mrb[0].mxu0
      %v1930 = vadd.f32 0.0, %v1929
      %v1931 = vpop.f32.mrb[0].mxu0
      %v1932 = vpop.f32.mrb[0].mxu0
      %v1933 = vpop.f32.mrb[0].mxu0
      %1934 = vdwg.mxu0
      %v1935 = vadd.f32 %v1808, %v1906
      %v1936 = vadd.f32 %v1809, %v1909
      %v1937 = vadd.f32 %v1810, %v1914
      %v1938 = vadd.f32 %v1811, %v1917
      %v1939 = vadd.f32 %v1812, %v1922
      %v1940 = vadd.f32 %v1813, %v1925
      %v1941 = vadd.f32 %v1814, %v1930
      %v1942 = vld [vmem:[%s1432 + $0x2] sm:$0xff]
      %v1943 = vld [vmem:[%s1432 + $0x12] sm:$0xff]
      %v1944 = vld [vmem:[%s1432 + $0x22] sm:$0xff]
      %v1945 = vld [vmem:[%s1432 + $0x32] sm:$0xff]
      %v1946 = vld [vmem:[%s1432 + $0x42] sm:$0xff]
      %v1947 = vld [vmem:[%s1432 + $0x52] sm:$0xff]
      %v1948 = vld [vmem:[%s1432 + $0x62] sm:$0xff]
      %v1949 = vpack.c.bf16 %v1943, %v1942
      %v1950 = vpack.c.bf16 %v1945, %v1944
      %v1951 = vpack.c.bf16 %v1947, %v1946
      %v1952 = vpack.c.bf16 %v1948, %v1948
      %s1953 = scalar_lea.vmem %s1, 448
      %v1954 = vld [vmem:[%s1953] sm:$0xf]
      %v1955 = vld [vmem:[%s1953 + $0x4] sm:$0xf]
      %v1956 = vld [vmem:[%s1953 + $0x8] sm:$0xf]
      %v1957 = vld [vmem:[%s1953 + $0xc] sm:$0xf]
      %v1958 = vld [vmem:[%s1953 + $0x10] sm:$0xf]
      %v1959 = vld [vmem:[%s1953 + $0x14] sm:$0xf]
      %v1960 = vld [vmem:[%s1953 + $0x18] sm:$0xf]
      %v1961 = vld [vmem:[%s1953 + $0x1c] sm:$0xf]
      %v1970 = vunpack.c.l.b16 %v1954
      %v1971 = vunpack.c.l.b16 %v1955
      %v1972 = vunpack.c.l.b16 %v1956
      %v1973 = vunpack.c.l.b16 %v1957
      %v1974 = vunpack.c.l.b16 %v1958
      %v1975 = vunpack.c.l.b16 %v1959
      %v1976 = vunpack.c.l.b16 %v1960
      %v1977 = vunpack.c.l.b16 %v1961
      %v1978 = vpack.c.b16 %v1971, %v1970
      %v1979 = vpack.c.b16 %v1973, %v1972
      %v1980 = vpack.c.b16 %v1975, %v1974
      %v1981 = vpack.c.b16 %v1977, %v1976
      %v1987 = vsel %vm237, %v1949, 0
      %v1990 = vsel %vm237, %v1950, 0
      %v1993 = vsel %vm237, %v1951, 0
      %v1996 = vsel %vm237, %v1952, 0
      %1998 = vmatprep.subr.bf16.mxu0 0
      %1999 = vmatpush1.bf16.msra.mxu0 %v1978
      %2000 = vmatprep.subr.bf16.mxu0 0
      %2001 = vmatpush1.bf16.msra.mxu0 %v1979
      %2002 = vmatprep.subr.bf16.mxu0 0
      %2003 = vmatpush1.bf16.msra.mxu0 %v1980
      %2004 = vmatprep.subr.bf16.mxu0 0
      %2005 = vmatpush1.bf16.msra.mxu0 %v1981
      %2006 = vmatprep.subr.bf16.mxu0 0
      %2007 = vmatpush1.bf16.msra.mxu0 0
      %2008 = vmatprep.subr.bf16.mxu0 0
      %2009 = vmatpush1.bf16.msra.mxu0 0
      %2010 = vmatprep.subr.bf16.mxu0 0
      %2011 = vmatpush1.bf16.msra.mxu0 0
      %2012 = vmatprep.subr.bf16.mxu0 0
      %2013 = vmatpush1.bf16.msra.mxu0 0
      %2014 = vmatprep.subr.bf16.mxu0 0
      %2015 = vmatpush1.bf16.msra.mxu0 0
      %2016 = vmatprep.subr.bf16.mxu0 0
      %2017 = vmatpush1.bf16.msra.mxu0 0
      %2018 = vmatprep.subr.bf16.mxu0 0
      %2019 = vmatpush1.bf16.msra.mxu0 0
      %2020 = vmatprep.subr.bf16.mxu0 0
      %2021 = vmatpush1.bf16.msra.mxu0 0
      %2022 = vmatprep.subr.bf16.mxu0 0
      %2023 = vmatpush1.bf16.msra.mxu0 0
      %2024 = vmatprep.subr.bf16.mxu0 0
      %2025 = vmatpush1.bf16.msra.mxu0 0
      %2026 = vmatprep.subr.bf16.mxu0 0
      %2027 = vmatpush1.bf16.msra.mxu0 0
      %2028 = vmatprep.subr.bf16.mxu0 0
      %2029 = vmatpush1.bf16.msra.mxu0 0
      %2030 = vmatprep.mubr.bf16.mxu0 0
      %2031 = vmatmul.mubr.bf16.gmra.mrb[0].mxu0 %v1987
      %v2032 = vpop.f32.mrb[0].mxu0
      %v2033 = vadd.f32 0.0, %v2032
      %v2034 = vpop.f32.mrb[0].mxu0
      %v2035 = vpop.f32.mrb[0].mxu0
      %v2036 = vadd.f32 0.0, %v2035
      %v2037 = vpop.f32.mrb[0].mxu0
      %2038 = vmatprep.mubr.bf16.mxu0 0
      %2039 = vmatmul.mubr.bf16.gmra.mrb[0].mxu0 %v1990
      %v2040 = vpop.f32.mrb[0].mxu0
      %v2041 = vadd.f32 0.0, %v2040
      %v2042 = vpop.f32.mrb[0].mxu0
      %v2043 = vpop.f32.mrb[0].mxu0
      %v2044 = vadd.f32 0.0, %v2043
      %v2045 = vpop.f32.mrb[0].mxu0
      %2046 = vmatprep.mubr.bf16.mxu0 0
      %2047 = vmatmul.mubr.bf16.gmra.mrb[0].mxu0 %v1993
      %v2048 = vpop.f32.mrb[0].mxu0
      %v2049 = vadd.f32 0.0, %v2048
      %v2050 = vpop.f32.mrb[0].mxu0
      %v2051 = vpop.f32.mrb[0].mxu0
      %v2052 = vadd.f32 0.0, %v2051
      %v2053 = vpop.f32.mrb[0].mxu0
      %2054 = vmatprep.mubr.bf16.mxu0 0
      %2055 = vmatmul.mubr.bf16.gmra.mrb[0].mxu0 %v1996
      %v2056 = vpop.f32.mrb[0].mxu0
      %v2057 = vadd.f32 0.0, %v2056
      %v2058 = vpop.f32.mrb[0].mxu0
      %v2059 = vpop.f32.mrb[0].mxu0
      %v2060 = vpop.f32.mrb[0].mxu0
      %2061 = vdwg.mxu0
      %v2062 = vadd.f32 %v1935, %v2033
      %v2063 = vadd.f32 %v1936, %v2036
      %v2064 = vadd.f32 %v1937, %v2041
      %v2065 = vadd.f32 %v1938, %v2044
      %v2066 = vadd.f32 %v1939, %v2049
      %v2067 = vadd.f32 %v1940, %v2052
      %v2068 = vadd.f32 %v1941, %v2057
      %s2069 = scalar_lea.vmem %s165, 304
      %v2070 = vld [vmem:[%s2069] sm:$0xff]
      %v2071 = vld [vmem:[%s2069 + $0x10] sm:$0xff]
      %v2072 = vld [vmem:[%s2069 + $0x20] sm:$0xff]
      %v2073 = vld [vmem:[%s2069 + $0x30] sm:$0xff]
      %v2074 = vld [vmem:[%s2069 + $0x40] sm:$0xff]
      %v2075 = vld [vmem:[%s2069 + $0x50] sm:$0xff]
      %v2076 = vld [vmem:[%s2069 + $0x60] sm:$0xff]
      %v2077 = vpack.c.bf16 %v2071, %v2070
      %v2078 = vpack.c.bf16 %v2073, %v2072
      %v2079 = vpack.c.bf16 %v2075, %v2074
      %v2080 = vpack.c.bf16 %v2076, %v2076
      %s2081 = scalar_lea.vmem %s1, 480
      %v2082 = vld [vmem:[%s2081] sm:$0xf]
      %v2083 = vld [vmem:[%s2081 + $0x4] sm:$0xf]
      %v2084 = vld [vmem:[%s2081 + $0x8] sm:$0xf]
      %v2085 = vld [vmem:[%s2081 + $0xc] sm:$0xf]
      %v2086 = vld [vmem:[%s2081 + $0x10] sm:$0xf]
      %v2087 = vld [vmem:[%s2081 + $0x14] sm:$0xf]
      %v2088 = vld [vmem:[%s2081 + $0x18] sm:$0xf]
      %v2089 = vld [vmem:[%s2081 + $0x1c] sm:$0xf]
      %v2098 = vunpack.c.l.b16 %v2082
      %v2099 = vunpack.c.l.b16 %v2083
      %v2100 = vunpack.c.l.b16 %v2084
      %v2101 = vunpack.c.l.b16 %v2085
      %v2102 = vunpack.c.l.b16 %v2086
      %v2103 = vunpack.c.l.b16 %v2087
      %v2104 = vunpack.c.l.b16 %v2088
      %v2105 = vunpack.c.l.b16 %v2089
      %v2106 = vpack.c.b16 %v2099, %v2098
      %v2107 = vpack.c.b16 %v2101, %v2100
      %v2108 = vpack.c.b16 %v2103, %v2102
      %v2109 = vpack.c.b16 %v2105, %v2104
      %v2115 = vsel %vm237, %v2077, 0
      %v2118 = vsel %vm237, %v2078, 0
      %v2121 = vsel %vm237, %v2079, 0
      %v2124 = vsel %vm237, %v2080, 0
      %2126 = vmatprep.subr.bf16.mxu0 0
      %2127 = vmatpush1.bf16.msra.mxu0 %v2106
      %2128 = vmatprep.subr.bf16.mxu0 0
      %2129 = vmatpush1.bf16.msra.mxu0 %v2107
      %2130 = vmatprep.subr.bf16.mxu0 0
      %2131 = vmatpush1.bf16.msra.mxu0 %v2108
      %2132 = vmatprep.subr.bf16.mxu0 0
      %2133 = vmatpush1.bf16.msra.mxu0 %v2109
      %2134 = vmatprep.subr.bf16.mxu0 0
      %2135 = vmatpush1.bf16.msra.mxu0 0
      %2136 = vmatprep.subr.bf16.mxu0 0
      %2137 = vmatpush1.bf16.msra.mxu0 0
      %2138 = vmatprep.subr.bf16.mxu0 0
      %2139 = vmatpush1.bf16.msra.mxu0 0
      %2140 = vmatprep.subr.bf16.mxu0 0
      %2141 = vmatpush1.bf16.msra.mxu0 0
      %2142 = vmatprep.subr.bf16.mxu0 0
      %2143 = vmatpush1.bf16.msra.mxu0 0
      %2144 = vmatprep.subr.bf16.mxu0 0
      %2145 = vmatpush1.bf16.msra.mxu0 0
      %2146 = vmatprep.subr.bf16.mxu0 0
      %2147 = vmatpush1.bf16.msra.mxu0 0
      %2148 = vmatprep.subr.bf16.mxu0 0
      %2149 = vmatpush1.bf16.msra.mxu0 0
      %2150 = vmatprep.subr.bf16.mxu0 0
      %2151 = vmatpush1.bf16.msra.mxu0 0
      %2152 = vmatprep.subr.bf16.mxu0 0
      %2153 = vmatpush1.bf16.msra.mxu0 0
      %2154 = vmatprep.subr.bf16.mxu0 0
      %2155 = vmatpush1.bf16.msra.mxu0 0
      %2156 = vmatprep.subr.bf16.mxu0 0
      %2157 = vmatpush1.bf16.msra.mxu0 0
      %2158 = vmatprep.mubr.bf16.mxu0 0
      %2159 = vmatmul.mubr.bf16.gmra.mrb[0].mxu0 %v2115
      %v2160 = vpop.f32.mrb[0].mxu0
      %v2161 = vadd.f32 0.0, %v2160
      %v2162 = vpop.f32.mrb[0].mxu0
      %v2163 = vpop.f32.mrb[0].mxu0
      %v2164 = vadd.f32 0.0, %v2163
      %v2165 = vpop.f32.mrb[0].mxu0
      %2166 = vmatprep.mubr.bf16.mxu0 0
      %2167 = vmatmul.mubr.bf16.gmra.mrb[0].mxu0 %v2118
      %v2168 = vpop.f32.mrb[0].mxu0
      %v2169 = vadd.f32 0.0, %v2168
      %v2170 = vpop.f32.mrb[0].mxu0
      %v2171 = vpop.f32.mrb[0].mxu0
      %v2172 = vadd.f32 0.0, %v2171
      %v2173 = vpop.f32.mrb[0].mxu0
      %2174 = vmatprep.mubr.bf16.mxu0 0
      %2175 = vmatmul.mubr.bf16.gmra.mrb[0].mxu0 %v2121
      %v2176 = vpop.f32.mrb[0].mxu0
      %v2177 = vadd.f32 0.0, %v2176
      %v2178 = vpop.f32.mrb[0].mxu0
      %v2179 = vpop.f32.mrb[0].mxu0
      %v2180 = vadd.f32 0.0, %v2179
      %v2181 = vpop.f32.mrb[0].mxu0
      %2182 = vmatprep.mubr.bf16.mxu0 0
      %2183 = vmatmul.mubr.bf16.gmra.mrb[0].mxu0 %v2124
      %v2184 = vpop.f32.mrb[0].mxu0
      %v2185 = vadd.f32 0.0, %v2184
      %v2186 = vpop.f32.mrb[0].mxu0
      %v2187 = vpop.f32.mrb[0].mxu0
      %v2188 = vpop.f32.mrb[0].mxu0
      %2189 = vdwg.mxu0
      %v2190 = vadd.f32 %v2062, %v2161
      %v2191 = vadd.f32 %v2063, %v2164
      %v2192 = vadd.f32 %v2064, %v2169
      %v2193 = vadd.f32 %v2065, %v2172
      %v2194 = vadd.f32 %v2066, %v2177
      %v2195 = vadd.f32 %v2067, %v2180
      %v2196 = vadd.f32 %v2068, %v2185
      %s2197 = scalar_lea.vmem %s165, 448
      %v2198 = vld [vmem:[%s2197] sm:$0xff]
      %v2199 = vld [vmem:[%s2197 + $0x10] sm:$0xff]
      %v2200 = vld [vmem:[%s2197 + $0x20] sm:$0xff]
      %v2201 = vld [vmem:[%s2197 + $0x30] sm:$0xff]
      %v2202 = vld [vmem:[%s2197 + $0x40] sm:$0xff]
      %v2203 = vld [vmem:[%s2197 + $0x50] sm:$0xff]
      %v2204 = vld [vmem:[%s2197 + $0x60] sm:$0xff]
      %v2205 = vpack.c.bf16 %v2199, %v2198
      %v2206 = vpack.c.bf16 %v2201, %v2200
      %v2207 = vpack.c.bf16 %v2203, %v2202
      %v2208 = vpack.c.bf16 %v2204, %v2204
      %s2209 = scalar_lea.vmem %s1, 512
      %v2210 = vld [vmem:[%s2209] sm:$0xf]
      %v2211 = vld [vmem:[%s2209 + $0x4] sm:$0xf]
      %v2212 = vld [vmem:[%s2209 + $0x8] sm:$0xf]
      %v2213 = vld [vmem:[%s2209 + $0xc] sm:$0xf]
      %v2214 = vld [vmem:[%s2209 + $0x10] sm:$0xf]
      %v2215 = vld [vmem:[%s2209 + $0x14] sm:$0xf]
      %v2216 = vld [vmem:[%s2209 + $0x18] sm:$0xf]
      %v2217 = vld [vmem:[%s2209 + $0x1c] sm:$0xf]
      %v2226 = vunpack.c.l.b16 %v2210
      %v2227 = vunpack.c.l.b16 %v2211
      %v2228 = vunpack.c.l.b16 %v2212
      %v2229 = vunpack.c.l.b16 %v2213
      %v2230 = vunpack.c.l.b16 %v2214
      %v2231 = vunpack.c.l.b16 %v2215
      %v2232 = vunpack.c.l.b16 %v2216
      %v2233 = vunpack.c.l.b16 %v2217
      %v2234 = vpack.c.b16 %v2227, %v2226
      %v2235 = vpack.c.b16 %v2229, %v2228
      %v2236 = vpack.c.b16 %v2231, %v2230
      %v2237 = vpack.c.b16 %v2233, %v2232
      %v2243 = vsel %vm237, %v2205, 0
      %v2246 = vsel %vm237, %v2206, 0
      %v2249 = vsel %vm237, %v2207, 0
      %v2252 = vsel %vm237, %v2208, 0
      %2254 = vmatprep.subr.bf16.mxu0 0
      %2255 = vmatpush1.bf16.msra.mxu0 %v2234
      %2256 = vmatprep.subr.bf16.mxu0 0
      %2257 = vmatpush1.bf16.msra.mxu0 %v2235
      %2258 = vmatprep.subr.bf16.mxu0 0
      %2259 = vmatpush1.bf16.msra.mxu0 %v2236
      %2260 = vmatprep.subr.bf16.mxu0 0
      %2261 = vmatpush1.bf16.msra.mxu0 %v2237
      %2262 = vmatprep.subr.bf16.mxu0 0
      %2263 = vmatpush1.bf16.msra.mxu0 0
      %2264 = vmatprep.subr.bf16.mxu0 0
      %2265 = vmatpush1.bf16.msra.mxu0 0
      %2266 = vmatprep.subr.bf16.mxu0 0
      %2267 = vmatpush1.bf16.msra.mxu0 0
      %2268 = vmatprep.subr.bf16.mxu0 0
      %2269 = vmatpush1.bf16.msra.mxu0 0
      %2270 = vmatprep.subr.bf16.mxu0 0
      %2271 = vmatpush1.bf16.msra.mxu0 0
      %2272 = vmatprep.subr.bf16.mxu0 0
      %2273 = vmatpush1.bf16.msra.mxu0 0
      %2274 = vmatprep.subr.bf16.mxu0 0
      %2275 = vmatpush1.bf16.msra.mxu0 0
      %2276 = vmatprep.subr.bf16.mxu0 0
      %2277 = vmatpush1.bf16.msra.mxu0 0
      %2278 = vmatprep.subr.bf16.mxu0 0
      %2279 = vmatpush1.bf16.msra.mxu0 0
      %2280 = vmatprep.subr.bf16.mxu0 0
      %2281 = vmatpush1.bf16.msra.mxu0 0
      %2282 = vmatprep.subr.bf16.mxu0 0
      %2283 = vmatpush1.bf16.msra.mxu0 0
      %2284 = vmatprep.subr.bf16.mxu0 0
      %2285 = vmatpush1.bf16.msra.mxu0 0
      %2286 = vmatprep.mubr.bf16.mxu0 0
      %2287 = vmatmul.mubr.bf16.gmra.mrb[0].mxu0 %v2243
      %v2288 = vpop.f32.mrb[0].mxu0
      %v2289 = vadd.f32 0.0, %v2288
      %v2290 = vpop.f32.mrb[0].mxu0
      %v2291 = vpop.f32.mrb[0].mxu0
      %v2292 = vadd.f32 0.0, %v2291
      %v2293 = vpop.f32.mrb[0].mxu0
      %2294 = vmatprep.mubr.bf16.mxu0 0
      %2295 = vmatmul.mubr.bf16.gmra.mrb[0].mxu0 %v2246
      %v2296 = vpop.f32.mrb[0].mxu0
      %v2297 = vadd.f32 0.0, %v2296
      %v2298 = vpop.f32.mrb[0].mxu0
      %v2299 = vpop.f32.mrb[0].mxu0
      %v2300 = vadd.f32 0.0, %v2299
      %v2301 = vpop.f32.mrb[0].mxu0
      %2302 = vmatprep.mubr.bf16.mxu0 0
      %2303 = vmatmul.mubr.bf16.gmra.mrb[0].mxu0 %v2249
      %v2304 = vpop.f32.mrb[0].mxu0
      %v2305 = vadd.f32 0.0, %v2304
      %v2306 = vpop.f32.mrb[0].mxu0
      %v2307 = vpop.f32.mrb[0].mxu0
      %v2308 = vadd.f32 0.0, %v2307
      %v2309 = vpop.f32.mrb[0].mxu0
      %2310 = vmatprep.mubr.bf16.mxu0 0
      %2311 = vmatmul.mubr.bf16.gmra.mrb[0].mxu0 %v2252
      %v2312 = vpop.f32.mrb[0].mxu0
      %v2313 = vadd.f32 0.0, %v2312
      %v2314 = vpop.f32.mrb[0].mxu0
      %v2315 = vpop.f32.mrb[0].mxu0
      %v2316 = vpop.f32.mrb[0].mxu0
      %2317 = vdwg.mxu0
      %v2318 = vadd.f32 %v2190, %v2289
      %v2319 = vadd.f32 %v2191, %v2292
      %v2320 = vadd.f32 %v2192, %v2297
      %v2321 = vadd.f32 %v2193, %v2300
      %v2322 = vadd.f32 %v2194, %v2305
      %v2323 = vadd.f32 %v2195, %v2308
      %v2324 = vadd.f32 %v2196, %v2313
      %v2325 = vld [vmem:[%s2069 + $0x1] sm:$0xff]
      %v2326 = vld [vmem:[%s2069 + $0x11] sm:$0xff]
      %v2327 = vld [vmem:[%s2069 + $0x21] sm:$0xff]
      %v2328 = vld [vmem:[%s2069 + $0x31] sm:$0xff]
      %v2329 = vld [vmem:[%s2069 + $0x41] sm:$0xff]
      %v2330 = vld [vmem:[%s2069 + $0x51] sm:$0xff]
      %v2331 = vld [vmem:[%s2069 + $0x61] sm:$0xff]
      %v2332 = vpack.c.bf16 %v2326, %v2325
      %v2333 = vpack.c.bf16 %v2328, %v2327
      %v2334 = vpack.c.bf16 %v2330, %v2329
      %v2335 = vpack.c.bf16 %v2331, %v2331
      %s2336 = scalar_lea.vmem %s1, 544
      %v2337 = vld [vmem:[%s2336] sm:$0xf]
      %v2338 = vld [vmem:[%s2336 + $0x4] sm:$0xf]
      %v2339 = vld [vmem:[%s2336 + $0x8] sm:$0xf]
      %v2340 = vld [vmem:[%s2336 + $0xc] sm:$0xf]
      %v2341 = vld [vmem:[%s2336 + $0x10] sm:$0xf]
      %v2342 = vld [vmem:[%s2336 + $0x14] sm:$0xf]
      %v2343 = vld [vmem:[%s2336 + $0x18] sm:$0xf]
      %v2344 = vld [vmem:[%s2336 + $0x1c] sm:$0xf]
      %v2353 = vunpack.c.l.b16 %v2337
      %v2354 = vunpack.c.l.b16 %v2338
      %v2355 = vunpack.c.l.b16 %v2339
      %v2356 = vunpack.c.l.b16 %v2340
      %v2357 = vunpack.c.l.b16 %v2341
      %v2358 = vunpack.c.l.b16 %v2342
      %v2359 = vunpack.c.l.b16 %v2343
      %v2360 = vunpack.c.l.b16 %v2344
      %v2361 = vpack.c.b16 %v2354, %v2353
      %v2362 = vpack.c.b16 %v2356, %v2355
      %v2363 = vpack.c.b16 %v2358, %v2357
      %v2364 = vpack.c.b16 %v2360, %v2359
      %v2370 = vsel %vm237, %v2332, 0
      %v2373 = vsel %vm237, %v2333, 0
      %v2376 = vsel %vm237, %v2334, 0
      %v2379 = vsel %vm237, %v2335, 0
      %2381 = vmatprep.subr.bf16.mxu0 0
      %2382 = vmatpush1.bf16.msra.mxu0 %v2361
      %2383 = vmatprep.subr.bf16.mxu0 0
      %2384 = vmatpush1.bf16.msra.mxu0 %v2362
      %2385 = vmatprep.subr.bf16.mxu0 0
      %2386 = vmatpush1.bf16.msra.mxu0 %v2363
      %2387 = vmatprep.subr.bf16.mxu0 0
      %2388 = vmatpush1.bf16.msra.mxu0 %v2364
      %2389 = vmatprep.subr.bf16.mxu0 0
      %2390 = vmatpush1.bf16.msra.mxu0 0
      %2391 = vmatprep.subr.bf16.mxu0 0
      %2392 = vmatpush1.bf16.msra.mxu0 0
      %2393 = vmatprep.subr.bf16.mxu0 0
      %2394 = vmatpush1.bf16.msra.mxu0 0
      %2395 = vmatprep.subr.bf16.mxu0 0
      %2396 = vmatpush1.bf16.msra.mxu0 0
      %2397 = vmatprep.subr.bf16.mxu0 0
      %2398 = vmatpush1.bf16.msra.mxu0 0
      %2399 = vmatprep.subr.bf16.mxu0 0
      %2400 = vmatpush1.bf16.msra.mxu0 0
      %2401 = vmatprep.subr.bf16.mxu0 0
      %2402 = vmatpush1.bf16.msra.mxu0 0
      %2403 = vmatprep.subr.bf16.mxu0 0
      %2404 = vmatpush1.bf16.msra.mxu0 0
      %2405 = vmatprep.subr.bf16.mxu0 0
      %2406 = vmatpush1.bf16.msra.mxu0 0
      %2407 = vmatprep.subr.bf16.mxu0 0
      %2408 = vmatpush1.bf16.msra.mxu0 0
      %2409 = vmatprep.subr.bf16.mxu0 0
      %2410 = vmatpush1.bf16.msra.mxu0 0
      %2411 = vmatprep.subr.bf16.mxu0 0
      %2412 = vmatpush1.bf16.msra.mxu0 0
      %2413 = vmatprep.mubr.bf16.mxu0 0
      %2414 = vmatmul.mubr.bf16.gmra.mrb[0].mxu0 %v2370
      %v2415 = vpop.f32.mrb[0].mxu0
      %v2416 = vadd.f32 0.0, %v2415
      %v2417 = vpop.f32.mrb[0].mxu0
      %v2418 = vpop.f32.mrb[0].mxu0
      %v2419 = vadd.f32 0.0, %v2418
      %v2420 = vpop.f32.mrb[0].mxu0
      %2421 = vmatprep.mubr.bf16.mxu0 0
      %2422 = vmatmul.mubr.bf16.gmra.mrb[0].mxu0 %v2373
      %v2423 = vpop.f32.mrb[0].mxu0
      %v2424 = vadd.f32 0.0, %v2423
      %v2425 = vpop.f32.mrb[0].mxu0
      %v2426 = vpop.f32.mrb[0].mxu0
      %v2427 = vadd.f32 0.0, %v2426
      %v2428 = vpop.f32.mrb[0].mxu0
      %2429 = vmatprep.mubr.bf16.mxu0 0
      %2430 = vmatmul.mubr.bf16.gmra.mrb[0].mxu0 %v2376
      %v2431 = vpop.f32.mrb[0].mxu0
      %v2432 = vadd.f32 0.0, %v2431
      %v2433 = vpop.f32.mrb[0].mxu0
      %v2434 = vpop.f32.mrb[0].mxu0
      %v2435 = vadd.f32 0.0, %v2434
      %v2436 = vpop.f32.mrb[0].mxu0
      %2437 = vmatprep.mubr.bf16.mxu0 0
      %2438 = vmatmul.mubr.bf16.gmra.mrb[0].mxu0 %v2379
      %v2439 = vpop.f32.mrb[0].mxu0
      %v2440 = vadd.f32 0.0, %v2439
      %v2441 = vpop.f32.mrb[0].mxu0
      %v2442 = vpop.f32.mrb[0].mxu0
      %v2443 = vpop.f32.mrb[0].mxu0
      %2444 = vdwg.mxu0
      %v2445 = vadd.f32 %v2318, %v2416
      %v2446 = vadd.f32 %v2319, %v2419
      %v2447 = vadd.f32 %v2320, %v2424
      %v2448 = vadd.f32 %v2321, %v2427
      %v2449 = vadd.f32 %v2322, %v2432
      %v2450 = vadd.f32 %v2323, %v2435
      %v2451 = vadd.f32 %v2324, %v2440
      %v2452 = vld [vmem:[%s2197 + $0x1] sm:$0xff]
      %v2453 = vld [vmem:[%s2197 + $0x11] sm:$0xff]
      %v2454 = vld [vmem:[%s2197 + $0x21] sm:$0xff]
      %v2455 = vld [vmem:[%s2197 + $0x31] sm:$0xff]
      %v2456 = vld [vmem:[%s2197 + $0x41] sm:$0xff]
      %v2457 = vld [vmem:[%s2197 + $0x51] sm:$0xff]
      %v2458 = vld [vmem:[%s2197 + $0x61] sm:$0xff]
      %v2459 = vpack.c.bf16 %v2453, %v2452
      %v2460 = vpack.c.bf16 %v2455, %v2454
      %v2461 = vpack.c.bf16 %v2457, %v2456
      %v2462 = vpack.c.bf16 %v2458, %v2458
      %s2463 = scalar_lea.vmem %s1, 576
      %v2464 = vld [vmem:[%s2463] sm:$0xf]
      %v2465 = vld [vmem:[%s2463 + $0x4] sm:$0xf]
      %v2466 = vld [vmem:[%s2463 + $0x8] sm:$0xf]
      %v2467 = vld [vmem:[%s2463 + $0xc] sm:$0xf]
      %v2468 = vld [vmem:[%s2463 + $0x10] sm:$0xf]
      %v2469 = vld [vmem:[%s2463 + $0x14] sm:$0xf]
      %v2470 = vld [vmem:[%s2463 + $0x18] sm:$0xf]
      %v2471 = vld [vmem:[%s2463 + $0x1c] sm:$0xf]
      %v2480 = vunpack.c.l.b16 %v2464
      %v2481 = vunpack.c.l.b16 %v2465
      %v2482 = vunpack.c.l.b16 %v2466
      %v2483 = vunpack.c.l.b16 %v2467
      %v2484 = vunpack.c.l.b16 %v2468
      %v2485 = vunpack.c.l.b16 %v2469
      %v2486 = vunpack.c.l.b16 %v2470
      %v2487 = vunpack.c.l.b16 %v2471
      %v2488 = vpack.c.b16 %v2481, %v2480
      %v2489 = vpack.c.b16 %v2483, %v2482
      %v2490 = vpack.c.b16 %v2485, %v2484
      %v2491 = vpack.c.b16 %v2487, %v2486
      %v2497 = vsel %vm237, %v2459, 0
      %v2500 = vsel %vm237, %v2460, 0
      %v2503 = vsel %vm237, %v2461, 0
      %v2506 = vsel %vm237, %v2462, 0
      %2508 = vmatprep.subr.bf16.mxu0 0
      %2509 = vmatpush1.bf16.msra.mxu0 %v2488
      %2510 = vmatprep.subr.bf16.mxu0 0
      %2511 = vmatpush1.bf16.msra.mxu0 %v2489
      %2512 = vmatprep.subr.bf16.mxu0 0
      %2513 = vmatpush1.bf16.msra.mxu0 %v2490
      %2514 = vmatprep.subr.bf16.mxu0 0
      %2515 = vmatpush1.bf16.msra.mxu0 %v2491
      %2516 = vmatprep.subr.bf16.mxu0 0
      %2517 = vmatpush1.bf16.msra.mxu0 0
      %2518 = vmatprep.subr.bf16.mxu0 0
      %2519 = vmatpush1.bf16.msra.mxu0 0
      %2520 = vmatprep.subr.bf16.mxu0 0
      %2521 = vmatpush1.bf16.msra.mxu0 0
      %2522 = vmatprep.subr.bf16.mxu0 0
      %2523 = vmatpush1.bf16.msra.mxu0 0
      %2524 = vmatprep.subr.bf16.mxu0 0
      %2525 = vmatpush1.bf16.msra.mxu0 0
      %2526 = vmatprep.subr.bf16.mxu0 0
      %2527 = vmatpush1.bf16.msra.mxu0 0
      %2528 = vmatprep.subr.bf16.mxu0 0
      %2529 = vmatpush1.bf16.msra.mxu0 0
      %2530 = vmatprep.subr.bf16.mxu0 0
      %2531 = vmatpush1.bf16.msra.mxu0 0
      %2532 = vmatprep.subr.bf16.mxu0 0
      %2533 = vmatpush1.bf16.msra.mxu0 0
      %2534 = vmatprep.subr.bf16.mxu0 0
      %2535 = vmatpush1.bf16.msra.mxu0 0
      %2536 = vmatprep.subr.bf16.mxu0 0
      %2537 = vmatpush1.bf16.msra.mxu0 0
      %2538 = vmatprep.subr.bf16.mxu0 0
      %2539 = vmatpush1.bf16.msra.mxu0 0
      %2540 = vmatprep.mubr.bf16.mxu0 0
      %2541 = vmatmul.mubr.bf16.gmra.mrb[0].mxu0 %v2497
      %v2542 = vpop.f32.mrb[0].mxu0
      %v2543 = vadd.f32 0.0, %v2542
      %v2544 = vpop.f32.mrb[0].mxu0
      %v2545 = vpop.f32.mrb[0].mxu0
      %v2546 = vadd.f32 0.0, %v2545
      %v2547 = vpop.f32.mrb[0].mxu0
      %2548 = vmatprep.mubr.bf16.mxu0 0
      %2549 = vmatmul.mubr.bf16.gmra.mrb[0].mxu0 %v2500
      %v2550 = vpop.f32.mrb[0].mxu0
      %v2551 = vadd.f32 0.0, %v2550
      %v2552 = vpop.f32.mrb[0].mxu0
      %v2553 = vpop.f32.mrb[0].mxu0
      %v2554 = vadd.f32 0.0, %v2553
      %v2555 = vpop.f32.mrb[0].mxu0
      %2556 = vmatprep.mubr.bf16.mxu0 0
      %2557 = vmatmul.mubr.bf16.gmra.mrb[0].mxu0 %v2503
      %v2558 = vpop.f32.mrb[0].mxu0
      %v2559 = vadd.f32 0.0, %v2558
      %v2560 = vpop.f32.mrb[0].mxu0
      %v2561 = vpop.f32.mrb[0].mxu0
      %v2562 = vadd.f32 0.0, %v2561
      %v2563 = vpop.f32.mrb[0].mxu0
      %2564 = vmatprep.mubr.bf16.mxu0 0
      %2565 = vmatmul.mubr.bf16.gmra.mrb[0].mxu0 %v2506
      %v2566 = vpop.f32.mrb[0].mxu0
      %v2567 = vadd.f32 0.0, %v2566
      %v2568 = vpop.f32.mrb[0].mxu0
      %v2569 = vpop.f32.mrb[0].mxu0
      %v2570 = vpop.f32.mrb[0].mxu0
      %2571 = vdwg.mxu0
      %v2572 = vadd.f32 %v2445, %v2543
      %v2573 = vadd.f32 %v2446, %v2546
      %v2574 = vadd.f32 %v2447, %v2551
      %v2575 = vadd.f32 %v2448, %v2554
      %v2576 = vadd.f32 %v2449, %v2559
      %v2577 = vadd.f32 %v2450, %v2562
      %v2578 = vadd.f32 %v2451, %v2567
      %v2579 = vld [vmem:[%s2069 + $0x2] sm:$0xff]
      %v2580 = vld [vmem:[%s2069 + $0x12] sm:$0xff]
      %v2581 = vld [vmem:[%s2069 + $0x22] sm:$0xff]
      %v2582 = vld [vmem:[%s2069 + $0x32] sm:$0xff]
      %v2583 = vld [vmem:[%s2069 + $0x42] sm:$0xff]
      %v2584 = vld [vmem:[%s2069 + $0x52] sm:$0xff]
      %v2585 = vld [vmem:[%s2069 + $0x62] sm:$0xff]
      %v2586 = vpack.c.bf16 %v2580, %v2579
      %v2587 = vpack.c.bf16 %v2582, %v2581
      %v2588 = vpack.c.bf16 %v2584, %v2583
      %v2589 = vpack.c.bf16 %v2585, %v2585
      %s2590 = scalar_lea.vmem %s1, 608
      %v2591 = vld [vmem:[%s2590] sm:$0xf]
      %v2592 = vld [vmem:[%s2590 + $0x4] sm:$0xf]
      %v2593 = vld [vmem:[%s2590 + $0x8] sm:$0xf]
      %v2594 = vld [vmem:[%s2590 + $0xc] sm:$0xf]
      %v2595 = vld [vmem:[%s2590 + $0x10] sm:$0xf]
      %v2596 = vld [vmem:[%s2590 + $0x14] sm:$0xf]
      %v2597 = vld [vmem:[%s2590 + $0x18] sm:$0xf]
      %v2598 = vld [vmem:[%s2590 + $0x1c] sm:$0xf]
      %v2607 = vunpack.c.l.b16 %v2591
      %v2608 = vunpack.c.l.b16 %v2592
      %v2609 = vunpack.c.l.b16 %v2593
      %v2610 = vunpack.c.l.b16 %v2594
      %v2611 = vunpack.c.l.b16 %v2595
      %v2612 = vunpack.c.l.b16 %v2596
      %v2613 = vunpack.c.l.b16 %v2597
      %v2614 = vunpack.c.l.b16 %v2598
      %v2615 = vpack.c.b16 %v2608, %v2607
      %v2616 = vpack.c.b16 %v2610, %v2609
      %v2617 = vpack.c.b16 %v2612, %v2611
      %v2618 = vpack.c.b16 %v2614, %v2613
      %v2624 = vsel %vm237, %v2586, 0
      %v2627 = vsel %vm237, %v2587, 0
      %v2630 = vsel %vm237, %v2588, 0
      %v2633 = vsel %vm237, %v2589, 0
      %2635 = vmatprep.subr.bf16.mxu0 0
      %2636 = vmatpush1.bf16.msra.mxu0 %v2615
      %2637 = vmatprep.subr.bf16.mxu0 0
      %2638 = vmatpush1.bf16.msra.mxu0 %v2616
      %2639 = vmatprep.subr.bf16.mxu0 0
      %2640 = vmatpush1.bf16.msra.mxu0 %v2617
      %2641 = vmatprep.subr.bf16.mxu0 0
      %2642 = vmatpush1.bf16.msra.mxu0 %v2618
      %2643 = vmatprep.subr.bf16.mxu0 0
      %2644 = vmatpush1.bf16.msra.mxu0 0
      %2645 = vmatprep.subr.bf16.mxu0 0
      %2646 = vmatpush1.bf16.msra.mxu0 0
      %2647 = vmatprep.subr.bf16.mxu0 0
      %2648 = vmatpush1.bf16.msra.mxu0 0
      %2649 = vmatprep.subr.bf16.mxu0 0
      %2650 = vmatpush1.bf16.msra.mxu0 0
      %2651 = vmatprep.subr.bf16.mxu0 0
      %2652 = vmatpush1.bf16.msra.mxu0 0
      %2653 = vmatprep.subr.bf16.mxu0 0
      %2654 = vmatpush1.bf16.msra.mxu0 0
      %2655 = vmatprep.subr.bf16.mxu0 0
      %2656 = vmatpush1.bf16.msra.mxu0 0
      %2657 = vmatprep.subr.bf16.mxu0 0
      %2658 = vmatpush1.bf16.msra.mxu0 0
      %2659 = vmatprep.subr.bf16.mxu0 0
      %2660 = vmatpush1.bf16.msra.mxu0 0
      %2661 = vmatprep.subr.bf16.mxu0 0
      %2662 = vmatpush1.bf16.msra.mxu0 0
      %2663 = vmatprep.subr.bf16.mxu0 0
      %2664 = vmatpush1.bf16.msra.mxu0 0
      %2665 = vmatprep.subr.bf16.mxu0 0
      %2666 = vmatpush1.bf16.msra.mxu0 0
      %2667 = vmatprep.mubr.bf16.mxu0 0
      %2668 = vmatmul.mubr.bf16.gmra.mrb[0].mxu0 %v2624
      %v2669 = vpop.f32.mrb[0].mxu0
      %v2670 = vadd.f32 0.0, %v2669
      %v2671 = vpop.f32.mrb[0].mxu0
      %v2672 = vpop.f32.mrb[0].mxu0
      %v2673 = vadd.f32 0.0, %v2672
      %v2674 = vpop.f32.mrb[0].mxu0
      %2675 = vmatprep.mubr.bf16.mxu0 0
      %2676 = vmatmul.mubr.bf16.gmra.mrb[0].mxu0 %v2627
      %v2677 = vpop.f32.mrb[0].mxu0
      %v2678 = vadd.f32 0.0, %v2677
      %v2679 = vpop.f32.mrb[0].mxu0
      %v2680 = vpop.f32.mrb[0].mxu0
      %v2681 = vadd.f32 0.0, %v2680
      %v2682 = vpop.f32.mrb[0].mxu0
      %2683 = vmatprep.mubr.bf16.mxu0 0
      %2684 = vmatmul.mubr.bf16.gmra.mrb[0].mxu0 %v2630
      %v2685 = vpop.f32.mrb[0].mxu0
      %v2686 = vadd.f32 0.0, %v2685
      %v2687 = vpop.f32.mrb[0].mxu0
      %v2688 = vpop.f32.mrb[0].mxu0
      %v2689 = vadd.f32 0.0, %v2688
      %v2690 = vpop.f32.mrb[0].mxu0
      %2691 = vmatprep.mubr.bf16.mxu0 0
      %2692 = vmatmul.mubr.bf16.gmra.mrb[0].mxu0 %v2633
      %v2693 = vpop.f32.mrb[0].mxu0
      %v2694 = vadd.f32 0.0, %v2693
      %v2695 = vpop.f32.mrb[0].mxu0
      %v2696 = vpop.f32.mrb[0].mxu0
      %v2697 = vpop.f32.mrb[0].mxu0
      %2698 = vdwg.mxu0
      %v2699 = vadd.f32 %v2572, %v2670
      %v2700 = vadd.f32 %v2573, %v2673
      %v2701 = vadd.f32 %v2574, %v2678
      %v2702 = vadd.f32 %v2575, %v2681
      %v2703 = vadd.f32 %v2576, %v2686
      %v2704 = vadd.f32 %v2577, %v2689
      %v2705 = vadd.f32 %v2578, %v2694
      %s2706 = scalar_lea.vmem %s165, 32
      %v2707 = vld [vmem:[%s2706] sm:$0xff]
      %v2708 = vld [vmem:[%s2706 + $0x10] sm:$0xff]
      %v2709 = vld [vmem:[%s2706 + $0x20] sm:$0xff]
      %v2710 = vld [vmem:[%s2706 + $0x30] sm:$0xff]
      %v2711 = vld [vmem:[%s2706 + $0x40] sm:$0xff]
      %v2712 = vld [vmem:[%s2706 + $0x50] sm:$0xff]
      %v2713 = vld [vmem:[%s2706 + $0x60] sm:$0xff]
      %v2714 = vpack.c.bf16 %v2708, %v2707
      %v2715 = vpack.c.bf16 %v2710, %v2709
      %v2716 = vpack.c.bf16 %v2712, %v2711
      %v2717 = vpack.c.bf16 %v2713, %v2713
      %s2718 = scalar_lea.vmem %s1, 640
      %v2719 = vld [vmem:[%s2718] sm:$0xf]
      %v2720 = vld [vmem:[%s2718 + $0x4] sm:$0xf]
      %v2721 = vld [vmem:[%s2718 + $0x8] sm:$0xf]
      %v2722 = vld [vmem:[%s2718 + $0xc] sm:$0xf]
      %v2723 = vld [vmem:[%s2718 + $0x10] sm:$0xf]
      %v2724 = vld [vmem:[%s2718 + $0x14] sm:$0xf]
      %v2725 = vld [vmem:[%s2718 + $0x18] sm:$0xf]
      %v2726 = vld [vmem:[%s2718 + $0x1c] sm:$0xf]
      %v2735 = vunpack.c.l.b16 %v2719
      %v2736 = vunpack.c.l.b16 %v2720
      %v2737 = vunpack.c.l.b16 %v2721
      %v2738 = vunpack.c.l.b16 %v2722
      %v2739 = vunpack.c.l.b16 %v2723
      %v2740 = vunpack.c.l.b16 %v2724
      %v2741 = vunpack.c.l.b16 %v2725
      %v2742 = vunpack.c.l.b16 %v2726
      %v2743 = vpack.c.b16 %v2736, %v2735
      %v2744 = vpack.c.b16 %v2738, %v2737
      %v2745 = vpack.c.b16 %v2740, %v2739
      %v2746 = vpack.c.b16 %v2742, %v2741
      %v2752 = vsel %vm237, %v2714, 0
      %v2755 = vsel %vm237, %v2715, 0
      %v2758 = vsel %vm237, %v2716, 0
      %v2761 = vsel %vm237, %v2717, 0
      %2763 = vmatprep.subr.bf16.mxu0 0
      %2764 = vmatpush1.bf16.msra.mxu0 %v2743
      %2765 = vmatprep.subr.bf16.mxu0 0
      %2766 = vmatpush1.bf16.msra.mxu0 %v2744
      %2767 = vmatprep.subr.bf16.mxu0 0
      %2768 = vmatpush1.bf16.msra.mxu0 %v2745
      %2769 = vmatprep.subr.bf16.mxu0 0
      %2770 = vmatpush1.bf16.msra.mxu0 %v2746
      %2771 = vmatprep.subr.bf16.mxu0 0
      %2772 = vmatpush1.bf16.msra.mxu0 0
      %2773 = vmatprep.subr.bf16.mxu0 0
      %2774 = vmatpush1.bf16.msra.mxu0 0
      %2775 = vmatprep.subr.bf16.mxu0 0
      %2776 = vmatpush1.bf16.msra.mxu0 0
      %2777 = vmatprep.subr.bf16.mxu0 0
      %2778 = vmatpush1.bf16.msra.mxu0 0
      %2779 = vmatprep.subr.bf16.mxu0 0
      %2780 = vmatpush1.bf16.msra.mxu0 0
      %2781 = vmatprep.subr.bf16.mxu0 0
      %2782 = vmatpush1.bf16.msra.mxu0 0
      %2783 = vmatprep.subr.bf16.mxu0 0
      %2784 = vmatpush1.bf16.msra.mxu0 0
      %2785 = vmatprep.subr.bf16.mxu0 0
      %2786 = vmatpush1.bf16.msra.mxu0 0
      %2787 = vmatprep.subr.bf16.mxu0 0
      %2788 = vmatpush1.bf16.msra.mxu0 0
      %2789 = vmatprep.subr.bf16.mxu0 0
      %2790 = vmatpush1.bf16.msra.mxu0 0
      %2791 = vmatprep.subr.bf16.mxu0 0
      %2792 = vmatpush1.bf16.msra.mxu0 0
      %2793 = vmatprep.subr.bf16.mxu0 0
      %2794 = vmatpush1.bf16.msra.mxu0 0
      %2795 = vmatprep.mubr.bf16.mxu0 0
      %2796 = vmatmul.mubr.bf16.gmra.mrb[0].mxu0 %v2752
      %v2797 = vpop.f32.mrb[0].mxu0
      %v2798 = vadd.f32 0.0, %v2797
      %v2799 = vpop.f32.mrb[0].mxu0
      %v2800 = vpop.f32.mrb[0].mxu0
      %v2801 = vadd.f32 0.0, %v2800
      %v2802 = vpop.f32.mrb[0].mxu0
      %2803 = vmatprep.mubr.bf16.mxu0 0
      %2804 = vmatmul.mubr.bf16.gmra.mrb[0].mxu0 %v2755
      %v2805 = vpop.f32.mrb[0].mxu0
      %v2806 = vadd.f32 0.0, %v2805
      %v2807 = vpop.f32.mrb[0].mxu0
      %v2808 = vpop.f32.mrb[0].mxu0
      %v2809 = vadd.f32 0.0, %v2808
      %v2810 = vpop.f32.mrb[0].mxu0
      %2811 = vmatprep.mubr.bf16.mxu0 0
      %2812 = vmatmul.mubr.bf16.gmra.mrb[0].mxu0 %v2758
      %v2813 = vpop.f32.mrb[0].mxu0
      %v2814 = vadd.f32 0.0, %v2813
      %v2815 = vpop.f32.mrb[0].mxu0
      %v2816 = vpop.f32.mrb[0].mxu0
      %v2817 = vadd.f32 0.0, %v2816
      %v2818 = vpop.f32.mrb[0].mxu0
      %2819 = vmatprep.mubr.bf16.mxu0 0
      %2820 = vmatmul.mubr.bf16.gmra.mrb[0].mxu0 %v2761
      %v2821 = vpop.f32.mrb[0].mxu0
      %v2822 = vadd.f32 0.0, %v2821
      %v2823 = vpop.f32.mrb[0].mxu0
      %v2824 = vpop.f32.mrb[0].mxu0
      %v2825 = vpop.f32.mrb[0].mxu0
      %2826 = vdwg.mxu0
      %v2827 = vadd.f32 %v2699, %v2798
      %v2828 = vadd.f32 %v2700, %v2801
      %v2829 = vadd.f32 %v2701, %v2806
      %v2830 = vadd.f32 %v2702, %v2809
      %v2831 = vadd.f32 %v2703, %v2814
      %v2832 = vadd.f32 %v2704, %v2817
      %v2833 = vadd.f32 %v2705, %v2822
      %s2834 = scalar_lea.vmem %s165, 176
      %v2835 = vld [vmem:[%s2834] sm:$0xff]
      %v2836 = vld [vmem:[%s2834 + $0x10] sm:$0xff]
      %v2837 = vld [vmem:[%s2834 + $0x20] sm:$0xff]
      %v2838 = vld [vmem:[%s2834 + $0x30] sm:$0xff]
      %v2839 = vld [vmem:[%s2834 + $0x40] sm:$0xff]
      %v2840 = vld [vmem:[%s2834 + $0x50] sm:$0xff]
      %v2841 = vld [vmem:[%s2834 + $0x60] sm:$0xff]
      %v2842 = vpack.c.bf16 %v2836, %v2835
      %v2843 = vpack.c.bf16 %v2838, %v2837
      %v2844 = vpack.c.bf16 %v2840, %v2839
      %v2845 = vpack.c.bf16 %v2841, %v2841
      %s2846 = scalar_lea.vmem %s1, 672
      %v2847 = vld [vmem:[%s2846] sm:$0xf]
      %v2848 = vld [vmem:[%s2846 + $0x4] sm:$0xf]
      %v2849 = vld [vmem:[%s2846 + $0x8] sm:$0xf]
      %v2850 = vld [vmem:[%s2846 + $0xc] sm:$0xf]
      %v2851 = vld [vmem:[%s2846 + $0x10] sm:$0xf]
      %v2852 = vld [vmem:[%s2846 + $0x14] sm:$0xf]
      %v2853 = vld [vmem:[%s2846 + $0x18] sm:$0xf]
      %v2854 = vld [vmem:[%s2846 + $0x1c] sm:$0xf]
      %v2863 = vunpack.c.l.b16 %v2847
      %v2864 = vunpack.c.l.b16 %v2848
      %v2865 = vunpack.c.l.b16 %v2849
      %v2866 = vunpack.c.l.b16 %v2850
      %v2867 = vunpack.c.l.b16 %v2851
      %v2868 = vunpack.c.l.b16 %v2852
      %v2869 = vunpack.c.l.b16 %v2853
      %v2870 = vunpack.c.l.b16 %v2854
      %v2871 = vpack.c.b16 %v2864, %v2863
      %v2872 = vpack.c.b16 %v2866, %v2865
      %v2873 = vpack.c.b16 %v2868, %v2867
      %v2874 = vpack.c.b16 %v2870, %v2869
      %v2880 = vsel %vm237, %v2842, 0
      %v2883 = vsel %vm237, %v2843, 0
      %v2886 = vsel %vm237, %v2844, 0
      %v2889 = vsel %vm237, %v2845, 0
      %2891 = vmatprep.subr.bf16.mxu0 0
      %2892 = vmatpush1.bf16.msra.mxu0 %v2871
      %2893 = vmatprep.subr.bf16.mxu0 0
      %2894 = vmatpush1.bf16.msra.mxu0 %v2872
      %2895 = vmatprep.subr.bf16.mxu0 0
      %2896 = vmatpush1.bf16.msra.mxu0 %v2873
      %2897 = vmatprep.subr.bf16.mxu0 0
      %2898 = vmatpush1.bf16.msra.mxu0 %v2874
      %2899 = vmatprep.subr.bf16.mxu0 0
      %2900 = vmatpush1.bf16.msra.mxu0 0
      %2901 = vmatprep.subr.bf16.mxu0 0
      %2902 = vmatpush1.bf16.msra.mxu0 0
      %2903 = vmatprep.subr.bf16.mxu0 0
      %2904 = vmatpush1.bf16.msra.mxu0 0
      %2905 = vmatprep.subr.bf16.mxu0 0
      %2906 = vmatpush1.bf16.msra.mxu0 0
      %2907 = vmatprep.subr.bf16.mxu0 0
      %2908 = vmatpush1.bf16.msra.mxu0 0
      %2909 = vmatprep.subr.bf16.mxu0 0
      %2910 = vmatpush1.bf16.msra.mxu0 0
      %2911 = vmatprep.subr.bf16.mxu0 0
      %2912 = vmatpush1.bf16.msra.mxu0 0
      %2913 = vmatprep.subr.bf16.mxu0 0
      %2914 = vmatpush1.bf16.msra.mxu0 0
      %2915 = vmatprep.subr.bf16.mxu0 0
      %2916 = vmatpush1.bf16.msra.mxu0 0
      %2917 = vmatprep.subr.bf16.mxu0 0
      %2918 = vmatpush1.bf16.msra.mxu0 0
      %2919 = vmatprep.subr.bf16.mxu0 0
      %2920 = vmatpush1.bf16.msra.mxu0 0
      %2921 = vmatprep.subr.bf16.mxu0 0
      %2922 = vmatpush1.bf16.msra.mxu0 0
      %2923 = vmatprep.mubr.bf16.mxu0 0
      %2924 = vmatmul.mubr.bf16.gmra.mrb[0].mxu0 %v2880
      %v2925 = vpop.f32.mrb[0].mxu0
      %v2926 = vadd.f32 0.0, %v2925
      %v2927 = vpop.f32.mrb[0].mxu0
      %v2928 = vpop.f32.mrb[0].mxu0
      %v2929 = vadd.f32 0.0, %v2928
      %v2930 = vpop.f32.mrb[0].mxu0
      %2931 = vmatprep.mubr.bf16.mxu0 0
      %2932 = vmatmul.mubr.bf16.gmra.mrb[0].mxu0 %v2883
      %v2933 = vpop.f32.mrb[0].mxu0
      %v2934 = vadd.f32 0.0, %v2933
      %v2935 = vpop.f32.mrb[0].mxu0
      %v2936 = vpop.f32.mrb[0].mxu0
      %v2937 = vadd.f32 0.0, %v2936
      %v2938 = vpop.f32.mrb[0].mxu0
      %2939 = vmatprep.mubr.bf16.mxu0 0
      %2940 = vmatmul.mubr.bf16.gmra.mrb[0].mxu0 %v2886
      %v2941 = vpop.f32.mrb[0].mxu0
      %v2942 = vadd.f32 0.0, %v2941
      %v2943 = vpop.f32.mrb[0].mxu0
      %v2944 = vpop.f32.mrb[0].mxu0
      %v2945 = vadd.f32 0.0, %v2944
      %v2946 = vpop.f32.mrb[0].mxu0
      %2947 = vmatprep.mubr.bf16.mxu0 0
      %2948 = vmatmul.mubr.bf16.gmra.mrb[0].mxu0 %v2889
      %v2949 = vpop.f32.mrb[0].mxu0
      %v2950 = vadd.f32 0.0, %v2949
      %v2951 = vpop.f32.mrb[0].mxu0
      %v2952 = vpop.f32.mrb[0].mxu0
      %v2953 = vpop.f32.mrb[0].mxu0
      %2954 = vdwg.mxu0
      %v2955 = vadd.f32 %v2827, %v2926
      %v2956 = vadd.f32 %v2828, %v2929
      %v2957 = vadd.f32 %v2829, %v2934
      %v2958 = vadd.f32 %v2830, %v2937
      %v2959 = vadd.f32 %v2831, %v2942
      %v2960 = vadd.f32 %v2832, %v2945
      %v2961 = vadd.f32 %v2833, %v2950
      %v2962 = vld [vmem:[%s2706 + $0x1] sm:$0xff]
      %v2963 = vld [vmem:[%s2706 + $0x11] sm:$0xff]
      %v2964 = vld [vmem:[%s2706 + $0x21] sm:$0xff]
      %v2965 = vld [vmem:[%s2706 + $0x31] sm:$0xff]
      %v2966 = vld [vmem:[%s2706 + $0x41] sm:$0xff]
      %v2967 = vld [vmem:[%s2706 + $0x51] sm:$0xff]
      %v2968 = vld [vmem:[%s2706 + $0x61] sm:$0xff]
      %v2969 = vpack.c.bf16 %v2963, %v2962
      %v2970 = vpack.c.bf16 %v2965, %v2964
      %v2971 = vpack.c.bf16 %v2967, %v2966
      %v2972 = vpack.c.bf16 %v2968, %v2968
      %s2973 = scalar_lea.vmem %s1, 704
      %v2974 = vld [vmem:[%s2973] sm:$0xf]
      %v2975 = vld [vmem:[%s2973 + $0x4] sm:$0xf]
      %v2976 = vld [vmem:[%s2973 + $0x8] sm:$0xf]
      %v2977 = vld [vmem:[%s2973 + $0xc] sm:$0xf]
      %v2978 = vld [vmem:[%s2973 + $0x10] sm:$0xf]
      %v2979 = vld [vmem:[%s2973 + $0x14] sm:$0xf]
      %v2980 = vld [vmem:[%s2973 + $0x18] sm:$0xf]
      %v2981 = vld [vmem:[%s2973 + $0x1c] sm:$0xf]
      %v2990 = vunpack.c.l.b16 %v2974
      %v2991 = vunpack.c.l.b16 %v2975
      %v2992 = vunpack.c.l.b16 %v2976
      %v2993 = vunpack.c.l.b16 %v2977
      %v2994 = vunpack.c.l.b16 %v2978
      %v2995 = vunpack.c.l.b16 %v2979
      %v2996 = vunpack.c.l.b16 %v2980
      %v2997 = vunpack.c.l.b16 %v2981
      %v2998 = vpack.c.b16 %v2991, %v2990
      %v2999 = vpack.c.b16 %v2993, %v2992
      %v3000 = vpack.c.b16 %v2995, %v2994
      %v3001 = vpack.c.b16 %v2997, %v2996
      %v3007 = vsel %vm237, %v2969, 0
      %v3010 = vsel %vm237, %v2970, 0
      %v3013 = vsel %vm237, %v2971, 0
      %v3016 = vsel %vm237, %v2972, 0
      %3018 = vmatprep.subr.bf16.mxu0 0
      %3019 = vmatpush1.bf16.msra.mxu0 %v2998
      %3020 = vmatprep.subr.bf16.mxu0 0
      %3021 = vmatpush1.bf16.msra.mxu0 %v2999
      %3022 = vmatprep.subr.bf16.mxu0 0
      %3023 = vmatpush1.bf16.msra.mxu0 %v3000
      %3024 = vmatprep.subr.bf16.mxu0 0
      %3025 = vmatpush1.bf16.msra.mxu0 %v3001
      %3026 = vmatprep.subr.bf16.mxu0 0
      %3027 = vmatpush1.bf16.msra.mxu0 0
      %3028 = vmatprep.subr.bf16.mxu0 0
      %3029 = vmatpush1.bf16.msra.mxu0 0
      %3030 = vmatprep.subr.bf16.mxu0 0
      %3031 = vmatpush1.bf16.msra.mxu0 0
      %3032 = vmatprep.subr.bf16.mxu0 0
      %3033 = vmatpush1.bf16.msra.mxu0 0
      %3034 = vmatprep.subr.bf16.mxu0 0
      %3035 = vmatpush1.bf16.msra.mxu0 0
      %3036 = vmatprep.subr.bf16.mxu0 0
      %3037 = vmatpush1.bf16.msra.mxu0 0
      %3038 = vmatprep.subr.bf16.mxu0 0
      %3039 = vmatpush1.bf16.msra.mxu0 0
      %3040 = vmatprep.subr.bf16.mxu0 0
      %3041 = vmatpush1.bf16.msra.mxu0 0
      %3042 = vmatprep.subr.bf16.mxu0 0
      %3043 = vmatpush1.bf16.msra.mxu0 0
      %3044 = vmatprep.subr.bf16.mxu0 0
      %3045 = vmatpush1.bf16.msra.mxu0 0
      %3046 = vmatprep.subr.bf16.mxu0 0
      %3047 = vmatpush1.bf16.msra.mxu0 0
      %3048 = vmatprep.subr.bf16.mxu0 0
      %3049 = vmatpush1.bf16.msra.mxu0 0
      %3050 = vmatprep.mubr.bf16.mxu0 0
      %3051 = vmatmul.mubr.bf16.gmra.mrb[0].mxu0 %v3007
      %v3052 = vpop.f32.mrb[0].mxu0
      %v3053 = vadd.f32 0.0, %v3052
      %v3054 = vpop.f32.mrb[0].mxu0
      %v3055 = vpop.f32.mrb[0].mxu0
      %v3056 = vadd.f32 0.0, %v3055
      %v3057 = vpop.f32.mrb[0].mxu0
      %3058 = vmatprep.mubr.bf16.mxu0 0
      %3059 = vmatmul.mubr.bf16.gmra.mrb[0].mxu0 %v3010
      %v3060 = vpop.f32.mrb[0].mxu0
      %v3061 = vadd.f32 0.0, %v3060
      %v3062 = vpop.f32.mrb[0].mxu0
      %v3063 = vpop.f32.mrb[0].mxu0
      %v3064 = vadd.f32 0.0, %v3063
      %v3065 = vpop.f32.mrb[0].mxu0
      %3066 = vmatprep.mubr.bf16.mxu0 0
      %3067 = vmatmul.mubr.bf16.gmra.mrb[0].mxu0 %v3013
      %v3068 = vpop.f32.mrb[0].mxu0
      %v3069 = vadd.f32 0.0, %v3068
      %v3070 = vpop.f32.mrb[0].mxu0
      %v3071 = vpop.f32.mrb[0].mxu0
      %v3072 = vadd.f32 0.0, %v3071
      %v3073 = vpop.f32.mrb[0].mxu0
      %3074 = vmatprep.mubr.bf16.mxu0 0
      %3075 = vmatmul.mubr.bf16.gmra.mrb[0].mxu0 %v3016
      %v3076 = vpop.f32.mrb[0].mxu0
      %v3077 = vadd.f32 0.0, %v3076
      %v3078 = vpop.f32.mrb[0].mxu0
      %v3079 = vpop.f32.mrb[0].mxu0
      %v3080 = vpop.f32.mrb[0].mxu0
      %3081 = vdwg.mxu0
      %v3082 = vadd.f32 %v2955, %v3053
      %v3083 = vadd.f32 %v2956, %v3056
      %v3084 = vadd.f32 %v2957, %v3061
      %v3085 = vadd.f32 %v2958, %v3064
      %v3086 = vadd.f32 %v2959, %v3069
      %v3087 = vadd.f32 %v2960, %v3072
      %v3088 = vadd.f32 %v2961, %v3077
      %v3089 = vld [vmem:[%s2834 + $0x1] sm:$0xff]
      %v3090 = vld [vmem:[%s2834 + $0x11] sm:$0xff]
      %v3091 = vld [vmem:[%s2834 + $0x21] sm:$0xff]
      %v3092 = vld [vmem:[%s2834 + $0x31] sm:$0xff]
      %v3093 = vld [vmem:[%s2834 + $0x41] sm:$0xff]
      %v3094 = vld [vmem:[%s2834 + $0x51] sm:$0xff]
      %v3095 = vld [vmem:[%s2834 + $0x61] sm:$0xff]
      %v3096 = vpack.c.bf16 %v3090, %v3089
      %v3097 = vpack.c.bf16 %v3092, %v3091
      %v3098 = vpack.c.bf16 %v3094, %v3093
      %v3099 = vpack.c.bf16 %v3095, %v3095
      %s3100 = scalar_lea.vmem %s1, 736
      %v3101 = vld [vmem:[%s3100] sm:$0xf]
      %v3102 = vld [vmem:[%s3100 + $0x4] sm:$0xf]
      %v3103 = vld [vmem:[%s3100 + $0x8] sm:$0xf]
      %v3104 = vld [vmem:[%s3100 + $0xc] sm:$0xf]
      %v3105 = vld [vmem:[%s3100 + $0x10] sm:$0xf]
      %v3106 = vld [vmem:[%s3100 + $0x14] sm:$0xf]
      %v3107 = vld [vmem:[%s3100 + $0x18] sm:$0xf]
      %v3108 = vld [vmem:[%s3100 + $0x1c] sm:$0xf]
      %v3117 = vunpack.c.l.b16 %v3101
      %v3118 = vunpack.c.l.b16 %v3102
      %v3119 = vunpack.c.l.b16 %v3103
      %v3120 = vunpack.c.l.b16 %v3104
      %v3121 = vunpack.c.l.b16 %v3105
      %v3122 = vunpack.c.l.b16 %v3106
      %v3123 = vunpack.c.l.b16 %v3107
      %v3124 = vunpack.c.l.b16 %v3108
      %v3125 = vpack.c.b16 %v3118, %v3117
      %v3126 = vpack.c.b16 %v3120, %v3119
      %v3127 = vpack.c.b16 %v3122, %v3121
      %v3128 = vpack.c.b16 %v3124, %v3123
      %v3134 = vsel %vm237, %v3096, 0
      %v3137 = vsel %vm237, %v3097, 0
      %v3140 = vsel %vm237, %v3098, 0
      %v3143 = vsel %vm237, %v3099, 0
      %3145 = vmatprep.subr.bf16.mxu0 0
      %3146 = vmatpush1.bf16.msra.mxu0 %v3125
      %3147 = vmatprep.subr.bf16.mxu0 0
      %3148 = vmatpush1.bf16.msra.mxu0 %v3126
      %3149 = vmatprep.subr.bf16.mxu0 0
      %3150 = vmatpush1.bf16.msra.mxu0 %v3127
      %3151 = vmatprep.subr.bf16.mxu0 0
      %3152 = vmatpush1.bf16.msra.mxu0 %v3128
      %3153 = vmatprep.subr.bf16.mxu0 0
      %3154 = vmatpush1.bf16.msra.mxu0 0
      %3155 = vmatprep.subr.bf16.mxu0 0
      %3156 = vmatpush1.bf16.msra.mxu0 0
      %3157 = vmatprep.subr.bf16.mxu0 0
      %3158 = vmatpush1.bf16.msra.mxu0 0
      %3159 = vmatprep.subr.bf16.mxu0 0
      %3160 = vmatpush1.bf16.msra.mxu0 0
      %3161 = vmatprep.subr.bf16.mxu0 0
      %3162 = vmatpush1.bf16.msra.mxu0 0
      %3163 = vmatprep.subr.bf16.mxu0 0
      %3164 = vmatpush1.bf16.msra.mxu0 0
      %3165 = vmatprep.subr.bf16.mxu0 0
      %3166 = vmatpush1.bf16.msra.mxu0 0
      %3167 = vmatprep.subr.bf16.mxu0 0
      %3168 = vmatpush1.bf16.msra.mxu0 0
      %3169 = vmatprep.subr.bf16.mxu0 0
      %3170 = vmatpush1.bf16.msra.mxu0 0
      %3171 = vmatprep.subr.bf16.mxu0 0
      %3172 = vmatpush1.bf16.msra.mxu0 0
      %3173 = vmatprep.subr.bf16.mxu0 0
      %3174 = vmatpush1.bf16.msra.mxu0 0
      %3175 = vmatprep.subr.bf16.mxu0 0
      %3176 = vmatpush1.bf16.msra.mxu0 0
      %3177 = vmatprep.mubr.bf16.mxu0 0
      %3178 = vmatmul.mubr.bf16.gmra.mrb[0].mxu0 %v3134
      %v3179 = vpop.f32.mrb[0].mxu0
      %v3180 = vadd.f32 0.0, %v3179
      %v3181 = vpop.f32.mrb[0].mxu0
      %v3182 = vpop.f32.mrb[0].mxu0
      %v3183 = vadd.f32 0.0, %v3182
      %v3184 = vpop.f32.mrb[0].mxu0
      %3185 = vmatprep.mubr.bf16.mxu0 0
      %3186 = vmatmul.mubr.bf16.gmra.mrb[0].mxu0 %v3137
      %v3187 = vpop.f32.mrb[0].mxu0
      %v3188 = vadd.f32 0.0, %v3187
      %v3189 = vpop.f32.mrb[0].mxu0
      %v3190 = vpop.f32.mrb[0].mxu0
      %v3191 = vadd.f32 0.0, %v3190
      %v3192 = vpop.f32.mrb[0].mxu0
      %3193 = vmatprep.mubr.bf16.mxu0 0
      %3194 = vmatmul.mubr.bf16.gmra.mrb[0].mxu0 %v3140
      %v3195 = vpop.f32.mrb[0].mxu0
      %v3196 = vadd.f32 0.0, %v3195
      %v3197 = vpop.f32.mrb[0].mxu0
      %v3198 = vpop.f32.mrb[0].mxu0
      %v3199 = vadd.f32 0.0, %v3198
      %v3200 = vpop.f32.mrb[0].mxu0
      %3201 = vmatprep.mubr.bf16.mxu0 0
      %3202 = vmatmul.mubr.bf16.gmra.mrb[0].mxu0 %v3143
      %v3203 = vpop.f32.mrb[0].mxu0
      %v3204 = vadd.f32 0.0, %v3203
      %v3205 = vpop.f32.mrb[0].mxu0
      %v3206 = vpop.f32.mrb[0].mxu0
      %v3207 = vpop.f32.mrb[0].mxu0
      %3208 = vdwg.mxu0
      %v3209 = vadd.f32 %v3082, %v3180
      %v3210 = vadd.f32 %v3083, %v3183
      %v3211 = vadd.f32 %v3084, %v3188
      %v3212 = vadd.f32 %v3085, %v3191
      %v3213 = vadd.f32 %v3086, %v3196
      %v3214 = vadd.f32 %v3087, %v3199
      %v3215 = vadd.f32 %v3088, %v3204
      %v3216 = vld [vmem:[%s2706 + $0x2] sm:$0xff]
      %v3217 = vld [vmem:[%s2706 + $0x12] sm:$0xff]
      %v3218 = vld [vmem:[%s2706 + $0x22] sm:$0xff]
      %v3219 = vld [vmem:[%s2706 + $0x32] sm:$0xff]
      %v3220 = vld [vmem:[%s2706 + $0x42] sm:$0xff]
      %v3221 = vld [vmem:[%s2706 + $0x52] sm:$0xff]
      %v3222 = vld [vmem:[%s2706 + $0x62] sm:$0xff]
      %v3223 = vpack.c.bf16 %v3217, %v3216
      %v3224 = vpack.c.bf16 %v3219, %v3218
      %v3225 = vpack.c.bf16 %v3221, %v3220
      %v3226 = vpack.c.bf16 %v3222, %v3222
      %s3227 = scalar_lea.vmem %s1, 768
      %v3228 = vld [vmem:[%s3227] sm:$0xf]
      %v3229 = vld [vmem:[%s3227 + $0x4] sm:$0xf]
      %v3230 = vld [vmem:[%s3227 + $0x8] sm:$0xf]
      %v3231 = vld [vmem:[%s3227 + $0xc] sm:$0xf]
      %v3232 = vld [vmem:[%s3227 + $0x10] sm:$0xf]
      %v3233 = vld [vmem:[%s3227 + $0x14] sm:$0xf]
      %v3234 = vld [vmem:[%s3227 + $0x18] sm:$0xf]
      %v3235 = vld [vmem:[%s3227 + $0x1c] sm:$0xf]
      %v3244 = vunpack.c.l.b16 %v3228
      %v3245 = vunpack.c.l.b16 %v3229
      %v3246 = vunpack.c.l.b16 %v3230
      %v3247 = vunpack.c.l.b16 %v3231
      %v3248 = vunpack.c.l.b16 %v3232
      %v3249 = vunpack.c.l.b16 %v3233
      %v3250 = vunpack.c.l.b16 %v3234
      %v3251 = vunpack.c.l.b16 %v3235
      %v3252 = vpack.c.b16 %v3245, %v3244
      %v3253 = vpack.c.b16 %v3247, %v3246
      %v3254 = vpack.c.b16 %v3249, %v3248
      %v3255 = vpack.c.b16 %v3251, %v3250
      %v3261 = vsel %vm237, %v3223, 0
      %v3264 = vsel %vm237, %v3224, 0
      %v3267 = vsel %vm237, %v3225, 0
      %v3270 = vsel %vm237, %v3226, 0
      %3272 = vmatprep.subr.bf16.mxu0 0
      %3273 = vmatpush1.bf16.msra.mxu0 %v3252
      %3274 = vmatprep.subr.bf16.mxu0 0
      %3275 = vmatpush1.bf16.msra.mxu0 %v3253
      %3276 = vmatprep.subr.bf16.mxu0 0
      %3277 = vmatpush1.bf16.msra.mxu0 %v3254
      %3278 = vmatprep.subr.bf16.mxu0 0
      %3279 = vmatpush1.bf16.msra.mxu0 %v3255
      %3280 = vmatprep.subr.bf16.mxu0 0
      %3281 = vmatpush1.bf16.msra.mxu0 0
      %3282 = vmatprep.subr.bf16.mxu0 0
      %3283 = vmatpush1.bf16.msra.mxu0 0
      %3284 = vmatprep.subr.bf16.mxu0 0
      %3285 = vmatpush1.bf16.msra.mxu0 0
      %3286 = vmatprep.subr.bf16.mxu0 0
      %3287 = vmatpush1.bf16.msra.mxu0 0
      %3288 = vmatprep.subr.bf16.mxu0 0
      %3289 = vmatpush1.bf16.msra.mxu0 0
      %3290 = vmatprep.subr.bf16.mxu0 0
      %3291 = vmatpush1.bf16.msra.mxu0 0
      %3292 = vmatprep.subr.bf16.mxu0 0
      %3293 = vmatpush1.bf16.msra.mxu0 0
      %3294 = vmatprep.subr.bf16.mxu0 0
      %3295 = vmatpush1.bf16.msra.mxu0 0
      %3296 = vmatprep.subr.bf16.mxu0 0
      %3297 = vmatpush1.bf16.msra.mxu0 0
      %3298 = vmatprep.subr.bf16.mxu0 0
      %3299 = vmatpush1.bf16.msra.mxu0 0
      %3300 = vmatprep.subr.bf16.mxu0 0
      %3301 = vmatpush1.bf16.msra.mxu0 0
      %3302 = vmatprep.subr.bf16.mxu0 0
      %3303 = vmatpush1.bf16.msra.mxu0 0
      %3304 = vmatprep.mubr.bf16.mxu0 0
      %3305 = vmatmul.mubr.bf16.gmra.mrb[0].mxu0 %v3261
      %v3306 = vpop.f32.mrb[0].mxu0
      %v3307 = vadd.f32 0.0, %v3306
      %v3308 = vpop.f32.mrb[0].mxu0
      %v3309 = vpop.f32.mrb[0].mxu0
      %v3310 = vadd.f32 0.0, %v3309
      %v3311 = vpop.f32.mrb[0].mxu0
      %3312 = vmatprep.mubr.bf16.mxu0 0
      %3313 = vmatmul.mubr.bf16.gmra.mrb[0].mxu0 %v3264
      %v3314 = vpop.f32.mrb[0].mxu0
      %v3315 = vadd.f32 0.0, %v3314
      %v3316 = vpop.f32.mrb[0].mxu0
      %v3317 = vpop.f32.mrb[0].mxu0
      %v3318 = vadd.f32 0.0, %v3317
      %v3319 = vpop.f32.mrb[0].mxu0
      %3320 = vmatprep.mubr.bf16.mxu0 0
      %3321 = vmatmul.mubr.bf16.gmra.mrb[0].mxu0 %v3267
      %v3322 = vpop.f32.mrb[0].mxu0
      %v3323 = vadd.f32 0.0, %v3322
      %v3324 = vpop.f32.mrb[0].mxu0
      %v3325 = vpop.f32.mrb[0].mxu0
      %v3326 = vadd.f32 0.0, %v3325
      %v3327 = vpop.f32.mrb[0].mxu0
      %3328 = vmatprep.mubr.bf16.mxu0 0
      %3329 = vmatmul.mubr.bf16.gmra.mrb[0].mxu0 %v3270
      %v3330 = vpop.f32.mrb[0].mxu0
      %v3331 = vadd.f32 0.0, %v3330
      %v3332 = vpop.f32.mrb[0].mxu0
      %v3333 = vpop.f32.mrb[0].mxu0
      %v3334 = vpop.f32.mrb[0].mxu0
      %3335 = vdwg.mxu0
      %v3336 = vadd.f32 %v3209, %v3307
      %v3337 = vadd.f32 %v3210, %v3310
      %v3338 = vadd.f32 %v3211, %v3315
      %v3339 = vadd.f32 %v3212, %v3318
      %v3340 = vadd.f32 %v3213, %v3323
      %v3341 = vadd.f32 %v3214, %v3326
      %v3342 = vadd.f32 %v3215, %v3331
      %v3343 = vld [vmem:[%s2] sm:$0x1]
      %v3345 = vlaneseq
      %v3346 = vshrl.u32 %v3345, 7
      %v3347 = vsub.s32 0, %v3346
      %v3348 = vrot.slane %v3343, %v3347
      %v3350 = vadd.f32 %v3336, %v3348
      %v3351 = vadd.f32 %v3337, %v3348
      %v3352 = vadd.f32 %v3338, %v3348
      %v3353 = vadd.f32 %v3339, %v3348
      %v3354 = vadd.f32 %v3340, %v3348
      %v3355 = vadd.f32 %v3341, %v3348
      %v3356 = vadd.f32 %v3342, %v3348
      %3357 = vst [vmem:[%s170] sm:$0xff] %v3350
      %3358 = vst [vmem:[%s170 + $0x8] sm:$0xff] %v3351
      %3359 = vst [vmem:[%s170 + $0x10] sm:$0xff] %v3352
      %3360 = vst [vmem:[%s170 + $0x18] sm:$0xff] %v3353
      %3361 = vst [vmem:[%s170 + $0x20] sm:$0xff] %v3354
      %3362 = vst [vmem:[%s170 + $0x28] sm:$0xff] %v3355
      %3363 = vst [vmem:[%s170 + $0x30] sm:$0xff] %v3356
      %s3364 = smul.u32 7, %s14
      %p3365 = scmp.lt.s32.totalorder %s3364, 13
      %s3366 = scalar_select %p3365, %s3364, 13
      %s3367 = smul.addr %s3366, 8
      %s3368 = scalar_lea.vmem %s3, %s3367
      // Predicated region
      $region33: #{discriminator_forward.4} parent=31 // pred_check
        %p3369 = pneg %p100
      $region34: #{discriminator_forward.4} parent=31 // pred_check_branch
        %3371 = sbr.rel (%p3369) target = $region36
      $region35: #{discriminator_forward.4} parent=31 // pred_region
        %s3372 = smul.u32 7, %s14
      $region36: #{discriminator_forward.4} parent=31 // pred_fallthru
        _
    $region32: #{discriminator_forward.4} parent=5 // pred_fallthru
      _
    %p3373 = scmp.le.s32.totalorder 2, %s9
    // Predicated region
    $region37: #{discriminator_forward.4} parent=5 // pred_check
      %p3374 = pneg %p3373
    $region38: #{discriminator_forward.4} parent=5 // pred_check_branch
      %3376 = sbr.rel (%p3374) target = $region40
    $region39: #{discriminator_forward.4} parent=5 // pred_region
      %s3377 = ssub.s32 %s9, 2
      // Predicated region
      $region41: #{discriminator_forward.4} parent=39 // pred_check
        %p3378 = pneg %p106
      $region42: #{discriminator_forward.4} parent=39 // pred_check_branch
        %3380 = sbr.rel (%p3378) target = $region44
      $region43: #{discriminator_forward.4} parent=39 // pred_region
        %s3381 = smul.u32 7, %s15
        %p3382 = scmp.lt.s32.totalorder %s3381, 13
        %s3383 = scalar_select %p3382, %s3381, 13
        %s3384 = smul.addr %s3383, 8
        %s3385 = scalar_lea.vmem %s3, %s3384
      $region44: #{discriminator_forward.4} parent=39 // pred_fallthru
        _
    $region40: #{discriminator_forward.4} parent=5 // pred_fallthru
      _
  $region6: #{discriminator_forward.4} parent=0 // loop_footer
    %s13 = sadd.s32 1, %s9
  $region7: #{discriminator_forward.4} parent=0 // loop_footer_branch
    %8 = sbr.rel target = $region3
  $region8: #{discriminator_forward.4} parent=0 // loop_exit
    _

// kernel: discriminator_forward.5
$region0: #{discriminator_forward.5}
  #allocation0 [shape = 'u32[]', space=smem, size = 0x4, offset = 0x4, fixed_abs, tag = 'smem constant byte address 0x4 - core index']
  #allocation1 [shape = 'u32[144,128]{1,0:T(1,128)}', space=vmem, size = 0x12000, scoped, tag = 'internal scratch']
  #allocation2 [shape = 'f32[1,1]{1,0:T(1,128)S(1)}', space=vmem, size = 0x200, scoped, tag = 'scoped memory for discriminator_forward.5']
  %s0 = inlined_call_operand.vmem [shape: f32[2,2,2,6,10,128], index: 0, kind: input, shape index: {}]
  %s1 = inlined_call_operand.vmem [shape: bf16[25,128,256], index: 1, kind: input, shape index: {}]
  %s2 = inlined_call_operand.vmem [shape: f32[1,256], index: 2, kind: input, shape index: {}]
  %s3 = inlined_call_operand.vmem [shape: f32[32,256], index: 3, kind: input, shape index: {}]
  %s4 = inlined_call_operand.<no memory space> [shape: f32[1,1], index: 4, kind: input, shape index: {}]
  %s5 = inlined_call_operand.vmem [shape: f32[2,8,1], index: 5, kind: output, shape index: {}]
  %s6 = sld [smem:[#allocation0]]
  $region53: #{discriminator_forward.5} parent=0
    _
  %s8 = ssub.s32 1, %s6
  %s9 = scalar_select 0, %s8, %s6
  %v10 = vstv %s4
  %11 = vst [vmem:[#allocation2] sm:$0x1] %v10
  loop: start=0, step=1, limit=4
  $region2: #{discriminator_forward.5} parent=0 // loop_pre_header
    _
  $region3: #{discriminator_forward.5} parent=0 // loop_header
    %s13 = sphi 0, %s17
    %p14 = scmp.ge.s32.totalorder %s13, 4
    %s23 = sphi 0, %s25
    %s26 = sphi 0, %s23
    %s27 = sphi 0, %s26
    %s43 = sphi 0, %s27
    %s47 = sphi 0, %s47
    %s49 = sphi 0, %s47
    %s50 = sphi 0, %s49
    %s64 = sphi 0, %s50
    %s68 = sphi 0, %s68
    %s70 = sphi 0, %s68
    %s71 = sphi 0, %s70
    %s85 = sphi 0, %s71
    %s89 = sphi 0, %s89
    %s91 = sphi 0, %s89
    %s92 = sphi 0, %s91
    %s106 = sphi 0, %s92
    %s110 = sphi 0, %s110
    %s112 = sphi 0, %s110
    %s113 = sphi 0, %s112
    %s127 = sphi 0, %s113
    %s133 = sphi 0, %s135
    %s136 = sphi 0, %s133
    %s137 = sphi 0, %s136
    %s153 = sphi 0, %s137
  $region4: #{discriminator_forward.5} parent=0 // loop_header_branch
    %16 = sbr.rel (%p14) target = $region8
  $region5: #{discriminator_forward.5} parent=0 // loop_body
    %s18 = ssub.s32 %s13, 1
    %s19 = ssub.s32 %s13, 2
    %s20 = sadd.s32 %s13, 1
    %s21 = ssub.s32 %s13, %s20
    %p22 = scmp.eq.s32.totalorder %s21, 0
    %s24 = sadd.s32 %s23, 1
    %s25 = scalar_select %p22, %s23, %s24
    %p28 = pneg %p22
    %p29 = scmp.eq.s32.totalorder %s13, 1
    %p30 = por %p28, %p29
    %p31 = scmp.ne.s32.totalorder %s23, %s26
    %p32 = scmp.eq.s32.totalorder %s13, 0
    %p33 = por %p31, %p32
    %p34 = scmp.ne.s32.totalorder %s23, %s26
    %p35 = scmp.eq.s32.totalorder %s18, 1
    %p36 = por %p34, %p35
    %p37 = scmp.ne.s32.totalorder %s26, %s27
    %p38 = scmp.eq.s32.totalorder %s18, 0
    %p39 = por %p37, %p38
    %p40 = scmp.ne.s32.totalorder %s26, %s27
    %p41 = scmp.eq.s32.totalorder %s19, 1
    %p42 = por %p40, %p41
    %p44 = scmp.ne.s32.totalorder %s27, %s43
    %p45 = scmp.eq.s32.totalorder %s19, 0
    %p46 = por %p44, %p45
    %s48 = sadd.s32 %s47, 1
    %p51 = scmp.eq.s32.totalorder %s13, 1
    %p52 = scmp.ne.s32.totalorder %s47, %s49
    %p53 = scmp.eq.s32.totalorder %s13, 0
    %p54 = por %p52, %p53
    %p55 = scmp.ne.s32.totalorder %s47, %s49
    %p56 = scmp.eq.s32.totalorder %s18, 1
    %p57 = por %p55, %p56
    %p58 = scmp.ne.s32.totalorder %s49, %s50
    %p59 = scmp.eq.s32.totalorder %s18, 0
    %p60 = por %p58, %p59
    %p61 = scmp.ne.s32.totalorder %s49, %s50
    %p62 = scmp.eq.s32.totalorder %s19, 1
    %p63 = por %p61, %p62
    %p65 = scmp.ne.s32.totalorder %s50, %s64
    %p66 = scmp.eq.s32.totalorder %s19, 0
    %p67 = por %p65, %p66
    %s69 = sadd.s32 %s68, 1
    %p72 = scmp.eq.s32.totalorder %s13, 1
    %p73 = scmp.ne.s32.totalorder %s68, %s70
    %p74 = scmp.eq.s32.totalorder %s13, 0
    %p75 = por %p73, %p74
    %p76 = scmp.ne.s32.totalorder %s68, %s70
    %p77 = scmp.eq.s32.totalorder %s18, 1
    %p78 = por %p76, %p77
    %p79 = scmp.ne.s32.totalorder %s70, %s71
    %p80 = scmp.eq.s32.totalorder %s18, 0
    %p81 = por %p79, %p80
    %p82 = scmp.ne.s32.totalorder %s70, %s71
    %p83 = scmp.eq.s32.totalorder %s19, 1
    %p84 = por %p82, %p83
    %p86 = scmp.ne.s32.totalorder %s71, %s85
    %p87 = scmp.eq.s32.totalorder %s19, 0
    %p88 = por %p86, %p87
    %s90 = sadd.s32 %s89, 1
    %p93 = scmp.eq.s32.totalorder %s13, 1
    %p94 = scmp.ne.s32.totalorder %s89, %s91
    %p95 = scmp.eq.s32.totalorder %s13, 0
    %p96 = por %p94, %p95
    %p97 = scmp.ne.s32.totalorder %s89, %s91
    %p98 = scmp.eq.s32.totalorder %s18, 1
    %p99 = por %p97, %p98
    %p100 = scmp.ne.s32.totalorder %s91, %s92
    %p101 = scmp.eq.s32.totalorder %s18, 0
    %p102 = por %p100, %p101
    %p103 = scmp.ne.s32.totalorder %s91, %s92
    %p104 = scmp.eq.s32.totalorder %s19, 1
    %p105 = por %p103, %p104
    %p107 = scmp.ne.s32.totalorder %s92, %s106
    %p108 = scmp.eq.s32.totalorder %s19, 0
    %p109 = por %p107, %p108
    %s111 = sadd.s32 %s110, 1
    %p114 = scmp.eq.s32.totalorder %s13, 1
    %p115 = scmp.ne.s32.totalorder %s110, %s112
    %p116 = scmp.eq.s32.totalorder %s13, 0
    %p117 = por %p115, %p116
    %p118 = scmp.ne.s32.totalorder %s110, %s112
    %p119 = scmp.eq.s32.totalorder %s18, 1
    %p120 = por %p118, %p119
    %p121 = scmp.ne.s32.totalorder %s112, %s113
    %p122 = scmp.eq.s32.totalorder %s18, 0
    %p123 = por %p121, %p122
    %p124 = scmp.ne.s32.totalorder %s112, %s113
    %p125 = scmp.eq.s32.totalorder %s19, 1
    %p126 = por %p124, %p125
    %p128 = scmp.ne.s32.totalorder %s113, %s127
    %p129 = scmp.eq.s32.totalorder %s19, 0
    %p130 = por %p128, %p129
    %s131 = ssub.s32 %s13, %s20
    %p132 = scmp.eq.s32.totalorder %s131, 0
    %s134 = sadd.s32 %s133, 1
    %s135 = scalar_select %p132, %s133, %s134
    %p138 = pneg %p132
    %p139 = scmp.eq.s32.totalorder %s13, 1
    %p140 = por %p138, %p139
    %p141 = scmp.ne.s32.totalorder %s133, %s136
    %p142 = scmp.eq.s32.totalorder %s13, 0
    %p143 = por %p141, %p142
    %p144 = scmp.ne.s32.totalorder %s133, %s136
    %p145 = scmp.eq.s32.totalorder %s18, 1
    %p146 = por %p144, %p145
    %p147 = scmp.ne.s32.totalorder %s136, %s137
    %p148 = scmp.eq.s32.totalorder %s18, 0
    %p149 = por %p147, %p148
    %p150 = scmp.ne.s32.totalorder %s136, %s137
    %p151 = scmp.eq.s32.totalorder %s19, 1
    %p152 = por %p150, %p151
    %p154 = scmp.ne.s32.totalorder %s137, %s153
    %p155 = scmp.eq.s32.totalorder %s19, 0
    %p156 = por %p154, %p155
    %p157 = scmp.le.s32.totalorder 1, %s13
    %p158 = scmp.lt.s32.totalorder %s13, 3
    %p159 = pnand %p157, %p158
    %p160 = pneg %p159
    // Predicated region
    $region9: #{discriminator_forward.5} parent=5 // pred_check
      _
    $region10: #{discriminator_forward.5} parent=5 // pred_check_branch
      %162 = sbr.rel (%p159) target = $region12
    $region11: #{discriminator_forward.5} parent=5 // pred_region
      %s163 = ssub.s32 %s13, 1
      // Predicated region
      $region13: #{discriminator_forward.5} parent=11 // pred_check
        %p164 = pneg %p60
      $region14: #{discriminator_forward.5} parent=11 // pred_check_branch
        %166 = sbr.rel (%p164) target = $region16
      $region15: #{discriminator_forward.5} parent=11 // pred_region
        _
      $region16: #{discriminator_forward.5} parent=11 // pred_fallthru
        _
      // Predicated region
      $region17: #{discriminator_forward.5} parent=11 // pred_check
        %p167 = pneg %p81
      $region18: #{discriminator_forward.5} parent=11 // pred_check_branch
        %169 = sbr.rel (%p167) target = $region20
      $region19: #{discriminator_forward.5} parent=11 // pred_region
        _
      $region20: #{discriminator_forward.5} parent=11 // pred_fallthru
        _
      // Predicated region
      $region21: #{discriminator_forward.5} parent=11 // pred_check
        %p170 = pneg %p102
      $region22: #{discriminator_forward.5} parent=11 // pred_check_branch
        %172 = sbr.rel (%p170) target = $region24
      $region23: #{discriminator_forward.5} parent=11 // pred_region
        _
      $region24: #{discriminator_forward.5} parent=11 // pred_fallthru
        _
      // Predicated region
      $region25: #{discriminator_forward.5} parent=11 // pred_check
        %p173 = pneg %p123
      $region26: #{discriminator_forward.5} parent=11 // pred_check_branch
        %175 = sbr.rel (%p173) target = $region28
      $region27: #{discriminator_forward.5} parent=11 // pred_region
        _
      $region28: #{discriminator_forward.5} parent=11 // pred_fallthru
        _
    $region12: #{discriminator_forward.5} parent=5 // pred_fallthru
      _
    %p176 = scmp.lt.s32.totalorder %s13, 2
    // Predicated region
    $region29: #{discriminator_forward.5} parent=5 // pred_check
      %p177 = pneg %p176
    $region30: #{discriminator_forward.5} parent=5 // pred_check_branch
      %179 = sbr.rel (%p177) target = $region32
    $region31: #{discriminator_forward.5} parent=5 // pred_region
      // Predicated region
      $region33: #{discriminator_forward.5} parent=31 // pred_check
        %p180 = pneg %p33
      $region34: #{discriminator_forward.5} parent=31 // pred_check_branch
        %182 = sbr.rel (%p180) target = $region36
      $region35: #{discriminator_forward.5} parent=31 // pred_region
        %p183 = scmp.lt.s32.totalorder %s13, 1
        %s184 = scalar_select %p183, %s13, 1
        %s185 = smul.addr %s184, 48
        %s186 = smul.addr %s185, 8
        %s187 = scalar_lea.vmem %s0, %s186
      $region36: #{discriminator_forward.5} parent=31 // pred_fallthru
        _
    $region32: #{discriminator_forward.5} parent=5 // pred_fallthru
      _
    %p188 = scmp.le.s32.totalorder 1, %s13
    %p189 = scmp.lt.s32.totalorder %s13, 3
    %p190 = pnand %p188, %p189
    %p191 = pneg %p190
    // Predicated region
    $region37: #{discriminator_forward.5} parent=5 // pred_check
      _
    $region38: #{discriminator_forward.5} parent=5 // pred_check_branch
      %193 = sbr.rel (%p190) target = $region40
    $region39: #{discriminator_forward.5} parent=5 // pred_region
      %s194 = ssub.s32 %s13, 1
      %p195 = scmp.lt.s32.totalorder %s18, 1
      %s196 = scalar_select %p195, %s18, 1
      %s197 = smul.addr %s196, 48
      %s198 = smul.addr %s197, 8
      %s199 = scalar_lea.vmem %s0, %s198
      %p200 = pneg %p39
      %p201 = pneg %p36
      %p202 = pneg %p60
      %p203 = pneg %p57
      %p204 = pneg %p81
      %p205 = pneg %p78
      %p206 = pneg %p102
      %p207 = pneg %p99
      %p208 = pneg %p123
      %p209 = pneg %p120
      %p210 = pneg %p149
      %p211 = pneg %p146
      %p212 = scmp.lt.s32.totalorder %s18, 1
      %s213 = scalar_select %p212, %s18, 1
      %s214 = smul.addr %s213, 8
      %s215 = scalar_lea.vmem %s5, %s214
      %p216 = scmp.lt.s32.totalorder %s18, 1
      %s217 = scalar_select %p216, %s18, 1
      %s218 = smul.addr %s217, 48
      %s219 = smul.addr %s218, 8
      %s220 = scalar_lea.vmem %s0, %s219
      %p221 = scmp.lt.s32.totalorder %s18, 1
      %s222 = scalar_select %p221, %s18, 1
      %s223 = smul.addr %s222, 8
      %s224 = scalar_lea.vmem %s5, %s223
      %v226 = vld [vmem:[%s220] sm:$0xff]
      %v227 = vld [vmem:[%s220 + $0x10] sm:$0xff]
      %v228 = vld [vmem:[%s220 + $0x20] sm:$0xff]
      %v229 = vld [vmem:[%s220 + $0x30] sm:$0xff]
      %v230 = vpack.c.bf16 %v227, %v226
      %v231 = vpack.c.bf16 %v229, %v228
      %v232 = vld [vmem:[%s1] sm:$0xff]
      %v233 = vld [vmem:[%s1 + $0x8] sm:$0xff]
      %v234 = vld [vmem:[%s1 + $0x10] sm:$0xff]
      %v235 = vld [vmem:[%s1 + $0x18] sm:$0xff]
      %v236 = vld [vmem:[%s1 + $0x20] sm:$0xff]
      %v237 = vld [vmem:[%s1 + $0x28] sm:$0xff]
      %v238 = vld [vmem:[%s1 + $0x30] sm:$0xff]
      %v239 = vld [vmem:[%s1 + $0x38] sm:$0xff]
      %v240 = vld [vmem:[%s1 + $0x40] sm:$0xff]
      %v241 = vld [vmem:[%s1 + $0x48] sm:$0xff]
      %v242 = vld [vmem:[%s1 + $0x50] sm:$0xff]
      %v243 = vld [vmem:[%s1 + $0x58] sm:$0xff]
      %v244 = vld [vmem:[%s1 + $0x60] sm:$0xff]
      %v245 = vld [vmem:[%s1 + $0x68] sm:$0xff]
      %v246 = vld [vmem:[%s1 + $0x70] sm:$0xff]
      %v247 = vld [vmem:[%s1 + $0x78] sm:$0xff]
      %s248 = scalar_lea.vmem %s220, 96
      %v249 = vld [vmem:[%s248] sm:$0xff]
      %v250 = vld [vmem:[%s248 + $0x10] sm:$0xff]
      %v251 = vld [vmem:[%s248 + $0x20] sm:$0xff]
      %v252 = vld [vmem:[%s248 + $0x30] sm:$0xff]
      %v253 = vpack.c.bf16 %v250, %v249
      %v254 = vpack.c.bf16 %v252, %v251
      %s255 = scalar_lea.vmem %s1, 128
      %v256 = vld [vmem:[%s255] sm:$0xff]
      %v257 = vld [vmem:[%s255 + $0x8] sm:$0xff]
      %v258 = vld [vmem:[%s255 + $0x10] sm:$0xff]
      %v259 = vld [vmem:[%s255 + $0x18] sm:$0xff]
      %v260 = vld [vmem:[%s255 + $0x20] sm:$0xff]
      %v261 = vld [vmem:[%s255 + $0x28] sm:$0xff]
      %v262 = vld [vmem:[%s255 + $0x30] sm:$0xff]
      %v263 = vld [vmem:[%s255 + $0x38] sm:$0xff]
      %v264 = vld [vmem:[%s255 + $0x40] sm:$0xff]
      %v265 = vld [vmem:[%s255 + $0x48] sm:$0xff]
      %v266 = vld [vmem:[%s255 + $0x50] sm:$0xff]
      %v267 = vld [vmem:[%s255 + $0x58] sm:$0xff]
      %v268 = vld [vmem:[%s255 + $0x60] sm:$0xff]
      %v269 = vld [vmem:[%s255 + $0x68] sm:$0xff]
      %v270 = vld [vmem:[%s255 + $0x70] sm:$0xff]
      %v271 = vld [vmem:[%s255 + $0x78] sm:$0xff]
      %v288 = vunpack.c.l.b16 %v256
      %v289 = vunpack.c.h.b16 %v256
      %v290 = vunpack.c.l.b16 %v257
      %v291 = vunpack.c.h.b16 %v257
      %v292 = vunpack.c.l.b16 %v258
      %v293 = vunpack.c.h.b16 %v258
      %v294 = vunpack.c.l.b16 %v259
      %v295 = vunpack.c.h.b16 %v259
      %v296 = vunpack.c.l.b16 %v260
      %v297 = vunpack.c.h.b16 %v260
      %v298 = vunpack.c.l.b16 %v261
      %v299 = vunpack.c.h.b16 %v261
      %v300 = vunpack.c.l.b16 %v262
      %v301 = vunpack.c.h.b16 %v262
      %v302 = vunpack.c.l.b16 %v263
      %v303 = vunpack.c.h.b16 %v263
      %v304 = vunpack.c.l.b16 %v264
      %v305 = vunpack.c.h.b16 %v264
      %v306 = vunpack.c.l.b16 %v265
      %v307 = vunpack.c.h.b16 %v265
      %v308 = vunpack.c.l.b16 %v266
      %v309 = vunpack.c.h.b16 %v266
      %v310 = vunpack.c.l.b16 %v267
      %v311 = vunpack.c.h.b16 %v267
      %v312 = vunpack.c.l.b16 %v268
      %v313 = vunpack.c.h.b16 %v268
      %v314 = vunpack.c.l.b16 %v269
      %v315 = vunpack.c.h.b16 %v269
      %v316 = vunpack.c.l.b16 %v270
      %v317 = vunpack.c.h.b16 %v270
      %v318 = vunpack.c.l.b16 %v271
      %v319 = vunpack.c.h.b16 %v271
      %v320 = vpack.c.b16 %v290, %v288
      %v321 = vpack.c.b16 %v291, %v289
      %v322 = vpack.c.b16 %v294, %v292
      %v323 = vpack.c.b16 %v295, %v293
      %v324 = vpack.c.b16 %v298, %v296
      %v325 = vpack.c.b16 %v299, %v297
      %v326 = vpack.c.b16 %v302, %v300
      %v327 = vpack.c.b16 %v303, %v301
      %v328 = vpack.c.b16 %v306, %v304
      %v329 = vpack.c.b16 %v307, %v305
      %v330 = vpack.c.b16 %v310, %v308
      %v331 = vpack.c.b16 %v311, %v309
      %v332 = vpack.c.b16 %v314, %v312
      %v333 = vpack.c.b16 %v315, %v313
      %v334 = vpack.c.b16 %v318, %v316
      %v335 = vpack.c.b16 %v319, %v317
      %352 = vmatprep.subr.bf16.mxu0 %v321
      %353 = vmatpush1.bf16.msra.mxu0 %v320
      %354 = vmatprep.subr.bf16.mxu0 %v323
      %355 = vmatpush1.bf16.msra.mxu0 %v322
      %356 = vmatprep.subr.bf16.mxu0 %v325
      %357 = vmatpush1.bf16.msra.mxu0 %v324
      %358 = vmatprep.subr.bf16.mxu0 %v327
      %359 = vmatpush1.bf16.msra.mxu0 %v326
      %360 = vmatprep.subr.bf16.mxu0 %v329
      %361 = vmatpush1.bf16.msra.mxu0 %v328
      %362 = vmatprep.subr.bf16.mxu0 %v331
      %363 = vmatpush1.bf16.msra.mxu0 %v330
      %364 = vmatprep.subr.bf16.mxu0 %v333
      %365 = vmatpush1.bf16.msra.mxu0 %v332
      %366 = vmatprep.subr.bf16.mxu0 %v335
      %367 = vmatpush1.bf16.msra.mxu0 %v334
      %368 = vmatprep.subr.bf16.mxu0 0
      %369 = vmatpush1.bf16.msra.mxu0 0
      %370 = vmatprep.subr.bf16.mxu0 0
      %371 = vmatpush1.bf16.msra.mxu0 0
      %372 = vmatprep.subr.bf16.mxu0 0
      %373 = vmatpush1.bf16.msra.mxu0 0
      %374 = vmatprep.subr.bf16.mxu0 0
      %375 = vmatpush1.bf16.msra.mxu0 0
      %376 = vmatprep.subr.bf16.mxu0 0
      %377 = vmatpush1.bf16.msra.mxu0 0
      %378 = vmatprep.subr.bf16.mxu0 0
      %379 = vmatpush1.bf16.msra.mxu0 0
      %380 = vmatprep.subr.bf16.mxu0 0
      %381 = vmatpush1.bf16.msra.mxu0 0
      %382 = vmatprep.subr.bf16.mxu0 0
      %383 = vmatpush1.bf16.msra.mxu0 0
      %384 = vmatprep.mubr.bf16.mxu0 0
      %385 = vmatmul.mubr.bf16.gmra.mrb[0].mxu0 %v253
      %v386 = vpop.f32.mrb[0].mxu0
      %v387 = vadd.f32 0.0, %v386
      %v388 = vpop.f32.mrb[0].mxu0
      %v389 = vadd.f32 0.0, %v388
      %v390 = vpop.f32.mrb[0].mxu0
      %v391 = vadd.f32 0.0, %v390
      %v392 = vpop.f32.mrb[0].mxu0
      %v393 = vadd.f32 0.0, %v392
      %394 = vmatprep.mubr.bf16.mxu0 0
      %395 = vmatmul.mubr.bf16.gmra.mrb[0].mxu0 %v254
      %v396 = vpop.f32.mrb[0].mxu0
      %v397 = vadd.f32 0.0, %v396
      %v398 = vpop.f32.mrb[0].mxu0
      %v399 = vadd.f32 0.0, %v398
      %v400 = vpop.f32.mrb[0].mxu0
      %v401 = vadd.f32 0.0, %v400
      %v402 = vpop.f32.mrb[0].mxu0
      %v403 = vadd.f32 0.0, %v402
      %404 = vdwg.mxu0
      %v421 = vunpack.c.l.b16 %v232
      %v422 = vunpack.c.h.b16 %v232
      %v423 = vunpack.c.l.b16 %v233
      %v424 = vunpack.c.h.b16 %v233
      %v425 = vunpack.c.l.b16 %v234
      %v426 = vunpack.c.h.b16 %v234
      %v427 = vunpack.c.l.b16 %v235
      %v428 = vunpack.c.h.b16 %v235
      %v429 = vunpack.c.l.b16 %v236
      %v430 = vunpack.c.h.b16 %v236
      %v431 = vunpack.c.l.b16 %v237
      %v432 = vunpack.c.h.b16 %v237
      %v433 = vunpack.c.l.b16 %v238
      %v434 = vunpack.c.h.b16 %v238
      %v435 = vunpack.c.l.b16 %v239
      %v436 = vunpack.c.h.b16 %v239
      %v437 = vunpack.c.l.b16 %v240
      %v438 = vunpack.c.h.b16 %v240
      %v439 = vunpack.c.l.b16 %v241
      %v440 = vunpack.c.h.b16 %v241
      %v441 = vunpack.c.l.b16 %v242
      %v442 = vunpack.c.h.b16 %v242
      %v443 = vunpack.c.l.b16 %v243
      %v444 = vunpack.c.h.b16 %v243
      %v445 = vunpack.c.l.b16 %v244
      %v446 = vunpack.c.h.b16 %v244
      %v447 = vunpack.c.l.b16 %v245
      %v448 = vunpack.c.h.b16 %v245
      %v449 = vunpack.c.l.b16 %v246
      %v450 = vunpack.c.h.b16 %v246
      %v451 = vunpack.c.l.b16 %v247
      %v452 = vunpack.c.h.b16 %v247
      %v453 = vpack.c.b16 %v423, %v421
      %v454 = vpack.c.b16 %v424, %v422
      %v455 = vpack.c.b16 %v427, %v425
      %v456 = vpack.c.b16 %v428, %v426
      %v457 = vpack.c.b16 %v431, %v429
      %v458 = vpack.c.b16 %v432, %v430
      %v459 = vpack.c.b16 %v435, %v433
      %v460 = vpack.c.b16 %v436, %v434
      %v461 = vpack.c.b16 %v439, %v437
      %v462 = vpack.c.b16 %v440, %v438
      %v463 = vpack.c.b16 %v443, %v441
      %v464 = vpack.c.b16 %v444, %v442
      %v465 = vpack.c.b16 %v447, %v445
      %v466 = vpack.c.b16 %v448, %v446
      %v467 = vpack.c.b16 %v451, %v449
      %v468 = vpack.c.b16 %v452, %v450
      %485 = vmatprep.subr.bf16.mxu0 %v454
      %486 = vmatpush1.bf16.msra.mxu0 %v453
      %487 = vmatprep.subr.bf16.mxu0 %v456
      %488 = vmatpush1.bf16.msra.mxu0 %v455
      %489 = vmatprep.subr.bf16.mxu0 %v458
      %490 = vmatpush1.bf16.msra.mxu0 %v457
      %491 = vmatprep.subr.bf16.mxu0 %v460
      %492 = vmatpush1.bf16.msra.mxu0 %v459
      %493 = vmatprep.subr.bf16.mxu0 %v462
      %494 = vmatpush1.bf16.msra.mxu0 %v461
      %495 = vmatprep.subr.bf16.mxu0 %v464
      %496 = vmatpush1.bf16.msra.mxu0 %v463
      %497 = vmatprep.subr.bf16.mxu0 %v466
      %498 = vmatpush1.bf16.msra.mxu0 %v465
      %499 = vmatprep.subr.bf16.mxu0 %v468
      %500 = vmatpush1.bf16.msra.mxu0 %v467
      %501 = vmatprep.subr.bf16.mxu0 0
      %502 = vmatpush1.bf16.msra.mxu0 0
      %503 = vmatprep.subr.bf16.mxu0 0
      %504 = vmatpush1.bf16.msra.mxu0 0
      %505 = vmatprep.subr.bf16.mxu0 0
      %506 = vmatpush1.bf16.msra.mxu0 0
      %507 = vmatprep.subr.bf16.mxu0 0
      %508 = vmatpush1.bf16.msra.mxu0 0
      %509 = vmatprep.subr.bf16.mxu0 0
      %510 = vmatpush1.bf16.msra.mxu0 0
      %511 = vmatprep.subr.bf16.mxu0 0
      %512 = vmatpush1.bf16.msra.mxu0 0
      %513 = vmatprep.subr.bf16.mxu0 0
      %514 = vmatpush1.bf16.msra.mxu0 0
      %515 = vmatprep.subr.bf16.mxu0 0
      %516 = vmatpush1.bf16.msra.mxu0 0
      %517 = vmatprep.mubr.bf16.mxu0 0
      %518 = vmatmul.mubr.bf16.gmra.mrb[0].mxu0 %v230
      %v519 = vpop.f32.mrb[0].mxu0
      %v520 = vadd.f32 %v387, %v519
      %v521 = vpop.f32.mrb[0].mxu0
      %v522 = vadd.f32 %v389, %v521
      %v523 = vpop.f32.mrb[0].mxu0
      %v524 = vadd.f32 %v391, %v523
      %v525 = vpop.f32.mrb[0].mxu0
      %v526 = vadd.f32 %v393, %v525
      %527 = vmatprep.mubr.bf16.mxu0 0
      %528 = vmatmul.mubr.bf16.gmra.mrb[0].mxu0 %v231
      %v529 = vpop.f32.mrb[0].mxu0
      %v530 = vadd.f32 %v397, %v529
      %v531 = vpop.f32.mrb[0].mxu0
      %v532 = vadd.f32 %v399, %v531
      %v533 = vpop.f32.mrb[0].mxu0
      %v534 = vadd.f32 %v401, %v533
      %v535 = vpop.f32.mrb[0].mxu0
      %v536 = vadd.f32 %v403, %v535
      %537 = vdwg.mxu0
      %v538 = vld [vmem:[%s220 + $0x1] sm:$0xff]
      %v539 = vld [vmem:[%s220 + $0x11] sm:$0xff]
      %v540 = vld [vmem:[%s220 + $0x21] sm:$0xff]
      %v541 = vld [vmem:[%s220 + $0x31] sm:$0xff]
      %v542 = vpack.c.bf16 %v539, %v538
      %v543 = vpack.c.bf16 %v541, %v540
      %s544 = scalar_lea.vmem %s1, 256
      %v545 = vld [vmem:[%s544] sm:$0xff]
      %v546 = vld [vmem:[%s544 + $0x8] sm:$0xff]
      %v547 = vld [vmem:[%s544 + $0x10] sm:$0xff]
      %v548 = vld [vmem:[%s544 + $0x18] sm:$0xff]
      %v549 = vld [vmem:[%s544 + $0x20] sm:$0xff]
      %v550 = vld [vmem:[%s544 + $0x28] sm:$0xff]
      %v551 = vld [vmem:[%s544 + $0x30] sm:$0xff]
      %v552 = vld [vmem:[%s544 + $0x38] sm:$0xff]
      %v553 = vld [vmem:[%s544 + $0x40] sm:$0xff]
      %v554 = vld [vmem:[%s544 + $0x48] sm:$0xff]
      %v555 = vld [vmem:[%s544 + $0x50] sm:$0xff]
      %v556 = vld [vmem:[%s544 + $0x58] sm:$0xff]
      %v557 = vld [vmem:[%s544 + $0x60] sm:$0xff]
      %v558 = vld [vmem:[%s544 + $0x68] sm:$0xff]
      %v559 = vld [vmem:[%s544 + $0x70] sm:$0xff]
      %v560 = vld [vmem:[%s544 + $0x78] sm:$0xff]
      %v577 = vunpack.c.l.b16 %v545
      %v578 = vunpack.c.h.b16 %v545
      %v579 = vunpack.c.l.b16 %v546
      %v580 = vunpack.c.h.b16 %v546
      %v581 = vunpack.c.l.b16 %v547
      %v582 = vunpack.c.h.b16 %v547
      %v583 = vunpack.c.l.b16 %v548
      %v584 = vunpack.c.h.b16 %v548
      %v585 = vunpack.c.l.b16 %v549
      %v586 = vunpack.c.h.b16 %v549
      %v587 = vunpack.c.l.b16 %v550
      %v588 = vunpack.c.h.b16 %v550
      %v589 = vunpack.c.l.b16 %v551
      %v590 = vunpack.c.h.b16 %v551
      %v591 = vunpack.c.l.b16 %v552
      %v592 = vunpack.c.h.b16 %v552
      %v593 = vunpack.c.l.b16 %v553
      %v594 = vunpack.c.h.b16 %v553
      %v595 = vunpack.c.l.b16 %v554
      %v596 = vunpack.c.h.b16 %v554
      %v597 = vunpack.c.l.b16 %v555
      %v598 = vunpack.c.h.b16 %v555
      %v599 = vunpack.c.l.b16 %v556
      %v600 = vunpack.c.h.b16 %v556
      %v601 = vunpack.c.l.b16 %v557
      %v602 = vunpack.c.h.b16 %v557
      %v603 = vunpack.c.l.b16 %v558
      %v604 = vunpack.c.h.b16 %v558
      %v605 = vunpack.c.l.b16 %v559
      %v606 = vunpack.c.h.b16 %v559
      %v607 = vunpack.c.l.b16 %v560
      %v608 = vunpack.c.h.b16 %v560
      %v609 = vpack.c.b16 %v579, %v577
      %v610 = vpack.c.b16 %v580, %v578
      %v611 = vpack.c.b16 %v583, %v581
      %v612 = vpack.c.b16 %v584, %v582
      %v613 = vpack.c.b16 %v587, %v585
      %v614 = vpack.c.b16 %v588, %v586
      %v615 = vpack.c.b16 %v591, %v589
      %v616 = vpack.c.b16 %v592, %v590
      %v617 = vpack.c.b16 %v595, %v593
      %v618 = vpack.c.b16 %v596, %v594
      %v619 = vpack.c.b16 %v599, %v597
      %v620 = vpack.c.b16 %v600, %v598
      %v621 = vpack.c.b16 %v603, %v601
      %v622 = vpack.c.b16 %v604, %v602
      %v623 = vpack.c.b16 %v607, %v605
      %v624 = vpack.c.b16 %v608, %v606
      %641 = vmatprep.subr.bf16.mxu0 %v610
      %642 = vmatpush1.bf16.msra.mxu0 %v609
      %643 = vmatprep.subr.bf16.mxu0 %v612
      %644 = vmatpush1.bf16.msra.mxu0 %v611
      %645 = vmatprep.subr.bf16.mxu0 %v614
      %646 = vmatpush1.bf16.msra.mxu0 %v613
      %647 = vmatprep.subr.bf16.mxu0 %v616
      %648 = vmatpush1.bf16.msra.mxu0 %v615
      %649 = vmatprep.subr.bf16.mxu0 %v618
      %650 = vmatpush1.bf16.msra.mxu0 %v617
      %651 = vmatprep.subr.bf16.mxu0 %v620
      %652 = vmatpush1.bf16.msra.mxu0 %v619
      %653 = vmatprep.subr.bf16.mxu0 %v622
      %654 = vmatpush1.bf16.msra.mxu0 %v621
      %655 = vmatprep.subr.bf16.mxu0 %v624
      %656 = vmatpush1.bf16.msra.mxu0 %v623
      %657 = vmatprep.subr.bf16.mxu0 0
      %658 = vmatpush1.bf16.msra.mxu0 0
      %659 = vmatprep.subr.bf16.mxu0 0
      %660 = vmatpush1.bf16.msra.mxu0 0
      %661 = vmatprep.subr.bf16.mxu0 0
      %662 = vmatpush1.bf16.msra.mxu0 0
      %663 = vmatprep.subr.bf16.mxu0 0
      %664 = vmatpush1.bf16.msra.mxu0 0
      %665 = vmatprep.subr.bf16.mxu0 0
      %666 = vmatpush1.bf16.msra.mxu0 0
      %667 = vmatprep.subr.bf16.mxu0 0
      %668 = vmatpush1.bf16.msra.mxu0 0
      %669 = vmatprep.subr.bf16.mxu0 0
      %670 = vmatpush1.bf16.msra.mxu0 0
      %671 = vmatprep.subr.bf16.mxu0 0
      %672 = vmatpush1.bf16.msra.mxu0 0
      %673 = vmatprep.mubr.bf16.mxu0 0
      %674 = vmatmul.mubr.bf16.gmra.mrb[0].mxu0 %v542
      %v675 = vpop.f32.mrb[0].mxu0
      %v676 = vadd.f32 0.0, %v675
      %v677 = vpop.f32.mrb[0].mxu0
      %v678 = vadd.f32 0.0, %v677
      %v679 = vpop.f32.mrb[0].mxu0
      %v680 = vadd.f32 0.0, %v679
      %v681 = vpop.f32.mrb[0].mxu0
      %v682 = vadd.f32 0.0, %v681
      %683 = vmatprep.mubr.bf16.mxu0 0
      %684 = vmatmul.mubr.bf16.gmra.mrb[0].mxu0 %v543
      %v685 = vpop.f32.mrb[0].mxu0
      %v686 = vadd.f32 0.0, %v685
      %v687 = vpop.f32.mrb[0].mxu0
      %v688 = vadd.f32 0.0, %v687
      %v689 = vpop.f32.mrb[0].mxu0
      %v690 = vadd.f32 0.0, %v689
      %v691 = vpop.f32.mrb[0].mxu0
      %v692 = vadd.f32 0.0, %v691
      %693 = vdwg.mxu0
      %v694 = vadd.f32 %v520, %v676
      %v695 = vadd.f32 %v522, %v678
      %v696 = vadd.f32 %v524, %v680
      %v697 = vadd.f32 %v526, %v682
      %v698 = vadd.f32 %v530, %v686
      %v699 = vadd.f32 %v532, %v688
      %v700 = vadd.f32 %v534, %v690
      %v701 = vadd.f32 %v536, %v692
      %v702 = vld [vmem:[%s248 + $0x1] sm:$0xff]
      %v703 = vld [vmem:[%s248 + $0x11] sm:$0xff]
      %v704 = vld [vmem:[%s248 + $0x21] sm:$0xff]
      %v705 = vld [vmem:[%s248 + $0x31] sm:$0xff]
      %v706 = vpack.c.bf16 %v703, %v702
      %v707 = vpack.c.bf16 %v705, %v704
      %s708 = scalar_lea.vmem %s1, 384
      %v709 = vld [vmem:[%s708] sm:$0xff]
      %v710 = vld [vmem:[%s708 + $0x8] sm:$0xff]
      %v711 = vld [vmem:[%s708 + $0x10] sm:$0xff]
      %v712 = vld [vmem:[%s708 + $0x18] sm:$0xff]
      %v713 = vld [vmem:[%s708 + $0x20] sm:$0xff]
      %v714 = vld [vmem:[%s708 + $0x28] sm:$0xff]
      %v715 = vld [vmem:[%s708 + $0x30] sm:$0xff]
      %v716 = vld [vmem:[%s708 + $0x38] sm:$0xff]
      %v717 = vld [vmem:[%s708 + $0x40] sm:$0xff]
      %v718 = vld [vmem:[%s708 + $0x48] sm:$0xff]
      %v719 = vld [vmem:[%s708 + $0x50] sm:$0xff]
      %v720 = vld [vmem:[%s708 + $0x58] sm:$0xff]
      %v721 = vld [vmem:[%s708 + $0x60] sm:$0xff]
      %v722 = vld [vmem:[%s708 + $0x68] sm:$0xff]
      %v723 = vld [vmem:[%s708 + $0x70] sm:$0xff]
      %v724 = vld [vmem:[%s708 + $0x78] sm:$0xff]
      %v741 = vunpack.c.l.b16 %v709
      %v742 = vunpack.c.h.b16 %v709
      %v743 = vunpack.c.l.b16 %v710
      %v744 = vunpack.c.h.b16 %v710
      %v745 = vunpack.c.l.b16 %v711
      %v746 = vunpack.c.h.b16 %v711
      %v747 = vunpack.c.l.b16 %v712
      %v748 = vunpack.c.h.b16 %v712
      %v749 = vunpack.c.l.b16 %v713
      %v750 = vunpack.c.h.b16 %v713
      %v751 = vunpack.c.l.b16 %v714
      %v752 = vunpack.c.h.b16 %v714
      %v753 = vunpack.c.l.b16 %v715
      %v754 = vunpack.c.h.b16 %v715
      %v755 = vunpack.c.l.b16 %v716
      %v756 = vunpack.c.h.b16 %v716
      %v757 = vunpack.c.l.b16 %v717
      %v758 = vunpack.c.h.b16 %v717
      %v759 = vunpack.c.l.b16 %v718
      %v760 = vunpack.c.h.b16 %v718
      %v761 = vunpack.c.l.b16 %v719
      %v762 = vunpack.c.h.b16 %v719
      %v763 = vunpack.c.l.b16 %v720
      %v764 = vunpack.c.h.b16 %v720
      %v765 = vunpack.c.l.b16 %v721
      %v766 = vunpack.c.h.b16 %v721
      %v767 = vunpack.c.l.b16 %v722
      %v768 = vunpack.c.h.b16 %v722
      %v769 = vunpack.c.l.b16 %v723
      %v770 = vunpack.c.h.b16 %v723
      %v771 = vunpack.c.l.b16 %v724
      %v772 = vunpack.c.h.b16 %v724
      %v773 = vpack.c.b16 %v743, %v741
      %v774 = vpack.c.b16 %v744, %v742
      %v775 = vpack.c.b16 %v747, %v745
      %v776 = vpack.c.b16 %v748, %v746
      %v777 = vpack.c.b16 %v751, %v749
      %v778 = vpack.c.b16 %v752, %v750
      %v779 = vpack.c.b16 %v755, %v753
      %v780 = vpack.c.b16 %v756, %v754
      %v781 = vpack.c.b16 %v759, %v757
      %v782 = vpack.c.b16 %v760, %v758
      %v783 = vpack.c.b16 %v763, %v761
      %v784 = vpack.c.b16 %v764, %v762
      %v785 = vpack.c.b16 %v767, %v765
      %v786 = vpack.c.b16 %v768, %v766
      %v787 = vpack.c.b16 %v771, %v769
      %v788 = vpack.c.b16 %v772, %v770
      %805 = vmatprep.subr.bf16.mxu0 %v774
      %806 = vmatpush1.bf16.msra.mxu0 %v773
      %807 = vmatprep.subr.bf16.mxu0 %v776
      %808 = vmatpush1.bf16.msra.mxu0 %v775
      %809 = vmatprep.subr.bf16.mxu0 %v778
      %810 = vmatpush1.bf16.msra.mxu0 %v777
      %811 = vmatprep.subr.bf16.mxu0 %v780
      %812 = vmatpush1.bf16.msra.mxu0 %v779
      %813 = vmatprep.subr.bf16.mxu0 %v782
      %814 = vmatpush1.bf16.msra.mxu0 %v781
      %815 = vmatprep.subr.bf16.mxu0 %v784
      %816 = vmatpush1.bf16.msra.mxu0 %v783
      %817 = vmatprep.subr.bf16.mxu0 %v786
      %818 = vmatpush1.bf16.msra.mxu0 %v785
      %819 = vmatprep.subr.bf16.mxu0 %v788
      %820 = vmatpush1.bf16.msra.mxu0 %v787
      %821 = vmatprep.subr.bf16.mxu0 0
      %822 = vmatpush1.bf16.msra.mxu0 0
      %823 = vmatprep.subr.bf16.mxu0 0
      %824 = vmatpush1.bf16.msra.mxu0 0
      %825 = vmatprep.subr.bf16.mxu0 0
      %826 = vmatpush1.bf16.msra.mxu0 0
      %827 = vmatprep.subr.bf16.mxu0 0
      %828 = vmatpush1.bf16.msra.mxu0 0
      %829 = vmatprep.subr.bf16.mxu0 0
      %830 = vmatpush1.bf16.msra.mxu0 0
      %831 = vmatprep.subr.bf16.mxu0 0
      %832 = vmatpush1.bf16.msra.mxu0 0
      %833 = vmatprep.subr.bf16.mxu0 0
      %834 = vmatpush1.bf16.msra.mxu0 0
      %835 = vmatprep.subr.bf16.mxu0 0
      %836 = vmatpush1.bf16.msra.mxu0 0
      %837 = vmatprep.mubr.bf16.mxu0 0
      %838 = vmatmul.mubr.bf16.gmra.mrb[0].mxu0 %v706
      %v839 = vpop.f32.mrb[0].mxu0
      %v840 = vadd.f32 0.0, %v839
      %v841 = vpop.f32.mrb[0].mxu0
      %v842 = vadd.f32 0.0, %v841
      %v843 = vpop.f32.mrb[0].mxu0
      %v844 = vadd.f32 0.0, %v843
      %v845 = vpop.f32.mrb[0].mxu0
      %v846 = vadd.f32 0.0, %v845
      %847 = vmatprep.mubr.bf16.mxu0 0
      %848 = vmatmul.mubr.bf16.gmra.mrb[0].mxu0 %v707
      %v849 = vpop.f32.mrb[0].mxu0
      %v850 = vadd.f32 0.0, %v849
      %v851 = vpop.f32.mrb[0].mxu0
      %v852 = vadd.f32 0.0, %v851
      %v853 = vpop.f32.mrb[0].mxu0
      %v854 = vadd.f32 0.0, %v853
      %v855 = vpop.f32.mrb[0].mxu0
      %v856 = vadd.f32 0.0, %v855
      %857 = vdwg.mxu0
      %v858 = vadd.f32 %v694, %v840
      %v859 = vadd.f32 %v695, %v842
      %v860 = vadd.f32 %v696, %v844
      %v861 = vadd.f32 %v697, %v846
      %v862 = vadd.f32 %v698, %v850
      %v863 = vadd.f32 %v699, %v852
      %v864 = vadd.f32 %v700, %v854
      %v865 = vadd.f32 %v701, %v856
      %v866 = vld [vmem:[%s220 + $0x2] sm:$0xff]
      %v867 = vld [vmem:[%s220 + $0x12] sm:$0xff]
      %v868 = vld [vmem:[%s220 + $0x22] sm:$0xff]
      %v869 = vld [vmem:[%s220 + $0x32] sm:$0xff]
      %v870 = vpack.c.bf16 %v867, %v866
      %v871 = vpack.c.bf16 %v869, %v868
      %s872 = scalar_lea.vmem %s1, 512
      %v873 = vld [vmem:[%s872] sm:$0xff]
      %v874 = vld [vmem:[%s872 + $0x8] sm:$0xff]
      %v875 = vld [vmem:[%s872 + $0x10] sm:$0xff]
      %v876 = vld [vmem:[%s872 + $0x18] sm:$0xff]
      %v877 = vld [vmem:[%s872 + $0x20] sm:$0xff]
      %v878 = vld [vmem:[%s872 + $0x28] sm:$0xff]
      %v879 = vld [vmem:[%s872 + $0x30] sm:$0xff]
      %v880 = vld [vmem:[%s872 + $0x38] sm:$0xff]
      %v881 = vld [vmem:[%s872 + $0x40] sm:$0xff]
      %v882 = vld [vmem:[%s872 + $0x48] sm:$0xff]
      %v883 = vld [vmem:[%s872 + $0x50] sm:$0xff]
      %v884 = vld [vmem:[%s872 + $0x58] sm:$0xff]
      %v885 = vld [vmem:[%s872 + $0x60] sm:$0xff]
      %v886 = vld [vmem:[%s872 + $0x68] sm:$0xff]
      %v887 = vld [vmem:[%s872 + $0x70] sm:$0xff]
      %v888 = vld [vmem:[%s872 + $0x78] sm:$0xff]
      %v905 = vunpack.c.l.b16 %v873
      %v906 = vunpack.c.h.b16 %v873
      %v907 = vunpack.c.l.b16 %v874
      %v908 = vunpack.c.h.b16 %v874
      %v909 = vunpack.c.l.b16 %v875
      %v910 = vunpack.c.h.b16 %v875
      %v911 = vunpack.c.l.b16 %v876
      %v912 = vunpack.c.h.b16 %v876
      %v913 = vunpack.c.l.b16 %v877
      %v914 = vunpack.c.h.b16 %v877
      %v915 = vunpack.c.l.b16 %v878
      %v916 = vunpack.c.h.b16 %v878
      %v917 = vunpack.c.l.b16 %v879
      %v918 = vunpack.c.h.b16 %v879
      %v919 = vunpack.c.l.b16 %v880
      %v920 = vunpack.c.h.b16 %v880
      %v921 = vunpack.c.l.b16 %v881
      %v922 = vunpack.c.h.b16 %v881
      %v923 = vunpack.c.l.b16 %v882
      %v924 = vunpack.c.h.b16 %v882
      %v925 = vunpack.c.l.b16 %v883
      %v926 = vunpack.c.h.b16 %v883
      %v927 = vunpack.c.l.b16 %v884
      %v928 = vunpack.c.h.b16 %v884
      %v929 = vunpack.c.l.b16 %v885
      %v930 = vunpack.c.h.b16 %v885
      %v931 = vunpack.c.l.b16 %v886
      %v932 = vunpack.c.h.b16 %v886
      %v933 = vunpack.c.l.b16 %v887
      %v934 = vunpack.c.h.b16 %v887
      %v935 = vunpack.c.l.b16 %v888
      %v936 = vunpack.c.h.b16 %v888
      %v937 = vpack.c.b16 %v907, %v905
      %v938 = vpack.c.b16 %v908, %v906
      %v939 = vpack.c.b16 %v911, %v909
      %v940 = vpack.c.b16 %v912, %v910
      %v941 = vpack.c.b16 %v915, %v913
      %v942 = vpack.c.b16 %v916, %v914
      %v943 = vpack.c.b16 %v919, %v917
      %v944 = vpack.c.b16 %v920, %v918
      %v945 = vpack.c.b16 %v923, %v921
      %v946 = vpack.c.b16 %v924, %v922
      %v947 = vpack.c.b16 %v927, %v925
      %v948 = vpack.c.b16 %v928, %v926
      %v949 = vpack.c.b16 %v931, %v929
      %v950 = vpack.c.b16 %v932, %v930
      %v951 = vpack.c.b16 %v935, %v933
      %v952 = vpack.c.b16 %v936, %v934
      %969 = vmatprep.subr.bf16.mxu0 %v938
      %970 = vmatpush1.bf16.msra.mxu0 %v937
      %971 = vmatprep.subr.bf16.mxu0 %v940
      %972 = vmatpush1.bf16.msra.mxu0 %v939
      %973 = vmatprep.subr.bf16.mxu0 %v942
      %974 = vmatpush1.bf16.msra.mxu0 %v941
      %975 = vmatprep.subr.bf16.mxu0 %v944
      %976 = vmatpush1.bf16.msra.mxu0 %v943
      %977 = vmatprep.subr.bf16.mxu0 %v946
      %978 = vmatpush1.bf16.msra.mxu0 %v945
      %979 = vmatprep.subr.bf16.mxu0 %v948
      %980 = vmatpush1.bf16.msra.mxu0 %v947
      %981 = vmatprep.subr.bf16.mxu0 %v950
      %982 = vmatpush1.bf16.msra.mxu0 %v949
      %983 = vmatprep.subr.bf16.mxu0 %v952
      %984 = vmatpush1.bf16.msra.mxu0 %v951
      %985 = vmatprep.subr.bf16.mxu0 0
      %986 = vmatpush1.bf16.msra.mxu0 0
      %987 = vmatprep.subr.bf16.mxu0 0
      %988 = vmatpush1.bf16.msra.mxu0 0
      %989 = vmatprep.subr.bf16.mxu0 0
      %990 = vmatpush1.bf16.msra.mxu0 0
      %991 = vmatprep.subr.bf16.mxu0 0
      %992 = vmatpush1.bf16.msra.mxu0 0
      %993 = vmatprep.subr.bf16.mxu0 0
      %994 = vmatpush1.bf16.msra.mxu0 0
      %995 = vmatprep.subr.bf16.mxu0 0
      %996 = vmatpush1.bf16.msra.mxu0 0
      %997 = vmatprep.subr.bf16.mxu0 0
      %998 = vmatpush1.bf16.msra.mxu0 0
      %999 = vmatprep.subr.bf16.mxu0 0
      %1000 = vmatpush1.bf16.msra.mxu0 0
      %1001 = vmatprep.mubr.bf16.mxu0 0
      %1002 = vmatmul.mubr.bf16.gmra.mrb[0].mxu0 %v870
      %v1003 = vpop.f32.mrb[0].mxu0
      %v1004 = vadd.f32 0.0, %v1003
      %v1005 = vpop.f32.mrb[0].mxu0
      %v1006 = vadd.f32 0.0, %v1005
      %v1007 = vpop.f32.mrb[0].mxu0
      %v1008 = vadd.f32 0.0, %v1007
      %v1009 = vpop.f32.mrb[0].mxu0
      %v1010 = vadd.f32 0.0, %v1009
      %1011 = vmatprep.mubr.bf16.mxu0 0
      %1012 = vmatmul.mubr.bf16.gmra.mrb[0].mxu0 %v871
      %v1013 = vpop.f32.mrb[0].mxu0
      %v1014 = vadd.f32 0.0, %v1013
      %v1015 = vpop.f32.mrb[0].mxu0
      %v1016 = vadd.f32 0.0, %v1015
      %v1017 = vpop.f32.mrb[0].mxu0
      %v1018 = vadd.f32 0.0, %v1017
      %v1019 = vpop.f32.mrb[0].mxu0
      %v1020 = vadd.f32 0.0, %v1019
      %1021 = vdwg.mxu0
      %v1022 = vadd.f32 %v858, %v1004
      %v1023 = vadd.f32 %v859, %v1006
      %v1024 = vadd.f32 %v860, %v1008
      %v1025 = vadd.f32 %v861, %v1010
      %v1026 = vadd.f32 %v862, %v1014
      %v1027 = vadd.f32 %v863, %v1016
      %v1028 = vadd.f32 %v864, %v1018
      %v1029 = vadd.f32 %v865, %v1020
      %s1030 = scalar_lea.vmem %s220, 192
      %v1031 = vld [vmem:[%s1030] sm:$0xff]
      %v1032 = vld [vmem:[%s1030 + $0x10] sm:$0xff]
      %v1033 = vld [vmem:[%s1030 + $0x20] sm:$0xff]
      %v1034 = vld [vmem:[%s1030 + $0x30] sm:$0xff]
      %v1035 = vpack.c.bf16 %v1032, %v1031
      %v1036 = vpack.c.bf16 %v1034, %v1033
      %s1037 = scalar_lea.vmem %s1, 640
      %v1038 = vld [vmem:[%s1037] sm:$0xff]
      %v1039 = vld [vmem:[%s1037 + $0x8] sm:$0xff]
      %v1040 = vld [vmem:[%s1037 + $0x10] sm:$0xff]
      %v1041 = vld [vmem:[%s1037 + $0x18] sm:$0xff]
      %v1042 = vld [vmem:[%s1037 + $0x20] sm:$0xff]
      %v1043 = vld [vmem:[%s1037 + $0x28] sm:$0xff]
      %v1044 = vld [vmem:[%s1037 + $0x30] sm:$0xff]
      %v1045 = vld [vmem:[%s1037 + $0x38] sm:$0xff]
      %v1046 = vld [vmem:[%s1037 + $0x40] sm:$0xff]
      %v1047 = vld [vmem:[%s1037 + $0x48] sm:$0xff]
      %v1048 = vld [vmem:[%s1037 + $0x50] sm:$0xff]
      %v1049 = vld [vmem:[%s1037 + $0x58] sm:$0xff]
      %v1050 = vld [vmem:[%s1037 + $0x60] sm:$0xff]
      %v1051 = vld [vmem:[%s1037 + $0x68] sm:$0xff]
      %v1052 = vld [vmem:[%s1037 + $0x70] sm:$0xff]
      %v1053 = vld [vmem:[%s1037 + $0x78] sm:$0xff]
      %v1070 = vunpack.c.l.b16 %v1038
      %v1071 = vunpack.c.h.b16 %v1038
      %v1072 = vunpack.c.l.b16 %v1039
      %v1073 = vunpack.c.h.b16 %v1039
      %v1074 = vunpack.c.l.b16 %v1040
      %v1075 = vunpack.c.h.b16 %v1040
      %v1076 = vunpack.c.l.b16 %v1041
      %v1077 = vunpack.c.h.b16 %v1041
      %v1078 = vunpack.c.l.b16 %v1042
      %v1079 = vunpack.c.h.b16 %v1042
      %v1080 = vunpack.c.l.b16 %v1043
      %v1081 = vunpack.c.h.b16 %v1043
      %v1082 = vunpack.c.l.b16 %v1044
      %v1083 = vunpack.c.h.b16 %v1044
      %v1084 = vunpack.c.l.b16 %v1045
      %v1085 = vunpack.c.h.b16 %v1045
      %v1086 = vunpack.c.l.b16 %v1046
      %v1087 = vunpack.c.h.b16 %v1046
      %v1088 = vunpack.c.l.b16 %v1047
      %v1089 = vunpack.c.h.b16 %v1047
      %v1090 = vunpack.c.l.b16 %v1048
      %v1091 = vunpack.c.h.b16 %v1048
      %v1092 = vunpack.c.l.b16 %v1049
      %v1093 = vunpack.c.h.b16 %v1049
      %v1094 = vunpack.c.l.b16 %v1050
      %v1095 = vunpack.c.h.b16 %v1050
      %v1096 = vunpack.c.l.b16 %v1051
      %v1097 = vunpack.c.h.b16 %v1051
      %v1098 = vunpack.c.l.b16 %v1052
      %v1099 = vunpack.c.h.b16 %v1052
      %v1100 = vunpack.c.l.b16 %v1053
      %v1101 = vunpack.c.h.b16 %v1053
      %v1102 = vpack.c.b16 %v1072, %v1070
      %v1103 = vpack.c.b16 %v1073, %v1071
      %v1104 = vpack.c.b16 %v1076, %v1074
      %v1105 = vpack.c.b16 %v1077, %v1075
      %v1106 = vpack.c.b16 %v1080, %v1078
      %v1107 = vpack.c.b16 %v1081, %v1079
      %v1108 = vpack.c.b16 %v1084, %v1082
      %v1109 = vpack.c.b16 %v1085, %v1083
      %v1110 = vpack.c.b16 %v1088, %v1086
      %v1111 = vpack.c.b16 %v1089, %v1087
      %v1112 = vpack.c.b16 %v1092, %v1090
      %v1113 = vpack.c.b16 %v1093, %v1091
      %v1114 = vpack.c.b16 %v1096, %v1094
      %v1115 = vpack.c.b16 %v1097, %v1095
      %v1116 = vpack.c.b16 %v1100, %v1098
      %v1117 = vpack.c.b16 %v1101, %v1099
      %1134 = vmatprep.subr.bf16.mxu0 %v1103
      %1135 = vmatpush1.bf16.msra.mxu0 %v1102
      %1136 = vmatprep.subr.bf16.mxu0 %v1105
      %1137 = vmatpush1.bf16.msra.mxu0 %v1104
      %1138 = vmatprep.subr.bf16.mxu0 %v1107
      %1139 = vmatpush1.bf16.msra.mxu0 %v1106
      %1140 = vmatprep.subr.bf16.mxu0 %v1109
      %1141 = vmatpush1.bf16.msra.mxu0 %v1108
      %1142 = vmatprep.subr.bf16.mxu0 %v1111
      %1143 = vmatpush1.bf16.msra.mxu0 %v1110
      %1144 = vmatprep.subr.bf16.mxu0 %v1113
      %1145 = vmatpush1.bf16.msra.mxu0 %v1112
      %1146 = vmatprep.subr.bf16.mxu0 %v1115
      %1147 = vmatpush1.bf16.msra.mxu0 %v1114
      %1148 = vmatprep.subr.bf16.mxu0 %v1117
      %1149 = vmatpush1.bf16.msra.mxu0 %v1116
      %1150 = vmatprep.subr.bf16.mxu0 0
      %1151 = vmatpush1.bf16.msra.mxu0 0
      %1152 = vmatprep.subr.bf16.mxu0 0
      %1153 = vmatpush1.bf16.msra.mxu0 0
      %1154 = vmatprep.subr.bf16.mxu0 0
      %1155 = vmatpush1.bf16.msra.mxu0 0
      %1156 = vmatprep.subr.bf16.mxu0 0
      %1157 = vmatpush1.bf16.msra.mxu0 0
      %1158 = vmatprep.subr.bf16.mxu0 0
      %1159 = vmatpush1.bf16.msra.mxu0 0
      %1160 = vmatprep.subr.bf16.mxu0 0
      %1161 = vmatpush1.bf16.msra.mxu0 0
      %1162 = vmatprep.subr.bf16.mxu0 0
      %1163 = vmatpush1.bf16.msra.mxu0 0
      %1164 = vmatprep.subr.bf16.mxu0 0
      %1165 = vmatpush1.bf16.msra.mxu0 0
      %1166 = vmatprep.mubr.bf16.mxu0 0
      %1167 = vmatmul.mubr.bf16.gmra.mrb[0].mxu0 %v1035
      %v1168 = vpop.f32.mrb[0].mxu0
      %v1169 = vadd.f32 0.0, %v1168
      %v1170 = vpop.f32.mrb[0].mxu0
      %v1171 = vadd.f32 0.0, %v1170
      %v1172 = vpop.f32.mrb[0].mxu0
      %v1173 = vadd.f32 0.0, %v1172
      %v1174 = vpop.f32.mrb[0].mxu0
      %v1175 = vadd.f32 0.0, %v1174
      %1176 = vmatprep.mubr.bf16.mxu0 0
      %1177 = vmatmul.mubr.bf16.gmra.mrb[0].mxu0 %v1036
      %v1178 = vpop.f32.mrb[0].mxu0
      %v1179 = vadd.f32 0.0, %v1178
      %v1180 = vpop.f32.mrb[0].mxu0
      %v1181 = vadd.f32 0.0, %v1180
      %v1182 = vpop.f32.mrb[0].mxu0
      %v1183 = vadd.f32 0.0, %v1182
      %v1184 = vpop.f32.mrb[0].mxu0
      %v1185 = vadd.f32 0.0, %v1184
      %1186 = vdwg.mxu0
      %v1187 = vadd.f32 %v1022, %v1169
      %v1188 = vadd.f32 %v1023, %v1171
      %v1189 = vadd.f32 %v1024, %v1173
      %v1190 = vadd.f32 %v1025, %v1175
      %v1191 = vadd.f32 %v1026, %v1179
      %v1192 = vadd.f32 %v1027, %v1181
      %v1193 = vadd.f32 %v1028, %v1183
      %v1194 = vadd.f32 %v1029, %v1185
      %s1195 = scalar_lea.vmem %s220, 288
      %v1196 = vld [vmem:[%s1195] sm:$0xff]
      %v1197 = vld [vmem:[%s1195 + $0x10] sm:$0xff]
      %v1198 = vld [vmem:[%s1195 + $0x20] sm:$0xff]
      %v1199 = vld [vmem:[%s1195 + $0x30] sm:$0xff]
      %v1200 = vpack.c.bf16 %v1197, %v1196
      %v1201 = vpack.c.bf16 %v1199, %v1198
      %s1202 = scalar_lea.vmem %s1, 768
      %v1203 = vld [vmem:[%s1202] sm:$0xff]
      %v1204 = vld [vmem:[%s1202 + $0x8] sm:$0xff]
      %v1205 = vld [vmem:[%s1202 + $0x10] sm:$0xff]
      %v1206 = vld [vmem:[%s1202 + $0x18] sm:$0xff]
      %v1207 = vld [vmem:[%s1202 + $0x20] sm:$0xff]
      %v1208 = vld [vmem:[%s1202 + $0x28] sm:$0xff]
      %v1209 = vld [vmem:[%s1202 + $0x30] sm:$0xff]
      %v1210 = vld [vmem:[%s1202 + $0x38] sm:$0xff]
      %v1211 = vld [vmem:[%s1202 + $0x40] sm:$0xff]
      %v1212 = vld [vmem:[%s1202 + $0x48] sm:$0xff]
      %v1213 = vld [vmem:[%s1202 + $0x50] sm:$0xff]
      %v1214 = vld [vmem:[%s1202 + $0x58] sm:$0xff]
      %v1215 = vld [vmem:[%s1202 + $0x60] sm:$0xff]
      %v1216 = vld [vmem:[%s1202 + $0x68] sm:$0xff]
      %v1217 = vld [vmem:[%s1202 + $0x70] sm:$0xff]
      %v1218 = vld [vmem:[%s1202 + $0x78] sm:$0xff]
      %v1235 = vunpack.c.l.b16 %v1203
      %v1236 = vunpack.c.h.b16 %v1203
      %v1237 = vunpack.c.l.b16 %v1204
      %v1238 = vunpack.c.h.b16 %v1204
      %v1239 = vunpack.c.l.b16 %v1205
      %v1240 = vunpack.c.h.b16 %v1205
      %v1241 = vunpack.c.l.b16 %v1206
      %v1242 = vunpack.c.h.b16 %v1206
      %v1243 = vunpack.c.l.b16 %v1207
      %v1244 = vunpack.c.h.b16 %v1207
      %v1245 = vunpack.c.l.b16 %v1208
      %v1246 = vunpack.c.h.b16 %v1208
      %v1247 = vunpack.c.l.b16 %v1209
      %v1248 = vunpack.c.h.b16 %v1209
      %v1249 = vunpack.c.l.b16 %v1210
      %v1250 = vunpack.c.h.b16 %v1210
      %v1251 = vunpack.c.l.b16 %v1211
      %v1252 = vunpack.c.h.b16 %v1211
      %v1253 = vunpack.c.l.b16 %v1212
      %v1254 = vunpack.c.h.b16 %v1212
      %v1255 = vunpack.c.l.b16 %v1213
      %v1256 = vunpack.c.h.b16 %v1213
      %v1257 = vunpack.c.l.b16 %v1214
      %v1258 = vunpack.c.h.b16 %v1214
      %v1259 = vunpack.c.l.b16 %v1215
      %v1260 = vunpack.c.h.b16 %v1215
      %v1261 = vunpack.c.l.b16 %v1216
      %v1262 = vunpack.c.h.b16 %v1216
      %v1263 = vunpack.c.l.b16 %v1217
      %v1264 = vunpack.c.h.b16 %v1217
      %v1265 = vunpack.c.l.b16 %v1218
      %v1266 = vunpack.c.h.b16 %v1218
      %v1267 = vpack.c.b16 %v1237, %v1235
      %v1268 = vpack.c.b16 %v1238, %v1236
      %v1269 = vpack.c.b16 %v1241, %v1239
      %v1270 = vpack.c.b16 %v1242, %v1240
      %v1271 = vpack.c.b16 %v1245, %v1243
      %v1272 = vpack.c.b16 %v1246, %v1244
      %v1273 = vpack.c.b16 %v1249, %v1247
      %v1274 = vpack.c.b16 %v1250, %v1248
      %v1275 = vpack.c.b16 %v1253, %v1251
      %v1276 = vpack.c.b16 %v1254, %v1252
      %v1277 = vpack.c.b16 %v1257, %v1255
      %v1278 = vpack.c.b16 %v1258, %v1256
      %v1279 = vpack.c.b16 %v1261, %v1259
      %v1280 = vpack.c.b16 %v1262, %v1260
      %v1281 = vpack.c.b16 %v1265, %v1263
      %v1282 = vpack.c.b16 %v1266, %v1264
      %1299 = vmatprep.subr.bf16.mxu0 %v1268
      %1300 = vmatpush1.bf16.msra.mxu0 %v1267
      %1301 = vmatprep.subr.bf16.mxu0 %v1270
      %1302 = vmatpush1.bf16.msra.mxu0 %v1269
      %1303 = vmatprep.subr.bf16.mxu0 %v1272
      %1304 = vmatpush1.bf16.msra.mxu0 %v1271
      %1305 = vmatprep.subr.bf16.mxu0 %v1274
      %1306 = vmatpush1.bf16.msra.mxu0 %v1273
      %1307 = vmatprep.subr.bf16.mxu0 %v1276
      %1308 = vmatpush1.bf16.msra.mxu0 %v1275
      %1309 = vmatprep.subr.bf16.mxu0 %v1278
      %1310 = vmatpush1.bf16.msra.mxu0 %v1277
      %1311 = vmatprep.subr.bf16.mxu0 %v1280
      %1312 = vmatpush1.bf16.msra.mxu0 %v1279
      %1313 = vmatprep.subr.bf16.mxu0 %v1282
      %1314 = vmatpush1.bf16.msra.mxu0 %v1281
      %1315 = vmatprep.subr.bf16.mxu0 0
      %1316 = vmatpush1.bf16.msra.mxu0 0
      %1317 = vmatprep.subr.bf16.mxu0 0
      %1318 = vmatpush1.bf16.msra.mxu0 0
      %1319 = vmatprep.subr.bf16.mxu0 0
      %1320 = vmatpush1.bf16.msra.mxu0 0
      %1321 = vmatprep.subr.bf16.mxu0 0
      %1322 = vmatpush1.bf16.msra.mxu0 0
      %1323 = vmatprep.subr.bf16.mxu0 0
      %1324 = vmatpush1.bf16.msra.mxu0 0
      %1325 = vmatprep.subr.bf16.mxu0 0
      %1326 = vmatpush1.bf16.msra.mxu0 0
      %1327 = vmatprep.subr.bf16.mxu0 0
      %1328 = vmatpush1.bf16.msra.mxu0 0
      %1329 = vmatprep.subr.bf16.mxu0 0
      %1330 = vmatpush1.bf16.msra.mxu0 0
      %1331 = vmatprep.mubr.bf16.mxu0 0
      %1332 = vmatmul.mubr.bf16.gmra.mrb[0].mxu0 %v1200
      %v1333 = vpop.f32.mrb[0].mxu0
      %v1334 = vadd.f32 0.0, %v1333
      %v1335 = vpop.f32.mrb[0].mxu0
      %v1336 = vadd.f32 0.0, %v1335
      %v1337 = vpop.f32.mrb[0].mxu0
      %v1338 = vadd.f32 0.0, %v1337
      %v1339 = vpop.f32.mrb[0].mxu0
      %v1340 = vadd.f32 0.0, %v1339
      %1341 = vmatprep.mubr.bf16.mxu0 0
      %1342 = vmatmul.mubr.bf16.gmra.mrb[0].mxu0 %v1201
      %v1343 = vpop.f32.mrb[0].mxu0
      %v1344 = vadd.f32 0.0, %v1343
      %v1345 = vpop.f32.mrb[0].mxu0
      %v1346 = vadd.f32 0.0, %v1345
      %v1347 = vpop.f32.mrb[0].mxu0
      %v1348 = vadd.f32 0.0, %v1347
      %v1349 = vpop.f32.mrb[0].mxu0
      %v1350 = vadd.f32 0.0, %v1349
      %1351 = vdwg.mxu0
      %v1352 = vadd.f32 %v1187, %v1334
      %v1353 = vadd.f32 %v1188, %v1336
      %v1354 = vadd.f32 %v1189, %v1338
      %v1355 = vadd.f32 %v1190, %v1340
      %v1356 = vadd.f32 %v1191, %v1344
      %v1357 = vadd.f32 %v1192, %v1346
      %v1358 = vadd.f32 %v1193, %v1348
      %v1359 = vadd.f32 %v1194, %v1350
      %v1360 = vld [vmem:[%s1030 + $0x1] sm:$0xff]
      %v1361 = vld [vmem:[%s1030 + $0x11] sm:$0xff]
      %v1362 = vld [vmem:[%s1030 + $0x21] sm:$0xff]
      %v1363 = vld [vmem:[%s1030 + $0x31] sm:$0xff]
      %v1364 = vpack.c.bf16 %v1361, %v1360
      %v1365 = vpack.c.bf16 %v1363, %v1362
      %s1366 = scalar_lea.vmem %s1, 896
      %v1367 = vld [vmem:[%s1366] sm:$0xff]
      %v1368 = vld [vmem:[%s1366 + $0x8] sm:$0xff]
      %v1369 = vld [vmem:[%s1366 + $0x10] sm:$0xff]
      %v1370 = vld [vmem:[%s1366 + $0x18] sm:$0xff]
      %v1371 = vld [vmem:[%s1366 + $0x20] sm:$0xff]
      %v1372 = vld [vmem:[%s1366 + $0x28] sm:$0xff]
      %v1373 = vld [vmem:[%s1366 + $0x30] sm:$0xff]
      %v1374 = vld [vmem:[%s1366 + $0x38] sm:$0xff]
      %v1375 = vld [vmem:[%s1366 + $0x40] sm:$0xff]
      %v1376 = vld [vmem:[%s1366 + $0x48] sm:$0xff]
      %v1377 = vld [vmem:[%s1366 + $0x50] sm:$0xff]
      %v1378 = vld [vmem:[%s1366 + $0x58] sm:$0xff]
      %v1379 = vld [vmem:[%s1366 + $0x60] sm:$0xff]
      %v1380 = vld [vmem:[%s1366 + $0x68] sm:$0xff]
      %v1381 = vld [vmem:[%s1366 + $0x70] sm:$0xff]
      %v1382 = vld [vmem:[%s1366 + $0x78] sm:$0xff]
      %v1399 = vunpack.c.l.b16 %v1367
      %v1400 = vunpack.c.h.b16 %v1367
      %v1401 = vunpack.c.l.b16 %v1368
      %v1402 = vunpack.c.h.b16 %v1368
      %v1403 = vunpack.c.l.b16 %v1369
      %v1404 = vunpack.c.h.b16 %v1369
      %v1405 = vunpack.c.l.b16 %v1370
      %v1406 = vunpack.c.h.b16 %v1370
      %v1407 = vunpack.c.l.b16 %v1371
      %v1408 = vunpack.c.h.b16 %v1371
      %v1409 = vunpack.c.l.b16 %v1372
      %v1410 = vunpack.c.h.b16 %v1372
      %v1411 = vunpack.c.l.b16 %v1373
      %v1412 = vunpack.c.h.b16 %v1373
      %v1413 = vunpack.c.l.b16 %v1374
      %v1414 = vunpack.c.h.b16 %v1374
      %v1415 = vunpack.c.l.b16 %v1375
      %v1416 = vunpack.c.h.b16 %v1375
      %v1417 = vunpack.c.l.b16 %v1376
      %v1418 = vunpack.c.h.b16 %v1376
      %v1419 = vunpack.c.l.b16 %v1377
      %v1420 = vunpack.c.h.b16 %v1377
      %v1421 = vunpack.c.l.b16 %v1378
      %v1422 = vunpack.c.h.b16 %v1378
      %v1423 = vunpack.c.l.b16 %v1379
      %v1424 = vunpack.c.h.b16 %v1379
      %v1425 = vunpack.c.l.b16 %v1380
      %v1426 = vunpack.c.h.b16 %v1380
      %v1427 = vunpack.c.l.b16 %v1381
      %v1428 = vunpack.c.h.b16 %v1381
      %v1429 = vunpack.c.l.b16 %v1382
      %v1430 = vunpack.c.h.b16 %v1382
      %v1431 = vpack.c.b16 %v1401, %v1399
      %v1432 = vpack.c.b16 %v1402, %v1400
      %v1433 = vpack.c.b16 %v1405, %v1403
      %v1434 = vpack.c.b16 %v1406, %v1404
      %v1435 = vpack.c.b16 %v1409, %v1407
      %v1436 = vpack.c.b16 %v1410, %v1408
      %v1437 = vpack.c.b16 %v1413, %v1411
      %v1438 = vpack.c.b16 %v1414, %v1412
      %v1439 = vpack.c.b16 %v1417, %v1415
      %v1440 = vpack.c.b16 %v1418, %v1416
      %v1441 = vpack.c.b16 %v1421, %v1419
      %v1442 = vpack.c.b16 %v1422, %v1420
      %v1443 = vpack.c.b16 %v1425, %v1423
      %v1444 = vpack.c.b16 %v1426, %v1424
      %v1445 = vpack.c.b16 %v1429, %v1427
      %v1446 = vpack.c.b16 %v1430, %v1428
      %1463 = vmatprep.subr.bf16.mxu0 %v1432
      %1464 = vmatpush1.bf16.msra.mxu0 %v1431
      %1465 = vmatprep.subr.bf16.mxu0 %v1434
      %1466 = vmatpush1.bf16.msra.mxu0 %v1433
      %1467 = vmatprep.subr.bf16.mxu0 %v1436
      %1468 = vmatpush1.bf16.msra.mxu0 %v1435
      %1469 = vmatprep.subr.bf16.mxu0 %v1438
      %1470 = vmatpush1.bf16.msra.mxu0 %v1437
      %1471 = vmatprep.subr.bf16.mxu0 %v1440
      %1472 = vmatpush1.bf16.msra.mxu0 %v1439
      %1473 = vmatprep.subr.bf16.mxu0 %v1442
      %1474 = vmatpush1.bf16.msra.mxu0 %v1441
      %1475 = vmatprep.subr.bf16.mxu0 %v1444
      %1476 = vmatpush1.bf16.msra.mxu0 %v1443
      %1477 = vmatprep.subr.bf16.mxu0 %v1446
      %1478 = vmatpush1.bf16.msra.mxu0 %v1445
      %1479 = vmatprep.subr.bf16.mxu0 0
      %1480 = vmatpush1.bf16.msra.mxu0 0
      %1481 = vmatprep.subr.bf16.mxu0 0
      %1482 = vmatpush1.bf16.msra.mxu0 0
      %1483 = vmatprep.subr.bf16.mxu0 0
      %1484 = vmatpush1.bf16.msra.mxu0 0
      %1485 = vmatprep.subr.bf16.mxu0 0
      %1486 = vmatpush1.bf16.msra.mxu0 0
      %1487 = vmatprep.subr.bf16.mxu0 0
      %1488 = vmatpush1.bf16.msra.mxu0 0
      %1489 = vmatprep.subr.bf16.mxu0 0
      %1490 = vmatpush1.bf16.msra.mxu0 0
      %1491 = vmatprep.subr.bf16.mxu0 0
      %1492 = vmatpush1.bf16.msra.mxu0 0
      %1493 = vmatprep.subr.bf16.mxu0 0
      %1494 = vmatpush1.bf16.msra.mxu0 0
      %1495 = vmatprep.mubr.bf16.mxu0 0
      %1496 = vmatmul.mubr.bf16.gmra.mrb[0].mxu0 %v1364
      %v1497 = vpop.f32.mrb[0].mxu0
      %v1498 = vadd.f32 0.0, %v1497
      %v1499 = vpop.f32.mrb[0].mxu0
      %v1500 = vadd.f32 0.0, %v1499
      %v1501 = vpop.f32.mrb[0].mxu0
      %v1502 = vadd.f32 0.0, %v1501
      %v1503 = vpop.f32.mrb[0].mxu0
      %v1504 = vadd.f32 0.0, %v1503
      %1505 = vmatprep.mubr.bf16.mxu0 0
      %1506 = vmatmul.mubr.bf16.gmra.mrb[0].mxu0 %v1365
      %v1507 = vpop.f32.mrb[0].mxu0
      %v1508 = vadd.f32 0.0, %v1507
      %v1509 = vpop.f32.mrb[0].mxu0
      %v1510 = vadd.f32 0.0, %v1509
      %v1511 = vpop.f32.mrb[0].mxu0
      %v1512 = vadd.f32 0.0, %v1511
      %v1513 = vpop.f32.mrb[0].mxu0
      %v1514 = vadd.f32 0.0, %v1513
      %1515 = vdwg.mxu0
      %v1516 = vadd.f32 %v1352, %v1498
      %v1517 = vadd.f32 %v1353, %v1500
      %v1518 = vadd.f32 %v1354, %v1502
      %v1519 = vadd.f32 %v1355, %v1504
      %v1520 = vadd.f32 %v1356, %v1508
      %v1521 = vadd.f32 %v1357, %v1510
      %v1522 = vadd.f32 %v1358, %v1512
      %v1523 = vadd.f32 %v1359, %v1514
      %v1524 = vld [vmem:[%s1195 + $0x1] sm:$0xff]
      %v1525 = vld [vmem:[%s1195 + $0x11] sm:$0xff]
      %v1526 = vld [vmem:[%s1195 + $0x21] sm:$0xff]
      %v1527 = vld [vmem:[%s1195 + $0x31] sm:$0xff]
      %v1528 = vpack.c.bf16 %v1525, %v1524
      %v1529 = vpack.c.bf16 %v1527, %v1526
      %s1530 = scalar_lea.vmem %s1, 1024
      %v1531 = vld [vmem:[%s1530] sm:$0xff]
      %v1532 = vld [vmem:[%s1530 + $0x8] sm:$0xff]
      %v1533 = vld [vmem:[%s1530 + $0x10] sm:$0xff]
      %v1534 = vld [vmem:[%s1530 + $0x18] sm:$0xff]
      %v1535 = vld [vmem:[%s1530 + $0x20] sm:$0xff]
      %v1536 = vld [vmem:[%s1530 + $0x28] sm:$0xff]
      %v1537 = vld [vmem:[%s1530 + $0x30] sm:$0xff]
      %v1538 = vld [vmem:[%s1530 + $0x38] sm:$0xff]
      %v1539 = vld [vmem:[%s1530 + $0x40] sm:$0xff]
      %v1540 = vld [vmem:[%s1530 + $0x48] sm:$0xff]
      %v1541 = vld [vmem:[%s1530 + $0x50] sm:$0xff]
      %v1542 = vld [vmem:[%s1530 + $0x58] sm:$0xff]
      %v1543 = vld [vmem:[%s1530 + $0x60] sm:$0xff]
      %v1544 = vld [vmem:[%s1530 + $0x68] sm:$0xff]
      %v1545 = vld [vmem:[%s1530 + $0x70] sm:$0xff]
      %v1546 = vld [vmem:[%s1530 + $0x78] sm:$0xff]
      %v1563 = vunpack.c.l.b16 %v1531
      %v1564 = vunpack.c.h.b16 %v1531
      %v1565 = vunpack.c.l.b16 %v1532
      %v1566 = vunpack.c.h.b16 %v1532
      %v1567 = vunpack.c.l.b16 %v1533
      %v1568 = vunpack.c.h.b16 %v1533
      %v1569 = vunpack.c.l.b16 %v1534
      %v1570 = vunpack.c.h.b16 %v1534
      %v1571 = vunpack.c.l.b16 %v1535
      %v1572 = vunpack.c.h.b16 %v1535
      %v1573 = vunpack.c.l.b16 %v1536
      %v1574 = vunpack.c.h.b16 %v1536
      %v1575 = vunpack.c.l.b16 %v1537
      %v1576 = vunpack.c.h.b16 %v1537
      %v1577 = vunpack.c.l.b16 %v1538
      %v1578 = vunpack.c.h.b16 %v1538
      %v1579 = vunpack.c.l.b16 %v1539
      %v1580 = vunpack.c.h.b16 %v1539
      %v1581 = vunpack.c.l.b16 %v1540
      %v1582 = vunpack.c.h.b16 %v1540
      %v1583 = vunpack.c.l.b16 %v1541
      %v1584 = vunpack.c.h.b16 %v1541
      %v1585 = vunpack.c.l.b16 %v1542
      %v1586 = vunpack.c.h.b16 %v1542
      %v1587 = vunpack.c.l.b16 %v1543
      %v1588 = vunpack.c.h.b16 %v1543
      %v1589 = vunpack.c.l.b16 %v1544
      %v1590 = vunpack.c.h.b16 %v1544
      %v1591 = vunpack.c.l.b16 %v1545
      %v1592 = vunpack.c.h.b16 %v1545
      %v1593 = vunpack.c.l.b16 %v1546
      %v1594 = vunpack.c.h.b16 %v1546
      %v1595 = vpack.c.b16 %v1565, %v1563
      %v1596 = vpack.c.b16 %v1566, %v1564
      %v1597 = vpack.c.b16 %v1569, %v1567
      %v1598 = vpack.c.b16 %v1570, %v1568
      %v1599 = vpack.c.b16 %v1573, %v1571
      %v1600 = vpack.c.b16 %v1574, %v1572
      %v1601 = vpack.c.b16 %v1577, %v1575
      %v1602 = vpack.c.b16 %v1578, %v1576
      %v1603 = vpack.c.b16 %v1581, %v1579
      %v1604 = vpack.c.b16 %v1582, %v1580
      %v1605 = vpack.c.b16 %v1585, %v1583
      %v1606 = vpack.c.b16 %v1586, %v1584
      %v1607 = vpack.c.b16 %v1589, %v1587
      %v1608 = vpack.c.b16 %v1590, %v1588
      %v1609 = vpack.c.b16 %v1593, %v1591
      %v1610 = vpack.c.b16 %v1594, %v1592
      %1627 = vmatprep.subr.bf16.mxu0 %v1596
      %1628 = vmatpush1.bf16.msra.mxu0 %v1595
      %1629 = vmatprep.subr.bf16.mxu0 %v1598
      %1630 = vmatpush1.bf16.msra.mxu0 %v1597
      %1631 = vmatprep.subr.bf16.mxu0 %v1600
      %1632 = vmatpush1.bf16.msra.mxu0 %v1599
      %1633 = vmatprep.subr.bf16.mxu0 %v1602
      %1634 = vmatpush1.bf16.msra.mxu0 %v1601
      %1635 = vmatprep.subr.bf16.mxu0 %v1604
      %1636 = vmatpush1.bf16.msra.mxu0 %v1603
      %1637 = vmatprep.subr.bf16.mxu0 %v1606
      %1638 = vmatpush1.bf16.msra.mxu0 %v1605
      %1639 = vmatprep.subr.bf16.mxu0 %v1608
      %1640 = vmatpush1.bf16.msra.mxu0 %v1607
      %1641 = vmatprep.subr.bf16.mxu0 %v1610
      %1642 = vmatpush1.bf16.msra.mxu0 %v1609
      %1643 = vmatprep.subr.bf16.mxu0 0
      %1644 = vmatpush1.bf16.msra.mxu0 0
      %1645 = vmatprep.subr.bf16.mxu0 0
      %1646 = vmatpush1.bf16.msra.mxu0 0
      %1647 = vmatprep.subr.bf16.mxu0 0
      %1648 = vmatpush1.bf16.msra.mxu0 0
      %1649 = vmatprep.subr.bf16.mxu0 0
      %1650 = vmatpush1.bf16.msra.mxu0 0
      %1651 = vmatprep.subr.bf16.mxu0 0
      %1652 = vmatpush1.bf16.msra.mxu0 0
      %1653 = vmatprep.subr.bf16.mxu0 0
      %1654 = vmatpush1.bf16.msra.mxu0 0
      %1655 = vmatprep.subr.bf16.mxu0 0
      %1656 = vmatpush1.bf16.msra.mxu0 0
      %1657 = vmatprep.subr.bf16.mxu0 0
      %1658 = vmatpush1.bf16.msra.mxu0 0
      %1659 = vmatprep.mubr.bf16.mxu0 0
      %1660 = vmatmul.mubr.bf16.gmra.mrb[0].mxu0 %v1528
      %v1661 = vpop.f32.mrb[0].mxu0
      %v1662 = vadd.f32 0.0, %v1661
      %v1663 = vpop.f32.mrb[0].mxu0
      %v1664 = vadd.f32 0.0, %v1663
      %v1665 = vpop.f32.mrb[0].mxu0
      %v1666 = vadd.f32 0.0, %v1665
      %v1667 = vpop.f32.mrb[0].mxu0
      %v1668 = vadd.f32 0.0, %v1667
      %1669 = vmatprep.mubr.bf16.mxu0 0
      %1670 = vmatmul.mubr.bf16.gmra.mrb[0].mxu0 %v1529
      %v1671 = vpop.f32.mrb[0].mxu0
      %v1672 = vadd.f32 0.0, %v1671
      %v1673 = vpop.f32.mrb[0].mxu0
      %v1674 = vadd.f32 0.0, %v1673
      %v1675 = vpop.f32.mrb[0].mxu0
      %v1676 = vadd.f32 0.0, %v1675
      %v1677 = vpop.f32.mrb[0].mxu0
      %v1678 = vadd.f32 0.0, %v1677
      %1679 = vdwg.mxu0
      %v1680 = vadd.f32 %v1516, %v1662
      %v1681 = vadd.f32 %v1517, %v1664
      %v1682 = vadd.f32 %v1518, %v1666
      %v1683 = vadd.f32 %v1519, %v1668
      %v1684 = vadd.f32 %v1520, %v1672
      %v1685 = vadd.f32 %v1521, %v1674
      %v1686 = vadd.f32 %v1522, %v1676
      %v1687 = vadd.f32 %v1523, %v1678
      %v1688 = vld [vmem:[%s1030 + $0x2] sm:$0xff]
      %v1689 = vld [vmem:[%s1030 + $0x12] sm:$0xff]
      %v1690 = vld [vmem:[%s1030 + $0x22] sm:$0xff]
      %v1691 = vld [vmem:[%s1030 + $0x32] sm:$0xff]
      %v1692 = vpack.c.bf16 %v1689, %v1688
      %v1693 = vpack.c.bf16 %v1691, %v1690
      %s1694 = scalar_lea.vmem %s1, 1152
      %v1695 = vld [vmem:[%s1694] sm:$0xff]
      %v1696 = vld [vmem:[%s1694 + $0x8] sm:$0xff]
      %v1697 = vld [vmem:[%s1694 + $0x10] sm:$0xff]
      %v1698 = vld [vmem:[%s1694 + $0x18] sm:$0xff]
      %v1699 = vld [vmem:[%s1694 + $0x20] sm:$0xff]
      %v1700 = vld [vmem:[%s1694 + $0x28] sm:$0xff]
      %v1701 = vld [vmem:[%s1694 + $0x30] sm:$0xff]
      %v1702 = vld [vmem:[%s1694 + $0x38] sm:$0xff]
      %v1703 = vld [vmem:[%s1694 + $0x40] sm:$0xff]
      %v1704 = vld [vmem:[%s1694 + $0x48] sm:$0xff]
      %v1705 = vld [vmem:[%s1694 + $0x50] sm:$0xff]
      %v1706 = vld [vmem:[%s1694 + $0x58] sm:$0xff]
      %v1707 = vld [vmem:[%s1694 + $0x60] sm:$0xff]
      %v1708 = vld [vmem:[%s1694 + $0x68] sm:$0xff]
      %v1709 = vld [vmem:[%s1694 + $0x70] sm:$0xff]
      %v1710 = vld [vmem:[%s1694 + $0x78] sm:$0xff]
      %v1727 = vunpack.c.l.b16 %v1695
      %v1728 = vunpack.c.h.b16 %v1695
      %v1729 = vunpack.c.l.b16 %v1696
      %v1730 = vunpack.c.h.b16 %v1696
      %v1731 = vunpack.c.l.b16 %v1697
      %v1732 = vunpack.c.h.b16 %v1697
      %v1733 = vunpack.c.l.b16 %v1698
      %v1734 = vunpack.c.h.b16 %v1698
      %v1735 = vunpack.c.l.b16 %v1699
      %v1736 = vunpack.c.h.b16 %v1699
      %v1737 = vunpack.c.l.b16 %v1700
      %v1738 = vunpack.c.h.b16 %v1700
      %v1739 = vunpack.c.l.b16 %v1701
      %v1740 = vunpack.c.h.b16 %v1701
      %v1741 = vunpack.c.l.b16 %v1702
      %v1742 = vunpack.c.h.b16 %v1702
      %v1743 = vunpack.c.l.b16 %v1703
      %v1744 = vunpack.c.h.b16 %v1703
      %v1745 = vunpack.c.l.b16 %v1704
      %v1746 = vunpack.c.h.b16 %v1704
      %v1747 = vunpack.c.l.b16 %v1705
      %v1748 = vunpack.c.h.b16 %v1705
      %v1749 = vunpack.c.l.b16 %v1706
      %v1750 = vunpack.c.h.b16 %v1706
      %v1751 = vunpack.c.l.b16 %v1707
      %v1752 = vunpack.c.h.b16 %v1707
      %v1753 = vunpack.c.l.b16 %v1708
      %v1754 = vunpack.c.h.b16 %v1708
      %v1755 = vunpack.c.l.b16 %v1709
      %v1756 = vunpack.c.h.b16 %v1709
      %v1757 = vunpack.c.l.b16 %v1710
      %v1758 = vunpack.c.h.b16 %v1710
      %v1759 = vpack.c.b16 %v1729, %v1727
      %v1760 = vpack.c.b16 %v1730, %v1728
      %v1761 = vpack.c.b16 %v1733, %v1731
      %v1762 = vpack.c.b16 %v1734, %v1732
      %v1763 = vpack.c.b16 %v1737, %v1735
      %v1764 = vpack.c.b16 %v1738, %v1736
      %v1765 = vpack.c.b16 %v1741, %v1739
      %v1766 = vpack.c.b16 %v1742, %v1740
      %v1767 = vpack.c.b16 %v1745, %v1743
      %v1768 = vpack.c.b16 %v1746, %v1744
      %v1769 = vpack.c.b16 %v1749, %v1747
      %v1770 = vpack.c.b16 %v1750, %v1748
      %v1771 = vpack.c.b16 %v1753, %v1751
      %v1772 = vpack.c.b16 %v1754, %v1752
      %v1773 = vpack.c.b16 %v1757, %v1755
      %v1774 = vpack.c.b16 %v1758, %v1756
      %1791 = vmatprep.subr.bf16.mxu0 %v1760
      %1792 = vmatpush1.bf16.msra.mxu0 %v1759
      %1793 = vmatprep.subr.bf16.mxu0 %v1762
      %1794 = vmatpush1.bf16.msra.mxu0 %v1761
      %1795 = vmatprep.subr.bf16.mxu0 %v1764
      %1796 = vmatpush1.bf16.msra.mxu0 %v1763
      %1797 = vmatprep.subr.bf16.mxu0 %v1766
      %1798 = vmatpush1.bf16.msra.mxu0 %v1765
      %1799 = vmatprep.subr.bf16.mxu0 %v1768
      %1800 = vmatpush1.bf16.msra.mxu0 %v1767
      %1801 = vmatprep.subr.bf16.mxu0 %v1770
      %1802 = vmatpush1.bf16.msra.mxu0 %v1769
      %1803 = vmatprep.subr.bf16.mxu0 %v1772
      %1804 = vmatpush1.bf16.msra.mxu0 %v1771
      %1805 = vmatprep.subr.bf16.mxu0 %v1774
      %1806 = vmatpush1.bf16.msra.mxu0 %v1773
      %1807 = vmatprep.subr.bf16.mxu0 0
      %1808 = vmatpush1.bf16.msra.mxu0 0
      %1809 = vmatprep.subr.bf16.mxu0 0
      %1810 = vmatpush1.bf16.msra.mxu0 0
      %1811 = vmatprep.subr.bf16.mxu0 0
      %1812 = vmatpush1.bf16.msra.mxu0 0
      %1813 = vmatprep.subr.bf16.mxu0 0
      %1814 = vmatpush1.bf16.msra.mxu0 0
      %1815 = vmatprep.subr.bf16.mxu0 0
      %1816 = vmatpush1.bf16.msra.mxu0 0
      %1817 = vmatprep.subr.bf16.mxu0 0
      %1818 = vmatpush1.bf16.msra.mxu0 0
      %1819 = vmatprep.subr.bf16.mxu0 0
      %1820 = vmatpush1.bf16.msra.mxu0 0
      %1821 = vmatprep.subr.bf16.mxu0 0
      %1822 = vmatpush1.bf16.msra.mxu0 0
      %1823 = vmatprep.mubr.bf16.mxu0 0
      %1824 = vmatmul.mubr.bf16.gmra.mrb[0].mxu0 %v1692
      %v1825 = vpop.f32.mrb[0].mxu0
      %v1826 = vadd.f32 0.0, %v1825
      %v1827 = vpop.f32.mrb[0].mxu0
      %v1828 = vadd.f32 0.0, %v1827
      %v1829 = vpop.f32.mrb[0].mxu0
      %v1830 = vadd.f32 0.0, %v1829
      %v1831 = vpop.f32.mrb[0].mxu0
      %v1832 = vadd.f32 0.0, %v1831
      %1833 = vmatprep.mubr.bf16.mxu0 0
      %1834 = vmatmul.mubr.bf16.gmra.mrb[0].mxu0 %v1693
      %v1835 = vpop.f32.mrb[0].mxu0
      %v1836 = vadd.f32 0.0, %v1835
      %v1837 = vpop.f32.mrb[0].mxu0
      %v1838 = vadd.f32 0.0, %v1837
      %v1839 = vpop.f32.mrb[0].mxu0
      %v1840 = vadd.f32 0.0, %v1839
      %v1841 = vpop.f32.mrb[0].mxu0
      %v1842 = vadd.f32 0.0, %v1841
      %1843 = vdwg.mxu0
      %v1844 = vadd.f32 %v1680, %v1826
      %v1845 = vadd.f32 %v1681, %v1828
      %v1846 = vadd.f32 %v1682, %v1830
      %v1847 = vadd.f32 %v1683, %v1832
      %v1848 = vadd.f32 %v1684, %v1836
      %v1849 = vadd.f32 %v1685, %v1838
      %v1850 = vadd.f32 %v1686, %v1840
      %v1851 = vadd.f32 %v1687, %v1842
      %s1852 = scalar_lea.vmem %s220, 16
      %v1853 = vld [vmem:[%s1852] sm:$0xff]
      %v1854 = vld [vmem:[%s1852 + $0x10] sm:$0xff]
      %v1855 = vld [vmem:[%s1852 + $0x20] sm:$0xff]
      %v1856 = vld [vmem:[%s1852 + $0x30] sm:$0xff]
      %v1857 = vpack.c.bf16 %v1854, %v1853
      %v1858 = vpack.c.bf16 %v1856, %v1855
      %s1859 = scalar_lea.vmem %s1, 1280
      %v1860 = vld [vmem:[%s1859] sm:$0xff]
      %v1861 = vld [vmem:[%s1859 + $0x8] sm:$0xff]
      %v1862 = vld [vmem:[%s1859 + $0x10] sm:$0xff]
      %v1863 = vld [vmem:[%s1859 + $0x18] sm:$0xff]
      %v1864 = vld [vmem:[%s1859 + $0x20] sm:$0xff]
      %v1865 = vld [vmem:[%s1859 + $0x28] sm:$0xff]
      %v1866 = vld [vmem:[%s1859 + $0x30] sm:$0xff]
      %v1867 = vld [vmem:[%s1859 + $0x38] sm:$0xff]
      %v1868 = vld [vmem:[%s1859 + $0x40] sm:$0xff]
      %v1869 = vld [vmem:[%s1859 + $0x48] sm:$0xff]
      %v1870 = vld [vmem:[%s1859 + $0x50] sm:$0xff]
      %v1871 = vld [vmem:[%s1859 + $0x58] sm:$0xff]
      %v1872 = vld [vmem:[%s1859 + $0x60] sm:$0xff]
      %v1873 = vld [vmem:[%s1859 + $0x68] sm:$0xff]
      %v1874 = vld [vmem:[%s1859 + $0x70] sm:$0xff]
      %v1875 = vld [vmem:[%s1859 + $0x78] sm:$0xff]
      %v1892 = vunpack.c.l.b16 %v1860
      %v1893 = vunpack.c.h.b16 %v1860
      %v1894 = vunpack.c.l.b16 %v1861
      %v1895 = vunpack.c.h.b16 %v1861
      %v1896 = vunpack.c.l.b16 %v1862
      %v1897 = vunpack.c.h.b16 %v1862
      %v1898 = vunpack.c.l.b16 %v1863
      %v1899 = vunpack.c.h.b16 %v1863
      %v1900 = vunpack.c.l.b16 %v1864
      %v1901 = vunpack.c.h.b16 %v1864
      %v1902 = vunpack.c.l.b16 %v1865
      %v1903 = vunpack.c.h.b16 %v1865
      %v1904 = vunpack.c.l.b16 %v1866
      %v1905 = vunpack.c.h.b16 %v1866
      %v1906 = vunpack.c.l.b16 %v1867
      %v1907 = vunpack.c.h.b16 %v1867
      %v1908 = vunpack.c.l.b16 %v1868
      %v1909 = vunpack.c.h.b16 %v1868
      %v1910 = vunpack.c.l.b16 %v1869
      %v1911 = vunpack.c.h.b16 %v1869
      %v1912 = vunpack.c.l.b16 %v1870
      %v1913 = vunpack.c.h.b16 %v1870
      %v1914 = vunpack.c.l.b16 %v1871
      %v1915 = vunpack.c.h.b16 %v1871
      %v1916 = vunpack.c.l.b16 %v1872
      %v1917 = vunpack.c.h.b16 %v1872
      %v1918 = vunpack.c.l.b16 %v1873
      %v1919 = vunpack.c.h.b16 %v1873
      %v1920 = vunpack.c.l.b16 %v1874
      %v1921 = vunpack.c.h.b16 %v1874
      %v1922 = vunpack.c.l.b16 %v1875
      %v1923 = vunpack.c.h.b16 %v1875
      %v1924 = vpack.c.b16 %v1894, %v1892
      %v1925 = vpack.c.b16 %v1895, %v1893
      %v1926 = vpack.c.b16 %v1898, %v1896
      %v1927 = vpack.c.b16 %v1899, %v1897
      %v1928 = vpack.c.b16 %v1902, %v1900
      %v1929 = vpack.c.b16 %v1903, %v1901
      %v1930 = vpack.c.b16 %v1906, %v1904
      %v1931 = vpack.c.b16 %v1907, %v1905
      %v1932 = vpack.c.b16 %v1910, %v1908
      %v1933 = vpack.c.b16 %v1911, %v1909
      %v1934 = vpack.c.b16 %v1914, %v1912
      %v1935 = vpack.c.b16 %v1915, %v1913
      %v1936 = vpack.c.b16 %v1918, %v1916
      %v1937 = vpack.c.b16 %v1919, %v1917
      %v1938 = vpack.c.b16 %v1922, %v1920
      %v1939 = vpack.c.b16 %v1923, %v1921
      %1956 = vmatprep.subr.bf16.mxu0 %v1925
      %1957 = vmatpush1.bf16.msra.mxu0 %v1924
      %1958 = vmatprep.subr.bf16.mxu0 %v1927
      %1959 = vmatpush1.bf16.msra.mxu0 %v1926
      %1960 = vmatprep.subr.bf16.mxu0 %v1929
      %1961 = vmatpush1.bf16.msra.mxu0 %v1928
      %1962 = vmatprep.subr.bf16.mxu0 %v1931
      %1963 = vmatpush1.bf16.msra.mxu0 %v1930
      %1964 = vmatprep.subr.bf16.mxu0 %v1933
      %1965 = vmatpush1.bf16.msra.mxu0 %v1932
      %1966 = vmatprep.subr.bf16.mxu0 %v1935
      %1967 = vmatpush1.bf16.msra.mxu0 %v1934
      %1968 = vmatprep.subr.bf16.mxu0 %v1937
      %1969 = vmatpush1.bf16.msra.mxu0 %v1936
      %1970 = vmatprep.subr.bf16.mxu0 %v1939
      %1971 = vmatpush1.bf16.msra.mxu0 %v1938
      %1972 = vmatprep.subr.bf16.mxu0 0
      %1973 = vmatpush1.bf16.msra.mxu0 0
      %1974 = vmatprep.subr.bf16.mxu0 0
      %1975 = vmatpush1.bf16.msra.mxu0 0
      %1976 = vmatprep.subr.bf16.mxu0 0
      %1977 = vmatpush1.bf16.msra.mxu0 0
      %1978 = vmatprep.subr.bf16.mxu0 0
      %1979 = vmatpush1.bf16.msra.mxu0 0
      %1980 = vmatprep.subr.bf16.mxu0 0
      %1981 = vmatpush1.bf16.msra.mxu0 0
      %1982 = vmatprep.subr.bf16.mxu0 0
      %1983 = vmatpush1.bf16.msra.mxu0 0
      %1984 = vmatprep.subr.bf16.mxu0 0
      %1985 = vmatpush1.bf16.msra.mxu0 0
      %1986 = vmatprep.subr.bf16.mxu0 0
      %1987 = vmatpush1.bf16.msra.mxu0 0
      %1988 = vmatprep.mubr.bf16.mxu0 0
      %1989 = vmatmul.mubr.bf16.gmra.mrb[0].mxu0 %v1857
      %v1990 = vpop.f32.mrb[0].mxu0
      %v1991 = vadd.f32 0.0, %v1990
      %v1992 = vpop.f32.mrb[0].mxu0
      %v1993 = vadd.f32 0.0, %v1992
      %v1994 = vpop.f32.mrb[0].mxu0
      %v1995 = vadd.f32 0.0, %v1994
      %v1996 = vpop.f32.mrb[0].mxu0
      %v1997 = vadd.f32 0.0, %v1996
      %1998 = vmatprep.mubr.bf16.mxu0 0
      %1999 = vmatmul.mubr.bf16.gmra.mrb[0].mxu0 %v1858
      %v2000 = vpop.f32.mrb[0].mxu0
      %v2001 = vadd.f32 0.0, %v2000
      %v2002 = vpop.f32.mrb[0].mxu0
      %v2003 = vadd.f32 0.0, %v2002
      %v2004 = vpop.f32.mrb[0].mxu0
      %v2005 = vadd.f32 0.0, %v2004
      %v2006 = vpop.f32.mrb[0].mxu0
      %v2007 = vadd.f32 0.0, %v2006
      %2008 = vdwg.mxu0
      %v2009 = vadd.f32 %v1844, %v1991
      %v2010 = vadd.f32 %v1845, %v1993
      %v2011 = vadd.f32 %v1846, %v1995
      %v2012 = vadd.f32 %v1847, %v1997
      %v2013 = vadd.f32 %v1848, %v2001
      %v2014 = vadd.f32 %v1849, %v2003
      %v2015 = vadd.f32 %v1850, %v2005
      %v2016 = vadd.f32 %v1851, %v2007
      %s2017 = scalar_lea.vmem %s220, 112
      %v2018 = vld [vmem:[%s2017] sm:$0xff]
      %v2019 = vld [vmem:[%s2017 + $0x10] sm:$0xff]
      %v2020 = vld [vmem:[%s2017 + $0x20] sm:$0xff]
      %v2021 = vld [vmem:[%s2017 + $0x30] sm:$0xff]
      %v2022 = vpack.c.bf16 %v2019, %v2018
      %v2023 = vpack.c.bf16 %v2021, %v2020
      %s2024 = scalar_lea.vmem %s1, 1408
      %v2025 = vld [vmem:[%s2024] sm:$0xff]
      %v2026 = vld [vmem:[%s2024 + $0x8] sm:$0xff]
      %v2027 = vld [vmem:[%s2024 + $0x10] sm:$0xff]
      %v2028 = vld [vmem:[%s2024 + $0x18] sm:$0xff]
      %v2029 = vld [vmem:[%s2024 + $0x20] sm:$0xff]
      %v2030 = vld [vmem:[%s2024 + $0x28] sm:$0xff]
      %v2031 = vld [vmem:[%s2024 + $0x30] sm:$0xff]
      %v2032 = vld [vmem:[%s2024 + $0x38] sm:$0xff]
      %v2033 = vld [vmem:[%s2024 + $0x40] sm:$0xff]
      %v2034 = vld [vmem:[%s2024 + $0x48] sm:$0xff]
      %v2035 = vld [vmem:[%s2024 + $0x50] sm:$0xff]
      %v2036 = vld [vmem:[%s2024 + $0x58] sm:$0xff]
      %v2037 = vld [vmem:[%s2024 + $0x60] sm:$0xff]
      %v2038 = vld [vmem:[%s2024 + $0x68] sm:$0xff]
      %v2039 = vld [vmem:[%s2024 + $0x70] sm:$0xff]
      %v2040 = vld [vmem:[%s2024 + $0x78] sm:$0xff]
      %v2057 = vunpack.c.l.b16 %v2025
      %v2058 = vunpack.c.h.b16 %v2025
      %v2059 = vunpack.c.l.b16 %v2026
      %v2060 = vunpack.c.h.b16 %v2026
      %v2061 = vunpack.c.l.b16 %v2027
      %v2062 = vunpack.c.h.b16 %v2027
      %v2063 = vunpack.c.l.b16 %v2028
      %v2064 = vunpack.c.h.b16 %v2028
      %v2065 = vunpack.c.l.b16 %v2029
      %v2066 = vunpack.c.h.b16 %v2029
      %v2067 = vunpack.c.l.b16 %v2030
      %v2068 = vunpack.c.h.b16 %v2030
      %v2069 = vunpack.c.l.b16 %v2031
      %v2070 = vunpack.c.h.b16 %v2031
      %v2071 = vunpack.c.l.b16 %v2032
      %v2072 = vunpack.c.h.b16 %v2032
      %v2073 = vunpack.c.l.b16 %v2033
      %v2074 = vunpack.c.h.b16 %v2033
      %v2075 = vunpack.c.l.b16 %v2034
      %v2076 = vunpack.c.h.b16 %v2034
      %v2077 = vunpack.c.l.b16 %v2035
      %v2078 = vunpack.c.h.b16 %v2035
      %v2079 = vunpack.c.l.b16 %v2036
      %v2080 = vunpack.c.h.b16 %v2036
      %v2081 = vunpack.c.l.b16 %v2037
      %v2082 = vunpack.c.h.b16 %v2037
      %v2083 = vunpack.c.l.b16 %v2038
      %v2084 = vunpack.c.h.b16 %v2038
      %v2085 = vunpack.c.l.b16 %v2039
      %v2086 = vunpack.c.h.b16 %v2039
      %v2087 = vunpack.c.l.b16 %v2040
      %v2088 = vunpack.c.h.b16 %v2040
      %v2089 = vpack.c.b16 %v2059, %v2057
      %v2090 = vpack.c.b16 %v2060, %v2058
      %v2091 = vpack.c.b16 %v2063, %v2061
      %v2092 = vpack.c.b16 %v2064, %v2062
      %v2093 = vpack.c.b16 %v2067, %v2065
      %v2094 = vpack.c.b16 %v2068, %v2066
      %v2095 = vpack.c.b16 %v2071, %v2069
      %v2096 = vpack.c.b16 %v2072, %v2070
      %v2097 = vpack.c.b16 %v2075, %v2073
      %v2098 = vpack.c.b16 %v2076, %v2074
      %v2099 = vpack.c.b16 %v2079, %v2077
      %v2100 = vpack.c.b16 %v2080, %v2078
      %v2101 = vpack.c.b16 %v2083, %v2081
      %v2102 = vpack.c.b16 %v2084, %v2082
      %v2103 = vpack.c.b16 %v2087, %v2085
      %v2104 = vpack.c.b16 %v2088, %v2086
      %2121 = vmatprep.subr.bf16.mxu0 %v2090
      %2122 = vmatpush1.bf16.msra.mxu0 %v2089
      %2123 = vmatprep.subr.bf16.mxu0 %v2092
      %2124 = vmatpush1.bf16.msra.mxu0 %v2091
      %2125 = vmatprep.subr.bf16.mxu0 %v2094
      %2126 = vmatpush1.bf16.msra.mxu0 %v2093
      %2127 = vmatprep.subr.bf16.mxu0 %v2096
      %2128 = vmatpush1.bf16.msra.mxu0 %v2095
      %2129 = vmatprep.subr.bf16.mxu0 %v2098
      %2130 = vmatpush1.bf16.msra.mxu0 %v2097
      %2131 = vmatprep.subr.bf16.mxu0 %v2100
      %2132 = vmatpush1.bf16.msra.mxu0 %v2099
      %2133 = vmatprep.subr.bf16.mxu0 %v2102
      %2134 = vmatpush1.bf16.msra.mxu0 %v2101
      %2135 = vmatprep.subr.bf16.mxu0 %v2104
      %2136 = vmatpush1.bf16.msra.mxu0 %v2103
      %2137 = vmatprep.subr.bf16.mxu0 0
      %2138 = vmatpush1.bf16.msra.mxu0 0
      %2139 = vmatprep.subr.bf16.mxu0 0
      %2140 = vmatpush1.bf16.msra.mxu0 0
      %2141 = vmatprep.subr.bf16.mxu0 0
      %2142 = vmatpush1.bf16.msra.mxu0 0
      %2143 = vmatprep.subr.bf16.mxu0 0
      %2144 = vmatpush1.bf16.msra.mxu0 0
      %2145 = vmatprep.subr.bf16.mxu0 0
      %2146 = vmatpush1.bf16.msra.mxu0 0
      %2147 = vmatprep.subr.bf16.mxu0 0
      %2148 = vmatpush1.bf16.msra.mxu0 0
      %2149 = vmatprep.subr.bf16.mxu0 0
      %2150 = vmatpush1.bf16.msra.mxu0 0
      %2151 = vmatprep.subr.bf16.mxu0 0
      %2152 = vmatpush1.bf16.msra.mxu0 0
      %2153 = vmatprep.mubr.bf16.mxu0 0
      %2154 = vmatmul.mubr.bf16.gmra.mrb[0].mxu0 %v2022
      %v2155 = vpop.f32.mrb[0].mxu0
      %v2156 = vadd.f32 0.0, %v2155
      %v2157 = vpop.f32.mrb[0].mxu0
      %v2158 = vadd.f32 0.0, %v2157
      %v2159 = vpop.f32.mrb[0].mxu0
      %v2160 = vadd.f32 0.0, %v2159
      %v2161 = vpop.f32.mrb[0].mxu0
      %v2162 = vadd.f32 0.0, %v2161
      %2163 = vmatprep.mubr.bf16.mxu0 0
      %2164 = vmatmul.mubr.bf16.gmra.mrb[0].mxu0 %v2023
      %v2165 = vpop.f32.mrb[0].mxu0
      %v2166 = vadd.f32 0.0, %v2165
      %v2167 = vpop.f32.mrb[0].mxu0
      %v2168 = vadd.f32 0.0, %v2167
      %v2169 = vpop.f32.mrb[0].mxu0
      %v2170 = vadd.f32 0.0, %v2169
      %v2171 = vpop.f32.mrb[0].mxu0
      %v2172 = vadd.f32 0.0, %v2171
      %2173 = vdwg.mxu0
      %v2174 = vadd.f32 %v2009, %v2156
      %v2175 = vadd.f32 %v2010, %v2158
      %v2176 = vadd.f32 %v2011, %v2160
      %v2177 = vadd.f32 %v2012, %v2162
      %v2178 = vadd.f32 %v2013, %v2166
      %v2179 = vadd.f32 %v2014, %v2168
      %v2180 = vadd.f32 %v2015, %v2170
      %v2181 = vadd.f32 %v2016, %v2172
      %v2182 = vld [vmem:[%s1852 + $0x1] sm:$0xff]
      %v2183 = vld [vmem:[%s1852 + $0x11] sm:$0xff]
      %v2184 = vld [vmem:[%s1852 + $0x21] sm:$0xff]
      %v2185 = vld [vmem:[%s1852 + $0x31] sm:$0xff]
      %v2186 = vpack.c.bf16 %v2183, %v2182
      %v2187 = vpack.c.bf16 %v2185, %v2184
      %s2188 = scalar_lea.vmem %s1, 1536
      %v2189 = vld [vmem:[%s2188] sm:$0xff]
      %v2190 = vld [vmem:[%s2188 + $0x8] sm:$0xff]
      %v2191 = vld [vmem:[%s2188 + $0x10] sm:$0xff]
      %v2192 = vld [vmem:[%s2188 + $0x18] sm:$0xff]
      %v2193 = vld [vmem:[%s2188 + $0x20] sm:$0xff]
      %v2194 = vld [vmem:[%s2188 + $0x28] sm:$0xff]
      %v2195 = vld [vmem:[%s2188 + $0x30] sm:$0xff]
      %v2196 = vld [vmem:[%s2188 + $0x38] sm:$0xff]
      %v2197 = vld [vmem:[%s2188 + $0x40] sm:$0xff]
      %v2198 = vld [vmem:[%s2188 + $0x48] sm:$0xff]
      %v2199 = vld [vmem:[%s2188 + $0x50] sm:$0xff]
      %v2200 = vld [vmem:[%s2188 + $0x58] sm:$0xff]
      %v2201 = vld [vmem:[%s2188 + $0x60] sm:$0xff]
      %v2202 = vld [vmem:[%s2188 + $0x68] sm:$0xff]
      %v2203 = vld [vmem:[%s2188 + $0x70] sm:$0xff]
      %v2204 = vld [vmem:[%s2188 + $0x78] sm:$0xff]
      %v2221 = vunpack.c.l.b16 %v2189
      %v2222 = vunpack.c.h.b16 %v2189
      %v2223 = vunpack.c.l.b16 %v2190
      %v2224 = vunpack.c.h.b16 %v2190
      %v2225 = vunpack.c.l.b16 %v2191
      %v2226 = vunpack.c.h.b16 %v2191
      %v2227 = vunpack.c.l.b16 %v2192
      %v2228 = vunpack.c.h.b16 %v2192
      %v2229 = vunpack.c.l.b16 %v2193
      %v2230 = vunpack.c.h.b16 %v2193
      %v2231 = vunpack.c.l.b16 %v2194
      %v2232 = vunpack.c.h.b16 %v2194
      %v2233 = vunpack.c.l.b16 %v2195
      %v2234 = vunpack.c.h.b16 %v2195
      %v2235 = vunpack.c.l.b16 %v2196
      %v2236 = vunpack.c.h.b16 %v2196
      %v2237 = vunpack.c.l.b16 %v2197
      %v2238 = vunpack.c.h.b16 %v2197
      %v2239 = vunpack.c.l.b16 %v2198
      %v2240 = vunpack.c.h.b16 %v2198
      %v2241 = vunpack.c.l.b16 %v2199
      %v2242 = vunpack.c.h.b16 %v2199
      %v2243 = vunpack.c.l.b16 %v2200
      %v2244 = vunpack.c.h.b16 %v2200
      %v2245 = vunpack.c.l.b16 %v2201
      %v2246 = vunpack.c.h.b16 %v2201
      %v2247 = vunpack.c.l.b16 %v2202
      %v2248 = vunpack.c.h.b16 %v2202
      %v2249 = vunpack.c.l.b16 %v2203
      %v2250 = vunpack.c.h.b16 %v2203
      %v2251 = vunpack.c.l.b16 %v2204
      %v2252 = vunpack.c.h.b16 %v2204
      %v2253 = vpack.c.b16 %v2223, %v2221
      %v2254 = vpack.c.b16 %v2224, %v2222
      %v2255 = vpack.c.b16 %v2227, %v2225
      %v2256 = vpack.c.b16 %v2228, %v2226
      %v2257 = vpack.c.b16 %v2231, %v2229
      %v2258 = vpack.c.b16 %v2232, %v2230
      %v2259 = vpack.c.b16 %v2235, %v2233
      %v2260 = vpack.c.b16 %v2236, %v2234
      %v2261 = vpack.c.b16 %v2239, %v2237
      %v2262 = vpack.c.b16 %v2240, %v2238
      %v2263 = vpack.c.b16 %v2243, %v2241
      %v2264 = vpack.c.b16 %v2244, %v2242
      %v2265 = vpack.c.b16 %v2247, %v2245
      %v2266 = vpack.c.b16 %v2248, %v2246
      %v2267 = vpack.c.b16 %v2251, %v2249
      %v2268 = vpack.c.b16 %v2252, %v2250
      %2285 = vmatprep.subr.bf16.mxu0 %v2254
      %2286 = vmatpush1.bf16.msra.mxu0 %v2253
      %2287 = vmatprep.subr.bf16.mxu0 %v2256
      %2288 = vmatpush1.bf16.msra.mxu0 %v2255
      %2289 = vmatprep.subr.bf16.mxu0 %v2258
      %2290 = vmatpush1.bf16.msra.mxu0 %v2257
      %2291 = vmatprep.subr.bf16.mxu0 %v2260
      %2292 = vmatpush1.bf16.msra.mxu0 %v2259
      %2293 = vmatprep.subr.bf16.mxu0 %v2262
      %2294 = vmatpush1.bf16.msra.mxu0 %v2261
      %2295 = vmatprep.subr.bf16.mxu0 %v2264
      %2296 = vmatpush1.bf16.msra.mxu0 %v2263
      %2297 = vmatprep.subr.bf16.mxu0 %v2266
      %2298 = vmatpush1.bf16.msra.mxu0 %v2265
      %2299 = vmatprep.subr.bf16.mxu0 %v2268
      %2300 = vmatpush1.bf16.msra.mxu0 %v2267
      %2301 = vmatprep.subr.bf16.mxu0 0
      %2302 = vmatpush1.bf16.msra.mxu0 0
      %2303 = vmatprep.subr.bf16.mxu0 0
      %2304 = vmatpush1.bf16.msra.mxu0 0
      %2305 = vmatprep.subr.bf16.mxu0 0
      %2306 = vmatpush1.bf16.msra.mxu0 0
      %2307 = vmatprep.subr.bf16.mxu0 0
      %2308 = vmatpush1.bf16.msra.mxu0 0
      %2309 = vmatprep.subr.bf16.mxu0 0
      %2310 = vmatpush1.bf16.msra.mxu0 0
      %2311 = vmatprep.subr.bf16.mxu0 0
      %2312 = vmatpush1.bf16.msra.mxu0 0
      %2313 = vmatprep.subr.bf16.mxu0 0
      %2314 = vmatpush1.bf16.msra.mxu0 0
      %2315 = vmatprep.subr.bf16.mxu0 0
      %2316 = vmatpush1.bf16.msra.mxu0 0
      %2317 = vmatprep.mubr.bf16.mxu0 0
      %2318 = vmatmul.mubr.bf16.gmra.mrb[0].mxu0 %v2186
      %v2319 = vpop.f32.mrb[0].mxu0
      %v2320 = vadd.f32 0.0, %v2319
      %v2321 = vpop.f32.mrb[0].mxu0
      %v2322 = vadd.f32 0.0, %v2321
      %v2323 = vpop.f32.mrb[0].mxu0
      %v2324 = vadd.f32 0.0, %v2323
      %v2325 = vpop.f32.mrb[0].mxu0
      %v2326 = vadd.f32 0.0, %v2325
      %2327 = vmatprep.mubr.bf16.mxu0 0
      %2328 = vmatmul.mubr.bf16.gmra.mrb[0].mxu0 %v2187
      %v2329 = vpop.f32.mrb[0].mxu0
      %v2330 = vadd.f32 0.0, %v2329
      %v2331 = vpop.f32.mrb[0].mxu0
      %v2332 = vadd.f32 0.0, %v2331
      %v2333 = vpop.f32.mrb[0].mxu0
      %v2334 = vadd.f32 0.0, %v2333
      %v2335 = vpop.f32.mrb[0].mxu0
      %v2336 = vadd.f32 0.0, %v2335
      %2337 = vdwg.mxu0
      %v2338 = vadd.f32 %v2174, %v2320
      %v2339 = vadd.f32 %v2175, %v2322
      %v2340 = vadd.f32 %v2176, %v2324
      %v2341 = vadd.f32 %v2177, %v2326
      %v2342 = vadd.f32 %v2178, %v2330
      %v2343 = vadd.f32 %v2179, %v2332
      %v2344 = vadd.f32 %v2180, %v2334
      %v2345 = vadd.f32 %v2181, %v2336
      %v2346 = vld [vmem:[%s2017 + $0x1] sm:$0xff]
      %v2347 = vld [vmem:[%s2017 + $0x11] sm:$0xff]
      %v2348 = vld [vmem:[%s2017 + $0x21] sm:$0xff]
      %v2349 = vld [vmem:[%s2017 + $0x31] sm:$0xff]
      %v2350 = vpack.c.bf16 %v2347, %v2346
      %v2351 = vpack.c.bf16 %v2349, %v2348
      %s2352 = scalar_lea.vmem %s1, 1664
      %v2353 = vld [vmem:[%s2352] sm:$0xff]
      %v2354 = vld [vmem:[%s2352 + $0x8] sm:$0xff]
      %v2355 = vld [vmem:[%s2352 + $0x10] sm:$0xff]
      %v2356 = vld [vmem:[%s2352 + $0x18] sm:$0xff]
      %v2357 = vld [vmem:[%s2352 + $0x20] sm:$0xff]
      %v2358 = vld [vmem:[%s2352 + $0x28] sm:$0xff]
      %v2359 = vld [vmem:[%s2352 + $0x30] sm:$0xff]
      %v2360 = vld [vmem:[%s2352 + $0x38] sm:$0xff]
      %v2361 = vld [vmem:[%s2352 + $0x40] sm:$0xff]
      %v2362 = vld [vmem:[%s2352 + $0x48] sm:$0xff]
      %v2363 = vld [vmem:[%s2352 + $0x50] sm:$0xff]
      %v2364 = vld [vmem:[%s2352 + $0x58] sm:$0xff]
      %v2365 = vld [vmem:[%s2352 + $0x60] sm:$0xff]
      %v2366 = vld [vmem:[%s2352 + $0x68] sm:$0xff]
      %v2367 = vld [vmem:[%s2352 + $0x70] sm:$0xff]
      %v2368 = vld [vmem:[%s2352 + $0x78] sm:$0xff]
      %v2385 = vunpack.c.l.b16 %v2353
      %v2386 = vunpack.c.h.b16 %v2353
      %v2387 = vunpack.c.l.b16 %v2354
      %v2388 = vunpack.c.h.b16 %v2354
      %v2389 = vunpack.c.l.b16 %v2355
      %v2390 = vunpack.c.h.b16 %v2355
      %v2391 = vunpack.c.l.b16 %v2356
      %v2392 = vunpack.c.h.b16 %v2356
      %v2393 = vunpack.c.l.b16 %v2357
      %v2394 = vunpack.c.h.b16 %v2357
      %v2395 = vunpack.c.l.b16 %v2358
      %v2396 = vunpack.c.h.b16 %v2358
      %v2397 = vunpack.c.l.b16 %v2359
      %v2398 = vunpack.c.h.b16 %v2359
      %v2399 = vunpack.c.l.b16 %v2360
      %v2400 = vunpack.c.h.b16 %v2360
      %v2401 = vunpack.c.l.b16 %v2361
      %v2402 = vunpack.c.h.b16 %v2361
      %v2403 = vunpack.c.l.b16 %v2362
      %v2404 = vunpack.c.h.b16 %v2362
      %v2405 = vunpack.c.l.b16 %v2363
      %v2406 = vunpack.c.h.b16 %v2363
      %v2407 = vunpack.c.l.b16 %v2364
      %v2408 = vunpack.c.h.b16 %v2364
      %v2409 = vunpack.c.l.b16 %v2365
      %v2410 = vunpack.c.h.b16 %v2365
      %v2411 = vunpack.c.l.b16 %v2366
      %v2412 = vunpack.c.h.b16 %v2366
      %v2413 = vunpack.c.l.b16 %v2367
      %v2414 = vunpack.c.h.b16 %v2367
      %v2415 = vunpack.c.l.b16 %v2368
      %v2416 = vunpack.c.h.b16 %v2368
      %v2417 = vpack.c.b16 %v2387, %v2385
      %v2418 = vpack.c.b16 %v2388, %v2386
      %v2419 = vpack.c.b16 %v2391, %v2389
      %v2420 = vpack.c.b16 %v2392, %v2390
      %v2421 = vpack.c.b16 %v2395, %v2393
      %v2422 = vpack.c.b16 %v2396, %v2394
      %v2423 = vpack.c.b16 %v2399, %v2397
      %v2424 = vpack.c.b16 %v2400, %v2398
      %v2425 = vpack.c.b16 %v2403, %v2401
      %v2426 = vpack.c.b16 %v2404, %v2402
      %v2427 = vpack.c.b16 %v2407, %v2405
      %v2428 = vpack.c.b16 %v2408, %v2406
      %v2429 = vpack.c.b16 %v2411, %v2409
      %v2430 = vpack.c.b16 %v2412, %v2410
      %v2431 = vpack.c.b16 %v2415, %v2413
      %v2432 = vpack.c.b16 %v2416, %v2414
      %2449 = vmatprep.subr.bf16.mxu0 %v2418
      %2450 = vmatpush1.bf16.msra.mxu0 %v2417
      %2451 = vmatprep.subr.bf16.mxu0 %v2420
      %2452 = vmatpush1.bf16.msra.mxu0 %v2419
      %2453 = vmatprep.subr.bf16.mxu0 %v2422
      %2454 = vmatpush1.bf16.msra.mxu0 %v2421
      %2455 = vmatprep.subr.bf16.mxu0 %v2424
      %2456 = vmatpush1.bf16.msra.mxu0 %v2423
      %2457 = vmatprep.subr.bf16.mxu0 %v2426
      %2458 = vmatpush1.bf16.msra.mxu0 %v2425
      %2459 = vmatprep.subr.bf16.mxu0 %v2428
      %2460 = vmatpush1.bf16.msra.mxu0 %v2427
      %2461 = vmatprep.subr.bf16.mxu0 %v2430
      %2462 = vmatpush1.bf16.msra.mxu0 %v2429
      %2463 = vmatprep.subr.bf16.mxu0 %v2432
      %2464 = vmatpush1.bf16.msra.mxu0 %v2431
      %2465 = vmatprep.subr.bf16.mxu0 0
      %2466 = vmatpush1.bf16.msra.mxu0 0
      %2467 = vmatprep.subr.bf16.mxu0 0
      %2468 = vmatpush1.bf16.msra.mxu0 0
      %2469 = vmatprep.subr.bf16.mxu0 0
      %2470 = vmatpush1.bf16.msra.mxu0 0
      %2471 = vmatprep.subr.bf16.mxu0 0
      %2472 = vmatpush1.bf16.msra.mxu0 0
      %2473 = vmatprep.subr.bf16.mxu0 0
      %2474 = vmatpush1.bf16.msra.mxu0 0
      %2475 = vmatprep.subr.bf16.mxu0 0
      %2476 = vmatpush1.bf16.msra.mxu0 0
      %2477 = vmatprep.subr.bf16.mxu0 0
      %2478 = vmatpush1.bf16.msra.mxu0 0
      %2479 = vmatprep.subr.bf16.mxu0 0
      %2480 = vmatpush1.bf16.msra.mxu0 0
      %2481 = vmatprep.mubr.bf16.mxu0 0
      %2482 = vmatmul.mubr.bf16.gmra.mrb[0].mxu0 %v2350
      %v2483 = vpop.f32.mrb[0].mxu0
      %v2484 = vadd.f32 0.0, %v2483
      %v2485 = vpop.f32.mrb[0].mxu0
      %v2486 = vadd.f32 0.0, %v2485
      %v2487 = vpop.f32.mrb[0].mxu0
      %v2488 = vadd.f32 0.0, %v2487
      %v2489 = vpop.f32.mrb[0].mxu0
      %v2490 = vadd.f32 0.0, %v2489
      %2491 = vmatprep.mubr.bf16.mxu0 0
      %2492 = vmatmul.mubr.bf16.gmra.mrb[0].mxu0 %v2351
      %v2493 = vpop.f32.mrb[0].mxu0
      %v2494 = vadd.f32 0.0, %v2493
      %v2495 = vpop.f32.mrb[0].mxu0
      %v2496 = vadd.f32 0.0, %v2495
      %v2497 = vpop.f32.mrb[0].mxu0
      %v2498 = vadd.f32 0.0, %v2497
      %v2499 = vpop.f32.mrb[0].mxu0
      %v2500 = vadd.f32 0.0, %v2499
      %2501 = vdwg.mxu0
      %v2502 = vadd.f32 %v2338, %v2484
      %v2503 = vadd.f32 %v2339, %v2486
      %v2504 = vadd.f32 %v2340, %v2488
      %v2505 = vadd.f32 %v2341, %v2490
      %v2506 = vadd.f32 %v2342, %v2494
      %v2507 = vadd.f32 %v2343, %v2496
      %v2508 = vadd.f32 %v2344, %v2498
      %v2509 = vadd.f32 %v2345, %v2500
      %v2510 = vld [vmem:[%s1852 + $0x2] sm:$0xff]
      %v2511 = vld [vmem:[%s1852 + $0x12] sm:$0xff]
      %v2512 = vld [vmem:[%s1852 + $0x22] sm:$0xff]
      %v2513 = vld [vmem:[%s1852 + $0x32] sm:$0xff]
      %v2514 = vpack.c.bf16 %v2511, %v2510
      %v2515 = vpack.c.bf16 %v2513, %v2512
      %s2516 = scalar_lea.vmem %s1, 1792
      %v2517 = vld [vmem:[%s2516] sm:$0xff]
      %v2518 = vld [vmem:[%s2516 + $0x8] sm:$0xff]
      %v2519 = vld [vmem:[%s2516 + $0x10] sm:$0xff]
      %v2520 = vld [vmem:[%s2516 + $0x18] sm:$0xff]
      %v2521 = vld [vmem:[%s2516 + $0x20] sm:$0xff]
      %v2522 = vld [vmem:[%s2516 + $0x28] sm:$0xff]
      %v2523 = vld [vmem:[%s2516 + $0x30] sm:$0xff]
      %v2524 = vld [vmem:[%s2516 + $0x38] sm:$0xff]
      %v2525 = vld [vmem:[%s2516 + $0x40] sm:$0xff]
      %v2526 = vld [vmem:[%s2516 + $0x48] sm:$0xff]
      %v2527 = vld [vmem:[%s2516 + $0x50] sm:$0xff]
      %v2528 = vld [vmem:[%s2516 + $0x58] sm:$0xff]
      %v2529 = vld [vmem:[%s2516 + $0x60] sm:$0xff]
      %v2530 = vld [vmem:[%s2516 + $0x68] sm:$0xff]
      %v2531 = vld [vmem:[%s2516 + $0x70] sm:$0xff]
      %v2532 = vld [vmem:[%s2516 + $0x78] sm:$0xff]
      %v2549 = vunpack.c.l.b16 %v2517
      %v2550 = vunpack.c.h.b16 %v2517
      %v2551 = vunpack.c.l.b16 %v2518
      %v2552 = vunpack.c.h.b16 %v2518
      %v2553 = vunpack.c.l.b16 %v2519
      %v2554 = vunpack.c.h.b16 %v2519
      %v2555 = vunpack.c.l.b16 %v2520
      %v2556 = vunpack.c.h.b16 %v2520
      %v2557 = vunpack.c.l.b16 %v2521
      %v2558 = vunpack.c.h.b16 %v2521
      %v2559 = vunpack.c.l.b16 %v2522
      %v2560 = vunpack.c.h.b16 %v2522
      %v2561 = vunpack.c.l.b16 %v2523
      %v2562 = vunpack.c.h.b16 %v2523
      %v2563 = vunpack.c.l.b16 %v2524
      %v2564 = vunpack.c.h.b16 %v2524
      %v2565 = vunpack.c.l.b16 %v2525
      %v2566 = vunpack.c.h.b16 %v2525
      %v2567 = vunpack.c.l.b16 %v2526
      %v2568 = vunpack.c.h.b16 %v2526
      %v2569 = vunpack.c.l.b16 %v2527
      %v2570 = vunpack.c.h.b16 %v2527
      %v2571 = vunpack.c.l.b16 %v2528
      %v2572 = vunpack.c.h.b16 %v2528
      %v2573 = vunpack.c.l.b16 %v2529
      %v2574 = vunpack.c.h.b16 %v2529
      %v2575 = vunpack.c.l.b16 %v2530
      %v2576 = vunpack.c.h.b16 %v2530
      %v2577 = vunpack.c.l.b16 %v2531
      %v2578 = vunpack.c.h.b16 %v2531
      %v2579 = vunpack.c.l.b16 %v2532
      %v2580 = vunpack.c.h.b16 %v2532
      %v2581 = vpack.c.b16 %v2551, %v2549
      %v2582 = vpack.c.b16 %v2552, %v2550
      %v2583 = vpack.c.b16 %v2555, %v2553
      %v2584 = vpack.c.b16 %v2556, %v2554
      %v2585 = vpack.c.b16 %v2559, %v2557
      %v2586 = vpack.c.b16 %v2560, %v2558
      %v2587 = vpack.c.b16 %v2563, %v2561
      %v2588 = vpack.c.b16 %v2564, %v2562
      %v2589 = vpack.c.b16 %v2567, %v2565
      %v2590 = vpack.c.b16 %v2568, %v2566
      %v2591 = vpack.c.b16 %v2571, %v2569
      %v2592 = vpack.c.b16 %v2572, %v2570
      %v2593 = vpack.c.b16 %v2575, %v2573
      %v2594 = vpack.c.b16 %v2576, %v2574
      %v2595 = vpack.c.b16 %v2579, %v2577
      %v2596 = vpack.c.b16 %v2580, %v2578
      %2613 = vmatprep.subr.bf16.mxu0 %v2582
      %2614 = vmatpush1.bf16.msra.mxu0 %v2581
      %2615 = vmatprep.subr.bf16.mxu0 %v2584
      %2616 = vmatpush1.bf16.msra.mxu0 %v2583
      %2617 = vmatprep.subr.bf16.mxu0 %v2586
      %2618 = vmatpush1.bf16.msra.mxu0 %v2585
      %2619 = vmatprep.subr.bf16.mxu0 %v2588
      %2620 = vmatpush1.bf16.msra.mxu0 %v2587
      %2621 = vmatprep.subr.bf16.mxu0 %v2590
      %2622 = vmatpush1.bf16.msra.mxu0 %v2589
      %2623 = vmatprep.subr.bf16.mxu0 %v2592
      %2624 = vmatpush1.bf16.msra.mxu0 %v2591
      %2625 = vmatprep.subr.bf16.mxu0 %v2594
      %2626 = vmatpush1.bf16.msra.mxu0 %v2593
      %2627 = vmatprep.subr.bf16.mxu0 %v2596
      %2628 = vmatpush1.bf16.msra.mxu0 %v2595
      %2629 = vmatprep.subr.bf16.mxu0 0
      %2630 = vmatpush1.bf16.msra.mxu0 0
      %2631 = vmatprep.subr.bf16.mxu0 0
      %2632 = vmatpush1.bf16.msra.mxu0 0
      %2633 = vmatprep.subr.bf16.mxu0 0
      %2634 = vmatpush1.bf16.msra.mxu0 0
      %2635 = vmatprep.subr.bf16.mxu0 0
      %2636 = vmatpush1.bf16.msra.mxu0 0
      %2637 = vmatprep.subr.bf16.mxu0 0
      %2638 = vmatpush1.bf16.msra.mxu0 0
      %2639 = vmatprep.subr.bf16.mxu0 0
      %2640 = vmatpush1.bf16.msra.mxu0 0
      %2641 = vmatprep.subr.bf16.mxu0 0
      %2642 = vmatpush1.bf16.msra.mxu0 0
      %2643 = vmatprep.subr.bf16.mxu0 0
      %2644 = vmatpush1.bf16.msra.mxu0 0
      %2645 = vmatprep.mubr.bf16.mxu0 0
      %2646 = vmatmul.mubr.bf16.gmra.mrb[0].mxu0 %v2514
      %v2647 = vpop.f32.mrb[0].mxu0
      %v2648 = vadd.f32 0.0, %v2647
      %v2649 = vpop.f32.mrb[0].mxu0
      %v2650 = vadd.f32 0.0, %v2649
      %v2651 = vpop.f32.mrb[0].mxu0
      %v2652 = vadd.f32 0.0, %v2651
      %v2653 = vpop.f32.mrb[0].mxu0
      %v2654 = vadd.f32 0.0, %v2653
      %2655 = vmatprep.mubr.bf16.mxu0 0
      %2656 = vmatmul.mubr.bf16.gmra.mrb[0].mxu0 %v2515
      %v2657 = vpop.f32.mrb[0].mxu0
      %v2658 = vadd.f32 0.0, %v2657
      %v2659 = vpop.f32.mrb[0].mxu0
      %v2660 = vadd.f32 0.0, %v2659
      %v2661 = vpop.f32.mrb[0].mxu0
      %v2662 = vadd.f32 0.0, %v2661
      %v2663 = vpop.f32.mrb[0].mxu0
      %v2664 = vadd.f32 0.0, %v2663
      %2665 = vdwg.mxu0
      %v2666 = vadd.f32 %v2502, %v2648
      %v2667 = vadd.f32 %v2503, %v2650
      %v2668 = vadd.f32 %v2504, %v2652
      %v2669 = vadd.f32 %v2505, %v2654
      %v2670 = vadd.f32 %v2506, %v2658
      %v2671 = vadd.f32 %v2507, %v2660
      %v2672 = vadd.f32 %v2508, %v2662
      %v2673 = vadd.f32 %v2509, %v2664
      %s2674 = scalar_lea.vmem %s220, 208
      %v2675 = vld [vmem:[%s2674] sm:$0xff]
      %v2676 = vld [vmem:[%s2674 + $0x10] sm:$0xff]
      %v2677 = vld [vmem:[%s2674 + $0x20] sm:$0xff]
      %v2678 = vld [vmem:[%s2674 + $0x30] sm:$0xff]
      %v2679 = vpack.c.bf16 %v2676, %v2675
      %v2680 = vpack.c.bf16 %v2678, %v2677
      %s2681 = scalar_lea.vmem %s1, 1920
      %v2682 = vld [vmem:[%s2681] sm:$0xff]
      %v2683 = vld [vmem:[%s2681 + $0x8] sm:$0xff]
      %v2684 = vld [vmem:[%s2681 + $0x10] sm:$0xff]
      %v2685 = vld [vmem:[%s2681 + $0x18] sm:$0xff]
      %v2686 = vld [vmem:[%s2681 + $0x20] sm:$0xff]
      %v2687 = vld [vmem:[%s2681 + $0x28] sm:$0xff]
      %v2688 = vld [vmem:[%s2681 + $0x30] sm:$0xff]
      %v2689 = vld [vmem:[%s2681 + $0x38] sm:$0xff]
      %v2690 = vld [vmem:[%s2681 + $0x40] sm:$0xff]
      %v2691 = vld [vmem:[%s2681 + $0x48] sm:$0xff]
      %v2692 = vld [vmem:[%s2681 + $0x50] sm:$0xff]
      %v2693 = vld [vmem:[%s2681 + $0x58] sm:$0xff]
      %v2694 = vld [vmem:[%s2681 + $0x60] sm:$0xff]
      %v2695 = vld [vmem:[%s2681 + $0x68] sm:$0xff]
      %v2696 = vld [vmem:[%s2681 + $0x70] sm:$0xff]
      %v2697 = vld [vmem:[%s2681 + $0x78] sm:$0xff]
      %v2714 = vunpack.c.l.b16 %v2682
      %v2715 = vunpack.c.h.b16 %v2682
      %v2716 = vunpack.c.l.b16 %v2683
      %v2717 = vunpack.c.h.b16 %v2683
      %v2718 = vunpack.c.l.b16 %v2684
      %v2719 = vunpack.c.h.b16 %v2684
      %v2720 = vunpack.c.l.b16 %v2685
      %v2721 = vunpack.c.h.b16 %v2685
      %v2722 = vunpack.c.l.b16 %v2686
      %v2723 = vunpack.c.h.b16 %v2686
      %v2724 = vunpack.c.l.b16 %v2687
      %v2725 = vunpack.c.h.b16 %v2687
      %v2726 = vunpack.c.l.b16 %v2688
      %v2727 = vunpack.c.h.b16 %v2688
      %v2728 = vunpack.c.l.b16 %v2689
      %v2729 = vunpack.c.h.b16 %v2689
      %v2730 = vunpack.c.l.b16 %v2690
      %v2731 = vunpack.c.h.b16 %v2690
      %v2732 = vunpack.c.l.b16 %v2691
      %v2733 = vunpack.c.h.b16 %v2691
      %v2734 = vunpack.c.l.b16 %v2692
      %v2735 = vunpack.c.h.b16 %v2692
      %v2736 = vunpack.c.l.b16 %v2693
      %v2737 = vunpack.c.h.b16 %v2693
      %v2738 = vunpack.c.l.b16 %v2694
      %v2739 = vunpack.c.h.b16 %v2694
      %v2740 = vunpack.c.l.b16 %v2695
      %v2741 = vunpack.c.h.b16 %v2695
      %v2742 = vunpack.c.l.b16 %v2696
      %v2743 = vunpack.c.h.b16 %v2696
      %v2744 = vunpack.c.l.b16 %v2697
      %v2745 = vunpack.c.h.b16 %v2697
      %v2746 = vpack.c.b16 %v2716, %v2714
      %v2747 = vpack.c.b16 %v2717, %v2715
      %v2748 = vpack.c.b16 %v2720, %v2718
      %v2749 = vpack.c.b16 %v2721, %v2719
      %v2750 = vpack.c.b16 %v2724, %v2722
      %v2751 = vpack.c.b16 %v2725, %v2723
      %v2752 = vpack.c.b16 %v2728, %v2726
      %v2753 = vpack.c.b16 %v2729, %v2727
      %v2754 = vpack.c.b16 %v2732, %v2730
      %v2755 = vpack.c.b16 %v2733, %v2731
      %v2756 = vpack.c.b16 %v2736, %v2734
      %v2757 = vpack.c.b16 %v2737, %v2735
      %v2758 = vpack.c.b16 %v2740, %v2738
      %v2759 = vpack.c.b16 %v2741, %v2739
      %v2760 = vpack.c.b16 %v2744, %v2742
      %v2761 = vpack.c.b16 %v2745, %v2743
      %2778 = vmatprep.subr.bf16.mxu0 %v2747
      %2779 = vmatpush1.bf16.msra.mxu0 %v2746
      %2780 = vmatprep.subr.bf16.mxu0 %v2749
      %2781 = vmatpush1.bf16.msra.mxu0 %v2748
      %2782 = vmatprep.subr.bf16.mxu0 %v2751
      %2783 = vmatpush1.bf16.msra.mxu0 %v2750
      %2784 = vmatprep.subr.bf16.mxu0 %v2753
      %2785 = vmatpush1.bf16.msra.mxu0 %v2752
      %2786 = vmatprep.subr.bf16.mxu0 %v2755
      %2787 = vmatpush1.bf16.msra.mxu0 %v2754
      %2788 = vmatprep.subr.bf16.mxu0 %v2757
      %2789 = vmatpush1.bf16.msra.mxu0 %v2756
      %2790 = vmatprep.subr.bf16.mxu0 %v2759
      %2791 = vmatpush1.bf16.msra.mxu0 %v2758
      %2792 = vmatprep.subr.bf16.mxu0 %v2761
      %2793 = vmatpush1.bf16.msra.mxu0 %v2760
      %2794 = vmatprep.subr.bf16.mxu0 0
      %2795 = vmatpush1.bf16.msra.mxu0 0
      %2796 = vmatprep.subr.bf16.mxu0 0
      %2797 = vmatpush1.bf16.msra.mxu0 0
      %2798 = vmatprep.subr.bf16.mxu0 0
      %2799 = vmatpush1.bf16.msra.mxu0 0
      %2800 = vmatprep.subr.bf16.mxu0 0
      %2801 = vmatpush1.bf16.msra.mxu0 0
      %2802 = vmatprep.subr.bf16.mxu0 0
      %2803 = vmatpush1.bf16.msra.mxu0 0
      %2804 = vmatprep.subr.bf16.mxu0 0
      %2805 = vmatpush1.bf16.msra.mxu0 0
      %2806 = vmatprep.subr.bf16.mxu0 0
      %2807 = vmatpush1.bf16.msra.mxu0 0
      %2808 = vmatprep.subr.bf16.mxu0 0
      %2809 = vmatpush1.bf16.msra.mxu0 0
      %2810 = vmatprep.mubr.bf16.mxu0 0
      %2811 = vmatmul.mubr.bf16.gmra.mrb[0].mxu0 %v2679
      %v2812 = vpop.f32.mrb[0].mxu0
      %v2813 = vadd.f32 0.0, %v2812
      %v2814 = vpop.f32.mrb[0].mxu0
      %v2815 = vadd.f32 0.0, %v2814
      %v2816 = vpop.f32.mrb[0].mxu0
      %v2817 = vadd.f32 0.0, %v2816
      %v2818 = vpop.f32.mrb[0].mxu0
      %v2819 = vadd.f32 0.0, %v2818
      %2820 = vmatprep.mubr.bf16.mxu0 0
      %2821 = vmatmul.mubr.bf16.gmra.mrb[0].mxu0 %v2680
      %v2822 = vpop.f32.mrb[0].mxu0
      %v2823 = vadd.f32 0.0, %v2822
      %v2824 = vpop.f32.mrb[0].mxu0
      %v2825 = vadd.f32 0.0, %v2824
      %v2826 = vpop.f32.mrb[0].mxu0
      %v2827 = vadd.f32 0.0, %v2826
      %v2828 = vpop.f32.mrb[0].mxu0
      %v2829 = vadd.f32 0.0, %v2828
      %2830 = vdwg.mxu0
      %v2831 = vadd.f32 %v2666, %v2813
      %v2832 = vadd.f32 %v2667, %v2815
      %v2833 = vadd.f32 %v2668, %v2817
      %v2834 = vadd.f32 %v2669, %v2819
      %v2835 = vadd.f32 %v2670, %v2823
      %v2836 = vadd.f32 %v2671, %v2825
      %v2837 = vadd.f32 %v2672, %v2827
      %v2838 = vadd.f32 %v2673, %v2829
      %s2839 = scalar_lea.vmem %s220, 304
      %v2840 = vld [vmem:[%s2839] sm:$0xff]
      %v2841 = vld [vmem:[%s2839 + $0x10] sm:$0xff]
      %v2842 = vld [vmem:[%s2839 + $0x20] sm:$0xff]
      %v2843 = vld [vmem:[%s2839 + $0x30] sm:$0xff]
      %v2844 = vpack.c.bf16 %v2841, %v2840
      %v2845 = vpack.c.bf16 %v2843, %v2842
      %s2846 = scalar_lea.vmem %s1, 2048
      %v2847 = vld [vmem:[%s2846] sm:$0xff]
      %v2848 = vld [vmem:[%s2846 + $0x8] sm:$0xff]
      %v2849 = vld [vmem:[%s2846 + $0x10] sm:$0xff]
      %v2850 = vld [vmem:[%s2846 + $0x18] sm:$0xff]
      %v2851 = vld [vmem:[%s2846 + $0x20] sm:$0xff]
      %v2852 = vld [vmem:[%s2846 + $0x28] sm:$0xff]
      %v2853 = vld [vmem:[%s2846 + $0x30] sm:$0xff]
      %v2854 = vld [vmem:[%s2846 + $0x38] sm:$0xff]
      %v2855 = vld [vmem:[%s2846 + $0x40] sm:$0xff]
      %v2856 = vld [vmem:[%s2846 + $0x48] sm:$0xff]
      %v2857 = vld [vmem:[%s2846 + $0x50] sm:$0xff]
      %v2858 = vld [vmem:[%s2846 + $0x58] sm:$0xff]
      %v2859 = vld [vmem:[%s2846 + $0x60] sm:$0xff]
      %v2860 = vld [vmem:[%s2846 + $0x68] sm:$0xff]
      %v2861 = vld [vmem:[%s2846 + $0x70] sm:$0xff]
      %v2862 = vld [vmem:[%s2846 + $0x78] sm:$0xff]
      %v2879 = vunpack.c.l.b16 %v2847
      %v2880 = vunpack.c.h.b16 %v2847
      %v2881 = vunpack.c.l.b16 %v2848
      %v2882 = vunpack.c.h.b16 %v2848
      %v2883 = vunpack.c.l.b16 %v2849
      %v2884 = vunpack.c.h.b16 %v2849
      %v2885 = vunpack.c.l.b16 %v2850
      %v2886 = vunpack.c.h.b16 %v2850
      %v2887 = vunpack.c.l.b16 %v2851
      %v2888 = vunpack.c.h.b16 %v2851
      %v2889 = vunpack.c.l.b16 %v2852
      %v2890 = vunpack.c.h.b16 %v2852
      %v2891 = vunpack.c.l.b16 %v2853
      %v2892 = vunpack.c.h.b16 %v2853
      %v2893 = vunpack.c.l.b16 %v2854
      %v2894 = vunpack.c.h.b16 %v2854
      %v2895 = vunpack.c.l.b16 %v2855
      %v2896 = vunpack.c.h.b16 %v2855
      %v2897 = vunpack.c.l.b16 %v2856
      %v2898 = vunpack.c.h.b16 %v2856
      %v2899 = vunpack.c.l.b16 %v2857
      %v2900 = vunpack.c.h.b16 %v2857
      %v2901 = vunpack.c.l.b16 %v2858
      %v2902 = vunpack.c.h.b16 %v2858
      %v2903 = vunpack.c.l.b16 %v2859
      %v2904 = vunpack.c.h.b16 %v2859
      %v2905 = vunpack.c.l.b16 %v2860
      %v2906 = vunpack.c.h.b16 %v2860
      %v2907 = vunpack.c.l.b16 %v2861
      %v2908 = vunpack.c.h.b16 %v2861
      %v2909 = vunpack.c.l.b16 %v2862
      %v2910 = vunpack.c.h.b16 %v2862
      %v2911 = vpack.c.b16 %v2881, %v2879
      %v2912 = vpack.c.b16 %v2882, %v2880
      %v2913 = vpack.c.b16 %v2885, %v2883
      %v2914 = vpack.c.b16 %v2886, %v2884
      %v2915 = vpack.c.b16 %v2889, %v2887
      %v2916 = vpack.c.b16 %v2890, %v2888
      %v2917 = vpack.c.b16 %v2893, %v2891
      %v2918 = vpack.c.b16 %v2894, %v2892
      %v2919 = vpack.c.b16 %v2897, %v2895
      %v2920 = vpack.c.b16 %v2898, %v2896
      %v2921 = vpack.c.b16 %v2901, %v2899
      %v2922 = vpack.c.b16 %v2902, %v2900
      %v2923 = vpack.c.b16 %v2905, %v2903
      %v2924 = vpack.c.b16 %v2906, %v2904
      %v2925 = vpack.c.b16 %v2909, %v2907
      %v2926 = vpack.c.b16 %v2910, %v2908
      %2943 = vmatprep.subr.bf16.mxu0 %v2912
      %2944 = vmatpush1.bf16.msra.mxu0 %v2911
      %2945 = vmatprep.subr.bf16.mxu0 %v2914
      %2946 = vmatpush1.bf16.msra.mxu0 %v2913
      %2947 = vmatprep.subr.bf16.mxu0 %v2916
      %2948 = vmatpush1.bf16.msra.mxu0 %v2915
      %2949 = vmatprep.subr.bf16.mxu0 %v2918
      %2950 = vmatpush1.bf16.msra.mxu0 %v2917
      %2951 = vmatprep.subr.bf16.mxu0 %v2920
      %2952 = vmatpush1.bf16.msra.mxu0 %v2919
      %2953 = vmatprep.subr.bf16.mxu0 %v2922
      %2954 = vmatpush1.bf16.msra.mxu0 %v2921
      %2955 = vmatprep.subr.bf16.mxu0 %v2924
      %2956 = vmatpush1.bf16.msra.mxu0 %v2923
      %2957 = vmatprep.subr.bf16.mxu0 %v2926
      %2958 = vmatpush1.bf16.msra.mxu0 %v2925
      %2959 = vmatprep.subr.bf16.mxu0 0
      %2960 = vmatpush1.bf16.msra.mxu0 0
      %2961 = vmatprep.subr.bf16.mxu0 0
      %2962 = vmatpush1.bf16.msra.mxu0 0
      %2963 = vmatprep.subr.bf16.mxu0 0
      %2964 = vmatpush1.bf16.msra.mxu0 0
      %2965 = vmatprep.subr.bf16.mxu0 0
      %2966 = vmatpush1.bf16.msra.mxu0 0
      %2967 = vmatprep.subr.bf16.mxu0 0
      %2968 = vmatpush1.bf16.msra.mxu0 0
      %2969 = vmatprep.subr.bf16.mxu0 0
      %2970 = vmatpush1.bf16.msra.mxu0 0
      %2971 = vmatprep.subr.bf16.mxu0 0
      %2972 = vmatpush1.bf16.msra.mxu0 0
      %2973 = vmatprep.subr.bf16.mxu0 0
      %2974 = vmatpush1.bf16.msra.mxu0 0
      %2975 = vmatprep.mubr.bf16.mxu0 0
      %2976 = vmatmul.mubr.bf16.gmra.mrb[0].mxu0 %v2844
      %v2977 = vpop.f32.mrb[0].mxu0
      %v2978 = vadd.f32 0.0, %v2977
      %v2979 = vpop.f32.mrb[0].mxu0
      %v2980 = vadd.f32 0.0, %v2979
      %v2981 = vpop.f32.mrb[0].mxu0
      %v2982 = vadd.f32 0.0, %v2981
      %v2983 = vpop.f32.mrb[0].mxu0
      %v2984 = vadd.f32 0.0, %v2983
      %2985 = vmatprep.mubr.bf16.mxu0 0
      %2986 = vmatmul.mubr.bf16.gmra.mrb[0].mxu0 %v2845
      %v2987 = vpop.f32.mrb[0].mxu0
      %v2988 = vadd.f32 0.0, %v2987
      %v2989 = vpop.f32.mrb[0].mxu0
      %v2990 = vadd.f32 0.0, %v2989
      %v2991 = vpop.f32.mrb[0].mxu0
      %v2992 = vadd.f32 0.0, %v2991
      %v2993 = vpop.f32.mrb[0].mxu0
      %v2994 = vadd.f32 0.0, %v2993
      %2995 = vdwg.mxu0
      %v2996 = vadd.f32 %v2831, %v2978
      %v2997 = vadd.f32 %v2832, %v2980
      %v2998 = vadd.f32 %v2833, %v2982
      %v2999 = vadd.f32 %v2834, %v2984
      %v3000 = vadd.f32 %v2835, %v2988
      %v3001 = vadd.f32 %v2836, %v2990
      %v3002 = vadd.f32 %v2837, %v2992
      %v3003 = vadd.f32 %v2838, %v2994
      %v3004 = vld [vmem:[%s2674 + $0x1] sm:$0xff]
      %v3005 = vld [vmem:[%s2674 + $0x11] sm:$0xff]
      %v3006 = vld [vmem:[%s2674 + $0x21] sm:$0xff]
      %v3007 = vld [vmem:[%s2674 + $0x31] sm:$0xff]
      %v3008 = vpack.c.bf16 %v3005, %v3004
      %v3009 = vpack.c.bf16 %v3007, %v3006
      %s3010 = scalar_lea.vmem %s1, 2176
      %v3011 = vld [vmem:[%s3010] sm:$0xff]
      %v3012 = vld [vmem:[%s3010 + $0x8] sm:$0xff]
      %v3013 = vld [vmem:[%s3010 + $0x10] sm:$0xff]
      %v3014 = vld [vmem:[%s3010 + $0x18] sm:$0xff]
      %v3015 = vld [vmem:[%s3010 + $0x20] sm:$0xff]
      %v3016 = vld [vmem:[%s3010 + $0x28] sm:$0xff]
      %v3017 = vld [vmem:[%s3010 + $0x30] sm:$0xff]
      %v3018 = vld [vmem:[%s3010 + $0x38] sm:$0xff]
      %v3019 = vld [vmem:[%s3010 + $0x40] sm:$0xff]
      %v3020 = vld [vmem:[%s3010 + $0x48] sm:$0xff]
      %v3021 = vld [vmem:[%s3010 + $0x50] sm:$0xff]
      %v3022 = vld [vmem:[%s3010 + $0x58] sm:$0xff]
      %v3023 = vld [vmem:[%s3010 + $0x60] sm:$0xff]
      %v3024 = vld [vmem:[%s3010 + $0x68] sm:$0xff]
      %v3025 = vld [vmem:[%s3010 + $0x70] sm:$0xff]
      %v3026 = vld [vmem:[%s3010 + $0x78] sm:$0xff]
      %v3043 = vunpack.c.l.b16 %v3011
      %v3044 = vunpack.c.h.b16 %v3011
      %v3045 = vunpack.c.l.b16 %v3012
      %v3046 = vunpack.c.h.b16 %v3012
      %v3047 = vunpack.c.l.b16 %v3013
      %v3048 = vunpack.c.h.b16 %v3013
      %v3049 = vunpack.c.l.b16 %v3014
      %v3050 = vunpack.c.h.b16 %v3014
      %v3051 = vunpack.c.l.b16 %v3015
      %v3052 = vunpack.c.h.b16 %v3015
      %v3053 = vunpack.c.l.b16 %v3016
      %v3054 = vunpack.c.h.b16 %v3016
      %v3055 = vunpack.c.l.b16 %v3017
      %v3056 = vunpack.c.h.b16 %v3017
      %v3057 = vunpack.c.l.b16 %v3018
      %v3058 = vunpack.c.h.b16 %v3018
      %v3059 = vunpack.c.l.b16 %v3019
      %v3060 = vunpack.c.h.b16 %v3019
      %v3061 = vunpack.c.l.b16 %v3020
      %v3062 = vunpack.c.h.b16 %v3020
      %v3063 = vunpack.c.l.b16 %v3021
      %v3064 = vunpack.c.h.b16 %v3021
      %v3065 = vunpack.c.l.b16 %v3022
      %v3066 = vunpack.c.h.b16 %v3022
      %v3067 = vunpack.c.l.b16 %v3023
      %v3068 = vunpack.c.h.b16 %v3023
      %v3069 = vunpack.c.l.b16 %v3024
      %v3070 = vunpack.c.h.b16 %v3024
      %v3071 = vunpack.c.l.b16 %v3025
      %v3072 = vunpack.c.h.b16 %v3025
      %v3073 = vunpack.c.l.b16 %v3026
      %v3074 = vunpack.c.h.b16 %v3026
      %v3075 = vpack.c.b16 %v3045, %v3043
      %v3076 = vpack.c.b16 %v3046, %v3044
      %v3077 = vpack.c.b16 %v3049, %v3047
      %v3078 = vpack.c.b16 %v3050, %v3048
      %v3079 = vpack.c.b16 %v3053, %v3051
      %v3080 = vpack.c.b16 %v3054, %v3052
      %v3081 = vpack.c.b16 %v3057, %v3055
      %v3082 = vpack.c.b16 %v3058, %v3056
      %v3083 = vpack.c.b16 %v3061, %v3059
      %v3084 = vpack.c.b16 %v3062, %v3060
      %v3085 = vpack.c.b16 %v3065, %v3063
      %v3086 = vpack.c.b16 %v3066, %v3064
      %v3087 = vpack.c.b16 %v3069, %v3067
      %v3088 = vpack.c.b16 %v3070, %v3068
      %v3089 = vpack.c.b16 %v3073, %v3071
      %v3090 = vpack.c.b16 %v3074, %v3072
      %3107 = vmatprep.subr.bf16.mxu0 %v3076
      %3108 = vmatpush1.bf16.msra.mxu0 %v3075
      %3109 = vmatprep.subr.bf16.mxu0 %v3078
      %3110 = vmatpush1.bf16.msra.mxu0 %v3077
      %3111 = vmatprep.subr.bf16.mxu0 %v3080
      %3112 = vmatpush1.bf16.msra.mxu0 %v3079
      %3113 = vmatprep.subr.bf16.mxu0 %v3082
      %3114 = vmatpush1.bf16.msra.mxu0 %v3081
      %3115 = vmatprep.subr.bf16.mxu0 %v3084
      %3116 = vmatpush1.bf16.msra.mxu0 %v3083
      %3117 = vmatprep.subr.bf16.mxu0 %v3086
      %3118 = vmatpush1.bf16.msra.mxu0 %v3085
      %3119 = vmatprep.subr.bf16.mxu0 %v3088
      %3120 = vmatpush1.bf16.msra.mxu0 %v3087
      %3121 = vmatprep.subr.bf16.mxu0 %v3090
      %3122 = vmatpush1.bf16.msra.mxu0 %v3089
      %3123 = vmatprep.subr.bf16.mxu0 0
      %3124 = vmatpush1.bf16.msra.mxu0 0
      %3125 = vmatprep.subr.bf16.mxu0 0
      %3126 = vmatpush1.bf16.msra.mxu0 0
      %3127 = vmatprep.subr.bf16.mxu0 0
      %3128 = vmatpush1.bf16.msra.mxu0 0
      %3129 = vmatprep.subr.bf16.mxu0 0
      %3130 = vmatpush1.bf16.msra.mxu0 0
      %3131 = vmatprep.subr.bf16.mxu0 0
      %3132 = vmatpush1.bf16.msra.mxu0 0
      %3133 = vmatprep.subr.bf16.mxu0 0
      %3134 = vmatpush1.bf16.msra.mxu0 0
      %3135 = vmatprep.subr.bf16.mxu0 0
      %3136 = vmatpush1.bf16.msra.mxu0 0
      %3137 = vmatprep.subr.bf16.mxu0 0
      %3138 = vmatpush1.bf16.msra.mxu0 0
      %3139 = vmatprep.mubr.bf16.mxu0 0
      %3140 = vmatmul.mubr.bf16.gmra.mrb[0].mxu0 %v3008
      %v3141 = vpop.f32.mrb[0].mxu0
      %v3142 = vadd.f32 0.0, %v3141
      %v3143 = vpop.f32.mrb[0].mxu0
      %v3144 = vadd.f32 0.0, %v3143
      %v3145 = vpop.f32.mrb[0].mxu0
      %v3146 = vadd.f32 0.0, %v3145
      %v3147 = vpop.f32.mrb[0].mxu0
      %v3148 = vadd.f32 0.0, %v3147
      %3149 = vmatprep.mubr.bf16.mxu0 0
      %3150 = vmatmul.mubr.bf16.gmra.mrb[0].mxu0 %v3009
      %v3151 = vpop.f32.mrb[0].mxu0
      %v3152 = vadd.f32 0.0, %v3151
      %v3153 = vpop.f32.mrb[0].mxu0
      %v3154 = vadd.f32 0.0, %v3153
      %v3155 = vpop.f32.mrb[0].mxu0
      %v3156 = vadd.f32 0.0, %v3155
      %v3157 = vpop.f32.mrb[0].mxu0
      %v3158 = vadd.f32 0.0, %v3157
      %3159 = vdwg.mxu0
      %v3160 = vadd.f32 %v2996, %v3142
      %v3161 = vadd.f32 %v2997, %v3144
      %v3162 = vadd.f32 %v2998, %v3146
      %v3163 = vadd.f32 %v2999, %v3148
      %v3164 = vadd.f32 %v3000, %v3152
      %v3165 = vadd.f32 %v3001, %v3154
      %v3166 = vadd.f32 %v3002, %v3156
      %v3167 = vadd.f32 %v3003, %v3158
      %v3168 = vld [vmem:[%s2839 + $0x1] sm:$0xff]
      %v3169 = vld [vmem:[%s2839 + $0x11] sm:$0xff]
      %v3170 = vld [vmem:[%s2839 + $0x21] sm:$0xff]
      %v3171 = vld [vmem:[%s2839 + $0x31] sm:$0xff]
      %v3172 = vpack.c.bf16 %v3169, %v3168
      %v3173 = vpack.c.bf16 %v3171, %v3170
      %s3174 = scalar_lea.vmem %s1, 2304
      %v3175 = vld [vmem:[%s3174] sm:$0xff]
      %v3176 = vld [vmem:[%s3174 + $0x8] sm:$0xff]
      %v3177 = vld [vmem:[%s3174 + $0x10] sm:$0xff]
      %v3178 = vld [vmem:[%s3174 + $0x18] sm:$0xff]
      %v3179 = vld [vmem:[%s3174 + $0x20] sm:$0xff]
      %v3180 = vld [vmem:[%s3174 + $0x28] sm:$0xff]
      %v3181 = vld [vmem:[%s3174 + $0x30] sm:$0xff]
      %v3182 = vld [vmem:[%s3174 + $0x38] sm:$0xff]
      %v3183 = vld [vmem:[%s3174 + $0x40] sm:$0xff]
      %v3184 = vld [vmem:[%s3174 + $0x48] sm:$0xff]
      %v3185 = vld [vmem:[%s3174 + $0x50] sm:$0xff]
      %v3186 = vld [vmem:[%s3174 + $0x58] sm:$0xff]
      %v3187 = vld [vmem:[%s3174 + $0x60] sm:$0xff]
      %v3188 = vld [vmem:[%s3174 + $0x68] sm:$0xff]
      %v3189 = vld [vmem:[%s3174 + $0x70] sm:$0xff]
      %v3190 = vld [vmem:[%s3174 + $0x78] sm:$0xff]
      %v3207 = vunpack.c.l.b16 %v3175
      %v3208 = vunpack.c.h.b16 %v3175
      %v3209 = vunpack.c.l.b16 %v3176
      %v3210 = vunpack.c.h.b16 %v3176
      %v3211 = vunpack.c.l.b16 %v3177
      %v3212 = vunpack.c.h.b16 %v3177
      %v3213 = vunpack.c.l.b16 %v3178
      %v3214 = vunpack.c.h.b16 %v3178
      %v3215 = vunpack.c.l.b16 %v3179
      %v3216 = vunpack.c.h.b16 %v3179
      %v3217 = vunpack.c.l.b16 %v3180
      %v3218 = vunpack.c.h.b16 %v3180
      %v3219 = vunpack.c.l.b16 %v3181
      %v3220 = vunpack.c.h.b16 %v3181
      %v3221 = vunpack.c.l.b16 %v3182
      %v3222 = vunpack.c.h.b16 %v3182
      %v3223 = vunpack.c.l.b16 %v3183
      %v3224 = vunpack.c.h.b16 %v3183
      %v3225 = vunpack.c.l.b16 %v3184
      %v3226 = vunpack.c.h.b16 %v3184
      %v3227 = vunpack.c.l.b16 %v3185
      %v3228 = vunpack.c.h.b16 %v3185
      %v3229 = vunpack.c.l.b16 %v3186
      %v3230 = vunpack.c.h.b16 %v3186
      %v3231 = vunpack.c.l.b16 %v3187
      %v3232 = vunpack.c.h.b16 %v3187
      %v3233 = vunpack.c.l.b16 %v3188
      %v3234 = vunpack.c.h.b16 %v3188
      %v3235 = vunpack.c.l.b16 %v3189
      %v3236 = vunpack.c.h.b16 %v3189
      %v3237 = vunpack.c.l.b16 %v3190
      %v3238 = vunpack.c.h.b16 %v3190
      %v3239 = vpack.c.b16 %v3209, %v3207
      %v3240 = vpack.c.b16 %v3210, %v3208
      %v3241 = vpack.c.b16 %v3213, %v3211
      %v3242 = vpack.c.b16 %v3214, %v3212
      %v3243 = vpack.c.b16 %v3217, %v3215
      %v3244 = vpack.c.b16 %v3218, %v3216
      %v3245 = vpack.c.b16 %v3221, %v3219
      %v3246 = vpack.c.b16 %v3222, %v3220
      %v3247 = vpack.c.b16 %v3225, %v3223
      %v3248 = vpack.c.b16 %v3226, %v3224
      %v3249 = vpack.c.b16 %v3229, %v3227
      %v3250 = vpack.c.b16 %v3230, %v3228
      %v3251 = vpack.c.b16 %v3233, %v3231
      %v3252 = vpack.c.b16 %v3234, %v3232
      %v3253 = vpack.c.b16 %v3237, %v3235
      %v3254 = vpack.c.b16 %v3238, %v3236
      %3271 = vmatprep.subr.bf16.mxu0 %v3240
      %3272 = vmatpush1.bf16.msra.mxu0 %v3239
      %3273 = vmatprep.subr.bf16.mxu0 %v3242
      %3274 = vmatpush1.bf16.msra.mxu0 %v3241
      %3275 = vmatprep.subr.bf16.mxu0 %v3244
      %3276 = vmatpush1.bf16.msra.mxu0 %v3243
      %3277 = vmatprep.subr.bf16.mxu0 %v3246
      %3278 = vmatpush1.bf16.msra.mxu0 %v3245
      %3279 = vmatprep.subr.bf16.mxu0 %v3248
      %3280 = vmatpush1.bf16.msra.mxu0 %v3247
      %3281 = vmatprep.subr.bf16.mxu0 %v3250
      %3282 = vmatpush1.bf16.msra.mxu0 %v3249
      %3283 = vmatprep.subr.bf16.mxu0 %v3252
      %3284 = vmatpush1.bf16.msra.mxu0 %v3251
      %3285 = vmatprep.subr.bf16.mxu0 %v3254
      %3286 = vmatpush1.bf16.msra.mxu0 %v3253
      %3287 = vmatprep.subr.bf16.mxu0 0
      %3288 = vmatpush1.bf16.msra.mxu0 0
      %3289 = vmatprep.subr.bf16.mxu0 0
      %3290 = vmatpush1.bf16.msra.mxu0 0
      %3291 = vmatprep.subr.bf16.mxu0 0
      %3292 = vmatpush1.bf16.msra.mxu0 0
      %3293 = vmatprep.subr.bf16.mxu0 0
      %3294 = vmatpush1.bf16.msra.mxu0 0
      %3295 = vmatprep.subr.bf16.mxu0 0
      %3296 = vmatpush1.bf16.msra.mxu0 0
      %3297 = vmatprep.subr.bf16.mxu0 0
      %3298 = vmatpush1.bf16.msra.mxu0 0
      %3299 = vmatprep.subr.bf16.mxu0 0
      %3300 = vmatpush1.bf16.msra.mxu0 0
      %3301 = vmatprep.subr.bf16.mxu0 0
      %3302 = vmatpush1.bf16.msra.mxu0 0
      %3303 = vmatprep.mubr.bf16.mxu0 0
      %3304 = vmatmul.mubr.bf16.gmra.mrb[0].mxu0 %v3172
      %v3305 = vpop.f32.mrb[0].mxu0
      %v3306 = vadd.f32 0.0, %v3305
      %v3307 = vpop.f32.mrb[0].mxu0
      %v3308 = vadd.f32 0.0, %v3307
      %v3309 = vpop.f32.mrb[0].mxu0
      %v3310 = vadd.f32 0.0, %v3309
      %v3311 = vpop.f32.mrb[0].mxu0
      %v3312 = vadd.f32 0.0, %v3311
      %3313 = vmatprep.mubr.bf16.mxu0 0
      %3314 = vmatmul.mubr.bf16.gmra.mrb[0].mxu0 %v3173
      %v3315 = vpop.f32.mrb[0].mxu0
      %v3316 = vadd.f32 0.0, %v3315
      %v3317 = vpop.f32.mrb[0].mxu0
      %v3318 = vadd.f32 0.0, %v3317
      %v3319 = vpop.f32.mrb[0].mxu0
      %v3320 = vadd.f32 0.0, %v3319
      %v3321 = vpop.f32.mrb[0].mxu0
      %v3322 = vadd.f32 0.0, %v3321
      %3323 = vdwg.mxu0
      %v3324 = vadd.f32 %v3160, %v3306
      %v3325 = vadd.f32 %v3161, %v3308
      %v3326 = vadd.f32 %v3162, %v3310
      %v3327 = vadd.f32 %v3163, %v3312
      %v3328 = vadd.f32 %v3164, %v3316
      %v3329 = vadd.f32 %v3165, %v3318
      %v3330 = vadd.f32 %v3166, %v3320
      %v3331 = vadd.f32 %v3167, %v3322
      %v3332 = vld [vmem:[%s2674 + $0x2] sm:$0xff]
      %v3333 = vld [vmem:[%s2674 + $0x12] sm:$0xff]
      %v3334 = vld [vmem:[%s2674 + $0x22] sm:$0xff]
      %v3335 = vld [vmem:[%s2674 + $0x32] sm:$0xff]
      %v3336 = vpack.c.bf16 %v3333, %v3332
      %v3337 = vpack.c.bf16 %v3335, %v3334
      %s3338 = scalar_lea.vmem %s1, 2432
      %v3339 = vld [vmem:[%s3338] sm:$0xff]
      %v3340 = vld [vmem:[%s3338 + $0x8] sm:$0xff]
      %v3341 = vld [vmem:[%s3338 + $0x10] sm:$0xff]
      %v3342 = vld [vmem:[%s3338 + $0x18] sm:$0xff]
      %v3343 = vld [vmem:[%s3338 + $0x20] sm:$0xff]
      %v3344 = vld [vmem:[%s3338 + $0x28] sm:$0xff]
      %v3345 = vld [vmem:[%s3338 + $0x30] sm:$0xff]
      %v3346 = vld [vmem:[%s3338 + $0x38] sm:$0xff]
      %v3347 = vld [vmem:[%s3338 + $0x40] sm:$0xff]
      %v3348 = vld [vmem:[%s3338 + $0x48] sm:$0xff]
      %v3349 = vld [vmem:[%s3338 + $0x50] sm:$0xff]
      %v3350 = vld [vmem:[%s3338 + $0x58] sm:$0xff]
      %v3351 = vld [vmem:[%s3338 + $0x60] sm:$0xff]
      %v3352 = vld [vmem:[%s3338 + $0x68] sm:$0xff]
      %v3353 = vld [vmem:[%s3338 + $0x70] sm:$0xff]
      %v3354 = vld [vmem:[%s3338 + $0x78] sm:$0xff]
      %v3371 = vunpack.c.l.b16 %v3339
      %v3372 = vunpack.c.h.b16 %v3339
      %v3373 = vunpack.c.l.b16 %v3340
      %v3374 = vunpack.c.h.b16 %v3340
      %v3375 = vunpack.c.l.b16 %v3341
      %v3376 = vunpack.c.h.b16 %v3341
      %v3377 = vunpack.c.l.b16 %v3342
      %v3378 = vunpack.c.h.b16 %v3342
      %v3379 = vunpack.c.l.b16 %v3343
      %v3380 = vunpack.c.h.b16 %v3343
      %v3381 = vunpack.c.l.b16 %v3344
      %v3382 = vunpack.c.h.b16 %v3344
      %v3383 = vunpack.c.l.b16 %v3345
      %v3384 = vunpack.c.h.b16 %v3345
      %v3385 = vunpack.c.l.b16 %v3346
      %v3386 = vunpack.c.h.b16 %v3346
      %v3387 = vunpack.c.l.b16 %v3347
      %v3388 = vunpack.c.h.b16 %v3347
      %v3389 = vunpack.c.l.b16 %v3348
      %v3390 = vunpack.c.h.b16 %v3348
      %v3391 = vunpack.c.l.b16 %v3349
      %v3392 = vunpack.c.h.b16 %v3349
      %v3393 = vunpack.c.l.b16 %v3350
      %v3394 = vunpack.c.h.b16 %v3350
      %v3395 = vunpack.c.l.b16 %v3351
      %v3396 = vunpack.c.h.b16 %v3351
      %v3397 = vunpack.c.l.b16 %v3352
      %v3398 = vunpack.c.h.b16 %v3352
      %v3399 = vunpack.c.l.b16 %v3353
      %v3400 = vunpack.c.h.b16 %v3353
      %v3401 = vunpack.c.l.b16 %v3354
      %v3402 = vunpack.c.h.b16 %v3354
      %v3403 = vpack.c.b16 %v3373, %v3371
      %v3404 = vpack.c.b16 %v3374, %v3372
      %v3405 = vpack.c.b16 %v3377, %v3375
      %v3406 = vpack.c.b16 %v3378, %v3376
      %v3407 = vpack.c.b16 %v3381, %v3379
      %v3408 = vpack.c.b16 %v3382, %v3380
      %v3409 = vpack.c.b16 %v3385, %v3383
      %v3410 = vpack.c.b16 %v3386, %v3384
      %v3411 = vpack.c.b16 %v3389, %v3387
      %v3412 = vpack.c.b16 %v3390, %v3388
      %v3413 = vpack.c.b16 %v3393, %v3391
      %v3414 = vpack.c.b16 %v3394, %v3392
      %v3415 = vpack.c.b16 %v3397, %v3395
      %v3416 = vpack.c.b16 %v3398, %v3396
      %v3417 = vpack.c.b16 %v3401, %v3399
      %v3418 = vpack.c.b16 %v3402, %v3400
      %3435 = vmatprep.subr.bf16.mxu0 %v3404
      %3436 = vmatpush1.bf16.msra.mxu0 %v3403
      %3437 = vmatprep.subr.bf16.mxu0 %v3406
      %3438 = vmatpush1.bf16.msra.mxu0 %v3405
      %3439 = vmatprep.subr.bf16.mxu0 %v3408
      %3440 = vmatpush1.bf16.msra.mxu0 %v3407
      %3441 = vmatprep.subr.bf16.mxu0 %v3410
      %3442 = vmatpush1.bf16.msra.mxu0 %v3409
      %3443 = vmatprep.subr.bf16.mxu0 %v3412
      %3444 = vmatpush1.bf16.msra.mxu0 %v3411
      %3445 = vmatprep.subr.bf16.mxu0 %v3414
      %3446 = vmatpush1.bf16.msra.mxu0 %v3413
      %3447 = vmatprep.subr.bf16.mxu0 %v3416
      %3448 = vmatpush1.bf16.msra.mxu0 %v3415
      %3449 = vmatprep.subr.bf16.mxu0 %v3418
      %3450 = vmatpush1.bf16.msra.mxu0 %v3417
      %3451 = vmatprep.subr.bf16.mxu0 0
      %3452 = vmatpush1.bf16.msra.mxu0 0
      %3453 = vmatprep.subr.bf16.mxu0 0
      %3454 = vmatpush1.bf16.msra.mxu0 0
      %3455 = vmatprep.subr.bf16.mxu0 0
      %3456 = vmatpush1.bf16.msra.mxu0 0
      %3457 = vmatprep.subr.bf16.mxu0 0
      %3458 = vmatpush1.bf16.msra.mxu0 0
      %3459 = vmatprep.subr.bf16.mxu0 0
      %3460 = vmatpush1.bf16.msra.mxu0 0
      %3461 = vmatprep.subr.bf16.mxu0 0
      %3462 = vmatpush1.bf16.msra.mxu0 0
      %3463 = vmatprep.subr.bf16.mxu0 0
      %3464 = vmatpush1.bf16.msra.mxu0 0
      %3465 = vmatprep.subr.bf16.mxu0 0
      %3466 = vmatpush1.bf16.msra.mxu0 0
      %3467 = vmatprep.mubr.bf16.mxu0 0
      %3468 = vmatmul.mubr.bf16.gmra.mrb[0].mxu0 %v3336
      %v3469 = vpop.f32.mrb[0].mxu0
      %v3470 = vadd.f32 0.0, %v3469
      %v3471 = vpop.f32.mrb[0].mxu0
      %v3472 = vadd.f32 0.0, %v3471
      %v3473 = vpop.f32.mrb[0].mxu0
      %v3474 = vadd.f32 0.0, %v3473
      %v3475 = vpop.f32.mrb[0].mxu0
      %v3476 = vadd.f32 0.0, %v3475
      %3477 = vmatprep.mubr.bf16.mxu0 0
      %3478 = vmatmul.mubr.bf16.gmra.mrb[0].mxu0 %v3337
      %v3479 = vpop.f32.mrb[0].mxu0
      %v3480 = vadd.f32 0.0, %v3479
      %v3481 = vpop.f32.mrb[0].mxu0
      %v3482 = vadd.f32 0.0, %v3481
      %v3483 = vpop.f32.mrb[0].mxu0
      %v3484 = vadd.f32 0.0, %v3483
      %v3485 = vpop.f32.mrb[0].mxu0
      %v3486 = vadd.f32 0.0, %v3485
      %3487 = vdwg.mxu0
      %v3488 = vadd.f32 %v3324, %v3470
      %v3489 = vadd.f32 %v3325, %v3472
      %v3490 = vadd.f32 %v3326, %v3474
      %v3491 = vadd.f32 %v3327, %v3476
      %v3492 = vadd.f32 %v3328, %v3480
      %v3493 = vadd.f32 %v3329, %v3482
      %v3494 = vadd.f32 %v3330, %v3484
      %v3495 = vadd.f32 %v3331, %v3486
      %s3496 = scalar_lea.vmem %s220, 32
      %v3497 = vld [vmem:[%s3496] sm:$0xff]
      %v3498 = vld [vmem:[%s3496 + $0x10] sm:$0xff]
      %v3499 = vld [vmem:[%s3496 + $0x20] sm:$0xff]
      %v3500 = vld [vmem:[%s3496 + $0x30] sm:$0xff]
      %v3501 = vpack.c.bf16 %v3498, %v3497
      %v3502 = vpack.c.bf16 %v3500, %v3499
      %s3503 = scalar_lea.vmem %s1, 2560
      %v3504 = vld [vmem:[%s3503] sm:$0xff]
      %v3505 = vld [vmem:[%s3503 + $0x8] sm:$0xff]
      %v3506 = vld [vmem:[%s3503 + $0x10] sm:$0xff]
      %v3507 = vld [vmem:[%s3503 + $0x18] sm:$0xff]
      %v3508 = vld [vmem:[%s3503 + $0x20] sm:$0xff]
      %v3509 = vld [vmem:[%s3503 + $0x28] sm:$0xff]
      %v3510 = vld [vmem:[%s3503 + $0x30] sm:$0xff]
      %v3511 = vld [vmem:[%s3503 + $0x38] sm:$0xff]
      %v3512 = vld [vmem:[%s3503 + $0x40] sm:$0xff]
      %v3513 = vld [vmem:[%s3503 + $0x48] sm:$0xff]
      %v3514 = vld [vmem:[%s3503 + $0x50] sm:$0xff]
      %v3515 = vld [vmem:[%s3503 + $0x58] sm:$0xff]
      %v3516 = vld [vmem:[%s3503 + $0x60] sm:$0xff]
      %v3517 = vld [vmem:[%s3503 + $0x68] sm:$0xff]
      %v3518 = vld [vmem:[%s3503 + $0x70] sm:$0xff]
      %v3519 = vld [vmem:[%s3503 + $0x78] sm:$0xff]
      %v3536 = vunpack.c.l.b16 %v3504
      %v3537 = vunpack.c.h.b16 %v3504
      %v3538 = vunpack.c.l.b16 %v3505
      %v3539 = vunpack.c.h.b16 %v3505
      %v3540 = vunpack.c.l.b16 %v3506
      %v3541 = vunpack.c.h.b16 %v3506
      %v3542 = vunpack.c.l.b16 %v3507
      %v3543 = vunpack.c.h.b16 %v3507
      %v3544 = vunpack.c.l.b16 %v3508
      %v3545 = vunpack.c.h.b16 %v3508
      %v3546 = vunpack.c.l.b16 %v3509
      %v3547 = vunpack.c.h.b16 %v3509
      %v3548 = vunpack.c.l.b16 %v3510
      %v3549 = vunpack.c.h.b16 %v3510
      %v3550 = vunpack.c.l.b16 %v3511
      %v3551 = vunpack.c.h.b16 %v3511
      %v3552 = vunpack.c.l.b16 %v3512
      %v3553 = vunpack.c.h.b16 %v3512
      %v3554 = vunpack.c.l.b16 %v3513
      %v3555 = vunpack.c.h.b16 %v3513
      %v3556 = vunpack.c.l.b16 %v3514
      %v3557 = vunpack.c.h.b16 %v3514
      %v3558 = vunpack.c.l.b16 %v3515
      %v3559 = vunpack.c.h.b16 %v3515
      %v3560 = vunpack.c.l.b16 %v3516
      %v3561 = vunpack.c.h.b16 %v3516
      %v3562 = vunpack.c.l.b16 %v3517
      %v3563 = vunpack.c.h.b16 %v3517
      %v3564 = vunpack.c.l.b16 %v3518
      %v3565 = vunpack.c.h.b16 %v3518
      %v3566 = vunpack.c.l.b16 %v3519
      %v3567 = vunpack.c.h.b16 %v3519
      %v3568 = vpack.c.b16 %v3538, %v3536
      %v3569 = vpack.c.b16 %v3539, %v3537
      %v3570 = vpack.c.b16 %v3542, %v3540
      %v3571 = vpack.c.b16 %v3543, %v3541
      %v3572 = vpack.c.b16 %v3546, %v3544
      %v3573 = vpack.c.b16 %v3547, %v3545
      %v3574 = vpack.c.b16 %v3550, %v3548
      %v3575 = vpack.c.b16 %v3551, %v3549
      %v3576 = vpack.c.b16 %v3554, %v3552
      %v3577 = vpack.c.b16 %v3555, %v3553
      %v3578 = vpack.c.b16 %v3558, %v3556
      %v3579 = vpack.c.b16 %v3559, %v3557
      %v3580 = vpack.c.b16 %v3562, %v3560
      %v3581 = vpack.c.b16 %v3563, %v3561
      %v3582 = vpack.c.b16 %v3566, %v3564
      %v3583 = vpack.c.b16 %v3567, %v3565
      %3600 = vmatprep.subr.bf16.mxu0 %v3569
      %3601 = vmatpush1.bf16.msra.mxu0 %v3568
      %3602 = vmatprep.subr.bf16.mxu0 %v3571
      %3603 = vmatpush1.bf16.msra.mxu0 %v3570
      %3604 = vmatprep.subr.bf16.mxu0 %v3573
      %3605 = vmatpush1.bf16.msra.mxu0 %v3572
      %3606 = vmatprep.subr.bf16.mxu0 %v3575
      %3607 = vmatpush1.bf16.msra.mxu0 %v3574
      %3608 = vmatprep.subr.bf16.mxu0 %v3577
      %3609 = vmatpush1.bf16.msra.mxu0 %v3576
      %3610 = vmatprep.subr.bf16.mxu0 %v3579
      %3611 = vmatpush1.bf16.msra.mxu0 %v3578
      %3612 = vmatprep.subr.bf16.mxu0 %v3581
      %3613 = vmatpush1.bf16.msra.mxu0 %v3580
      %3614 = vmatprep.subr.bf16.mxu0 %v3583
      %3615 = vmatpush1.bf16.msra.mxu0 %v3582
      %3616 = vmatprep.subr.bf16.mxu0 0
      %3617 = vmatpush1.bf16.msra.mxu0 0
      %3618 = vmatprep.subr.bf16.mxu0 0
      %3619 = vmatpush1.bf16.msra.mxu0 0
      %3620 = vmatprep.subr.bf16.mxu0 0
      %3621 = vmatpush1.bf16.msra.mxu0 0
      %3622 = vmatprep.subr.bf16.mxu0 0
      %3623 = vmatpush1.bf16.msra.mxu0 0
      %3624 = vmatprep.subr.bf16.mxu0 0
      %3625 = vmatpush1.bf16.msra.mxu0 0
      %3626 = vmatprep.subr.bf16.mxu0 0
      %3627 = vmatpush1.bf16.msra.mxu0 0
      %3628 = vmatprep.subr.bf16.mxu0 0
      %3629 = vmatpush1.bf16.msra.mxu0 0
      %3630 = vmatprep.subr.bf16.mxu0 0
      %3631 = vmatpush1.bf16.msra.mxu0 0
      %3632 = vmatprep.mubr.bf16.mxu0 0
      %3633 = vmatmul.mubr.bf16.gmra.mrb[0].mxu0 %v3501
      %v3634 = vpop.f32.mrb[0].mxu0
      %v3635 = vadd.f32 0.0, %v3634
      %v3636 = vpop.f32.mrb[0].mxu0
      %v3637 = vadd.f32 0.0, %v3636
      %v3638 = vpop.f32.mrb[0].mxu0
      %v3639 = vadd.f32 0.0, %v3638
      %v3640 = vpop.f32.mrb[0].mxu0
      %v3641 = vadd.f32 0.0, %v3640
      %3642 = vmatprep.mubr.bf16.mxu0 0
      %3643 = vmatmul.mubr.bf16.gmra.mrb[0].mxu0 %v3502
      %v3644 = vpop.f32.mrb[0].mxu0
      %v3645 = vadd.f32 0.0, %v3644
      %v3646 = vpop.f32.mrb[0].mxu0
      %v3647 = vadd.f32 0.0, %v3646
      %v3648 = vpop.f32.mrb[0].mxu0
      %v3649 = vadd.f32 0.0, %v3648
      %v3650 = vpop.f32.mrb[0].mxu0
      %v3651 = vadd.f32 0.0, %v3650
      %3652 = vdwg.mxu0
      %v3653 = vadd.f32 %v3488, %v3635
      %v3654 = vadd.f32 %v3489, %v3637
      %v3655 = vadd.f32 %v3490, %v3639
      %v3656 = vadd.f32 %v3491, %v3641
      %v3657 = vadd.f32 %v3492, %v3645
      %v3658 = vadd.f32 %v3493, %v3647
      %v3659 = vadd.f32 %v3494, %v3649
      %v3660 = vadd.f32 %v3495, %v3651
      %s3661 = scalar_lea.vmem %s220, 128
      %v3662 = vld [vmem:[%s3661] sm:$0xff]
      %v3663 = vld [vmem:[%s3661 + $0x10] sm:$0xff]
      %v3664 = vld [vmem:[%s3661 + $0x20] sm:$0xff]
      %v3665 = vld [vmem:[%s3661 + $0x30] sm:$0xff]
      %v3666 = vpack.c.bf16 %v3663, %v3662
      %v3667 = vpack.c.bf16 %v3665, %v3664
      %s3668 = scalar_lea.vmem %s1, 2688
      %v3669 = vld [vmem:[%s3668] sm:$0xff]
      %v3670 = vld [vmem:[%s3668 + $0x8] sm:$0xff]
      %v3671 = vld [vmem:[%s3668 + $0x10] sm:$0xff]
      %v3672 = vld [vmem:[%s3668 + $0x18] sm:$0xff]
      %v3673 = vld [vmem:[%s3668 + $0x20] sm:$0xff]
      %v3674 = vld [vmem:[%s3668 + $0x28] sm:$0xff]
      %v3675 = vld [vmem:[%s3668 + $0x30] sm:$0xff]
      %v3676 = vld [vmem:[%s3668 + $0x38] sm:$0xff]
      %v3677 = vld [vmem:[%s3668 + $0x40] sm:$0xff]
      %v3678 = vld [vmem:[%s3668 + $0x48] sm:$0xff]
      %v3679 = vld [vmem:[%s3668 + $0x50] sm:$0xff]
      %v3680 = vld [vmem:[%s3668 + $0x58] sm:$0xff]
      %v3681 = vld [vmem:[%s3668 + $0x60] sm:$0xff]
      %v3682 = vld [vmem:[%s3668 + $0x68] sm:$0xff]
      %v3683 = vld [vmem:[%s3668 + $0x70] sm:$0xff]
      %v3684 = vld [vmem:[%s3668 + $0x78] sm:$0xff]
      %v3701 = vunpack.c.l.b16 %v3669
      %v3702 = vunpack.c.h.b16 %v3669
      %v3703 = vunpack.c.l.b16 %v3670
      %v3704 = vunpack.c.h.b16 %v3670
      %v3705 = vunpack.c.l.b16 %v3671
      %v3706 = vunpack.c.h.b16 %v3671
      %v3707 = vunpack.c.l.b16 %v3672
      %v3708 = vunpack.c.h.b16 %v3672
      %v3709 = vunpack.c.l.b16 %v3673
      %v3710 = vunpack.c.h.b16 %v3673
      %v3711 = vunpack.c.l.b16 %v3674
      %v3712 = vunpack.c.h.b16 %v3674
      %v3713 = vunpack.c.l.b16 %v3675
      %v3714 = vunpack.c.h.b16 %v3675
      %v3715 = vunpack.c.l.b16 %v3676
      %v3716 = vunpack.c.h.b16 %v3676
      %v3717 = vunpack.c.l.b16 %v3677
      %v3718 = vunpack.c.h.b16 %v3677
      %v3719 = vunpack.c.l.b16 %v3678
      %v3720 = vunpack.c.h.b16 %v3678
      %v3721 = vunpack.c.l.b16 %v3679
      %v3722 = vunpack.c.h.b16 %v3679
      %v3723 = vunpack.c.l.b16 %v3680
      %v3724 = vunpack.c.h.b16 %v3680
      %v3725 = vunpack.c.l.b16 %v3681
      %v3726 = vunpack.c.h.b16 %v3681
      %v3727 = vunpack.c.l.b16 %v3682
      %v3728 = vunpack.c.h.b16 %v3682
      %v3729 = vunpack.c.l.b16 %v3683
      %v3730 = vunpack.c.h.b16 %v3683
      %v3731 = vunpack.c.l.b16 %v3684
      %v3732 = vunpack.c.h.b16 %v3684
      %v3733 = vpack.c.b16 %v3703, %v3701
      %v3734 = vpack.c.b16 %v3704, %v3702
      %v3735 = vpack.c.b16 %v3707, %v3705
      %v3736 = vpack.c.b16 %v3708, %v3706
      %v3737 = vpack.c.b16 %v3711, %v3709
      %v3738 = vpack.c.b16 %v3712, %v3710
      %v3739 = vpack.c.b16 %v3715, %v3713
      %v3740 = vpack.c.b16 %v3716, %v3714
      %v3741 = vpack.c.b16 %v3719, %v3717
      %v3742 = vpack.c.b16 %v3720, %v3718
      %v3743 = vpack.c.b16 %v3723, %v3721
      %v3744 = vpack.c.b16 %v3724, %v3722
      %v3745 = vpack.c.b16 %v3727, %v3725
      %v3746 = vpack.c.b16 %v3728, %v3726
      %v3747 = vpack.c.b16 %v3731, %v3729
      %v3748 = vpack.c.b16 %v3732, %v3730
      %3765 = vmatprep.subr.bf16.mxu0 %v3734
      %3766 = vmatpush1.bf16.msra.mxu0 %v3733
      %3767 = vmatprep.subr.bf16.mxu0 %v3736
      %3768 = vmatpush1.bf16.msra.mxu0 %v3735
      %3769 = vmatprep.subr.bf16.mxu0 %v3738
      %3770 = vmatpush1.bf16.msra.mxu0 %v3737
      %3771 = vmatprep.subr.bf16.mxu0 %v3740
      %3772 = vmatpush1.bf16.msra.mxu0 %v3739
      %3773 = vmatprep.subr.bf16.mxu0 %v3742
      %3774 = vmatpush1.bf16.msra.mxu0 %v3741
      %3775 = vmatprep.subr.bf16.mxu0 %v3744
      %3776 = vmatpush1.bf16.msra.mxu0 %v3743
      %3777 = vmatprep.subr.bf16.mxu0 %v3746
      %3778 = vmatpush1.bf16.msra.mxu0 %v3745
      %3779 = vmatprep.subr.bf16.mxu0 %v3748
      %3780 = vmatpush1.bf16.msra.mxu0 %v3747
      %3781 = vmatprep.subr.bf16.mxu0 0
      %3782 = vmatpush1.bf16.msra.mxu0 0
      %3783 = vmatprep.subr.bf16.mxu0 0
      %3784 = vmatpush1.bf16.msra.mxu0 0
      %3785 = vmatprep.subr.bf16.mxu0 0
      %3786 = vmatpush1.bf16.msra.mxu0 0
      %3787 = vmatprep.subr.bf16.mxu0 0
      %3788 = vmatpush1.bf16.msra.mxu0 0
      %3789 = vmatprep.subr.bf16.mxu0 0
      %3790 = vmatpush1.bf16.msra.mxu0 0
      %3791 = vmatprep.subr.bf16.mxu0 0
      %3792 = vmatpush1.bf16.msra.mxu0 0
      %3793 = vmatprep.subr.bf16.mxu0 0
      %3794 = vmatpush1.bf16.msra.mxu0 0
      %3795 = vmatprep.subr.bf16.mxu0 0
      %3796 = vmatpush1.bf16.msra.mxu0 0
      %3797 = vmatprep.mubr.bf16.mxu0 0
      %3798 = vmatmul.mubr.bf16.gmra.mrb[0].mxu0 %v3666
      %v3799 = vpop.f32.mrb[0].mxu0
      %v3800 = vadd.f32 0.0, %v3799
      %v3801 = vpop.f32.mrb[0].mxu0
      %v3802 = vadd.f32 0.0, %v3801
      %v3803 = vpop.f32.mrb[0].mxu0
      %v3804 = vadd.f32 0.0, %v3803
      %v3805 = vpop.f32.mrb[0].mxu0
      %v3806 = vadd.f32 0.0, %v3805
      %3807 = vmatprep.mubr.bf16.mxu0 0
      %3808 = vmatmul.mubr.bf16.gmra.mrb[0].mxu0 %v3667
      %v3809 = vpop.f32.mrb[0].mxu0
      %v3810 = vadd.f32 0.0, %v3809
      %v3811 = vpop.f32.mrb[0].mxu0
      %v3812 = vadd.f32 0.0, %v3811
      %v3813 = vpop.f32.mrb[0].mxu0
      %v3814 = vadd.f32 0.0, %v3813
      %v3815 = vpop.f32.mrb[0].mxu0
      %v3816 = vadd.f32 0.0, %v3815
      %3817 = vdwg.mxu0
      %v3818 = vadd.f32 %v3653, %v3800
      %v3819 = vadd.f32 %v3654, %v3802
      %v3820 = vadd.f32 %v3655, %v3804
      %v3821 = vadd.f32 %v3656, %v3806
      %v3822 = vadd.f32 %v3657, %v3810
      %v3823 = vadd.f32 %v3658, %v3812
      %v3824 = vadd.f32 %v3659, %v3814
      %v3825 = vadd.f32 %v3660, %v3816
      %v3826 = vld [vmem:[%s3496 + $0x1] sm:$0xff]
      %v3827 = vld [vmem:[%s3496 + $0x11] sm:$0xff]
      %v3828 = vld [vmem:[%s3496 + $0x21] sm:$0xff]
      %v3829 = vld [vmem:[%s3496 + $0x31] sm:$0xff]
      %v3830 = vpack.c.bf16 %v3827, %v3826
      %v3831 = vpack.c.bf16 %v3829, %v3828
      %s3832 = scalar_lea.vmem %s1, 2816
      %v3833 = vld [vmem:[%s3832] sm:$0xff]
      %v3834 = vld [vmem:[%s3832 + $0x8] sm:$0xff]
      %v3835 = vld [vmem:[%s3832 + $0x10] sm:$0xff]
      %v3836 = vld [vmem:[%s3832 + $0x18] sm:$0xff]
      %v3837 = vld [vmem:[%s3832 + $0x20] sm:$0xff]
      %v3838 = vld [vmem:[%s3832 + $0x28] sm:$0xff]
      %v3839 = vld [vmem:[%s3832 + $0x30] sm:$0xff]
      %v3840 = vld [vmem:[%s3832 + $0x38] sm:$0xff]
      %v3841 = vld [vmem:[%s3832 + $0x40] sm:$0xff]
      %v3842 = vld [vmem:[%s3832 + $0x48] sm:$0xff]
      %v3843 = vld [vmem:[%s3832 + $0x50] sm:$0xff]
      %v3844 = vld [vmem:[%s3832 + $0x58] sm:$0xff]
      %v3845 = vld [vmem:[%s3832 + $0x60] sm:$0xff]
      %v3846 = vld [vmem:[%s3832 + $0x68] sm:$0xff]
      %v3847 = vld [vmem:[%s3832 + $0x70] sm:$0xff]
      %v3848 = vld [vmem:[%s3832 + $0x78] sm:$0xff]
      %v3865 = vunpack.c.l.b16 %v3833
      %v3866 = vunpack.c.h.b16 %v3833
      %v3867 = vunpack.c.l.b16 %v3834
      %v3868 = vunpack.c.h.b16 %v3834
      %v3869 = vunpack.c.l.b16 %v3835
      %v3870 = vunpack.c.h.b16 %v3835
      %v3871 = vunpack.c.l.b16 %v3836
      %v3872 = vunpack.c.h.b16 %v3836
      %v3873 = vunpack.c.l.b16 %v3837
      %v3874 = vunpack.c.h.b16 %v3837
      %v3875 = vunpack.c.l.b16 %v3838
      %v3876 = vunpack.c.h.b16 %v3838
      %v3877 = vunpack.c.l.b16 %v3839
      %v3878 = vunpack.c.h.b16 %v3839
      %v3879 = vunpack.c.l.b16 %v3840
      %v3880 = vunpack.c.h.b16 %v3840
      %v3881 = vunpack.c.l.b16 %v3841
      %v3882 = vunpack.c.h.b16 %v3841
      %v3883 = vunpack.c.l.b16 %v3842
      %v3884 = vunpack.c.h.b16 %v3842
      %v3885 = vunpack.c.l.b16 %v3843
      %v3886 = vunpack.c.h.b16 %v3843
      %v3887 = vunpack.c.l.b16 %v3844
      %v3888 = vunpack.c.h.b16 %v3844
      %v3889 = vunpack.c.l.b16 %v3845
      %v3890 = vunpack.c.h.b16 %v3845
      %v3891 = vunpack.c.l.b16 %v3846
      %v3892 = vunpack.c.h.b16 %v3846
      %v3893 = vunpack.c.l.b16 %v3847
      %v3894 = vunpack.c.h.b16 %v3847
      %v3895 = vunpack.c.l.b16 %v3848
      %v3896 = vunpack.c.h.b16 %v3848
      %v3897 = vpack.c.b16 %v3867, %v3865
      %v3898 = vpack.c.b16 %v3868, %v3866
      %v3899 = vpack.c.b16 %v3871, %v3869
      %v3900 = vpack.c.b16 %v3872, %v3870
      %v3901 = vpack.c.b16 %v3875, %v3873
      %v3902 = vpack.c.b16 %v3876, %v3874
      %v3903 = vpack.c.b16 %v3879, %v3877
      %v3904 = vpack.c.b16 %v3880, %v3878
      %v3905 = vpack.c.b16 %v3883, %v3881
      %v3906 = vpack.c.b16 %v3884, %v3882
      %v3907 = vpack.c.b16 %v3887, %v3885
      %v3908 = vpack.c.b16 %v3888, %v3886
      %v3909 = vpack.c.b16 %v3891, %v3889
      %v3910 = vpack.c.b16 %v3892, %v3890
      %v3911 = vpack.c.b16 %v3895, %v3893
      %v3912 = vpack.c.b16 %v3896, %v3894
      %3929 = vmatprep.subr.bf16.mxu0 %v3898
      %3930 = vmatpush1.bf16.msra.mxu0 %v3897
      %3931 = vmatprep.subr.bf16.mxu0 %v3900
      %3932 = vmatpush1.bf16.msra.mxu0 %v3899
      %3933 = vmatprep.subr.bf16.mxu0 %v3902
      %3934 = vmatpush1.bf16.msra.mxu0 %v3901
      %3935 = vmatprep.subr.bf16.mxu0 %v3904
      %3936 = vmatpush1.bf16.msra.mxu0 %v3903
      %3937 = vmatprep.subr.bf16.mxu0 %v3906
      %3938 = vmatpush1.bf16.msra.mxu0 %v3905
      %3939 = vmatprep.subr.bf16.mxu0 %v3908
      %3940 = vmatpush1.bf16.msra.mxu0 %v3907
      %3941 = vmatprep.subr.bf16.mxu0 %v3910
      %3942 = vmatpush1.bf16.msra.mxu0 %v3909
      %3943 = vmatprep.subr.bf16.mxu0 %v3912
      %3944 = vmatpush1.bf16.msra.mxu0 %v3911
      %3945 = vmatprep.subr.bf16.mxu0 0
      %3946 = vmatpush1.bf16.msra.mxu0 0
      %3947 = vmatprep.subr.bf16.mxu0 0
      %3948 = vmatpush1.bf16.msra.mxu0 0
      %3949 = vmatprep.subr.bf16.mxu0 0
      %3950 = vmatpush1.bf16.msra.mxu0 0
      %3951 = vmatprep.subr.bf16.mxu0 0
      %3952 = vmatpush1.bf16.msra.mxu0 0
      %3953 = vmatprep.subr.bf16.mxu0 0
      %3954 = vmatpush1.bf16.msra.mxu0 0
      %3955 = vmatprep.subr.bf16.mxu0 0
      %3956 = vmatpush1.bf16.msra.mxu0 0
      %3957 = vmatprep.subr.bf16.mxu0 0
      %3958 = vmatpush1.bf16.msra.mxu0 0
      %3959 = vmatprep.subr.bf16.mxu0 0
      %3960 = vmatpush1.bf16.msra.mxu0 0
      %3961 = vmatprep.mubr.bf16.mxu0 0
      %3962 = vmatmul.mubr.bf16.gmra.mrb[0].mxu0 %v3830
      %v3963 = vpop.f32.mrb[0].mxu0
      %v3964 = vadd.f32 0.0, %v3963
      %v3965 = vpop.f32.mrb[0].mxu0
      %v3966 = vadd.f32 0.0, %v3965
      %v3967 = vpop.f32.mrb[0].mxu0
      %v3968 = vadd.f32 0.0, %v3967
      %v3969 = vpop.f32.mrb[0].mxu0
      %v3970 = vadd.f32 0.0, %v3969
      %3971 = vmatprep.mubr.bf16.mxu0 0
      %3972 = vmatmul.mubr.bf16.gmra.mrb[0].mxu0 %v3831
      %v3973 = vpop.f32.mrb[0].mxu0
      %v3974 = vadd.f32 0.0, %v3973
      %v3975 = vpop.f32.mrb[0].mxu0
      %v3976 = vadd.f32 0.0, %v3975
      %v3977 = vpop.f32.mrb[0].mxu0
      %v3978 = vadd.f32 0.0, %v3977
      %v3979 = vpop.f32.mrb[0].mxu0
      %v3980 = vadd.f32 0.0, %v3979
      %3981 = vdwg.mxu0
      %v3982 = vadd.f32 %v3818, %v3964
      %v3983 = vadd.f32 %v3819, %v3966
      %v3984 = vadd.f32 %v3820, %v3968
      %v3985 = vadd.f32 %v3821, %v3970
      %v3986 = vadd.f32 %v3822, %v3974
      %v3987 = vadd.f32 %v3823, %v3976
      %v3988 = vadd.f32 %v3824, %v3978
      %v3989 = vadd.f32 %v3825, %v3980
      %v3990 = vld [vmem:[%s3661 + $0x1] sm:$0xff]
      %v3991 = vld [vmem:[%s3661 + $0x11] sm:$0xff]
      %v3992 = vld [vmem:[%s3661 + $0x21] sm:$0xff]
      %v3993 = vld [vmem:[%s3661 + $0x31] sm:$0xff]
      %v3994 = vpack.c.bf16 %v3991, %v3990
      %v3995 = vpack.c.bf16 %v3993, %v3992
      %s3996 = scalar_lea.vmem %s1, 2944
      %v3997 = vld [vmem:[%s3996] sm:$0xff]
      %v3998 = vld [vmem:[%s3996 + $0x8] sm:$0xff]
      %v3999 = vld [vmem:[%s3996 + $0x10] sm:$0xff]
      %v4000 = vld [vmem:[%s3996 + $0x18] sm:$0xff]
      %v4001 = vld [vmem:[%s3996 + $0x20] sm:$0xff]
      %v4002 = vld [vmem:[%s3996 + $0x28] sm:$0xff]
      %v4003 = vld [vmem:[%s3996 + $0x30] sm:$0xff]
      %v4004 = vld [vmem:[%s3996 + $0x38] sm:$0xff]
      %v4005 = vld [vmem:[%s3996 + $0x40] sm:$0xff]
      %v4006 = vld [vmem:[%s3996 + $0x48] sm:$0xff]
      %v4007 = vld [vmem:[%s3996 + $0x50] sm:$0xff]
      %v4008 = vld [vmem:[%s3996 + $0x58] sm:$0xff]
      %v4009 = vld [vmem:[%s3996 + $0x60] sm:$0xff]
      %v4010 = vld [vmem:[%s3996 + $0x68] sm:$0xff]
      %v4011 = vld [vmem:[%s3996 + $0x70] sm:$0xff]
      %v4012 = vld [vmem:[%s3996 + $0x78] sm:$0xff]
      %v4029 = vunpack.c.l.b16 %v3997
      %v4030 = vunpack.c.h.b16 %v3997
      %v4031 = vunpack.c.l.b16 %v3998
      %v4032 = vunpack.c.h.b16 %v3998
      %v4033 = vunpack.c.l.b16 %v3999
      %v4034 = vunpack.c.h.b16 %v3999
      %v4035 = vunpack.c.l.b16 %v4000
      %v4036 = vunpack.c.h.b16 %v4000
      %v4037 = vunpack.c.l.b16 %v4001
      %v4038 = vunpack.c.h.b16 %v4001
      %v4039 = vunpack.c.l.b16 %v4002
      %v4040 = vunpack.c.h.b16 %v4002
      %v4041 = vunpack.c.l.b16 %v4003
      %v4042 = vunpack.c.h.b16 %v4003
      %v4043 = vunpack.c.l.b16 %v4004
      %v4044 = vunpack.c.h.b16 %v4004
      %v4045 = vunpack.c.l.b16 %v4005
      %v4046 = vunpack.c.h.b16 %v4005
      %v4047 = vunpack.c.l.b16 %v4006
      %v4048 = vunpack.c.h.b16 %v4006
      %v4049 = vunpack.c.l.b16 %v4007
      %v4050 = vunpack.c.h.b16 %v4007
      %v4051 = vunpack.c.l.b16 %v4008
      %v4052 = vunpack.c.h.b16 %v4008
      %v4053 = vunpack.c.l.b16 %v4009
      %v4054 = vunpack.c.h.b16 %v4009
      %v4055 = vunpack.c.l.b16 %v4010
      %v4056 = vunpack.c.h.b16 %v4010
      %v4057 = vunpack.c.l.b16 %v4011
      %v4058 = vunpack.c.h.b16 %v4011
      %v4059 = vunpack.c.l.b16 %v4012
      %v4060 = vunpack.c.h.b16 %v4012
      %v4061 = vpack.c.b16 %v4031, %v4029
      %v4062 = vpack.c.b16 %v4032, %v4030
      %v4063 = vpack.c.b16 %v4035, %v4033
      %v4064 = vpack.c.b16 %v4036, %v4034
      %v4065 = vpack.c.b16 %v4039, %v4037
      %v4066 = vpack.c.b16 %v4040, %v4038
      %v4067 = vpack.c.b16 %v4043, %v4041
      %v4068 = vpack.c.b16 %v4044, %v4042
      %v4069 = vpack.c.b16 %v4047, %v4045
      %v4070 = vpack.c.b16 %v4048, %v4046
      %v4071 = vpack.c.b16 %v4051, %v4049
      %v4072 = vpack.c.b16 %v4052, %v4050
      %v4073 = vpack.c.b16 %v4055, %v4053
      %v4074 = vpack.c.b16 %v4056, %v4054
      %v4075 = vpack.c.b16 %v4059, %v4057
      %v4076 = vpack.c.b16 %v4060, %v4058
      %4093 = vmatprep.subr.bf16.mxu0 %v4062
      %4094 = vmatpush1.bf16.msra.mxu0 %v4061
      %4095 = vmatprep.subr.bf16.mxu0 %v4064
      %4096 = vmatpush1.bf16.msra.mxu0 %v4063
      %4097 = vmatprep.subr.bf16.mxu0 %v4066
      %4098 = vmatpush1.bf16.msra.mxu0 %v4065
      %4099 = vmatprep.subr.bf16.mxu0 %v4068
      %4100 = vmatpush1.bf16.msra.mxu0 %v4067
      %4101 = vmatprep.subr.bf16.mxu0 %v4070
      %4102 = vmatpush1.bf16.msra.mxu0 %v4069
      %4103 = vmatprep.subr.bf16.mxu0 %v4072
      %4104 = vmatpush1.bf16.msra.mxu0 %v4071
      %4105 = vmatprep.subr.bf16.mxu0 %v4074
      %4106 = vmatpush1.bf16.msra.mxu0 %v4073
      %4107 = vmatprep.subr.bf16.mxu0 %v4076
      %4108 = vmatpush1.bf16.msra.mxu0 %v4075
      %4109 = vmatprep.subr.bf16.mxu0 0
      %4110 = vmatpush1.bf16.msra.mxu0 0
      %4111 = vmatprep.subr.bf16.mxu0 0
      %4112 = vmatpush1.bf16.msra.mxu0 0
      %4113 = vmatprep.subr.bf16.mxu0 0
      %4114 = vmatpush1.bf16.msra.mxu0 0
      %4115 = vmatprep.subr.bf16.mxu0 0
      %4116 = vmatpush1.bf16.msra.mxu0 0
      %4117 = vmatprep.subr.bf16.mxu0 0
      %4118 = vmatpush1.bf16.msra.mxu0 0
      %4119 = vmatprep.subr.bf16.mxu0 0
      %4120 = vmatpush1.bf16.msra.mxu0 0
      %4121 = vmatprep.subr.bf16.mxu0 0
      %4122 = vmatpush1.bf16.msra.mxu0 0
      %4123 = vmatprep.subr.bf16.mxu0 0
      %4124 = vmatpush1.bf16.msra.mxu0 0
      %4125 = vmatprep.mubr.bf16.mxu0 0
      %4126 = vmatmul.mubr.bf16.gmra.mrb[0].mxu0 %v3994
      %v4127 = vpop.f32.mrb[0].mxu0
      %v4128 = vadd.f32 0.0, %v4127
      %v4129 = vpop.f32.mrb[0].mxu0
      %v4130 = vadd.f32 0.0, %v4129
      %v4131 = vpop.f32.mrb[0].mxu0
      %v4132 = vadd.f32 0.0, %v4131
      %v4133 = vpop.f32.mrb[0].mxu0
      %v4134 = vadd.f32 0.0, %v4133
      %4135 = vmatprep.mubr.bf16.mxu0 0
      %4136 = vmatmul.mubr.bf16.gmra.mrb[0].mxu0 %v3995
      %v4137 = vpop.f32.mrb[0].mxu0
      %v4138 = vadd.f32 0.0, %v4137
      %v4139 = vpop.f32.mrb[0].mxu0
      %v4140 = vadd.f32 0.0, %v4139
      %v4141 = vpop.f32.mrb[0].mxu0
      %v4142 = vadd.f32 0.0, %v4141
      %v4143 = vpop.f32.mrb[0].mxu0
      %v4144 = vadd.f32 0.0, %v4143
      %4145 = vdwg.mxu0
      %v4146 = vadd.f32 %v3982, %v4128
      %v4147 = vadd.f32 %v3983, %v4130
      %v4148 = vadd.f32 %v3984, %v4132
      %v4149 = vadd.f32 %v3985, %v4134
      %v4150 = vadd.f32 %v3986, %v4138
      %v4151 = vadd.f32 %v3987, %v4140
      %v4152 = vadd.f32 %v3988, %v4142
      %v4153 = vadd.f32 %v3989, %v4144
      %v4154 = vld [vmem:[%s3496 + $0x2] sm:$0xff]
      %v4155 = vld [vmem:[%s3496 + $0x12] sm:$0xff]
      %v4156 = vld [vmem:[%s3496 + $0x22] sm:$0xff]
      %v4157 = vld [vmem:[%s3496 + $0x32] sm:$0xff]
      %v4158 = vpack.c.bf16 %v4155, %v4154
      %v4159 = vpack.c.bf16 %v4157, %v4156
      %s4160 = scalar_lea.vmem %s1, 3072
      %v4161 = vld [vmem:[%s4160] sm:$0xff]
      %v4162 = vld [vmem:[%s4160 + $0x8] sm:$0xff]
      %v4163 = vld [vmem:[%s4160 + $0x10] sm:$0xff]
      %v4164 = vld [vmem:[%s4160 + $0x18] sm:$0xff]
      %v4165 = vld [vmem:[%s4160 + $0x20] sm:$0xff]
      %v4166 = vld [vmem:[%s4160 + $0x28] sm:$0xff]
      %v4167 = vld [vmem:[%s4160 + $0x30] sm:$0xff]
      %v4168 = vld [vmem:[%s4160 + $0x38] sm:$0xff]
      %v4169 = vld [vmem:[%s4160 + $0x40] sm:$0xff]
      %v4170 = vld [vmem:[%s4160 + $0x48] sm:$0xff]
      %v4171 = vld [vmem:[%s4160 + $0x50] sm:$0xff]
      %v4172 = vld [vmem:[%s4160 + $0x58] sm:$0xff]
      %v4173 = vld [vmem:[%s4160 + $0x60] sm:$0xff]
      %v4174 = vld [vmem:[%s4160 + $0x68] sm:$0xff]
      %v4175 = vld [vmem:[%s4160 + $0x70] sm:$0xff]
      %v4176 = vld [vmem:[%s4160 + $0x78] sm:$0xff]
      %v4193 = vunpack.c.l.b16 %v4161
      %v4194 = vunpack.c.h.b16 %v4161
      %v4195 = vunpack.c.l.b16 %v4162
      %v4196 = vunpack.c.h.b16 %v4162
      %v4197 = vunpack.c.l.b16 %v4163
      %v4198 = vunpack.c.h.b16 %v4163
      %v4199 = vunpack.c.l.b16 %v4164
      %v4200 = vunpack.c.h.b16 %v4164
      %v4201 = vunpack.c.l.b16 %v4165
      %v4202 = vunpack.c.h.b16 %v4165
      %v4203 = vunpack.c.l.b16 %v4166
      %v4204 = vunpack.c.h.b16 %v4166
      %v4205 = vunpack.c.l.b16 %v4167
      %v4206 = vunpack.c.h.b16 %v4167
      %v4207 = vunpack.c.l.b16 %v4168
      %v4208 = vunpack.c.h.b16 %v4168
      %v4209 = vunpack.c.l.b16 %v4169
      %v4210 = vunpack.c.h.b16 %v4169
      %v4211 = vunpack.c.l.b16 %v4170
      %v4212 = vunpack.c.h.b16 %v4170
      %v4213 = vunpack.c.l.b16 %v4171
      %v4214 = vunpack.c.h.b16 %v4171
      %v4215 = vunpack.c.l.b16 %v4172
      %v4216 = vunpack.c.h.b16 %v4172
      %v4217 = vunpack.c.l.b16 %v4173
      %v4218 = vunpack.c.h.b16 %v4173
      %v4219 = vunpack.c.l.b16 %v4174
      %v4220 = vunpack.c.h.b16 %v4174
      %v4221 = vunpack.c.l.b16 %v4175
      %v4222 = vunpack.c.h.b16 %v4175
      %v4223 = vunpack.c.l.b16 %v4176
      %v4224 = vunpack.c.h.b16 %v4176
      %v4225 = vpack.c.b16 %v4195, %v4193
      %v4226 = vpack.c.b16 %v4196, %v4194
      %v4227 = vpack.c.b16 %v4199, %v4197
      %v4228 = vpack.c.b16 %v4200, %v4198
      %v4229 = vpack.c.b16 %v4203, %v4201
      %v4230 = vpack.c.b16 %v4204, %v4202
      %v4231 = vpack.c.b16 %v4207, %v4205
      %v4232 = vpack.c.b16 %v4208, %v4206
      %v4233 = vpack.c.b16 %v4211, %v4209
      %v4234 = vpack.c.b16 %v4212, %v4210
      %v4235 = vpack.c.b16 %v4215, %v4213
      %v4236 = vpack.c.b16 %v4216, %v4214
      %v4237 = vpack.c.b16 %v4219, %v4217
      %v4238 = vpack.c.b16 %v4220, %v4218
      %v4239 = vpack.c.b16 %v4223, %v4221
      %v4240 = vpack.c.b16 %v4224, %v4222
      %4257 = vmatprep.subr.bf16.mxu0 %v4226
      %4258 = vmatpush1.bf16.msra.mxu0 %v4225
      %4259 = vmatprep.subr.bf16.mxu0 %v4228
      %4260 = vmatpush1.bf16.msra.mxu0 %v4227
      %4261 = vmatprep.subr.bf16.mxu0 %v4230
      %4262 = vmatpush1.bf16.msra.mxu0 %v4229
      %4263 = vmatprep.subr.bf16.mxu0 %v4232
      %4264 = vmatpush1.bf16.msra.mxu0 %v4231
      %4265 = vmatprep.subr.bf16.mxu0 %v4234
      %4266 = vmatpush1.bf16.msra.mxu0 %v4233
      %4267 = vmatprep.subr.bf16.mxu0 %v4236
      %4268 = vmatpush1.bf16.msra.mxu0 %v4235
      %4269 = vmatprep.subr.bf16.mxu0 %v4238
      %4270 = vmatpush1.bf16.msra.mxu0 %v4237
      %4271 = vmatprep.subr.bf16.mxu0 %v4240
      %4272 = vmatpush1.bf16.msra.mxu0 %v4239
      %4273 = vmatprep.subr.bf16.mxu0 0
      %4274 = vmatpush1.bf16.msra.mxu0 0
      %4275 = vmatprep.subr.bf16.mxu0 0
      %4276 = vmatpush1.bf16.msra.mxu0 0
      %4277 = vmatprep.subr.bf16.mxu0 0
      %4278 = vmatpush1.bf16.msra.mxu0 0
      %4279 = vmatprep.subr.bf16.mxu0 0
      %4280 = vmatpush1.bf16.msra.mxu0 0
      %4281 = vmatprep.subr.bf16.mxu0 0
      %4282 = vmatpush1.bf16.msra.mxu0 0
      %4283 = vmatprep.subr.bf16.mxu0 0
      %4284 = vmatpush1.bf16.msra.mxu0 0
      %4285 = vmatprep.subr.bf16.mxu0 0
      %4286 = vmatpush1.bf16.msra.mxu0 0
      %4287 = vmatprep.subr.bf16.mxu0 0
      %4288 = vmatpush1.bf16.msra.mxu0 0
      %4289 = vmatprep.mubr.bf16.mxu0 0
      %4290 = vmatmul.mubr.bf16.gmra.mrb[0].mxu0 %v4158
      %v4291 = vpop.f32.mrb[0].mxu0
      %v4292 = vadd.f32 0.0, %v4291
      %v4293 = vpop.f32.mrb[0].mxu0
      %v4294 = vadd.f32 0.0, %v4293
      %v4295 = vpop.f32.mrb[0].mxu0
      %v4296 = vadd.f32 0.0, %v4295
      %v4297 = vpop.f32.mrb[0].mxu0
      %v4298 = vadd.f32 0.0, %v4297
      %4299 = vmatprep.mubr.bf16.mxu0 0
      %4300 = vmatmul.mubr.bf16.gmra.mrb[0].mxu0 %v4159
      %v4301 = vpop.f32.mrb[0].mxu0
      %v4302 = vadd.f32 0.0, %v4301
      %v4303 = vpop.f32.mrb[0].mxu0
      %v4304 = vadd.f32 0.0, %v4303
      %v4305 = vpop.f32.mrb[0].mxu0
      %v4306 = vadd.f32 0.0, %v4305
      %v4307 = vpop.f32.mrb[0].mxu0
      %v4308 = vadd.f32 0.0, %v4307
      %4309 = vdwg.mxu0
      %v4310 = vadd.f32 %v4146, %v4292
      %v4311 = vadd.f32 %v4147, %v4294
      %v4312 = vadd.f32 %v4148, %v4296
      %v4313 = vadd.f32 %v4149, %v4298
      %v4314 = vadd.f32 %v4150, %v4302
      %v4315 = vadd.f32 %v4151, %v4304
      %v4316 = vadd.f32 %v4152, %v4306
      %v4317 = vadd.f32 %v4153, %v4308
      %v4318 = vld [vmem:[%s2] sm:$0x3]
      %v4320 = vlaneseq
      %v4321 = vshrl.u32 %v4320, 7
      %v4322 = vsub.s32 0, %v4321
      %v4323 = vrot.slane %v4318, %v4322
      %v4324 = vlaneseq
      %v4325 = vshrl.u32 %v4324, 7
      %v4326 = vsub.s32 1, %v4325
      %v4327 = vrot.slane %v4318, %v4326
      %v4330 = vadd.f32 %v4310, %v4323
      %v4331 = vadd.f32 %v4311, %v4327
      %v4332 = vadd.f32 %v4312, %v4323
      %v4333 = vadd.f32 %v4313, %v4327
      %v4334 = vadd.f32 %v4314, %v4323
      %v4335 = vadd.f32 %v4315, %v4327
      %v4336 = vadd.f32 %v4316, %v4323
      %v4337 = vadd.f32 %v4317, %v4327
      %v4338 = vld [vmem:[%s3] sm:$0xff]
      %v4339 = vld [vmem:[%s3 + $0x8] sm:$0xff]
      %v4340 = vld [vmem:[%s3 + $0x10] sm:$0xff]
      %v4341 = vld [vmem:[%s3 + $0x18] sm:$0xff]
      %v4342 = vld [vmem:[%s3 + $0x20] sm:$0xff]
      %v4343 = vld [vmem:[%s3 + $0x28] sm:$0xff]
      %v4344 = vld [vmem:[%s3 + $0x30] sm:$0xff]
      %v4345 = vld [vmem:[%s3 + $0x38] sm:$0xff]
      %v4346 = vmul.f32 %v4330, %v4338
      %v4347 = vmul.f32 %v4331, %v4339
      %v4348 = vmul.f32 %v4332, %v4340
      %v4349 = vmul.f32 %v4333, %v4341
      %v4350 = vmul.f32 %v4334, %v4342
      %v4351 = vmul.f32 %v4335, %v4343
      %v4352 = vmul.f32 %v4336, %v4344
      %v4353 = vmul.f32 %v4337, %v4345
      %v4354 = vadd.f32 %v4346, %v4348
      %v4355 = vadd.f32 %v4354, %v4350
      %v4356 = vadd.f32 %v4355, %v4352
      %v4357 = vrot.slane %v4356, 4
      %v4358 = vadd.f32 %v4356, %v4357
      %v4359 = vrot.slane %v4358, 2
      %v4360 = vadd.f32 %v4358, %v4359
      %v4361 = vrot.slane %v4360, 1
      %v4362 = vadd.f32 %v4360, %v4361
      %v4363 = vadd.f32 %v4347, %v4349
      %v4364 = vadd.f32 %v4363, %v4351
      %v4365 = vadd.f32 %v4364, %v4353
      %v4366 = vrot.slane %v4365, 4
      %v4367 = vadd.f32 %v4365, %v4366
      %v4368 = vrot.slane %v4367, 2
      %v4369 = vadd.f32 %v4367, %v4368
      %v4370 = vrot.slane %v4369, 1
      %v4371 = vadd.f32 %v4369, %v4370
      %v4372 = vadd.f32 %v4362, %v4371
      %4373 = vadd.xlane.f32.xlu0 %v4372
      %v4374 = vpop.xlane.xlu0 %4373
      %v4375 = vld [vmem:[#allocation2] sm:$0x1]
      %v4376 = vadd.f32 %v4374, %v4375
      %vm4377 = vcmask 0
      %4378 = vst.msk [vmem:[%s224] sm:$0x1] %vm4377, %v4376
      %p4379 = scmp.lt.s32.totalorder %s18, 1
      %s4380 = scalar_select %p4379, %s18, 1
      %s4381 = smul.addr %s4380, 8
      %s4382 = scalar_lea.vmem %s5, %s4381
      // Predicated region
      $region41: #{discriminator_forward.5} parent=39 // pred_check
        %p4383 = pneg %p146
      $region42: #{discriminator_forward.5} parent=39 // pred_check_branch
        %4385 = sbr.rel (%p4383) target = $region44
      $region43: #{discriminator_forward.5} parent=39 // pred_region
        _
      $region44: #{discriminator_forward.5} parent=39 // pred_fallthru
        _
    $region40: #{discriminator_forward.5} parent=5 // pred_fallthru
      _
    %p4386 = scmp.le.s32.totalorder 2, %s13
    // Predicated region
    $region45: #{discriminator_forward.5} parent=5 // pred_check
      %p4387 = pneg %p4386
    $region46: #{discriminator_forward.5} parent=5 // pred_check_branch
      %4389 = sbr.rel (%p4387) target = $region48
    $region47: #{discriminator_forward.5} parent=5 // pred_region
      %s4390 = ssub.s32 %s13, 2
      // Predicated region
      $region49: #{discriminator_forward.5} parent=47 // pred_check
        %p4391 = pneg %p152
      $region50: #{discriminator_forward.5} parent=47 // pred_check_branch
        %4393 = sbr.rel (%p4391) target = $region52
      $region51: #{discriminator_forward.5} parent=47 // pred_region
        %p4394 = scmp.lt.s32.totalorder %s19, 1
        %s4395 = scalar_select %p4394, %s19, 1
        %s4396 = smul.addr %s4395, 8
        %s4397 = scalar_lea.vmem %s5, %s4396
      $region52: #{discriminator_forward.5} parent=47 // pred_fallthru
        _
    $region48: #{discriminator_forward.5} parent=5 // pred_fallthru
      _
  $region6: #{discriminator_forward.5} parent=0 // loop_footer
    %s17 = sadd.s32 1, %s13
  $region7: #{discriminator_forward.5} parent=0 // loop_footer_branch
    %12 = sbr.rel target = $region3
  $region8: #{discriminator_forward.5} parent=0 // loop_exit
    _

</llo_original>
